<compile_context>
chip_gen: v6e
topology: v6e:2x2x1
jax: 0.10.0
libtpu: 0.0.40
codegen_flags: <defaults>
</compile_context>

<pallas_src>
import functools

import jax
import jax.numpy as jnp
from jax import lax
from jax.experimental import pallas as pl
from jax.experimental.pallas import tpu as pltpu

_LANES = 128


def _value_mlp_kernel(w1_ref, b1_ref, w2_ref, w3_ref, x_ref, o_ref):
    """Fused 1->H1->H2->1 MLP.

    w1_ref, b1_ref : (HP, 1)  f32  layer-1 weight/bias (padded; b1[HP-1] = 1)
    w2_ref         : (HP, HP) f32  transposed layer-2 weight, b2 folded in
    w3_ref         : (8, HP)  f32  layer-3 weight (row 0 real, b3 folded in)
    x_ref, o_ref   : (block_rows, BE) f32 lane-dense input / output tiles
    """
    hp = w2_ref.shape[0]
    block_rows, be = x_ref.shape

    # Hoisted, loop-invariant broadcasts of the tiny layer-1 params.
    w1b = jnp.broadcast_to(w1_ref[...], (hp, be))
    b1b = jnp.broadcast_to(b1_ref[...], (hp, be))
    w2a = w2_ref[...]
    w3a = w3_ref[...]

    def row(r, carry):
        x = x_ref[pl.ds(r, 1), :]                                 # (1, BE)
        # Layer 1 (VPU): hidden on sublanes, N on lanes (fully lane-dense).
        # Row hp-1 becomes the constant-1 bias channel (w1=0, b1=1).
        h1 = jnp.maximum(x * w1b + b1b, 0.0)                      # (HP, BE)
        # Layer 2 (+ b2 via the ones channel) on the MXU.
        z = jnp.dot(w2a, h1, precision=lax.Precision.HIGHEST,
                    preferred_element_type=jnp.float32)           # (HP, BE)
        h2 = jnp.maximum(z, 0.0)                                  # ones channel stays 1
        # Layer 3 (+ b3) on the MXU; only row 0 of w3a is non-zero.
        y = jnp.dot(w3a, h2, precision=lax.Precision.HIGHEST,
                    preferred_element_type=jnp.float32)           # (8, BE)
        o_ref[pl.ds(r, 1), :] = y[0:1, :]
        return carry

    lax.fori_loop(0, block_rows, row, 0, unroll=False)


def _augment_params(params):
    """Pad the hidden dims to a sublane-aligned width (30 -> 32) and fold every
    bias into the matmuls through a constant-1 augmentation channel."""
    w1, b1, w2, b2, w3, b3 = params
    h1_n, h2_n = w2.shape
    hp = ((max(h1_n, h2_n) + 1 + 7) // 8) * 8   # 30 -> 32
    aug = hp - 1                                # index of the constant-1 channel

    w1c = jnp.zeros((hp, 1), jnp.float32).at[:h1_n, 0].set(w1)
    b1c = jnp.zeros((hp, 1), jnp.float32).at[:h1_n, 0].set(b1)
    b1c = b1c.at[aug, 0].set(1.0)               # H1[aug] = ReLU(0*x + 1) = 1

    w2a = jnp.zeros((hp, hp), jnp.float32)
    w2a = w2a.at[:h2_n, :h1_n].set(w2.T)        # Z = w2a @ H1
    w2a = w2a.at[:h2_n, aug].set(b2)            # + b2 through the ones channel
    w2a = w2a.at[aug, aug].set(1.0)             # keep the ones channel alive

    w3a = jnp.zeros((8, hp), jnp.float32)
    w3a = w3a.at[0, :h2_n].set(w3)
    w3a = w3a.at[0, aug].set(b3[0])             # + b3
    return w1c, b1c, w2a, w3a


@functools.partial(jax.jit, static_argnames=("block_elems", "block_rows"))
def value_layer_forward(x, params, *, block_elems=2048, block_rows=16):
    """x: (N,) -> (N,) float32, matching ValueLayer.forward (ReLU activation)."""
    assert block_elems % _LANES == 0
    assert block_rows % 8 == 0
    w1c, b1c, w2a, w3a = _augment_params(params)
    hp = w2a.shape[0]
    h1_n, h2_n = params[2].shape

    n = x.shape[0]
    n_rows = max(1, pl.cdiv(n, block_elems))
    br = min(block_rows, n_rows)                 # grid==1 whenever br != block_rows
    n_rows_pad = pl.cdiv(n_rows, br) * br
    n_pad = n_rows_pad * block_elems

    xp = jnp.pad(x.astype(jnp.float32), (0, n_pad - n)).reshape(n_rows_pad, block_elems)

    def const2d(shape):
        return pl.BlockSpec(shape, lambda i: (0, 0))

    tile = pl.BlockSpec((br, block_elems), lambda i: (i, 0))

    cost = pl.CostEstimate(
        flops=2 * n_pad * (h1_n + h1_n * h2_n + h2_n),
        transcendentals=0,
        bytes_accessed=8 * n_pad + 4 * (2 * hp + hp * hp + 8 * hp),
    )

    out = pl.pallas_call(
        _value_mlp_kernel,
        out_shape=jax.ShapeDtypeStruct((n_rows_pad, block_elems), jnp.float32),
        grid=(n_rows_pad // br,),
        in_specs=[const2d((hp, 1)), const2d((hp, 1)), const2d((hp, hp)),
                  const2d((8, hp)), tile],
        out_specs=tile,
        compiler_params=pltpu.CompilerParams(dimension_semantics=("parallel",)),
        cost_estimate=cost,
    )(w1c, b1c, w2a, w3a, xp)

    return out.reshape(n_pad)[:n]


def init_params(key, mlp_layers=(1, 30, 30, 1)):
    """Deterministic synthetic weights in x @ W layout, squeezed at the 1-wide
    ends: w1 (H1,), b1 (H1,), w2 (H1, H2), b2 (H2,), w3 (H2,), b3 (1,)."""
    # TODO(synk): the PyTorch module trains these weights (init_kernel Adam
    # loop fitting the trilinear kernel) or loads trilinear_init.pth; here we
    # only build deterministic random weights of the correct shapes.
    assert mlp_layers[0] == 1 and mlp_layers[-1] == 1
    ws, bs = [], []
    in_c = mlp_layers[0]
    for out_c in mlp_layers[1:]:
        key, kw, kb = jax.random.split(key, 3)
        bound = 1.0 / float(in_c) ** 0.5
        ws.append(jax.random.uniform(kw, (in_c, out_c), jnp.float32, -bound, bound))
        bs.append(jax.random.uniform(kb, (out_c,), jnp.float32, -bound, bound))
        in_c = out_c
    w1, w2, w3 = ws
    b1, b2, b3 = bs
    return (w1.reshape(-1), b1, w2, b2, w3.reshape(-1), b3)


def value_layer_ref(x, params):
    """Pure-JAX reference of ValueLayer.forward (ReLU activation)."""
    w1, b1, w2, b2, w3, b3 = params
    h = x.astype(jnp.float32)[:, None]                            # (N, 1)
    h = jnp.maximum(h * w1[None, :] + b1[None, :], 0.0)           # (N, H1)
    h = jnp.maximum(jnp.dot(h, w2, precision=lax.Precision.HIGHEST)
                    + b2[None, :], 0.0)                           # (N, H2)
    return jnp.dot(h, w3, precision=lax.Precision.HIGHEST) + b3   # (N,)


if __name__ == "__main__":
    key = jax.random.PRNGKey(0)
    kx, kp = jax.random.split(key)

    # ValueLayer consumes normalized timestamps in [-1, 1]; use N=2000 like
    # the module's init loop.
    N = 2000
    x = jax.random.uniform(kx, (N,), jnp.float32, -1.0, 1.0)
    params = init_params(kp, mlp_layers=(1, 30, 30, 1))

    out = jax.block_until_ready(value_layer_forward(x, params))
    ref = value_layer_ref(x, params)

    assert out.shape == (N,), out.shape
    assert jnp.allclose(out, ref, atol=1e-4, rtol=1e-4), "mismatch vs reference"

    print("KERNEL_OK")
</pallas_src>

<mosaic_0001>
module attributes {stable_mosaic.version = 11 : i64} {
  func.func @_value_mlp_kernel(%arg0: i32, %arg1: memref<32x1xf32, #tpu.memory_space<vmem>>, %arg2: memref<32x1xf32, #tpu.memory_space<vmem>>, %arg3: memref<32x32xf32, #tpu.memory_space<vmem>>, %arg4: memref<8x32xf32, #tpu.memory_space<vmem>>, %arg5: memref<1x2048xf32, #tpu.memory_space<vmem>>, %arg6: memref<1x2048xf32, #tpu.memory_space<vmem>>) attributes {dimension_semantics = [#tpu.dimension_semantics<parallel>], iteration_bounds = array<i64: 1>, scalar_prefetch = 0 : i64, scratch_operands = 0 : i64, tpu.core_type = #tpu.core_type<tc>, window_params = [{pipeline_mode = #tpu.pipeline_mode<synchronous>, transform_indices = @transform_0, window_bounds = array<i64: 32, 1>}, {pipeline_mode = #tpu.pipeline_mode<synchronous>, transform_indices = @transform_1, window_bounds = array<i64: 32, 1>}, {pipeline_mode = #tpu.pipeline_mode<synchronous>, transform_indices = @transform_2, window_bounds = array<i64: 32, 32>}, {pipeline_mode = #tpu.pipeline_mode<synchronous>, transform_indices = @transform_3, window_bounds = array<i64: 8, 32>}, {transform_indices = @transform_4, window_bounds = array<i64: 1, 2048>}, {transform_indices = @transform_5, window_bounds = array<i64: 1, 2048>}]} {
    %c0 = arith.constant 0 : index
    %c0_0 = arith.constant 0 : index
    %0 = vector.load %arg1[%c0, %c0_0] : memref<32x1xf32, #tpu.memory_space<vmem>>, vector<32x1xf32>
    %1 = vector.shape_cast %0 : vector<32x1xf32> to vector<32x1xf32>
    %2 = vector.broadcast %1 : vector<32x1xf32> to vector<32x2048xf32>
    %c0_1 = arith.constant 0 : index
    %c0_2 = arith.constant 0 : index
    %3 = vector.load %arg2[%c0_1, %c0_2] : memref<32x1xf32, #tpu.memory_space<vmem>>, vector<32x1xf32>
    %4 = vector.shape_cast %3 : vector<32x1xf32> to vector<32x1xf32>
    %5 = vector.broadcast %4 : vector<32x1xf32> to vector<32x2048xf32>
    %c0_3 = arith.constant 0 : index
    %c0_4 = arith.constant 0 : index
    %6 = vector.load %arg3[%c0_3, %c0_4] : memref<32x32xf32, #tpu.memory_space<vmem>>, vector<32x32xf32>
    %c0_5 = arith.constant 0 : index
    %c0_6 = arith.constant 0 : index
    %7 = vector.load %arg4[%c0_5, %c0_6] : memref<8x32xf32, #tpu.memory_space<vmem>>, vector<8x32xf32>
    %c0_i32 = arith.constant 0 : i32
    %8 = arith.index_cast %c0_i32 : i32 to index
    %c0_7 = arith.constant 0 : index
    %9 = vector.load %arg5[%8, %c0_7] : memref<1x2048xf32, #tpu.memory_space<vmem>>, vector<1x2048xf32>
    %10 = vector.broadcast %9 : vector<1x2048xf32> to vector<32x2048xf32>
    %11 = arith.mulf %10, %2 : vector<32x2048xf32>
    %12 = arith.addf %11, %5 : vector<32x2048xf32>
    %cst = arith.constant 0.000000e+00 : f32
    %13 = vector.broadcast %cst : f32 to vector<32x2048xf32>
    %14 = arith.maximumf %12, %13 : vector<32x2048xf32>
    %cst_8 = arith.constant dense<0.000000e+00> : vector<32x2048xf32>
    %15 = tpu.matmul %6, %14, %cst_8 {dimension_numbers = #tpu.dot_dimension_numbers<[1], [0], [0], [1], [0, 0, 1, 1], [], []>, precision = #tpu.contract_precision<fp32>} : vector<32x32xf32>, vector<32x2048xf32>, vector<32x2048xf32> -> vector<32x2048xf32>
    %cst_9 = arith.constant 0.000000e+00 : f32
    %16 = vector.broadcast %cst_9 : f32 to vector<32x2048xf32>
    %17 = arith.maximumf %15, %16 : vector<32x2048xf32>
    %cst_10 = arith.constant dense<0.000000e+00> : vector<8x2048xf32>
    %18 = tpu.matmul %7, %17, %cst_10 {dimension_numbers = #tpu.dot_dimension_numbers<[1], [0], [0], [1], [0, 0, 1, 1], [], []>, precision = #tpu.contract_precision<fp32>} : vector<8x32xf32>, vector<32x2048xf32>, vector<8x2048xf32> -> vector<8x2048xf32>
    %19 = vector.extract_strided_slice %18 {offsets = [0, 0], sizes = [1, 2048], strides = [1, 1]} : vector<8x2048xf32> to vector<1x2048xf32>
    %20 = arith.index_cast %c0_i32 : i32 to index
    %c0_11 = arith.constant 0 : index
    %21 = vector.load %arg6[%20, %c0_11] : memref<1x2048xf32, #tpu.memory_space<vmem>>, vector<1x2048xf32>
    tpu.vector_store %arg6[%20, %c0_11], %19 {strides = array<i32>} : memref<1x2048xf32, #tpu.memory_space<vmem>>, vector<1x2048xf32>,
    %c1_i32 = arith.constant 1 : i32
    return
  }
  func.func @transform_0(%arg0: i32) -> (i32, i32) {
    %c0_i32 = arith.constant 0 : i32
    %c0_i32_0 = arith.constant 0 : i32
    %c0_i32_1 = arith.constant 0 : i32
    return %c0_i32, %c0_i32_0 : i32, i32
  }
  func.func @transform_1(%arg0: i32) -> (i32, i32) {
    %c0_i32 = arith.constant 0 : i32
    %c0_i32_0 = arith.constant 0 : i32
    %c0_i32_1 = arith.constant 0 : i32
    return %c0_i32, %c0_i32_0 : i32, i32
  }
  func.func @transform_2(%arg0: i32) -> (i32, i32) {
    %c0_i32 = arith.constant 0 : i32
    %c0_i32_0 = arith.constant 0 : i32
    %c0_i32_1 = arith.constant 0 : i32
    return %c0_i32, %c0_i32_0 : i32, i32
  }
  func.func @transform_3(%arg0: i32) -> (i32, i32) {
    %c0_i32 = arith.constant 0 : i32
    %c0_i32_0 = arith.constant 0 : i32
    %c0_i32_1 = arith.constant 0 : i32
    return %c0_i32, %c0_i32_0 : i32, i32
  }
  func.func @transform_4(%arg0: i32) -> (i32, i32) {
    %c0_i32 = arith.constant 0 : i32
    %c0_i32_0 = arith.constant 0 : i32
    return %arg0, %c0_i32 : i32, i32
  }
  func.func @transform_5(%arg0: i32) -> (i32, i32) {
    %c0_i32 = arith.constant 0 : i32
    %c0_i32_0 = arith.constant 0 : i32
    return %arg0, %c0_i32 : i32, i32
  }
}

</mosaic_0001>

<llo_original>
// kernel: value_layer_forward.1
$region0: #{value_layer_forward.1}
  #allocation0 [shape = 'u32[]', space=smem, size = 0x4, offset = 0x4, fixed_abs, tag = 'smem constant byte address 0x4 - core index']
  #allocation1 [shape = 'u32[144,128]{1,0:T(1,128)}', space=vmem, size = 0x12000, scoped, tag = 'internal scratch']
  %s0 = inlined_call_operand.vmem [shape: f32[32,1], index: 0, kind: input, shape index: {}]
  %s1 = inlined_call_operand.vmem [shape: f32[32,1], index: 1, kind: input, shape index: {}]
  %s2 = inlined_call_operand.vmem [shape: f32[32,32], index: 2, kind: input, shape index: {}]
  %s3 = inlined_call_operand.vmem [shape: f32[8,32], index: 3, kind: input, shape index: {}]
  %s4 = inlined_call_operand.vmem [shape: f32[1,2048], index: 4, kind: input, shape index: {}]
  %s5 = inlined_call_operand.hbm [shape: f32[1,2048], index: 5, kind: output, shape index: {}]
  %s6 = sld [smem:[#allocation0]]
  $region30: #{value_layer_forward.1} parent=0
    _
  %s8 = ssub.s32 1, %s6
  %s9 = scalar_select 0, %s8, %s6
  $region1: #{value_layer_forward.1} parent=0
    #allocation2 [shape = 'u8[8192]{0}', space=vmem, size = 0x2000, scoped, tag = 'output window, operand 0, single buffered']
    #allocation3 [shape = 's32[1]{0}', space=sflag, size = 0x4, scoped, tag = 'scoped memory for value_layer_forward.1']
    %10 = vsyncpa [#allocation3], 0
    // Predicated region
    $region2: #{value_layer_forward.1} parent=1 // pred_check
      _
    $region3: #{value_layer_forward.1} parent=1 // pred_check_branch
      %12 = sbr.rel (0) target = $region5
    $region4: #{value_layer_forward.1} parent=1 // pred_region
      _
    $region5: #{value_layer_forward.1} parent=1 // pred_fallthru
      _
    // Predicated region
    $region6: #{value_layer_forward.1} parent=1 // pred_check
      _
    $region7: #{value_layer_forward.1} parent=1 // pred_check_branch
      %14 = sbr.rel (0) target = $region9
    $region8: #{value_layer_forward.1} parent=1 // pred_region
      _
    $region9: #{value_layer_forward.1} parent=1 // pred_fallthru
      _
    // Predicated region
    $region10: #{value_layer_forward.1} parent=1 // pred_check
      _
    $region11: #{value_layer_forward.1} parent=1 // pred_check_branch
      %16 = sbr.rel (0) target = $region13
    $region12: #{value_layer_forward.1} parent=1 // pred_region
      _
    $region13: #{value_layer_forward.1} parent=1 // pred_fallthru
      _
    // Predicated region
    $region14: #{value_layer_forward.1} parent=1 // pred_check
      _
    $region15: #{value_layer_forward.1} parent=1 // pred_check_branch
      %18 = sbr.rel (0) target = $region17
    $region16: #{value_layer_forward.1} parent=1 // pred_region
      _
    $region17: #{value_layer_forward.1} parent=1 // pred_fallthru
      _
    // Predicated region
    $region18: #{value_layer_forward.1} parent=1 // pred_check
      _
    $region19: #{value_layer_forward.1} parent=1 // pred_check_branch
      %20 = sbr.rel (0) target = $region21
    $region20: #{value_layer_forward.1} parent=1 // pred_region
      _
    $region21: #{value_layer_forward.1} parent=1 // pred_fallthru
      _
    %v21 = vld [vmem:[%s0] sm:$0xff]
    %v22 = vld [vmem:[%s0 + $0x8] sm:$0xff]
    %v23 = vld [vmem:[%s0 + $0x10] sm:$0xff]
    %v24 = vld [vmem:[%s0 + $0x18] sm:$0xff]
    %26 = vset.pattern.permute.xlu0 0
    %27 = vperm.xlu0 %26, %v21
    %v28 = vpop.permute.xlu0 %27
    %31 = vset.pattern.permute.xlu0 0
    %32 = vperm.xlu0 %31, %v22
    %v33 = vpop.permute.xlu0 %32
    %36 = vset.pattern.permute.xlu0 0
    %37 = vperm.xlu0 %36, %v23
    %v38 = vpop.permute.xlu0 %37
    %41 = vset.pattern.permute.xlu0 0
    %42 = vperm.xlu0 %41, %v24
    %v43 = vpop.permute.xlu0 %42
    %v45 = vld [vmem:[%s1] sm:$0xff]
    %v46 = vld [vmem:[%s1 + $0x8] sm:$0xff]
    %v47 = vld [vmem:[%s1 + $0x10] sm:$0xff]
    %v48 = vld [vmem:[%s1 + $0x18] sm:$0xff]
    %50 = vset.pattern.permute.xlu0 0
    %51 = vperm.xlu0 %50, %v45
    %v52 = vpop.permute.xlu0 %51
    %55 = vset.pattern.permute.xlu0 0
    %56 = vperm.xlu0 %55, %v46
    %v57 = vpop.permute.xlu0 %56
    %60 = vset.pattern.permute.xlu0 0
    %61 = vperm.xlu0 %60, %v47
    %v62 = vpop.permute.xlu0 %61
    %65 = vset.pattern.permute.xlu0 0
    %66 = vperm.xlu0 %65, %v48
    %v67 = vpop.permute.xlu0 %66
    %v69 = vld [vmem:[%s2] sm:$0xff]
    %v70 = vld [vmem:[%s2 + $0x8] sm:$0xff]
    %v71 = vld [vmem:[%s2 + $0x10] sm:$0xff]
    %v72 = vld [vmem:[%s2 + $0x18] sm:$0xff]
    %v73 = vld [vmem:[%s3] sm:$0xff]
    %v74 = vld [vmem:[%s4] sm:$0xff]
    %v75 = vld [vmem:[%s4 + $0x8] sm:$0xff]
    %v78 = vlaneseq
    %v79 = vshrl.u32 %v78, 7
    %v80 = vsub.s32 0, %v79
    %v81 = vrot.slane %v74, %v80
    %v82 = vlaneseq
    %v83 = vshrl.u32 %v82, 7
    %v84 = vsub.s32 1, %v83
    %v85 = vrot.slane %v74, %v84
    %v86 = vlaneseq
    %v87 = vshrl.u32 %v86, 7
    %v88 = vsub.s32 2, %v87
    %v89 = vrot.slane %v74, %v88
    %v90 = vlaneseq
    %v91 = vshrl.u32 %v90, 7
    %v92 = vsub.s32 3, %v91
    %v93 = vrot.slane %v74, %v92
    %v94 = vlaneseq
    %v95 = vshrl.u32 %v94, 7
    %v96 = vsub.s32 4, %v95
    %v97 = vrot.slane %v74, %v96
    %v98 = vlaneseq
    %v99 = vshrl.u32 %v98, 7
    %v100 = vsub.s32 5, %v99
    %v101 = vrot.slane %v74, %v100
    %v102 = vlaneseq
    %v103 = vshrl.u32 %v102, 7
    %v104 = vsub.s32 6, %v103
    %v105 = vrot.slane %v74, %v104
    %v106 = vlaneseq
    %v107 = vshrl.u32 %v106, 7
    %v108 = vsub.s32 7, %v107
    %v109 = vrot.slane %v74, %v108
    %v110 = vlaneseq
    %v111 = vshrl.u32 %v110, 7
    %v112 = vsub.s32 0, %v111
    %v113 = vrot.slane %v75, %v112
    %v114 = vlaneseq
    %v115 = vshrl.u32 %v114, 7
    %v116 = vsub.s32 1, %v115
    %v117 = vrot.slane %v75, %v116
    %v118 = vlaneseq
    %v119 = vshrl.u32 %v118, 7
    %v120 = vsub.s32 2, %v119
    %v121 = vrot.slane %v75, %v120
    %v122 = vlaneseq
    %v123 = vshrl.u32 %v122, 7
    %v124 = vsub.s32 3, %v123
    %v125 = vrot.slane %v75, %v124
    %v126 = vlaneseq
    %v127 = vshrl.u32 %v126, 7
    %v128 = vsub.s32 4, %v127
    %v129 = vrot.slane %v75, %v128
    %v130 = vlaneseq
    %v131 = vshrl.u32 %v130, 7
    %v132 = vsub.s32 5, %v131
    %v133 = vrot.slane %v75, %v132
    %v134 = vlaneseq
    %v135 = vshrl.u32 %v134, 7
    %v136 = vsub.s32 6, %v135
    %v137 = vrot.slane %v75, %v136
    %v138 = vlaneseq
    %v139 = vshrl.u32 %v138, 7
    %v140 = vsub.s32 7, %v139
    %v141 = vrot.slane %v75, %v140
    %v158 = vmul.f32 %v81, %v28
    %v159 = vmul.f32 %v85, %v28
    %v160 = vmul.f32 %v89, %v28
    %v161 = vmul.f32 %v93, %v28
    %v162 = vmul.f32 %v97, %v28
    %v163 = vmul.f32 %v101, %v28
    %v164 = vmul.f32 %v105, %v28
    %v165 = vmul.f32 %v109, %v28
    %v166 = vmul.f32 %v113, %v28
    %v167 = vmul.f32 %v117, %v28
    %v168 = vmul.f32 %v121, %v28
    %v169 = vmul.f32 %v125, %v28
    %v170 = vmul.f32 %v129, %v28
    %v171 = vmul.f32 %v133, %v28
    %v172 = vmul.f32 %v137, %v28
    %v173 = vmul.f32 %v141, %v28
    %v174 = vmul.f32 %v81, %v33
    %v175 = vmul.f32 %v85, %v33
    %v176 = vmul.f32 %v89, %v33
    %v177 = vmul.f32 %v93, %v33
    %v178 = vmul.f32 %v97, %v33
    %v179 = vmul.f32 %v101, %v33
    %v180 = vmul.f32 %v105, %v33
    %v181 = vmul.f32 %v109, %v33
    %v182 = vmul.f32 %v113, %v33
    %v183 = vmul.f32 %v117, %v33
    %v184 = vmul.f32 %v121, %v33
    %v185 = vmul.f32 %v125, %v33
    %v186 = vmul.f32 %v129, %v33
    %v187 = vmul.f32 %v133, %v33
    %v188 = vmul.f32 %v137, %v33
    %v189 = vmul.f32 %v141, %v33
    %v190 = vmul.f32 %v81, %v38
    %v191 = vmul.f32 %v85, %v38
    %v192 = vmul.f32 %v89, %v38
    %v193 = vmul.f32 %v93, %v38
    %v194 = vmul.f32 %v97, %v38
    %v195 = vmul.f32 %v101, %v38
    %v196 = vmul.f32 %v105, %v38
    %v197 = vmul.f32 %v109, %v38
    %v198 = vmul.f32 %v113, %v38
    %v199 = vmul.f32 %v117, %v38
    %v200 = vmul.f32 %v121, %v38
    %v201 = vmul.f32 %v125, %v38
    %v202 = vmul.f32 %v129, %v38
    %v203 = vmul.f32 %v133, %v38
    %v204 = vmul.f32 %v137, %v38
    %v205 = vmul.f32 %v141, %v38
    %v206 = vmul.f32 %v81, %v43
    %v207 = vmul.f32 %v85, %v43
    %v208 = vmul.f32 %v89, %v43
    %v209 = vmul.f32 %v93, %v43
    %v210 = vmul.f32 %v97, %v43
    %v211 = vmul.f32 %v101, %v43
    %v212 = vmul.f32 %v105, %v43
    %v213 = vmul.f32 %v109, %v43
    %v214 = vmul.f32 %v113, %v43
    %v215 = vmul.f32 %v117, %v43
    %v216 = vmul.f32 %v121, %v43
    %v217 = vmul.f32 %v125, %v43
    %v218 = vmul.f32 %v129, %v43
    %v219 = vmul.f32 %v133, %v43
    %v220 = vmul.f32 %v137, %v43
    %v221 = vmul.f32 %v141, %v43
    %v222 = vadd.f32 %v158, %v52
    %v223 = vadd.f32 %v159, %v52
    %v224 = vadd.f32 %v160, %v52
    %v225 = vadd.f32 %v161, %v52
    %v226 = vadd.f32 %v162, %v52
    %v227 = vadd.f32 %v163, %v52
    %v228 = vadd.f32 %v164, %v52
    %v229 = vadd.f32 %v165, %v52
    %v230 = vadd.f32 %v166, %v52
    %v231 = vadd.f32 %v167, %v52
    %v232 = vadd.f32 %v168, %v52
    %v233 = vadd.f32 %v169, %v52
    %v234 = vadd.f32 %v170, %v52
    %v235 = vadd.f32 %v171, %v52
    %v236 = vadd.f32 %v172, %v52
    %v237 = vadd.f32 %v173, %v52
    %v238 = vadd.f32 %v174, %v57
    %v239 = vadd.f32 %v175, %v57
    %v240 = vadd.f32 %v176, %v57
    %v241 = vadd.f32 %v177, %v57
    %v242 = vadd.f32 %v178, %v57
    %v243 = vadd.f32 %v179, %v57
    %v244 = vadd.f32 %v180, %v57
    %v245 = vadd.f32 %v181, %v57
    %v246 = vadd.f32 %v182, %v57
    %v247 = vadd.f32 %v183, %v57
    %v248 = vadd.f32 %v184, %v57
    %v249 = vadd.f32 %v185, %v57
    %v250 = vadd.f32 %v186, %v57
    %v251 = vadd.f32 %v187, %v57
    %v252 = vadd.f32 %v188, %v57
    %v253 = vadd.f32 %v189, %v57
    %v254 = vadd.f32 %v190, %v62
    %v255 = vadd.f32 %v191, %v62
    %v256 = vadd.f32 %v192, %v62
    %v257 = vadd.f32 %v193, %v62
    %v258 = vadd.f32 %v194, %v62
    %v259 = vadd.f32 %v195, %v62
    %v260 = vadd.f32 %v196, %v62
    %v261 = vadd.f32 %v197, %v62
    %v262 = vadd.f32 %v198, %v62
    %v263 = vadd.f32 %v199, %v62
    %v264 = vadd.f32 %v200, %v62
    %v265 = vadd.f32 %v201, %v62
    %v266 = vadd.f32 %v202, %v62
    %v267 = vadd.f32 %v203, %v62
    %v268 = vadd.f32 %v204, %v62
    %v269 = vadd.f32 %v205, %v62
    %v270 = vadd.f32 %v206, %v67
    %v271 = vadd.f32 %v207, %v67
    %v272 = vadd.f32 %v208, %v67
    %v273 = vadd.f32 %v209, %v67
    %v274 = vadd.f32 %v210, %v67
    %v275 = vadd.f32 %v211, %v67
    %v276 = vadd.f32 %v212, %v67
    %v277 = vadd.f32 %v213, %v67
    %v278 = vadd.f32 %v214, %v67
    %v279 = vadd.f32 %v215, %v67
    %v280 = vadd.f32 %v216, %v67
    %v281 = vadd.f32 %v217, %v67
    %v282 = vadd.f32 %v218, %v67
    %v283 = vadd.f32 %v219, %v67
    %v284 = vadd.f32 %v220, %v67
    %v285 = vadd.f32 %v221, %v67
    %v286 = vmax.f32 %v222, 0.0
    %v287 = vmax.f32 %v223, 0.0
    %v288 = vmax.f32 %v224, 0.0
    %v289 = vmax.f32 %v225, 0.0
    %v290 = vmax.f32 %v226, 0.0
    %v291 = vmax.f32 %v227, 0.0
    %v292 = vmax.f32 %v228, 0.0
    %v293 = vmax.f32 %v229, 0.0
    %v294 = vmax.f32 %v230, 0.0
    %v295 = vmax.f32 %v231, 0.0
    %v296 = vmax.f32 %v232, 0.0
    %v297 = vmax.f32 %v233, 0.0
    %v298 = vmax.f32 %v234, 0.0
    %v299 = vmax.f32 %v235, 0.0
    %v300 = vmax.f32 %v236, 0.0
    %v301 = vmax.f32 %v237, 0.0
    %v302 = vmax.f32 %v238, 0.0
    %v303 = vmax.f32 %v239, 0.0
    %v304 = vmax.f32 %v240, 0.0
    %v305 = vmax.f32 %v241, 0.0
    %v306 = vmax.f32 %v242, 0.0
    %v307 = vmax.f32 %v243, 0.0
    %v308 = vmax.f32 %v244, 0.0
    %v309 = vmax.f32 %v245, 0.0
    %v310 = vmax.f32 %v246, 0.0
    %v311 = vmax.f32 %v247, 0.0
    %v312 = vmax.f32 %v248, 0.0
    %v313 = vmax.f32 %v249, 0.0
    %v314 = vmax.f32 %v250, 0.0
    %v315 = vmax.f32 %v251, 0.0
    %v316 = vmax.f32 %v252, 0.0
    %v317 = vmax.f32 %v253, 0.0
    %v318 = vmax.f32 %v254, 0.0
    %v319 = vmax.f32 %v255, 0.0
    %v320 = vmax.f32 %v256, 0.0
    %v321 = vmax.f32 %v257, 0.0
    %v322 = vmax.f32 %v258, 0.0
    %v323 = vmax.f32 %v259, 0.0
    %v324 = vmax.f32 %v260, 0.0
    %v325 = vmax.f32 %v261, 0.0
    %v326 = vmax.f32 %v262, 0.0
    %v327 = vmax.f32 %v263, 0.0
    %v328 = vmax.f32 %v264, 0.0
    %v329 = vmax.f32 %v265, 0.0
    %v330 = vmax.f32 %v266, 0.0
    %v331 = vmax.f32 %v267, 0.0
    %v332 = vmax.f32 %v268, 0.0
    %v333 = vmax.f32 %v269, 0.0
    %v334 = vmax.f32 %v270, 0.0
    %v335 = vmax.f32 %v271, 0.0
    %v336 = vmax.f32 %v272, 0.0
    %v337 = vmax.f32 %v273, 0.0
    %v338 = vmax.f32 %v274, 0.0
    %v339 = vmax.f32 %v275, 0.0
    %v340 = vmax.f32 %v276, 0.0
    %v341 = vmax.f32 %v277, 0.0
    %v342 = vmax.f32 %v278, 0.0
    %v343 = vmax.f32 %v279, 0.0
    %v344 = vmax.f32 %v280, 0.0
    %v345 = vmax.f32 %v281, 0.0
    %v346 = vmax.f32 %v282, 0.0
    %v347 = vmax.f32 %v283, 0.0
    %v348 = vmax.f32 %v284, 0.0
    %v349 = vmax.f32 %v285, 0.0
    %vm350 = vcmask 261120
    %v352 = vsel %vm350, %v69, 0
    %v355 = vsel %vm350, %v70, 0
    %v358 = vsel %vm350, %v71, 0
    %v361 = vsel %vm350, %v72, 0
    %363 = vmatprep.subr.mxu0 0.0
    %364 = vmatpush1.msra.mxu0 0.0
    %365 = vmatprep.subr.mxu0 0.0
    %366 = vmatpush1.msra.mxu0 0.0
    %367 = vmatprep.subr.mxu0 0.0
    %368 = vmatpush1.msra.mxu0 0.0
    %369 = vmatprep.subr.mxu0 0.0
    %370 = vmatpush1.msra.mxu0 0.0
    %371 = vmatprep.subr.mxu0 0.0
    %372 = vmatpush1.msra.mxu0 0.0
    %373 = vmatprep.subr.mxu0 0.0
    %374 = vmatpush1.msra.mxu0 0.0
    %375 = vmatprep.subr.mxu0 0.0
    %376 = vmatpush1.msra.mxu0 0.0
    %377 = vmatprep.subr.mxu0 0.0
    %378 = vmatpush1.msra.mxu0 0.0
    %379 = vmatprep.subr.mxu0 0.0
    %380 = vmatpush1.msra.mxu0 0.0
    %381 = vmatprep.subr.mxu0 0.0
    %382 = vmatpush1.msra.mxu0 0.0
    %383 = vmatprep.subr.mxu0 0.0
    %384 = vmatpush1.msra.mxu0 0.0
    %385 = vmatprep.subr.mxu0 0.0
    %386 = vmatpush1.msra.mxu0 0.0
    %v387 = vand.u32 %v335, 4294901760
    %388 = vmatprep.subr.mxu0 %v387
    %v389 = vand.u32 %v334, 4294901760
    %390 = vmatpush1.msra.mxu0 %v389
    %v391 = vand.u32 %v319, 4294901760
    %392 = vmatprep.subr.mxu0 %v391
    %v393 = vand.u32 %v318, 4294901760
    %394 = vmatpush1.msra.mxu0 %v393
    %v395 = vand.u32 %v303, 4294901760
    %396 = vmatprep.subr.mxu0 %v395
    %v397 = vand.u32 %v302, 4294901760
    %398 = vmatpush1.msra.mxu0 %v397
    %v399 = vand.u32 %v287, 4294901760
    %400 = vmatprep.subr.mxu0 %v399
    %v401 = vand.u32 %v286, 4294901760
    %402 = vmatpush1.msra.mxu0 %v401
    %403 = vmatprep.subr.mxu0 0.0
    %404 = vmatpush2.msra.mxu0 0.0
    %405 = vmatprep.subr.mxu0 0.0
    %406 = vmatpush2.msra.mxu0 0.0
    %407 = vmatprep.subr.mxu0 0.0
    %408 = vmatpush2.msra.mxu0 0.0
    %409 = vmatprep.subr.mxu0 0.0
    %410 = vmatpush2.msra.mxu0 0.0
    %411 = vmatprep.subr.mxu0 0.0
    %412 = vmatpush2.msra.mxu0 0.0
    %413 = vmatprep.subr.mxu0 0.0
    %414 = vmatpush2.msra.mxu0 0.0
    %415 = vmatprep.subr.mxu0 0.0
    %416 = vmatpush2.msra.mxu0 0.0
    %417 = vmatprep.subr.mxu0 0.0
    %418 = vmatpush2.msra.mxu0 0.0
    %419 = vmatprep.subr.mxu0 0.0
    %420 = vmatpush2.msra.mxu0 0.0
    %421 = vmatprep.subr.mxu0 0.0
    %422 = vmatpush2.msra.mxu0 0.0
    %423 = vmatprep.subr.mxu0 0.0
    %424 = vmatpush2.msra.mxu0 0.0
    %425 = vmatprep.subr.mxu0 0.0
    %426 = vmatpush2.msra.mxu0 0.0
    %427 = vmatprep.subr.mxu0 0.0
    %428 = vmatpush2.msra.mxu0 0.0
    %429 = vmatprep.subr.mxu0 0.0
    %430 = vmatpush2.msra.mxu0 0.0
    %431 = vmatprep.subr.mxu0 0.0
    %432 = vmatpush2.msra.mxu0 0.0
    %433 = vmatprep.subr.mxu0 0.0
    %434 = vmatpush2.msra.mxu0 0.0
    %435 = vmatprep.mubr.f32.mxu0 0.0
    %v436 = vand.u32 %v352, 4294901760
    %v437 = vsub.f32 %v352, %v436
    %v438 = vand.u32 %v437, 4294901760
    %v439 = vsub.f32 %v437, %v438
    %v440 = vand.u32 %v439, 4294901760
    %441 = vmatmul.mubr.f32.gmra.mxu0 %v440
    %v442 = vpop.f32.mrf.mxu0
    %v443 = vadd.f32 0.0, %v442
    %v444 = vpop.f32.mrf.mxu0
    %v445 = vadd.f32 0.0, %v444
    %446 = vmatprep.mubr.f32.mxu0 0.0
    %v447 = vand.u32 %v355, 4294901760
    %v448 = vsub.f32 %v355, %v447
    %v449 = vand.u32 %v448, 4294901760
    %v450 = vsub.f32 %v448, %v449
    %v451 = vand.u32 %v450, 4294901760
    %452 = vmatmul.mubr.f32.gmra.mxu0 %v451
    %v453 = vpop.f32.mrf.mxu0
    %v454 = vadd.f32 0.0, %v453
    %v455 = vpop.f32.mrf.mxu0
    %v456 = vadd.f32 0.0, %v455
    %457 = vmatprep.mubr.f32.mxu0 0.0
    %v458 = vand.u32 %v358, 4294901760
    %v459 = vsub.f32 %v358, %v458
    %v460 = vand.u32 %v459, 4294901760
    %v461 = vsub.f32 %v459, %v460
    %v462 = vand.u32 %v461, 4294901760
    %463 = vmatmul.mubr.f32.gmra.mxu0 %v462
    %v464 = vpop.f32.mrf.mxu0
    %v465 = vadd.f32 0.0, %v464
    %v466 = vpop.f32.mrf.mxu0
    %v467 = vadd.f32 0.0, %v466
    %468 = vmatprep.mubr.f32.mxu0 0.0
    %v469 = vand.u32 %v361, 4294901760
    %v470 = vsub.f32 %v361, %v469
    %v471 = vand.u32 %v470, 4294901760
    %v472 = vsub.f32 %v470, %v471
    %v473 = vand.u32 %v472, 4294901760
    %474 = vmatmul.mubr.f32.gmra.mxu0 %v473
    %v475 = vpop.f32.mrf.mxu0
    %v476 = vadd.f32 0.0, %v475
    %v477 = vpop.f32.mrf.mxu0
    %v478 = vadd.f32 0.0, %v477
    %479 = vdwg.mxu0
    %480 = vmatprep.subr.mxu0 0.0
    %481 = vmatpush1.msra.mxu0 0.0
    %482 = vmatprep.subr.mxu0 0.0
    %483 = vmatpush1.msra.mxu0 0.0
    %484 = vmatprep.subr.mxu0 0.0
    %485 = vmatpush1.msra.mxu0 0.0
    %486 = vmatprep.subr.mxu0 0.0
    %487 = vmatpush1.msra.mxu0 0.0
    %488 = vmatprep.subr.mxu0 0.0
    %489 = vmatpush1.msra.mxu0 0.0
    %490 = vmatprep.subr.mxu0 0.0
    %491 = vmatpush1.msra.mxu0 0.0
    %492 = vmatprep.subr.mxu0 0.0
    %493 = vmatpush1.msra.mxu0 0.0
    %494 = vmatprep.subr.mxu0 0.0
    %495 = vmatpush1.msra.mxu0 0.0
    %496 = vmatprep.subr.mxu0 0.0
    %497 = vmatpush1.msra.mxu0 0.0
    %498 = vmatprep.subr.mxu0 0.0
    %499 = vmatpush1.msra.mxu0 0.0
    %500 = vmatprep.subr.mxu0 0.0
    %501 = vmatpush1.msra.mxu0 0.0
    %502 = vmatprep.subr.mxu0 0.0
    %503 = vmatpush1.msra.mxu0 0.0
    %v504 = vand.u32 %v335, 4294901760
    %v505 = vsub.f32 %v335, %v504
    %v506 = vand.u32 %v505, 4294901760
    %v507 = vsub.f32 %v505, %v506
    %v508 = vand.u32 %v507, 4294901760
    %509 = vmatprep.subr.mxu0 %v508
    %v510 = vand.u32 %v334, 4294901760
    %v511 = vsub.f32 %v334, %v510
    %v512 = vand.u32 %v511, 4294901760
    %v513 = vsub.f32 %v511, %v512
    %v514 = vand.u32 %v513, 4294901760
    %515 = vmatpush1.msra.mxu0 %v514
    %v516 = vand.u32 %v319, 4294901760
    %v517 = vsub.f32 %v319, %v516
    %v518 = vand.u32 %v517, 4294901760
    %v519 = vsub.f32 %v517, %v518
    %v520 = vand.u32 %v519, 4294901760
    %521 = vmatprep.subr.mxu0 %v520
    %v522 = vand.u32 %v318, 4294901760
    %v523 = vsub.f32 %v318, %v522
    %v524 = vand.u32 %v523, 4294901760
    %v525 = vsub.f32 %v523, %v524
    %v526 = vand.u32 %v525, 4294901760
    %527 = vmatpush1.msra.mxu0 %v526
    %v528 = vand.u32 %v303, 4294901760
    %v529 = vsub.f32 %v303, %v528
    %v530 = vand.u32 %v529, 4294901760
    %v531 = vsub.f32 %v529, %v530
    %v532 = vand.u32 %v531, 4294901760
    %533 = vmatprep.subr.mxu0 %v532
    %v534 = vand.u32 %v302, 4294901760
    %v535 = vsub.f32 %v302, %v534
    %v536 = vand.u32 %v535, 4294901760
    %v537 = vsub.f32 %v535, %v536
    %v538 = vand.u32 %v537, 4294901760
    %539 = vmatpush1.msra.mxu0 %v538
    %v540 = vand.u32 %v287, 4294901760
    %v541 = vsub.f32 %v287, %v540
    %v542 = vand.u32 %v541, 4294901760
    %v543 = vsub.f32 %v541, %v542
    %v544 = vand.u32 %v543, 4294901760
    %545 = vmatprep.subr.mxu0 %v544
    %v546 = vand.u32 %v286, 4294901760
    %v547 = vsub.f32 %v286, %v546
    %v548 = vand.u32 %v547, 4294901760
    %v549 = vsub.f32 %v547, %v548
    %v550 = vand.u32 %v549, 4294901760
    %551 = vmatpush1.msra.mxu0 %v550
    %552 = vmatprep.subr.mxu0 0.0
    %553 = vmatpush2.msra.mxu0 0.0
    %554 = vmatprep.subr.mxu0 0.0
    %555 = vmatpush2.msra.mxu0 0.0
    %556 = vmatprep.subr.mxu0 0.0
    %557 = vmatpush2.msra.mxu0 0.0
    %558 = vmatprep.subr.mxu0 0.0
    %559 = vmatpush2.msra.mxu0 0.0
    %560 = vmatprep.subr.mxu0 0.0
    %561 = vmatpush2.msra.mxu0 0.0
    %562 = vmatprep.subr.mxu0 0.0
    %563 = vmatpush2.msra.mxu0 0.0
    %564 = vmatprep.subr.mxu0 0.0
    %565 = vmatpush2.msra.mxu0 0.0
    %566 = vmatprep.subr.mxu0 0.0
    %567 = vmatpush2.msra.mxu0 0.0
    %568 = vmatprep.subr.mxu0 0.0
    %569 = vmatpush2.msra.mxu0 0.0
    %570 = vmatprep.subr.mxu0 0.0
    %571 = vmatpush2.msra.mxu0 0.0
    %572 = vmatprep.subr.mxu0 0.0
    %573 = vmatpush2.msra.mxu0 0.0
    %574 = vmatprep.subr.mxu0 0.0
    %575 = vmatpush2.msra.mxu0 0.0
    %576 = vmatprep.subr.mxu0 0.0
    %577 = vmatpush2.msra.mxu0 0.0
    %578 = vmatprep.subr.mxu0 0.0
    %579 = vmatpush2.msra.mxu0 0.0
    %580 = vmatprep.subr.mxu0 0.0
    %581 = vmatpush2.msra.mxu0 0.0
    %582 = vmatprep.subr.mxu0 0.0
    %583 = vmatpush2.msra.mxu0 0.0
    %584 = vmatprep.mubr.f32.mxu0 0.0
    %v585 = vand.u32 %v352, 4294901760
    %586 = vmatmul.mubr.f32.gmra.mxu0 %v585
    %v587 = vpop.f32.mrf.mxu0
    %v588 = vadd.f32 %v443, %v587
    %v589 = vpop.f32.mrf.mxu0
    %v590 = vadd.f32 %v445, %v589
    %591 = vmatprep.mubr.f32.mxu0 0.0
    %v592 = vand.u32 %v355, 4294901760
    %593 = vmatmul.mubr.f32.gmra.mxu0 %v592
    %v594 = vpop.f32.mrf.mxu0
    %v595 = vadd.f32 %v454, %v594
    %v596 = vpop.f32.mrf.mxu0
    %v597 = vadd.f32 %v456, %v596
    %598 = vmatprep.mubr.f32.mxu0 0.0
    %v599 = vand.u32 %v358, 4294901760
    %600 = vmatmul.mubr.f32.gmra.mxu0 %v599
    %v601 = vpop.f32.mrf.mxu0
    %v602 = vadd.f32 %v465, %v601
    %v603 = vpop.f32.mrf.mxu0
    %v604 = vadd.f32 %v467, %v603
    %605 = vmatprep.mubr.f32.mxu0 0.0
    %v606 = vand.u32 %v361, 4294901760
    %607 = vmatmul.mubr.f32.gmra.mxu0 %v606
    %v608 = vpop.f32.mrf.mxu0
    %v609 = vadd.f32 %v476, %v608
    %v610 = vpop.f32.mrf.mxu0
    %v611 = vadd.f32 %v478, %v610
    %612 = vdwg.mxu0
    %613 = vmatprep.subr.mxu0 0.0
    %614 = vmatpush1.msra.mxu0 0.0
    %615 = vmatprep.subr.mxu0 0.0
    %616 = vmatpush1.msra.mxu0 0.0
    %617 = vmatprep.subr.mxu0 0.0
    %618 = vmatpush1.msra.mxu0 0.0
    %619 = vmatprep.subr.mxu0 0.0
    %620 = vmatpush1.msra.mxu0 0.0
    %621 = vmatprep.subr.mxu0 0.0
    %622 = vmatpush1.msra.mxu0 0.0
    %623 = vmatprep.subr.mxu0 0.0
    %624 = vmatpush1.msra.mxu0 0.0
    %625 = vmatprep.subr.mxu0 0.0
    %626 = vmatpush1.msra.mxu0 0.0
    %627 = vmatprep.subr.mxu0 0.0
    %628 = vmatpush1.msra.mxu0 0.0
    %629 = vmatprep.subr.mxu0 0.0
    %630 = vmatpush1.msra.mxu0 0.0
    %631 = vmatprep.subr.mxu0 0.0
    %632 = vmatpush1.msra.mxu0 0.0
    %633 = vmatprep.subr.mxu0 0.0
    %634 = vmatpush1.msra.mxu0 0.0
    %635 = vmatprep.subr.mxu0 0.0
    %636 = vmatpush1.msra.mxu0 0.0
    %v637 = vand.u32 %v335, 4294901760
    %v638 = vsub.f32 %v335, %v637
    %639 = vmatprep.subr.mxu0 %v638
    %v640 = vand.u32 %v334, 4294901760
    %v641 = vsub.f32 %v334, %v640
    %642 = vmatpush1.msra.mxu0 %v641
    %v643 = vand.u32 %v319, 4294901760
    %v644 = vsub.f32 %v319, %v643
    %645 = vmatprep.subr.mxu0 %v644
    %v646 = vand.u32 %v318, 4294901760
    %v647 = vsub.f32 %v318, %v646
    %648 = vmatpush1.msra.mxu0 %v647
    %v649 = vand.u32 %v303, 4294901760
    %v650 = vsub.f32 %v303, %v649
    %651 = vmatprep.subr.mxu0 %v650
    %v652 = vand.u32 %v302, 4294901760
    %v653 = vsub.f32 %v302, %v652
    %654 = vmatpush1.msra.mxu0 %v653
    %v655 = vand.u32 %v287, 4294901760
    %v656 = vsub.f32 %v287, %v655
    %657 = vmatprep.subr.mxu0 %v656
    %v658 = vand.u32 %v286, 4294901760
    %v659 = vsub.f32 %v286, %v658
    %660 = vmatpush1.msra.mxu0 %v659
    %661 = vmatprep.subr.mxu0 0.0
    %662 = vmatpush2.msra.mxu0 0.0
    %663 = vmatprep.subr.mxu0 0.0
    %664 = vmatpush2.msra.mxu0 0.0
    %665 = vmatprep.subr.mxu0 0.0
    %666 = vmatpush2.msra.mxu0 0.0
    %667 = vmatprep.subr.mxu0 0.0
    %668 = vmatpush2.msra.mxu0 0.0
    %669 = vmatprep.subr.mxu0 0.0
    %670 = vmatpush2.msra.mxu0 0.0
    %671 = vmatprep.subr.mxu0 0.0
    %672 = vmatpush2.msra.mxu0 0.0
    %673 = vmatprep.subr.mxu0 0.0
    %674 = vmatpush2.msra.mxu0 0.0
    %675 = vmatprep.subr.mxu0 0.0
    %676 = vmatpush2.msra.mxu0 0.0
    %677 = vmatprep.subr.mxu0 0.0
    %678 = vmatpush2.msra.mxu0 0.0
    %679 = vmatprep.subr.mxu0 0.0
    %680 = vmatpush2.msra.mxu0 0.0
    %681 = vmatprep.subr.mxu0 0.0
    %682 = vmatpush2.msra.mxu0 0.0
    %683 = vmatprep.subr.mxu0 0.0
    %684 = vmatpush2.msra.mxu0 0.0
    %685 = vmatprep.subr.mxu0 0.0
    %686 = vmatpush2.msra.mxu0 0.0
    %687 = vmatprep.subr.mxu0 0.0
    %688 = vmatpush2.msra.mxu0 0.0
    %689 = vmatprep.subr.mxu0 0.0
    %690 = vmatpush2.msra.mxu0 0.0
    %691 = vmatprep.subr.mxu0 0.0
    %692 = vmatpush2.msra.mxu0 0.0
    %693 = vmatprep.mubr.f32.mxu0 0.0
    %v694 = vand.u32 %v352, 4294901760
    %v695 = vsub.f32 %v352, %v694
    %696 = vmatmul.mubr.f32.gmra.mxu0 %v695
    %v697 = vpop.f32.mrf.mxu0
    %v698 = vadd.f32 %v588, %v697
    %v699 = vpop.f32.mrf.mxu0
    %v700 = vadd.f32 %v590, %v699
    %701 = vmatprep.mubr.f32.mxu0 0.0
    %v702 = vand.u32 %v355, 4294901760
    %v703 = vsub.f32 %v355, %v702
    %704 = vmatmul.mubr.f32.gmra.mxu0 %v703
    %v705 = vpop.f32.mrf.mxu0
    %v706 = vadd.f32 %v595, %v705
    %v707 = vpop.f32.mrf.mxu0
    %v708 = vadd.f32 %v597, %v707
    %709 = vmatprep.mubr.f32.mxu0 0.0
    %v710 = vand.u32 %v358, 4294901760
    %v711 = vsub.f32 %v358, %v710
    %712 = vmatmul.mubr.f32.gmra.mxu0 %v711
    %v713 = vpop.f32.mrf.mxu0
    %v714 = vadd.f32 %v602, %v713
    %v715 = vpop.f32.mrf.mxu0
    %v716 = vadd.f32 %v604, %v715
    %717 = vmatprep.mubr.f32.mxu0 0.0
    %v718 = vand.u32 %v361, 4294901760
    %v719 = vsub.f32 %v361, %v718
    %720 = vmatmul.mubr.f32.gmra.mxu0 %v719
    %v721 = vpop.f32.mrf.mxu0
    %v722 = vadd.f32 %v609, %v721
    %v723 = vpop.f32.mrf.mxu0
    %v724 = vadd.f32 %v611, %v723
    %725 = vdwg.mxu0
    %726 = vmatprep.subr.mxu0 0.0
    %727 = vmatpush1.msra.mxu0 0.0
    %728 = vmatprep.subr.mxu0 0.0
    %729 = vmatpush1.msra.mxu0 0.0
    %730 = vmatprep.subr.mxu0 0.0
    %731 = vmatpush1.msra.mxu0 0.0
    %732 = vmatprep.subr.mxu0 0.0
    %733 = vmatpush1.msra.mxu0 0.0
    %734 = vmatprep.subr.mxu0 0.0
    %735 = vmatpush1.msra.mxu0 0.0
    %736 = vmatprep.subr.mxu0 0.0
    %737 = vmatpush1.msra.mxu0 0.0
    %738 = vmatprep.subr.mxu0 0.0
    %739 = vmatpush1.msra.mxu0 0.0
    %740 = vmatprep.subr.mxu0 0.0
    %741 = vmatpush1.msra.mxu0 0.0
    %742 = vmatprep.subr.mxu0 0.0
    %743 = vmatpush1.msra.mxu0 0.0
    %744 = vmatprep.subr.mxu0 0.0
    %745 = vmatpush1.msra.mxu0 0.0
    %746 = vmatprep.subr.mxu0 0.0
    %747 = vmatpush1.msra.mxu0 0.0
    %748 = vmatprep.subr.mxu0 0.0
    %749 = vmatpush1.msra.mxu0 0.0
    %v750 = vand.u32 %v335, 4294901760
    %751 = vmatprep.subr.mxu0 %v750
    %v752 = vand.u32 %v334, 4294901760
    %753 = vmatpush1.msra.mxu0 %v752
    %v754 = vand.u32 %v319, 4294901760
    %755 = vmatprep.subr.mxu0 %v754
    %v756 = vand.u32 %v318, 4294901760
    %757 = vmatpush1.msra.mxu0 %v756
    %v758 = vand.u32 %v303, 4294901760
    %759 = vmatprep.subr.mxu0 %v758
    %v760 = vand.u32 %v302, 4294901760
    %761 = vmatpush1.msra.mxu0 %v760
    %v762 = vand.u32 %v287, 4294901760
    %763 = vmatprep.subr.mxu0 %v762
    %v764 = vand.u32 %v286, 4294901760
    %765 = vmatpush1.msra.mxu0 %v764
    %766 = vmatprep.subr.mxu0 0.0
    %767 = vmatpush2.msra.mxu0 0.0
    %768 = vmatprep.subr.mxu0 0.0
    %769 = vmatpush2.msra.mxu0 0.0
    %770 = vmatprep.subr.mxu0 0.0
    %771 = vmatpush2.msra.mxu0 0.0
    %772 = vmatprep.subr.mxu0 0.0
    %773 = vmatpush2.msra.mxu0 0.0
    %774 = vmatprep.subr.mxu0 0.0
    %775 = vmatpush2.msra.mxu0 0.0
    %776 = vmatprep.subr.mxu0 0.0
    %777 = vmatpush2.msra.mxu0 0.0
    %778 = vmatprep.subr.mxu0 0.0
    %779 = vmatpush2.msra.mxu0 0.0
    %780 = vmatprep.subr.mxu0 0.0
    %781 = vmatpush2.msra.mxu0 0.0
    %782 = vmatprep.subr.mxu0 0.0
    %783 = vmatpush2.msra.mxu0 0.0
    %784 = vmatprep.subr.mxu0 0.0
    %785 = vmatpush2.msra.mxu0 0.0
    %786 = vmatprep.subr.mxu0 0.0
    %787 = vmatpush2.msra.mxu0 0.0
    %788 = vmatprep.subr.mxu0 0.0
    %789 = vmatpush2.msra.mxu0 0.0
    %790 = vmatprep.subr.mxu0 0.0
    %791 = vmatpush2.msra.mxu0 0.0
    %792 = vmatprep.subr.mxu0 0.0
    %793 = vmatpush2.msra.mxu0 0.0
    %794 = vmatprep.subr.mxu0 0.0
    %795 = vmatpush2.msra.mxu0 0.0
    %796 = vmatprep.subr.mxu0 0.0
    %797 = vmatpush2.msra.mxu0 0.0
    %798 = vmatprep.mubr.f32.mxu0 0.0
    %v799 = vand.u32 %v352, 4294901760
    %v800 = vsub.f32 %v352, %v799
    %v801 = vand.u32 %v800, 4294901760
    %802 = vmatmul.mubr.f32.gmra.mxu0 %v801
    %v803 = vpop.f32.mrf.mxu0
    %v804 = vadd.f32 %v698, %v803
    %v805 = vpop.f32.mrf.mxu0
    %v806 = vadd.f32 %v700, %v805
    %807 = vmatprep.mubr.f32.mxu0 0.0
    %v808 = vand.u32 %v355, 4294901760
    %v809 = vsub.f32 %v355, %v808
    %v810 = vand.u32 %v809, 4294901760
    %811 = vmatmul.mubr.f32.gmra.mxu0 %v810
    %v812 = vpop.f32.mrf.mxu0
    %v813 = vadd.f32 %v706, %v812
    %v814 = vpop.f32.mrf.mxu0
    %v815 = vadd.f32 %v708, %v814
    %816 = vmatprep.mubr.f32.mxu0 0.0
    %v817 = vand.u32 %v358, 4294901760
    %v818 = vsub.f32 %v358, %v817
    %v819 = vand.u32 %v818, 4294901760
    %820 = vmatmul.mubr.f32.gmra.mxu0 %v819
    %v821 = vpop.f32.mrf.mxu0
    %v822 = vadd.f32 %v714, %v821
    %v823 = vpop.f32.mrf.mxu0
    %v824 = vadd.f32 %v716, %v823
    %825 = vmatprep.mubr.f32.mxu0 0.0
    %v826 = vand.u32 %v361, 4294901760
    %v827 = vsub.f32 %v361, %v826
    %v828 = vand.u32 %v827, 4294901760
    %829 = vmatmul.mubr.f32.gmra.mxu0 %v828
    %v830 = vpop.f32.mrf.mxu0
    %v831 = vadd.f32 %v722, %v830
    %v832 = vpop.f32.mrf.mxu0
    %v833 = vadd.f32 %v724, %v832
    %834 = vdwg.mxu0
    %835 = vmatprep.subr.mxu0 0.0
    %836 = vmatpush1.msra.mxu0 0.0
    %837 = vmatprep.subr.mxu0 0.0
    %838 = vmatpush1.msra.mxu0 0.0
    %839 = vmatprep.subr.mxu0 0.0
    %840 = vmatpush1.msra.mxu0 0.0
    %841 = vmatprep.subr.mxu0 0.0
    %842 = vmatpush1.msra.mxu0 0.0
    %843 = vmatprep.subr.mxu0 0.0
    %844 = vmatpush1.msra.mxu0 0.0
    %845 = vmatprep.subr.mxu0 0.0
    %846 = vmatpush1.msra.mxu0 0.0
    %847 = vmatprep.subr.mxu0 0.0
    %848 = vmatpush1.msra.mxu0 0.0
    %849 = vmatprep.subr.mxu0 0.0
    %850 = vmatpush1.msra.mxu0 0.0
    %851 = vmatprep.subr.mxu0 0.0
    %852 = vmatpush1.msra.mxu0 0.0
    %853 = vmatprep.subr.mxu0 0.0
    %854 = vmatpush1.msra.mxu0 0.0
    %855 = vmatprep.subr.mxu0 0.0
    %856 = vmatpush1.msra.mxu0 0.0
    %857 = vmatprep.subr.mxu0 0.0
    %858 = vmatpush1.msra.mxu0 0.0
    %v859 = vand.u32 %v335, 4294901760
    %v860 = vsub.f32 %v335, %v859
    %v861 = vand.u32 %v860, 4294901760
    %862 = vmatprep.subr.mxu0 %v861
    %v863 = vand.u32 %v334, 4294901760
    %v864 = vsub.f32 %v334, %v863
    %v865 = vand.u32 %v864, 4294901760
    %866 = vmatpush1.msra.mxu0 %v865
    %v867 = vand.u32 %v319, 4294901760
    %v868 = vsub.f32 %v319, %v867
    %v869 = vand.u32 %v868, 4294901760
    %870 = vmatprep.subr.mxu0 %v869
    %v871 = vand.u32 %v318, 4294901760
    %v872 = vsub.f32 %v318, %v871
    %v873 = vand.u32 %v872, 4294901760
    %874 = vmatpush1.msra.mxu0 %v873
    %v875 = vand.u32 %v303, 4294901760
    %v876 = vsub.f32 %v303, %v875
    %v877 = vand.u32 %v876, 4294901760
    %878 = vmatprep.subr.mxu0 %v877
    %v879 = vand.u32 %v302, 4294901760
    %v880 = vsub.f32 %v302, %v879
    %v881 = vand.u32 %v880, 4294901760
    %882 = vmatpush1.msra.mxu0 %v881
    %v883 = vand.u32 %v287, 4294901760
    %v884 = vsub.f32 %v287, %v883
    %v885 = vand.u32 %v884, 4294901760
    %886 = vmatprep.subr.mxu0 %v885
    %v887 = vand.u32 %v286, 4294901760
    %v888 = vsub.f32 %v286, %v887
    %v889 = vand.u32 %v888, 4294901760
    %890 = vmatpush1.msra.mxu0 %v889
    %891 = vmatprep.subr.mxu0 0.0
    %892 = vmatpush2.msra.mxu0 0.0
    %893 = vmatprep.subr.mxu0 0.0
    %894 = vmatpush2.msra.mxu0 0.0
    %895 = vmatprep.subr.mxu0 0.0
    %896 = vmatpush2.msra.mxu0 0.0
    %897 = vmatprep.subr.mxu0 0.0
    %898 = vmatpush2.msra.mxu0 0.0
    %899 = vmatprep.subr.mxu0 0.0
    %900 = vmatpush2.msra.mxu0 0.0
    %901 = vmatprep.subr.mxu0 0.0
    %902 = vmatpush2.msra.mxu0 0.0
    %903 = vmatprep.subr.mxu0 0.0
    %904 = vmatpush2.msra.mxu0 0.0
    %905 = vmatprep.subr.mxu0 0.0
    %906 = vmatpush2.msra.mxu0 0.0
    %907 = vmatprep.subr.mxu0 0.0
    %908 = vmatpush2.msra.mxu0 0.0
    %909 = vmatprep.subr.mxu0 0.0
    %910 = vmatpush2.msra.mxu0 0.0
    %911 = vmatprep.subr.mxu0 0.0
    %912 = vmatpush2.msra.mxu0 0.0
    %913 = vmatprep.subr.mxu0 0.0
    %914 = vmatpush2.msra.mxu0 0.0
    %915 = vmatprep.subr.mxu0 0.0
    %916 = vmatpush2.msra.mxu0 0.0
    %917 = vmatprep.subr.mxu0 0.0
    %918 = vmatpush2.msra.mxu0 0.0
    %919 = vmatprep.subr.mxu0 0.0
    %920 = vmatpush2.msra.mxu0 0.0
    %921 = vmatprep.subr.mxu0 0.0
    %922 = vmatpush2.msra.mxu0 0.0
    %923 = vmatprep.mubr.f32.mxu0 0.0
    %v924 = vand.u32 %v352, 4294901760
    %925 = vmatmul.mubr.f32.gmra.mxu0 %v924
    %v926 = vpop.f32.mrf.mxu0
    %v927 = vadd.f32 %v804, %v926
    %v928 = vpop.f32.mrf.mxu0
    %v929 = vadd.f32 %v806, %v928
    %930 = vmatprep.mubr.f32.mxu0 0.0
    %v931 = vand.u32 %v355, 4294901760
    %932 = vmatmul.mubr.f32.gmra.mxu0 %v931
    %v933 = vpop.f32.mrf.mxu0
    %v934 = vadd.f32 %v813, %v933
    %v935 = vpop.f32.mrf.mxu0
    %v936 = vadd.f32 %v815, %v935
    %937 = vmatprep.mubr.f32.mxu0 0.0
    %v938 = vand.u32 %v358, 4294901760
    %939 = vmatmul.mubr.f32.gmra.mxu0 %v938
    %v940 = vpop.f32.mrf.mxu0
    %v941 = vadd.f32 %v822, %v940
    %v942 = vpop.f32.mrf.mxu0
    %v943 = vadd.f32 %v824, %v942
    %944 = vmatprep.mubr.f32.mxu0 0.0
    %v945 = vand.u32 %v361, 4294901760
    %946 = vmatmul.mubr.f32.gmra.mxu0 %v945
    %v947 = vpop.f32.mrf.mxu0
    %v948 = vadd.f32 %v831, %v947
    %v949 = vpop.f32.mrf.mxu0
    %v950 = vadd.f32 %v833, %v949
    %951 = vdwg.mxu0
    %952 = vmatprep.subr.mxu0 0.0
    %953 = vmatpush1.msra.mxu0 0.0
    %954 = vmatprep.subr.mxu0 0.0
    %955 = vmatpush1.msra.mxu0 0.0
    %956 = vmatprep.subr.mxu0 0.0
    %957 = vmatpush1.msra.mxu0 0.0
    %958 = vmatprep.subr.mxu0 0.0
    %959 = vmatpush1.msra.mxu0 0.0
    %960 = vmatprep.subr.mxu0 0.0
    %961 = vmatpush1.msra.mxu0 0.0
    %962 = vmatprep.subr.mxu0 0.0
    %963 = vmatpush1.msra.mxu0 0.0
    %964 = vmatprep.subr.mxu0 0.0
    %965 = vmatpush1.msra.mxu0 0.0
    %966 = vmatprep.subr.mxu0 0.0
    %967 = vmatpush1.msra.mxu0 0.0
    %968 = vmatprep.subr.mxu0 0.0
    %969 = vmatpush1.msra.mxu0 0.0
    %970 = vmatprep.subr.mxu0 0.0
    %971 = vmatpush1.msra.mxu0 0.0
    %972 = vmatprep.subr.mxu0 0.0
    %973 = vmatpush1.msra.mxu0 0.0
    %974 = vmatprep.subr.mxu0 0.0
    %975 = vmatpush1.msra.mxu0 0.0
    %v976 = vand.u32 %v335, 4294901760
    %977 = vmatprep.subr.mxu0 %v976
    %v978 = vand.u32 %v334, 4294901760
    %979 = vmatpush1.msra.mxu0 %v978
    %v980 = vand.u32 %v319, 4294901760
    %981 = vmatprep.subr.mxu0 %v980
    %v982 = vand.u32 %v318, 4294901760
    %983 = vmatpush1.msra.mxu0 %v982
    %v984 = vand.u32 %v303, 4294901760
    %985 = vmatprep.subr.mxu0 %v984
    %v986 = vand.u32 %v302, 4294901760
    %987 = vmatpush1.msra.mxu0 %v986
    %v988 = vand.u32 %v287, 4294901760
    %989 = vmatprep.subr.mxu0 %v988
    %v990 = vand.u32 %v286, 4294901760
    %991 = vmatpush1.msra.mxu0 %v990
    %992 = vmatprep.subr.mxu0 0.0
    %993 = vmatpush2.msra.mxu0 0.0
    %994 = vmatprep.subr.mxu0 0.0
    %995 = vmatpush2.msra.mxu0 0.0
    %996 = vmatprep.subr.mxu0 0.0
    %997 = vmatpush2.msra.mxu0 0.0
    %998 = vmatprep.subr.mxu0 0.0
    %999 = vmatpush2.msra.mxu0 0.0
    %1000 = vmatprep.subr.mxu0 0.0
    %1001 = vmatpush2.msra.mxu0 0.0
    %1002 = vmatprep.subr.mxu0 0.0
    %1003 = vmatpush2.msra.mxu0 0.0
    %1004 = vmatprep.subr.mxu0 0.0
    %1005 = vmatpush2.msra.mxu0 0.0
    %1006 = vmatprep.subr.mxu0 0.0
    %1007 = vmatpush2.msra.mxu0 0.0
    %1008 = vmatprep.subr.mxu0 0.0
    %1009 = vmatpush2.msra.mxu0 0.0
    %1010 = vmatprep.subr.mxu0 0.0
    %1011 = vmatpush2.msra.mxu0 0.0
    %1012 = vmatprep.subr.mxu0 0.0
    %1013 = vmatpush2.msra.mxu0 0.0
    %1014 = vmatprep.subr.mxu0 0.0
    %1015 = vmatpush2.msra.mxu0 0.0
    %1016 = vmatprep.subr.mxu0 0.0
    %1017 = vmatpush2.msra.mxu0 0.0
    %1018 = vmatprep.subr.mxu0 0.0
    %1019 = vmatpush2.msra.mxu0 0.0
    %1020 = vmatprep.subr.mxu0 0.0
    %1021 = vmatpush2.msra.mxu0 0.0
    %1022 = vmatprep.subr.mxu0 0.0
    %1023 = vmatpush2.msra.mxu0 0.0
    %1024 = vmatprep.mubr.f32.mxu0 0.0
    %v1025 = vand.u32 %v352, 4294901760
    %1026 = vmatmul.mubr.f32.gmra.mxu0 %v1025
    %v1027 = vpop.f32.mrf.mxu0
    %v1028 = vadd.f32 %v927, %v1027
    %v1029 = vpop.f32.mrf.mxu0
    %v1030 = vadd.f32 %v929, %v1029
    %1031 = vmatprep.mubr.f32.mxu0 0.0
    %v1032 = vand.u32 %v355, 4294901760
    %1033 = vmatmul.mubr.f32.gmra.mxu0 %v1032
    %v1034 = vpop.f32.mrf.mxu0
    %v1035 = vadd.f32 %v934, %v1034
    %v1036 = vpop.f32.mrf.mxu0
    %v1037 = vadd.f32 %v936, %v1036
    %1038 = vmatprep.mubr.f32.mxu0 0.0
    %v1039 = vand.u32 %v358, 4294901760
    %1040 = vmatmul.mubr.f32.gmra.mxu0 %v1039
    %v1041 = vpop.f32.mrf.mxu0
    %v1042 = vadd.f32 %v941, %v1041
    %v1043 = vpop.f32.mrf.mxu0
    %v1044 = vadd.f32 %v943, %v1043
    %1045 = vmatprep.mubr.f32.mxu0 0.0
    %v1046 = vand.u32 %v361, 4294901760
    %1047 = vmatmul.mubr.f32.gmra.mxu0 %v1046
    %v1048 = vpop.f32.mrf.mxu0
    %v1049 = vadd.f32 %v948, %v1048
    %v1050 = vpop.f32.mrf.mxu0
    %v1051 = vadd.f32 %v950, %v1050
    %1052 = vdwg.mxu0
    %1053 = vmatprep.subr.mxu0 0.0
    %1054 = vmatpush1.msra.mxu0 0.0
    %1055 = vmatprep.subr.mxu0 0.0
    %1056 = vmatpush1.msra.mxu0 0.0
    %1057 = vmatprep.subr.mxu0 0.0
    %1058 = vmatpush1.msra.mxu0 0.0
    %1059 = vmatprep.subr.mxu0 0.0
    %1060 = vmatpush1.msra.mxu0 0.0
    %1061 = vmatprep.subr.mxu0 0.0
    %1062 = vmatpush1.msra.mxu0 0.0
    %1063 = vmatprep.subr.mxu0 0.0
    %1064 = vmatpush1.msra.mxu0 0.0
    %1065 = vmatprep.subr.mxu0 0.0
    %1066 = vmatpush1.msra.mxu0 0.0
    %1067 = vmatprep.subr.mxu0 0.0
    %1068 = vmatpush1.msra.mxu0 0.0
    %1069 = vmatprep.subr.mxu0 0.0
    %1070 = vmatpush1.msra.mxu0 0.0
    %1071 = vmatprep.subr.mxu0 0.0
    %1072 = vmatpush1.msra.mxu0 0.0
    %1073 = vmatprep.subr.mxu0 0.0
    %1074 = vmatpush1.msra.mxu0 0.0
    %1075 = vmatprep.subr.mxu0 0.0
    %1076 = vmatpush1.msra.mxu0 0.0
    %v1077 = vand.u32 %v337, 4294901760
    %1078 = vmatprep.subr.mxu0 %v1077
    %v1079 = vand.u32 %v336, 4294901760
    %1080 = vmatpush1.msra.mxu0 %v1079
    %v1081 = vand.u32 %v321, 4294901760
    %1082 = vmatprep.subr.mxu0 %v1081
    %v1083 = vand.u32 %v320, 4294901760
    %1084 = vmatpush1.msra.mxu0 %v1083
    %v1085 = vand.u32 %v305, 4294901760
    %1086 = vmatprep.subr.mxu0 %v1085
    %v1087 = vand.u32 %v304, 4294901760
    %1088 = vmatpush1.msra.mxu0 %v1087
    %v1089 = vand.u32 %v289, 4294901760
    %1090 = vmatprep.subr.mxu0 %v1089
    %v1091 = vand.u32 %v288, 4294901760
    %1092 = vmatpush1.msra.mxu0 %v1091
    %1093 = vmatprep.subr.mxu0 0.0
    %1094 = vmatpush2.msra.mxu0 0.0
    %1095 = vmatprep.subr.mxu0 0.0
    %1096 = vmatpush2.msra.mxu0 0.0
    %1097 = vmatprep.subr.mxu0 0.0
    %1098 = vmatpush2.msra.mxu0 0.0
    %1099 = vmatprep.subr.mxu0 0.0
    %1100 = vmatpush2.msra.mxu0 0.0
    %1101 = vmatprep.subr.mxu0 0.0
    %1102 = vmatpush2.msra.mxu0 0.0
    %1103 = vmatprep.subr.mxu0 0.0
    %1104 = vmatpush2.msra.mxu0 0.0
    %1105 = vmatprep.subr.mxu0 0.0
    %1106 = vmatpush2.msra.mxu0 0.0
    %1107 = vmatprep.subr.mxu0 0.0
    %1108 = vmatpush2.msra.mxu0 0.0
    %1109 = vmatprep.subr.mxu0 0.0
    %1110 = vmatpush2.msra.mxu0 0.0
    %1111 = vmatprep.subr.mxu0 0.0
    %1112 = vmatpush2.msra.mxu0 0.0
    %1113 = vmatprep.subr.mxu0 0.0
    %1114 = vmatpush2.msra.mxu0 0.0
    %1115 = vmatprep.subr.mxu0 0.0
    %1116 = vmatpush2.msra.mxu0 0.0
    %1117 = vmatprep.subr.mxu0 0.0
    %1118 = vmatpush2.msra.mxu0 0.0
    %1119 = vmatprep.subr.mxu0 0.0
    %1120 = vmatpush2.msra.mxu0 0.0
    %1121 = vmatprep.subr.mxu0 0.0
    %1122 = vmatpush2.msra.mxu0 0.0
    %1123 = vmatprep.subr.mxu0 0.0
    %1124 = vmatpush2.msra.mxu0 0.0
    %1125 = vmatprep.mubr.f32.mxu0 0.0
    %v1126 = vand.u32 %v352, 4294901760
    %v1127 = vsub.f32 %v352, %v1126
    %v1128 = vand.u32 %v1127, 4294901760
    %v1129 = vsub.f32 %v1127, %v1128
    %v1130 = vand.u32 %v1129, 4294901760
    %1131 = vmatmul.mubr.f32.gmra.mxu0 %v1130
    %v1132 = vpop.f32.mrf.mxu0
    %v1133 = vadd.f32 0.0, %v1132
    %v1134 = vpop.f32.mrf.mxu0
    %v1135 = vadd.f32 0.0, %v1134
    %1136 = vmatprep.mubr.f32.mxu0 0.0
    %v1137 = vand.u32 %v355, 4294901760
    %v1138 = vsub.f32 %v355, %v1137
    %v1139 = vand.u32 %v1138, 4294901760
    %v1140 = vsub.f32 %v1138, %v1139
    %v1141 = vand.u32 %v1140, 4294901760
    %1142 = vmatmul.mubr.f32.gmra.mxu0 %v1141
    %v1143 = vpop.f32.mrf.mxu0
    %v1144 = vadd.f32 0.0, %v1143
    %v1145 = vpop.f32.mrf.mxu0
    %v1146 = vadd.f32 0.0, %v1145
    %1147 = vmatprep.mubr.f32.mxu0 0.0
    %v1148 = vand.u32 %v358, 4294901760
    %v1149 = vsub.f32 %v358, %v1148
    %v1150 = vand.u32 %v1149, 4294901760
    %v1151 = vsub.f32 %v1149, %v1150
    %v1152 = vand.u32 %v1151, 4294901760
    %1153 = vmatmul.mubr.f32.gmra.mxu0 %v1152
    %v1154 = vpop.f32.mrf.mxu0
    %v1155 = vadd.f32 0.0, %v1154
    %v1156 = vpop.f32.mrf.mxu0
    %v1157 = vadd.f32 0.0, %v1156
    %1158 = vmatprep.mubr.f32.mxu0 0.0
    %v1159 = vand.u32 %v361, 4294901760
    %v1160 = vsub.f32 %v361, %v1159
    %v1161 = vand.u32 %v1160, 4294901760
    %v1162 = vsub.f32 %v1160, %v1161
    %v1163 = vand.u32 %v1162, 4294901760
    %1164 = vmatmul.mubr.f32.gmra.mxu0 %v1163
    %v1165 = vpop.f32.mrf.mxu0
    %v1166 = vadd.f32 0.0, %v1165
    %v1167 = vpop.f32.mrf.mxu0
    %v1168 = vadd.f32 0.0, %v1167
    %1169 = vdwg.mxu0
    %1170 = vmatprep.subr.mxu0 0.0
    %1171 = vmatpush1.msra.mxu0 0.0
    %1172 = vmatprep.subr.mxu0 0.0
    %1173 = vmatpush1.msra.mxu0 0.0
    %1174 = vmatprep.subr.mxu0 0.0
    %1175 = vmatpush1.msra.mxu0 0.0
    %1176 = vmatprep.subr.mxu0 0.0
    %1177 = vmatpush1.msra.mxu0 0.0
    %1178 = vmatprep.subr.mxu0 0.0
    %1179 = vmatpush1.msra.mxu0 0.0
    %1180 = vmatprep.subr.mxu0 0.0
    %1181 = vmatpush1.msra.mxu0 0.0
    %1182 = vmatprep.subr.mxu0 0.0
    %1183 = vmatpush1.msra.mxu0 0.0
    %1184 = vmatprep.subr.mxu0 0.0
    %1185 = vmatpush1.msra.mxu0 0.0
    %1186 = vmatprep.subr.mxu0 0.0
    %1187 = vmatpush1.msra.mxu0 0.0
    %1188 = vmatprep.subr.mxu0 0.0
    %1189 = vmatpush1.msra.mxu0 0.0
    %1190 = vmatprep.subr.mxu0 0.0
    %1191 = vmatpush1.msra.mxu0 0.0
    %1192 = vmatprep.subr.mxu0 0.0
    %1193 = vmatpush1.msra.mxu0 0.0
    %v1194 = vand.u32 %v337, 4294901760
    %v1195 = vsub.f32 %v337, %v1194
    %v1196 = vand.u32 %v1195, 4294901760
    %v1197 = vsub.f32 %v1195, %v1196
    %v1198 = vand.u32 %v1197, 4294901760
    %1199 = vmatprep.subr.mxu0 %v1198
    %v1200 = vand.u32 %v336, 4294901760
    %v1201 = vsub.f32 %v336, %v1200
    %v1202 = vand.u32 %v1201, 4294901760
    %v1203 = vsub.f32 %v1201, %v1202
    %v1204 = vand.u32 %v1203, 4294901760
    %1205 = vmatpush1.msra.mxu0 %v1204
    %v1206 = vand.u32 %v321, 4294901760
    %v1207 = vsub.f32 %v321, %v1206
    %v1208 = vand.u32 %v1207, 4294901760
    %v1209 = vsub.f32 %v1207, %v1208
    %v1210 = vand.u32 %v1209, 4294901760
    %1211 = vmatprep.subr.mxu0 %v1210
    %v1212 = vand.u32 %v320, 4294901760
    %v1213 = vsub.f32 %v320, %v1212
    %v1214 = vand.u32 %v1213, 4294901760
    %v1215 = vsub.f32 %v1213, %v1214
    %v1216 = vand.u32 %v1215, 4294901760
    %1217 = vmatpush1.msra.mxu0 %v1216
    %v1218 = vand.u32 %v305, 4294901760
    %v1219 = vsub.f32 %v305, %v1218
    %v1220 = vand.u32 %v1219, 4294901760
    %v1221 = vsub.f32 %v1219, %v1220
    %v1222 = vand.u32 %v1221, 4294901760
    %1223 = vmatprep.subr.mxu0 %v1222
    %v1224 = vand.u32 %v304, 4294901760
    %v1225 = vsub.f32 %v304, %v1224
    %v1226 = vand.u32 %v1225, 4294901760
    %v1227 = vsub.f32 %v1225, %v1226
    %v1228 = vand.u32 %v1227, 4294901760
    %1229 = vmatpush1.msra.mxu0 %v1228
    %v1230 = vand.u32 %v289, 4294901760
    %v1231 = vsub.f32 %v289, %v1230
    %v1232 = vand.u32 %v1231, 4294901760
    %v1233 = vsub.f32 %v1231, %v1232
    %v1234 = vand.u32 %v1233, 4294901760
    %1235 = vmatprep.subr.mxu0 %v1234
    %v1236 = vand.u32 %v288, 4294901760
    %v1237 = vsub.f32 %v288, %v1236
    %v1238 = vand.u32 %v1237, 4294901760
    %v1239 = vsub.f32 %v1237, %v1238
    %v1240 = vand.u32 %v1239, 4294901760
    %1241 = vmatpush1.msra.mxu0 %v1240
    %1242 = vmatprep.subr.mxu0 0.0
    %1243 = vmatpush2.msra.mxu0 0.0
    %1244 = vmatprep.subr.mxu0 0.0
    %1245 = vmatpush2.msra.mxu0 0.0
    %1246 = vmatprep.subr.mxu0 0.0
    %1247 = vmatpush2.msra.mxu0 0.0
    %1248 = vmatprep.subr.mxu0 0.0
    %1249 = vmatpush2.msra.mxu0 0.0
    %1250 = vmatprep.subr.mxu0 0.0
    %1251 = vmatpush2.msra.mxu0 0.0
    %1252 = vmatprep.subr.mxu0 0.0
    %1253 = vmatpush2.msra.mxu0 0.0
    %1254 = vmatprep.subr.mxu0 0.0
    %1255 = vmatpush2.msra.mxu0 0.0
    %1256 = vmatprep.subr.mxu0 0.0
    %1257 = vmatpush2.msra.mxu0 0.0
    %1258 = vmatprep.subr.mxu0 0.0
    %1259 = vmatpush2.msra.mxu0 0.0
    %1260 = vmatprep.subr.mxu0 0.0
    %1261 = vmatpush2.msra.mxu0 0.0
    %1262 = vmatprep.subr.mxu0 0.0
    %1263 = vmatpush2.msra.mxu0 0.0
    %1264 = vmatprep.subr.mxu0 0.0
    %1265 = vmatpush2.msra.mxu0 0.0
    %1266 = vmatprep.subr.mxu0 0.0
    %1267 = vmatpush2.msra.mxu0 0.0
    %1268 = vmatprep.subr.mxu0 0.0
    %1269 = vmatpush2.msra.mxu0 0.0
    %1270 = vmatprep.subr.mxu0 0.0
    %1271 = vmatpush2.msra.mxu0 0.0
    %1272 = vmatprep.subr.mxu0 0.0
    %1273 = vmatpush2.msra.mxu0 0.0
    %1274 = vmatprep.mubr.f32.mxu0 0.0
    %v1275 = vand.u32 %v352, 4294901760
    %1276 = vmatmul.mubr.f32.gmra.mxu0 %v1275
    %v1277 = vpop.f32.mrf.mxu0
    %v1278 = vadd.f32 %v1133, %v1277
    %v1279 = vpop.f32.mrf.mxu0
    %v1280 = vadd.f32 %v1135, %v1279
    %1281 = vmatprep.mubr.f32.mxu0 0.0
    %v1282 = vand.u32 %v355, 4294901760
    %1283 = vmatmul.mubr.f32.gmra.mxu0 %v1282
    %v1284 = vpop.f32.mrf.mxu0
    %v1285 = vadd.f32 %v1144, %v1284
    %v1286 = vpop.f32.mrf.mxu0
    %v1287 = vadd.f32 %v1146, %v1286
    %1288 = vmatprep.mubr.f32.mxu0 0.0
    %v1289 = vand.u32 %v358, 4294901760
    %1290 = vmatmul.mubr.f32.gmra.mxu0 %v1289
    %v1291 = vpop.f32.mrf.mxu0
    %v1292 = vadd.f32 %v1155, %v1291
    %v1293 = vpop.f32.mrf.mxu0
    %v1294 = vadd.f32 %v1157, %v1293
    %1295 = vmatprep.mubr.f32.mxu0 0.0
    %v1296 = vand.u32 %v361, 4294901760
    %1297 = vmatmul.mubr.f32.gmra.mxu0 %v1296
    %v1298 = vpop.f32.mrf.mxu0
    %v1299 = vadd.f32 %v1166, %v1298
    %v1300 = vpop.f32.mrf.mxu0
    %v1301 = vadd.f32 %v1168, %v1300
    %1302 = vdwg.mxu0
    %1303 = vmatprep.subr.mxu0 0.0
    %1304 = vmatpush1.msra.mxu0 0.0
    %1305 = vmatprep.subr.mxu0 0.0
    %1306 = vmatpush1.msra.mxu0 0.0
    %1307 = vmatprep.subr.mxu0 0.0
    %1308 = vmatpush1.msra.mxu0 0.0
    %1309 = vmatprep.subr.mxu0 0.0
    %1310 = vmatpush1.msra.mxu0 0.0
    %1311 = vmatprep.subr.mxu0 0.0
    %1312 = vmatpush1.msra.mxu0 0.0
    %1313 = vmatprep.subr.mxu0 0.0
    %1314 = vmatpush1.msra.mxu0 0.0
    %1315 = vmatprep.subr.mxu0 0.0
    %1316 = vmatpush1.msra.mxu0 0.0
    %1317 = vmatprep.subr.mxu0 0.0
    %1318 = vmatpush1.msra.mxu0 0.0
    %1319 = vmatprep.subr.mxu0 0.0
    %1320 = vmatpush1.msra.mxu0 0.0
    %1321 = vmatprep.subr.mxu0 0.0
    %1322 = vmatpush1.msra.mxu0 0.0
    %1323 = vmatprep.subr.mxu0 0.0
    %1324 = vmatpush1.msra.mxu0 0.0
    %1325 = vmatprep.subr.mxu0 0.0
    %1326 = vmatpush1.msra.mxu0 0.0
    %v1327 = vand.u32 %v337, 4294901760
    %v1328 = vsub.f32 %v337, %v1327
    %1329 = vmatprep.subr.mxu0 %v1328
    %v1330 = vand.u32 %v336, 4294901760
    %v1331 = vsub.f32 %v336, %v1330
    %1332 = vmatpush1.msra.mxu0 %v1331
    %v1333 = vand.u32 %v321, 4294901760
    %v1334 = vsub.f32 %v321, %v1333
    %1335 = vmatprep.subr.mxu0 %v1334
    %v1336 = vand.u32 %v320, 4294901760
    %v1337 = vsub.f32 %v320, %v1336
    %1338 = vmatpush1.msra.mxu0 %v1337
    %v1339 = vand.u32 %v305, 4294901760
    %v1340 = vsub.f32 %v305, %v1339
    %1341 = vmatprep.subr.mxu0 %v1340
    %v1342 = vand.u32 %v304, 4294901760
    %v1343 = vsub.f32 %v304, %v1342
    %1344 = vmatpush1.msra.mxu0 %v1343
    %v1345 = vand.u32 %v289, 4294901760
    %v1346 = vsub.f32 %v289, %v1345
    %1347 = vmatprep.subr.mxu0 %v1346
    %v1348 = vand.u32 %v288, 4294901760
    %v1349 = vsub.f32 %v288, %v1348
    %1350 = vmatpush1.msra.mxu0 %v1349
    %1351 = vmatprep.subr.mxu0 0.0
    %1352 = vmatpush2.msra.mxu0 0.0
    %1353 = vmatprep.subr.mxu0 0.0
    %1354 = vmatpush2.msra.mxu0 0.0
    %1355 = vmatprep.subr.mxu0 0.0
    %1356 = vmatpush2.msra.mxu0 0.0
    %1357 = vmatprep.subr.mxu0 0.0
    %1358 = vmatpush2.msra.mxu0 0.0
    %1359 = vmatprep.subr.mxu0 0.0
    %1360 = vmatpush2.msra.mxu0 0.0
    %1361 = vmatprep.subr.mxu0 0.0
    %1362 = vmatpush2.msra.mxu0 0.0
    %1363 = vmatprep.subr.mxu0 0.0
    %1364 = vmatpush2.msra.mxu0 0.0
    %1365 = vmatprep.subr.mxu0 0.0
    %1366 = vmatpush2.msra.mxu0 0.0
    %1367 = vmatprep.subr.mxu0 0.0
    %1368 = vmatpush2.msra.mxu0 0.0
    %1369 = vmatprep.subr.mxu0 0.0
    %1370 = vmatpush2.msra.mxu0 0.0
    %1371 = vmatprep.subr.mxu0 0.0
    %1372 = vmatpush2.msra.mxu0 0.0
    %1373 = vmatprep.subr.mxu0 0.0
    %1374 = vmatpush2.msra.mxu0 0.0
    %1375 = vmatprep.subr.mxu0 0.0
    %1376 = vmatpush2.msra.mxu0 0.0
    %1377 = vmatprep.subr.mxu0 0.0
    %1378 = vmatpush2.msra.mxu0 0.0
    %1379 = vmatprep.subr.mxu0 0.0
    %1380 = vmatpush2.msra.mxu0 0.0
    %1381 = vmatprep.subr.mxu0 0.0
    %1382 = vmatpush2.msra.mxu0 0.0
    %1383 = vmatprep.mubr.f32.mxu0 0.0
    %v1384 = vand.u32 %v352, 4294901760
    %v1385 = vsub.f32 %v352, %v1384
    %1386 = vmatmul.mubr.f32.gmra.mxu0 %v1385
    %v1387 = vpop.f32.mrf.mxu0
    %v1388 = vadd.f32 %v1278, %v1387
    %v1389 = vpop.f32.mrf.mxu0
    %v1390 = vadd.f32 %v1280, %v1389
    %1391 = vmatprep.mubr.f32.mxu0 0.0
    %v1392 = vand.u32 %v355, 4294901760
    %v1393 = vsub.f32 %v355, %v1392
    %1394 = vmatmul.mubr.f32.gmra.mxu0 %v1393
    %v1395 = vpop.f32.mrf.mxu0
    %v1396 = vadd.f32 %v1285, %v1395
    %v1397 = vpop.f32.mrf.mxu0
    %v1398 = vadd.f32 %v1287, %v1397
    %1399 = vmatprep.mubr.f32.mxu0 0.0
    %v1400 = vand.u32 %v358, 4294901760
    %v1401 = vsub.f32 %v358, %v1400
    %1402 = vmatmul.mubr.f32.gmra.mxu0 %v1401
    %v1403 = vpop.f32.mrf.mxu0
    %v1404 = vadd.f32 %v1292, %v1403
    %v1405 = vpop.f32.mrf.mxu0
    %v1406 = vadd.f32 %v1294, %v1405
    %1407 = vmatprep.mubr.f32.mxu0 0.0
    %v1408 = vand.u32 %v361, 4294901760
    %v1409 = vsub.f32 %v361, %v1408
    %1410 = vmatmul.mubr.f32.gmra.mxu0 %v1409
    %v1411 = vpop.f32.mrf.mxu0
    %v1412 = vadd.f32 %v1299, %v1411
    %v1413 = vpop.f32.mrf.mxu0
    %v1414 = vadd.f32 %v1301, %v1413
    %1415 = vdwg.mxu0
    %1416 = vmatprep.subr.mxu0 0.0
    %1417 = vmatpush1.msra.mxu0 0.0
    %1418 = vmatprep.subr.mxu0 0.0
    %1419 = vmatpush1.msra.mxu0 0.0
    %1420 = vmatprep.subr.mxu0 0.0
    %1421 = vmatpush1.msra.mxu0 0.0
    %1422 = vmatprep.subr.mxu0 0.0
    %1423 = vmatpush1.msra.mxu0 0.0
    %1424 = vmatprep.subr.mxu0 0.0
    %1425 = vmatpush1.msra.mxu0 0.0
    %1426 = vmatprep.subr.mxu0 0.0
    %1427 = vmatpush1.msra.mxu0 0.0
    %1428 = vmatprep.subr.mxu0 0.0
    %1429 = vmatpush1.msra.mxu0 0.0
    %1430 = vmatprep.subr.mxu0 0.0
    %1431 = vmatpush1.msra.mxu0 0.0
    %1432 = vmatprep.subr.mxu0 0.0
    %1433 = vmatpush1.msra.mxu0 0.0
    %1434 = vmatprep.subr.mxu0 0.0
    %1435 = vmatpush1.msra.mxu0 0.0
    %1436 = vmatprep.subr.mxu0 0.0
    %1437 = vmatpush1.msra.mxu0 0.0
    %1438 = vmatprep.subr.mxu0 0.0
    %1439 = vmatpush1.msra.mxu0 0.0
    %v1440 = vand.u32 %v337, 4294901760
    %1441 = vmatprep.subr.mxu0 %v1440
    %v1442 = vand.u32 %v336, 4294901760
    %1443 = vmatpush1.msra.mxu0 %v1442
    %v1444 = vand.u32 %v321, 4294901760
    %1445 = vmatprep.subr.mxu0 %v1444
    %v1446 = vand.u32 %v320, 4294901760
    %1447 = vmatpush1.msra.mxu0 %v1446
    %v1448 = vand.u32 %v305, 4294901760
    %1449 = vmatprep.subr.mxu0 %v1448
    %v1450 = vand.u32 %v304, 4294901760
    %1451 = vmatpush1.msra.mxu0 %v1450
    %v1452 = vand.u32 %v289, 4294901760
    %1453 = vmatprep.subr.mxu0 %v1452
    %v1454 = vand.u32 %v288, 4294901760
    %1455 = vmatpush1.msra.mxu0 %v1454
    %1456 = vmatprep.subr.mxu0 0.0
    %1457 = vmatpush2.msra.mxu0 0.0
    %1458 = vmatprep.subr.mxu0 0.0
    %1459 = vmatpush2.msra.mxu0 0.0
    %1460 = vmatprep.subr.mxu0 0.0
    %1461 = vmatpush2.msra.mxu0 0.0
    %1462 = vmatprep.subr.mxu0 0.0
    %1463 = vmatpush2.msra.mxu0 0.0
    %1464 = vmatprep.subr.mxu0 0.0
    %1465 = vmatpush2.msra.mxu0 0.0
    %1466 = vmatprep.subr.mxu0 0.0
    %1467 = vmatpush2.msra.mxu0 0.0
    %1468 = vmatprep.subr.mxu0 0.0
    %1469 = vmatpush2.msra.mxu0 0.0
    %1470 = vmatprep.subr.mxu0 0.0
    %1471 = vmatpush2.msra.mxu0 0.0
    %1472 = vmatprep.subr.mxu0 0.0
    %1473 = vmatpush2.msra.mxu0 0.0
    %1474 = vmatprep.subr.mxu0 0.0
    %1475 = vmatpush2.msra.mxu0 0.0
    %1476 = vmatprep.subr.mxu0 0.0
    %1477 = vmatpush2.msra.mxu0 0.0
    %1478 = vmatprep.subr.mxu0 0.0
    %1479 = vmatpush2.msra.mxu0 0.0
    %1480 = vmatprep.subr.mxu0 0.0
    %1481 = vmatpush2.msra.mxu0 0.0
    %1482 = vmatprep.subr.mxu0 0.0
    %1483 = vmatpush2.msra.mxu0 0.0
    %1484 = vmatprep.subr.mxu0 0.0
    %1485 = vmatpush2.msra.mxu0 0.0
    %1486 = vmatprep.subr.mxu0 0.0
    %1487 = vmatpush2.msra.mxu0 0.0
    %1488 = vmatprep.mubr.f32.mxu0 0.0
    %v1489 = vand.u32 %v352, 4294901760
    %v1490 = vsub.f32 %v352, %v1489
    %v1491 = vand.u32 %v1490, 4294901760
    %1492 = vmatmul.mubr.f32.gmra.mxu0 %v1491
    %v1493 = vpop.f32.mrf.mxu0
    %v1494 = vadd.f32 %v1388, %v1493
    %v1495 = vpop.f32.mrf.mxu0
    %v1496 = vadd.f32 %v1390, %v1495
    %1497 = vmatprep.mubr.f32.mxu0 0.0
    %v1498 = vand.u32 %v355, 4294901760
    %v1499 = vsub.f32 %v355, %v1498
    %v1500 = vand.u32 %v1499, 4294901760
    %1501 = vmatmul.mubr.f32.gmra.mxu0 %v1500
    %v1502 = vpop.f32.mrf.mxu0
    %v1503 = vadd.f32 %v1396, %v1502
    %v1504 = vpop.f32.mrf.mxu0
    %v1505 = vadd.f32 %v1398, %v1504
    %1506 = vmatprep.mubr.f32.mxu0 0.0
    %v1507 = vand.u32 %v358, 4294901760
    %v1508 = vsub.f32 %v358, %v1507
    %v1509 = vand.u32 %v1508, 4294901760
    %1510 = vmatmul.mubr.f32.gmra.mxu0 %v1509
    %v1511 = vpop.f32.mrf.mxu0
    %v1512 = vadd.f32 %v1404, %v1511
    %v1513 = vpop.f32.mrf.mxu0
    %v1514 = vadd.f32 %v1406, %v1513
    %1515 = vmatprep.mubr.f32.mxu0 0.0
    %v1516 = vand.u32 %v361, 4294901760
    %v1517 = vsub.f32 %v361, %v1516
    %v1518 = vand.u32 %v1517, 4294901760
    %1519 = vmatmul.mubr.f32.gmra.mxu0 %v1518
    %v1520 = vpop.f32.mrf.mxu0
    %v1521 = vadd.f32 %v1412, %v1520
    %v1522 = vpop.f32.mrf.mxu0
    %v1523 = vadd.f32 %v1414, %v1522
    %1524 = vdwg.mxu0
    %1525 = vmatprep.subr.mxu0 0.0
    %1526 = vmatpush1.msra.mxu0 0.0
    %1527 = vmatprep.subr.mxu0 0.0
    %1528 = vmatpush1.msra.mxu0 0.0
    %1529 = vmatprep.subr.mxu0 0.0
    %1530 = vmatpush1.msra.mxu0 0.0
    %1531 = vmatprep.subr.mxu0 0.0
    %1532 = vmatpush1.msra.mxu0 0.0
    %1533 = vmatprep.subr.mxu0 0.0
    %1534 = vmatpush1.msra.mxu0 0.0
    %1535 = vmatprep.subr.mxu0 0.0
    %1536 = vmatpush1.msra.mxu0 0.0
    %1537 = vmatprep.subr.mxu0 0.0
    %1538 = vmatpush1.msra.mxu0 0.0
    %1539 = vmatprep.subr.mxu0 0.0
    %1540 = vmatpush1.msra.mxu0 0.0
    %1541 = vmatprep.subr.mxu0 0.0
    %1542 = vmatpush1.msra.mxu0 0.0
    %1543 = vmatprep.subr.mxu0 0.0
    %1544 = vmatpush1.msra.mxu0 0.0
    %1545 = vmatprep.subr.mxu0 0.0
    %1546 = vmatpush1.msra.mxu0 0.0
    %1547 = vmatprep.subr.mxu0 0.0
    %1548 = vmatpush1.msra.mxu0 0.0
    %v1549 = vand.u32 %v337, 4294901760
    %v1550 = vsub.f32 %v337, %v1549
    %v1551 = vand.u32 %v1550, 4294901760
    %1552 = vmatprep.subr.mxu0 %v1551
    %v1553 = vand.u32 %v336, 4294901760
    %v1554 = vsub.f32 %v336, %v1553
    %v1555 = vand.u32 %v1554, 4294901760
    %1556 = vmatpush1.msra.mxu0 %v1555
    %v1557 = vand.u32 %v321, 4294901760
    %v1558 = vsub.f32 %v321, %v1557
    %v1559 = vand.u32 %v1558, 4294901760
    %1560 = vmatprep.subr.mxu0 %v1559
    %v1561 = vand.u32 %v320, 4294901760
    %v1562 = vsub.f32 %v320, %v1561
    %v1563 = vand.u32 %v1562, 4294901760
    %1564 = vmatpush1.msra.mxu0 %v1563
    %v1565 = vand.u32 %v305, 4294901760
    %v1566 = vsub.f32 %v305, %v1565
    %v1567 = vand.u32 %v1566, 4294901760
    %1568 = vmatprep.subr.mxu0 %v1567
    %v1569 = vand.u32 %v304, 4294901760
    %v1570 = vsub.f32 %v304, %v1569
    %v1571 = vand.u32 %v1570, 4294901760
    %1572 = vmatpush1.msra.mxu0 %v1571
    %v1573 = vand.u32 %v289, 4294901760
    %v1574 = vsub.f32 %v289, %v1573
    %v1575 = vand.u32 %v1574, 4294901760
    %1576 = vmatprep.subr.mxu0 %v1575
    %v1577 = vand.u32 %v288, 4294901760
    %v1578 = vsub.f32 %v288, %v1577
    %v1579 = vand.u32 %v1578, 4294901760
    %1580 = vmatpush1.msra.mxu0 %v1579
    %1581 = vmatprep.subr.mxu0 0.0
    %1582 = vmatpush2.msra.mxu0 0.0
    %1583 = vmatprep.subr.mxu0 0.0
    %1584 = vmatpush2.msra.mxu0 0.0
    %1585 = vmatprep.subr.mxu0 0.0
    %1586 = vmatpush2.msra.mxu0 0.0
    %1587 = vmatprep.subr.mxu0 0.0
    %1588 = vmatpush2.msra.mxu0 0.0
    %1589 = vmatprep.subr.mxu0 0.0
    %1590 = vmatpush2.msra.mxu0 0.0
    %1591 = vmatprep.subr.mxu0 0.0
    %1592 = vmatpush2.msra.mxu0 0.0
    %1593 = vmatprep.subr.mxu0 0.0
    %1594 = vmatpush2.msra.mxu0 0.0
    %1595 = vmatprep.subr.mxu0 0.0
    %1596 = vmatpush2.msra.mxu0 0.0
    %1597 = vmatprep.subr.mxu0 0.0
    %1598 = vmatpush2.msra.mxu0 0.0
    %1599 = vmatprep.subr.mxu0 0.0
    %1600 = vmatpush2.msra.mxu0 0.0
    %1601 = vmatprep.subr.mxu0 0.0
    %1602 = vmatpush2.msra.mxu0 0.0
    %1603 = vmatprep.subr.mxu0 0.0
    %1604 = vmatpush2.msra.mxu0 0.0
    %1605 = vmatprep.subr.mxu0 0.0
    %1606 = vmatpush2.msra.mxu0 0.0
    %1607 = vmatprep.subr.mxu0 0.0
    %1608 = vmatpush2.msra.mxu0 0.0
    %1609 = vmatprep.subr.mxu0 0.0
    %1610 = vmatpush2.msra.mxu0 0.0
    %1611 = vmatprep.subr.mxu0 0.0
    %1612 = vmatpush2.msra.mxu0 0.0
    %1613 = vmatprep.mubr.f32.mxu0 0.0
    %v1614 = vand.u32 %v352, 4294901760
    %1615 = vmatmul.mubr.f32.gmra.mxu0 %v1614
    %v1616 = vpop.f32.mrf.mxu0
    %v1617 = vadd.f32 %v1494, %v1616
    %v1618 = vpop.f32.mrf.mxu0
    %v1619 = vadd.f32 %v1496, %v1618
    %1620 = vmatprep.mubr.f32.mxu0 0.0
    %v1621 = vand.u32 %v355, 4294901760
    %1622 = vmatmul.mubr.f32.gmra.mxu0 %v1621
    %v1623 = vpop.f32.mrf.mxu0
    %v1624 = vadd.f32 %v1503, %v1623
    %v1625 = vpop.f32.mrf.mxu0
    %v1626 = vadd.f32 %v1505, %v1625
    %1627 = vmatprep.mubr.f32.mxu0 0.0
    %v1628 = vand.u32 %v358, 4294901760
    %1629 = vmatmul.mubr.f32.gmra.mxu0 %v1628
    %v1630 = vpop.f32.mrf.mxu0
    %v1631 = vadd.f32 %v1512, %v1630
    %v1632 = vpop.f32.mrf.mxu0
    %v1633 = vadd.f32 %v1514, %v1632
    %1634 = vmatprep.mubr.f32.mxu0 0.0
    %v1635 = vand.u32 %v361, 4294901760
    %1636 = vmatmul.mubr.f32.gmra.mxu0 %v1635
    %v1637 = vpop.f32.mrf.mxu0
    %v1638 = vadd.f32 %v1521, %v1637
    %v1639 = vpop.f32.mrf.mxu0
    %v1640 = vadd.f32 %v1523, %v1639
    %1641 = vdwg.mxu0
    %1642 = vmatprep.subr.mxu0 0.0
    %1643 = vmatpush1.msra.mxu0 0.0
    %1644 = vmatprep.subr.mxu0 0.0
    %1645 = vmatpush1.msra.mxu0 0.0
    %1646 = vmatprep.subr.mxu0 0.0
    %1647 = vmatpush1.msra.mxu0 0.0
    %1648 = vmatprep.subr.mxu0 0.0
    %1649 = vmatpush1.msra.mxu0 0.0
    %1650 = vmatprep.subr.mxu0 0.0
    %1651 = vmatpush1.msra.mxu0 0.0
    %1652 = vmatprep.subr.mxu0 0.0
    %1653 = vmatpush1.msra.mxu0 0.0
    %1654 = vmatprep.subr.mxu0 0.0
    %1655 = vmatpush1.msra.mxu0 0.0
    %1656 = vmatprep.subr.mxu0 0.0
    %1657 = vmatpush1.msra.mxu0 0.0
    %1658 = vmatprep.subr.mxu0 0.0
    %1659 = vmatpush1.msra.mxu0 0.0
    %1660 = vmatprep.subr.mxu0 0.0
    %1661 = vmatpush1.msra.mxu0 0.0
    %1662 = vmatprep.subr.mxu0 0.0
    %1663 = vmatpush1.msra.mxu0 0.0
    %1664 = vmatprep.subr.mxu0 0.0
    %1665 = vmatpush1.msra.mxu0 0.0
    %v1666 = vand.u32 %v337, 4294901760
    %1667 = vmatprep.subr.mxu0 %v1666
    %v1668 = vand.u32 %v336, 4294901760
    %1669 = vmatpush1.msra.mxu0 %v1668
    %v1670 = vand.u32 %v321, 4294901760
    %1671 = vmatprep.subr.mxu0 %v1670
    %v1672 = vand.u32 %v320, 4294901760
    %1673 = vmatpush1.msra.mxu0 %v1672
    %v1674 = vand.u32 %v305, 4294901760
    %1675 = vmatprep.subr.mxu0 %v1674
    %v1676 = vand.u32 %v304, 4294901760
    %1677 = vmatpush1.msra.mxu0 %v1676
    %v1678 = vand.u32 %v289, 4294901760
    %1679 = vmatprep.subr.mxu0 %v1678
    %v1680 = vand.u32 %v288, 4294901760
    %1681 = vmatpush1.msra.mxu0 %v1680
    %1682 = vmatprep.subr.mxu0 0.0
    %1683 = vmatpush2.msra.mxu0 0.0
    %1684 = vmatprep.subr.mxu0 0.0
    %1685 = vmatpush2.msra.mxu0 0.0
    %1686 = vmatprep.subr.mxu0 0.0
    %1687 = vmatpush2.msra.mxu0 0.0
    %1688 = vmatprep.subr.mxu0 0.0
    %1689 = vmatpush2.msra.mxu0 0.0
    %1690 = vmatprep.subr.mxu0 0.0
    %1691 = vmatpush2.msra.mxu0 0.0
    %1692 = vmatprep.subr.mxu0 0.0
    %1693 = vmatpush2.msra.mxu0 0.0
    %1694 = vmatprep.subr.mxu0 0.0
    %1695 = vmatpush2.msra.mxu0 0.0
    %1696 = vmatprep.subr.mxu0 0.0
    %1697 = vmatpush2.msra.mxu0 0.0
    %1698 = vmatprep.subr.mxu0 0.0
    %1699 = vmatpush2.msra.mxu0 0.0
    %1700 = vmatprep.subr.mxu0 0.0
    %1701 = vmatpush2.msra.mxu0 0.0
    %1702 = vmatprep.subr.mxu0 0.0
    %1703 = vmatpush2.msra.mxu0 0.0
    %1704 = vmatprep.subr.mxu0 0.0
    %1705 = vmatpush2.msra.mxu0 0.0
    %1706 = vmatprep.subr.mxu0 0.0
    %1707 = vmatpush2.msra.mxu0 0.0
    %1708 = vmatprep.subr.mxu0 0.0
    %1709 = vmatpush2.msra.mxu0 0.0
    %1710 = vmatprep.subr.mxu0 0.0
    %1711 = vmatpush2.msra.mxu0 0.0
    %1712 = vmatprep.subr.mxu0 0.0
    %1713 = vmatpush2.msra.mxu0 0.0
    %1714 = vmatprep.mubr.f32.mxu0 0.0
    %v1715 = vand.u32 %v352, 4294901760
    %1716 = vmatmul.mubr.f32.gmra.mxu0 %v1715
    %v1717 = vpop.f32.mrf.mxu0
    %v1718 = vadd.f32 %v1617, %v1717
    %v1719 = vpop.f32.mrf.mxu0
    %v1720 = vadd.f32 %v1619, %v1719
    %1721 = vmatprep.mubr.f32.mxu0 0.0
    %v1722 = vand.u32 %v355, 4294901760
    %1723 = vmatmul.mubr.f32.gmra.mxu0 %v1722
    %v1724 = vpop.f32.mrf.mxu0
    %v1725 = vadd.f32 %v1624, %v1724
    %v1726 = vpop.f32.mrf.mxu0
    %v1727 = vadd.f32 %v1626, %v1726
    %1728 = vmatprep.mubr.f32.mxu0 0.0
    %v1729 = vand.u32 %v358, 4294901760
    %1730 = vmatmul.mubr.f32.gmra.mxu0 %v1729
    %v1731 = vpop.f32.mrf.mxu0
    %v1732 = vadd.f32 %v1631, %v1731
    %v1733 = vpop.f32.mrf.mxu0
    %v1734 = vadd.f32 %v1633, %v1733
    %1735 = vmatprep.mubr.f32.mxu0 0.0
    %v1736 = vand.u32 %v361, 4294901760
    %1737 = vmatmul.mubr.f32.gmra.mxu0 %v1736
    %v1738 = vpop.f32.mrf.mxu0
    %v1739 = vadd.f32 %v1638, %v1738
    %v1740 = vpop.f32.mrf.mxu0
    %v1741 = vadd.f32 %v1640, %v1740
    %1742 = vdwg.mxu0
    %1743 = vmatprep.subr.mxu0 0.0
    %1744 = vmatpush1.msra.mxu0 0.0
    %1745 = vmatprep.subr.mxu0 0.0
    %1746 = vmatpush1.msra.mxu0 0.0
    %1747 = vmatprep.subr.mxu0 0.0
    %1748 = vmatpush1.msra.mxu0 0.0
    %1749 = vmatprep.subr.mxu0 0.0
    %1750 = vmatpush1.msra.mxu0 0.0
    %1751 = vmatprep.subr.mxu0 0.0
    %1752 = vmatpush1.msra.mxu0 0.0
    %1753 = vmatprep.subr.mxu0 0.0
    %1754 = vmatpush1.msra.mxu0 0.0
    %1755 = vmatprep.subr.mxu0 0.0
    %1756 = vmatpush1.msra.mxu0 0.0
    %1757 = vmatprep.subr.mxu0 0.0
    %1758 = vmatpush1.msra.mxu0 0.0
    %1759 = vmatprep.subr.mxu0 0.0
    %1760 = vmatpush1.msra.mxu0 0.0
    %1761 = vmatprep.subr.mxu0 0.0
    %1762 = vmatpush1.msra.mxu0 0.0
    %1763 = vmatprep.subr.mxu0 0.0
    %1764 = vmatpush1.msra.mxu0 0.0
    %1765 = vmatprep.subr.mxu0 0.0
    %1766 = vmatpush1.msra.mxu0 0.0
    %v1767 = vand.u32 %v339, 4294901760
    %1768 = vmatprep.subr.mxu0 %v1767
    %v1769 = vand.u32 %v338, 4294901760
    %1770 = vmatpush1.msra.mxu0 %v1769
    %v1771 = vand.u32 %v323, 4294901760
    %1772 = vmatprep.subr.mxu0 %v1771
    %v1773 = vand.u32 %v322, 4294901760
    %1774 = vmatpush1.msra.mxu0 %v1773
    %v1775 = vand.u32 %v307, 4294901760
    %1776 = vmatprep.subr.mxu0 %v1775
    %v1777 = vand.u32 %v306, 4294901760
    %1778 = vmatpush1.msra.mxu0 %v1777
    %v1779 = vand.u32 %v291, 4294901760
    %1780 = vmatprep.subr.mxu0 %v1779
    %v1781 = vand.u32 %v290, 4294901760
    %1782 = vmatpush1.msra.mxu0 %v1781
    %1783 = vmatprep.subr.mxu0 0.0
    %1784 = vmatpush2.msra.mxu0 0.0
    %1785 = vmatprep.subr.mxu0 0.0
    %1786 = vmatpush2.msra.mxu0 0.0
    %1787 = vmatprep.subr.mxu0 0.0
    %1788 = vmatpush2.msra.mxu0 0.0
    %1789 = vmatprep.subr.mxu0 0.0
    %1790 = vmatpush2.msra.mxu0 0.0
    %1791 = vmatprep.subr.mxu0 0.0
    %1792 = vmatpush2.msra.mxu0 0.0
    %1793 = vmatprep.subr.mxu0 0.0
    %1794 = vmatpush2.msra.mxu0 0.0
    %1795 = vmatprep.subr.mxu0 0.0
    %1796 = vmatpush2.msra.mxu0 0.0
    %1797 = vmatprep.subr.mxu0 0.0
    %1798 = vmatpush2.msra.mxu0 0.0
    %1799 = vmatprep.subr.mxu0 0.0
    %1800 = vmatpush2.msra.mxu0 0.0
    %1801 = vmatprep.subr.mxu0 0.0
    %1802 = vmatpush2.msra.mxu0 0.0
    %1803 = vmatprep.subr.mxu0 0.0
    %1804 = vmatpush2.msra.mxu0 0.0
    %1805 = vmatprep.subr.mxu0 0.0
    %1806 = vmatpush2.msra.mxu0 0.0
    %1807 = vmatprep.subr.mxu0 0.0
    %1808 = vmatpush2.msra.mxu0 0.0
    %1809 = vmatprep.subr.mxu0 0.0
    %1810 = vmatpush2.msra.mxu0 0.0
    %1811 = vmatprep.subr.mxu0 0.0
    %1812 = vmatpush2.msra.mxu0 0.0
    %1813 = vmatprep.subr.mxu0 0.0
    %1814 = vmatpush2.msra.mxu0 0.0
    %1815 = vmatprep.mubr.f32.mxu0 0.0
    %v1816 = vand.u32 %v352, 4294901760
    %v1817 = vsub.f32 %v352, %v1816
    %v1818 = vand.u32 %v1817, 4294901760
    %v1819 = vsub.f32 %v1817, %v1818
    %v1820 = vand.u32 %v1819, 4294901760
    %1821 = vmatmul.mubr.f32.gmra.mxu0 %v1820
    %v1822 = vpop.f32.mrf.mxu0
    %v1823 = vadd.f32 0.0, %v1822
    %v1824 = vpop.f32.mrf.mxu0
    %v1825 = vadd.f32 0.0, %v1824
    %1826 = vmatprep.mubr.f32.mxu0 0.0
    %v1827 = vand.u32 %v355, 4294901760
    %v1828 = vsub.f32 %v355, %v1827
    %v1829 = vand.u32 %v1828, 4294901760
    %v1830 = vsub.f32 %v1828, %v1829
    %v1831 = vand.u32 %v1830, 4294901760
    %1832 = vmatmul.mubr.f32.gmra.mxu0 %v1831
    %v1833 = vpop.f32.mrf.mxu0
    %v1834 = vadd.f32 0.0, %v1833
    %v1835 = vpop.f32.mrf.mxu0
    %v1836 = vadd.f32 0.0, %v1835
    %1837 = vmatprep.mubr.f32.mxu0 0.0
    %v1838 = vand.u32 %v358, 4294901760
    %v1839 = vsub.f32 %v358, %v1838
    %v1840 = vand.u32 %v1839, 4294901760
    %v1841 = vsub.f32 %v1839, %v1840
    %v1842 = vand.u32 %v1841, 4294901760
    %1843 = vmatmul.mubr.f32.gmra.mxu0 %v1842
    %v1844 = vpop.f32.mrf.mxu0
    %v1845 = vadd.f32 0.0, %v1844
    %v1846 = vpop.f32.mrf.mxu0
    %v1847 = vadd.f32 0.0, %v1846
    %1848 = vmatprep.mubr.f32.mxu0 0.0
    %v1849 = vand.u32 %v361, 4294901760
    %v1850 = vsub.f32 %v361, %v1849
    %v1851 = vand.u32 %v1850, 4294901760
    %v1852 = vsub.f32 %v1850, %v1851
    %v1853 = vand.u32 %v1852, 4294901760
    %1854 = vmatmul.mubr.f32.gmra.mxu0 %v1853
    %v1855 = vpop.f32.mrf.mxu0
    %v1856 = vadd.f32 0.0, %v1855
    %v1857 = vpop.f32.mrf.mxu0
    %v1858 = vadd.f32 0.0, %v1857
    %1859 = vdwg.mxu0
    %1860 = vmatprep.subr.mxu0 0.0
    %1861 = vmatpush1.msra.mxu0 0.0
    %1862 = vmatprep.subr.mxu0 0.0
    %1863 = vmatpush1.msra.mxu0 0.0
    %1864 = vmatprep.subr.mxu0 0.0
    %1865 = vmatpush1.msra.mxu0 0.0
    %1866 = vmatprep.subr.mxu0 0.0
    %1867 = vmatpush1.msra.mxu0 0.0
    %1868 = vmatprep.subr.mxu0 0.0
    %1869 = vmatpush1.msra.mxu0 0.0
    %1870 = vmatprep.subr.mxu0 0.0
    %1871 = vmatpush1.msra.mxu0 0.0
    %1872 = vmatprep.subr.mxu0 0.0
    %1873 = vmatpush1.msra.mxu0 0.0
    %1874 = vmatprep.subr.mxu0 0.0
    %1875 = vmatpush1.msra.mxu0 0.0
    %1876 = vmatprep.subr.mxu0 0.0
    %1877 = vmatpush1.msra.mxu0 0.0
    %1878 = vmatprep.subr.mxu0 0.0
    %1879 = vmatpush1.msra.mxu0 0.0
    %1880 = vmatprep.subr.mxu0 0.0
    %1881 = vmatpush1.msra.mxu0 0.0
    %1882 = vmatprep.subr.mxu0 0.0
    %1883 = vmatpush1.msra.mxu0 0.0
    %v1884 = vand.u32 %v339, 4294901760
    %v1885 = vsub.f32 %v339, %v1884
    %v1886 = vand.u32 %v1885, 4294901760
    %v1887 = vsub.f32 %v1885, %v1886
    %v1888 = vand.u32 %v1887, 4294901760
    %1889 = vmatprep.subr.mxu0 %v1888
    %v1890 = vand.u32 %v338, 4294901760
    %v1891 = vsub.f32 %v338, %v1890
    %v1892 = vand.u32 %v1891, 4294901760
    %v1893 = vsub.f32 %v1891, %v1892
    %v1894 = vand.u32 %v1893, 4294901760
    %1895 = vmatpush1.msra.mxu0 %v1894
    %v1896 = vand.u32 %v323, 4294901760
    %v1897 = vsub.f32 %v323, %v1896
    %v1898 = vand.u32 %v1897, 4294901760
    %v1899 = vsub.f32 %v1897, %v1898
    %v1900 = vand.u32 %v1899, 4294901760
    %1901 = vmatprep.subr.mxu0 %v1900
    %v1902 = vand.u32 %v322, 4294901760
    %v1903 = vsub.f32 %v322, %v1902
    %v1904 = vand.u32 %v1903, 4294901760
    %v1905 = vsub.f32 %v1903, %v1904
    %v1906 = vand.u32 %v1905, 4294901760
    %1907 = vmatpush1.msra.mxu0 %v1906
    %v1908 = vand.u32 %v307, 4294901760
    %v1909 = vsub.f32 %v307, %v1908
    %v1910 = vand.u32 %v1909, 4294901760
    %v1911 = vsub.f32 %v1909, %v1910
    %v1912 = vand.u32 %v1911, 4294901760
    %1913 = vmatprep.subr.mxu0 %v1912
    %v1914 = vand.u32 %v306, 4294901760
    %v1915 = vsub.f32 %v306, %v1914
    %v1916 = vand.u32 %v1915, 4294901760
    %v1917 = vsub.f32 %v1915, %v1916
    %v1918 = vand.u32 %v1917, 4294901760
    %1919 = vmatpush1.msra.mxu0 %v1918
    %v1920 = vand.u32 %v291, 4294901760
    %v1921 = vsub.f32 %v291, %v1920
    %v1922 = vand.u32 %v1921, 4294901760
    %v1923 = vsub.f32 %v1921, %v1922
    %v1924 = vand.u32 %v1923, 4294901760
    %1925 = vmatprep.subr.mxu0 %v1924
    %v1926 = vand.u32 %v290, 4294901760
    %v1927 = vsub.f32 %v290, %v1926
    %v1928 = vand.u32 %v1927, 4294901760
    %v1929 = vsub.f32 %v1927, %v1928
    %v1930 = vand.u32 %v1929, 4294901760
    %1931 = vmatpush1.msra.mxu0 %v1930
    %1932 = vmatprep.subr.mxu0 0.0
    %1933 = vmatpush2.msra.mxu0 0.0
    %1934 = vmatprep.subr.mxu0 0.0
    %1935 = vmatpush2.msra.mxu0 0.0
    %1936 = vmatprep.subr.mxu0 0.0
    %1937 = vmatpush2.msra.mxu0 0.0
    %1938 = vmatprep.subr.mxu0 0.0
    %1939 = vmatpush2.msra.mxu0 0.0
    %1940 = vmatprep.subr.mxu0 0.0
    %1941 = vmatpush2.msra.mxu0 0.0
    %1942 = vmatprep.subr.mxu0 0.0
    %1943 = vmatpush2.msra.mxu0 0.0
    %1944 = vmatprep.subr.mxu0 0.0
    %1945 = vmatpush2.msra.mxu0 0.0
    %1946 = vmatprep.subr.mxu0 0.0
    %1947 = vmatpush2.msra.mxu0 0.0
    %1948 = vmatprep.subr.mxu0 0.0
    %1949 = vmatpush2.msra.mxu0 0.0
    %1950 = vmatprep.subr.mxu0 0.0
    %1951 = vmatpush2.msra.mxu0 0.0
    %1952 = vmatprep.subr.mxu0 0.0
    %1953 = vmatpush2.msra.mxu0 0.0
    %1954 = vmatprep.subr.mxu0 0.0
    %1955 = vmatpush2.msra.mxu0 0.0
    %1956 = vmatprep.subr.mxu0 0.0
    %1957 = vmatpush2.msra.mxu0 0.0
    %1958 = vmatprep.subr.mxu0 0.0
    %1959 = vmatpush2.msra.mxu0 0.0
    %1960 = vmatprep.subr.mxu0 0.0
    %1961 = vmatpush2.msra.mxu0 0.0
    %1962 = vmatprep.subr.mxu0 0.0
    %1963 = vmatpush2.msra.mxu0 0.0
    %1964 = vmatprep.mubr.f32.mxu0 0.0
    %v1965 = vand.u32 %v352, 4294901760
    %1966 = vmatmul.mubr.f32.gmra.mxu0 %v1965
    %v1967 = vpop.f32.mrf.mxu0
    %v1968 = vadd.f32 %v1823, %v1967
    %v1969 = vpop.f32.mrf.mxu0
    %v1970 = vadd.f32 %v1825, %v1969
    %1971 = vmatprep.mubr.f32.mxu0 0.0
    %v1972 = vand.u32 %v355, 4294901760
    %1973 = vmatmul.mubr.f32.gmra.mxu0 %v1972
    %v1974 = vpop.f32.mrf.mxu0
    %v1975 = vadd.f32 %v1834, %v1974
    %v1976 = vpop.f32.mrf.mxu0
    %v1977 = vadd.f32 %v1836, %v1976
    %1978 = vmatprep.mubr.f32.mxu0 0.0
    %v1979 = vand.u32 %v358, 4294901760
    %1980 = vmatmul.mubr.f32.gmra.mxu0 %v1979
    %v1981 = vpop.f32.mrf.mxu0
    %v1982 = vadd.f32 %v1845, %v1981
    %v1983 = vpop.f32.mrf.mxu0
    %v1984 = vadd.f32 %v1847, %v1983
    %1985 = vmatprep.mubr.f32.mxu0 0.0
    %v1986 = vand.u32 %v361, 4294901760
    %1987 = vmatmul.mubr.f32.gmra.mxu0 %v1986
    %v1988 = vpop.f32.mrf.mxu0
    %v1989 = vadd.f32 %v1856, %v1988
    %v1990 = vpop.f32.mrf.mxu0
    %v1991 = vadd.f32 %v1858, %v1990
    %1992 = vdwg.mxu0
    %1993 = vmatprep.subr.mxu0 0.0
    %1994 = vmatpush1.msra.mxu0 0.0
    %1995 = vmatprep.subr.mxu0 0.0
    %1996 = vmatpush1.msra.mxu0 0.0
    %1997 = vmatprep.subr.mxu0 0.0
    %1998 = vmatpush1.msra.mxu0 0.0
    %1999 = vmatprep.subr.mxu0 0.0
    %2000 = vmatpush1.msra.mxu0 0.0
    %2001 = vmatprep.subr.mxu0 0.0
    %2002 = vmatpush1.msra.mxu0 0.0
    %2003 = vmatprep.subr.mxu0 0.0
    %2004 = vmatpush1.msra.mxu0 0.0
    %2005 = vmatprep.subr.mxu0 0.0
    %2006 = vmatpush1.msra.mxu0 0.0
    %2007 = vmatprep.subr.mxu0 0.0
    %2008 = vmatpush1.msra.mxu0 0.0
    %2009 = vmatprep.subr.mxu0 0.0
    %2010 = vmatpush1.msra.mxu0 0.0
    %2011 = vmatprep.subr.mxu0 0.0
    %2012 = vmatpush1.msra.mxu0 0.0
    %2013 = vmatprep.subr.mxu0 0.0
    %2014 = vmatpush1.msra.mxu0 0.0
    %2015 = vmatprep.subr.mxu0 0.0
    %2016 = vmatpush1.msra.mxu0 0.0
    %v2017 = vand.u32 %v339, 4294901760
    %v2018 = vsub.f32 %v339, %v2017
    %2019 = vmatprep.subr.mxu0 %v2018
    %v2020 = vand.u32 %v338, 4294901760
    %v2021 = vsub.f32 %v338, %v2020
    %2022 = vmatpush1.msra.mxu0 %v2021
    %v2023 = vand.u32 %v323, 4294901760
    %v2024 = vsub.f32 %v323, %v2023
    %2025 = vmatprep.subr.mxu0 %v2024
    %v2026 = vand.u32 %v322, 4294901760
    %v2027 = vsub.f32 %v322, %v2026
    %2028 = vmatpush1.msra.mxu0 %v2027
    %v2029 = vand.u32 %v307, 4294901760
    %v2030 = vsub.f32 %v307, %v2029
    %2031 = vmatprep.subr.mxu0 %v2030
    %v2032 = vand.u32 %v306, 4294901760
    %v2033 = vsub.f32 %v306, %v2032
    %2034 = vmatpush1.msra.mxu0 %v2033
    %v2035 = vand.u32 %v291, 4294901760
    %v2036 = vsub.f32 %v291, %v2035
    %2037 = vmatprep.subr.mxu0 %v2036
    %v2038 = vand.u32 %v290, 4294901760
    %v2039 = vsub.f32 %v290, %v2038
    %2040 = vmatpush1.msra.mxu0 %v2039
    %2041 = vmatprep.subr.mxu0 0.0
    %2042 = vmatpush2.msra.mxu0 0.0
    %2043 = vmatprep.subr.mxu0 0.0
    %2044 = vmatpush2.msra.mxu0 0.0
    %2045 = vmatprep.subr.mxu0 0.0
    %2046 = vmatpush2.msra.mxu0 0.0
    %2047 = vmatprep.subr.mxu0 0.0
    %2048 = vmatpush2.msra.mxu0 0.0
    %2049 = vmatprep.subr.mxu0 0.0
    %2050 = vmatpush2.msra.mxu0 0.0
    %2051 = vmatprep.subr.mxu0 0.0
    %2052 = vmatpush2.msra.mxu0 0.0
    %2053 = vmatprep.subr.mxu0 0.0
    %2054 = vmatpush2.msra.mxu0 0.0
    %2055 = vmatprep.subr.mxu0 0.0
    %2056 = vmatpush2.msra.mxu0 0.0
    %2057 = vmatprep.subr.mxu0 0.0
    %2058 = vmatpush2.msra.mxu0 0.0
    %2059 = vmatprep.subr.mxu0 0.0
    %2060 = vmatpush2.msra.mxu0 0.0
    %2061 = vmatprep.subr.mxu0 0.0
    %2062 = vmatpush2.msra.mxu0 0.0
    %2063 = vmatprep.subr.mxu0 0.0
    %2064 = vmatpush2.msra.mxu0 0.0
    %2065 = vmatprep.subr.mxu0 0.0
    %2066 = vmatpush2.msra.mxu0 0.0
    %2067 = vmatprep.subr.mxu0 0.0
    %2068 = vmatpush2.msra.mxu0 0.0
    %2069 = vmatprep.subr.mxu0 0.0
    %2070 = vmatpush2.msra.mxu0 0.0
    %2071 = vmatprep.subr.mxu0 0.0
    %2072 = vmatpush2.msra.mxu0 0.0
    %2073 = vmatprep.mubr.f32.mxu0 0.0
    %v2074 = vand.u32 %v352, 4294901760
    %v2075 = vsub.f32 %v352, %v2074
    %2076 = vmatmul.mubr.f32.gmra.mxu0 %v2075
    %v2077 = vpop.f32.mrf.mxu0
    %v2078 = vadd.f32 %v1968, %v2077
    %v2079 = vpop.f32.mrf.mxu0
    %v2080 = vadd.f32 %v1970, %v2079
    %2081 = vmatprep.mubr.f32.mxu0 0.0
    %v2082 = vand.u32 %v355, 4294901760
    %v2083 = vsub.f32 %v355, %v2082
    %2084 = vmatmul.mubr.f32.gmra.mxu0 %v2083
    %v2085 = vpop.f32.mrf.mxu0
    %v2086 = vadd.f32 %v1975, %v2085
    %v2087 = vpop.f32.mrf.mxu0
    %v2088 = vadd.f32 %v1977, %v2087
    %2089 = vmatprep.mubr.f32.mxu0 0.0
    %v2090 = vand.u32 %v358, 4294901760
    %v2091 = vsub.f32 %v358, %v2090
    %2092 = vmatmul.mubr.f32.gmra.mxu0 %v2091
    %v2093 = vpop.f32.mrf.mxu0
    %v2094 = vadd.f32 %v1982, %v2093
    %v2095 = vpop.f32.mrf.mxu0
    %v2096 = vadd.f32 %v1984, %v2095
    %2097 = vmatprep.mubr.f32.mxu0 0.0
    %v2098 = vand.u32 %v361, 4294901760
    %v2099 = vsub.f32 %v361, %v2098
    %2100 = vmatmul.mubr.f32.gmra.mxu0 %v2099
    %v2101 = vpop.f32.mrf.mxu0
    %v2102 = vadd.f32 %v1989, %v2101
    %v2103 = vpop.f32.mrf.mxu0
    %v2104 = vadd.f32 %v1991, %v2103
    %2105 = vdwg.mxu0
    %2106 = vmatprep.subr.mxu0 0.0
    %2107 = vmatpush1.msra.mxu0 0.0
    %2108 = vmatprep.subr.mxu0 0.0
    %2109 = vmatpush1.msra.mxu0 0.0
    %2110 = vmatprep.subr.mxu0 0.0
    %2111 = vmatpush1.msra.mxu0 0.0
    %2112 = vmatprep.subr.mxu0 0.0
    %2113 = vmatpush1.msra.mxu0 0.0
    %2114 = vmatprep.subr.mxu0 0.0
    %2115 = vmatpush1.msra.mxu0 0.0
    %2116 = vmatprep.subr.mxu0 0.0
    %2117 = vmatpush1.msra.mxu0 0.0
    %2118 = vmatprep.subr.mxu0 0.0
    %2119 = vmatpush1.msra.mxu0 0.0
    %2120 = vmatprep.subr.mxu0 0.0
    %2121 = vmatpush1.msra.mxu0 0.0
    %2122 = vmatprep.subr.mxu0 0.0
    %2123 = vmatpush1.msra.mxu0 0.0
    %2124 = vmatprep.subr.mxu0 0.0
    %2125 = vmatpush1.msra.mxu0 0.0
    %2126 = vmatprep.subr.mxu0 0.0
    %2127 = vmatpush1.msra.mxu0 0.0
    %2128 = vmatprep.subr.mxu0 0.0
    %2129 = vmatpush1.msra.mxu0 0.0
    %v2130 = vand.u32 %v339, 4294901760
    %2131 = vmatprep.subr.mxu0 %v2130
    %v2132 = vand.u32 %v338, 4294901760
    %2133 = vmatpush1.msra.mxu0 %v2132
    %v2134 = vand.u32 %v323, 4294901760
    %2135 = vmatprep.subr.mxu0 %v2134
    %v2136 = vand.u32 %v322, 4294901760
    %2137 = vmatpush1.msra.mxu0 %v2136
    %v2138 = vand.u32 %v307, 4294901760
    %2139 = vmatprep.subr.mxu0 %v2138
    %v2140 = vand.u32 %v306, 4294901760
    %2141 = vmatpush1.msra.mxu0 %v2140
    %v2142 = vand.u32 %v291, 4294901760
    %2143 = vmatprep.subr.mxu0 %v2142
    %v2144 = vand.u32 %v290, 4294901760
    %2145 = vmatpush1.msra.mxu0 %v2144
    %2146 = vmatprep.subr.mxu0 0.0
    %2147 = vmatpush2.msra.mxu0 0.0
    %2148 = vmatprep.subr.mxu0 0.0
    %2149 = vmatpush2.msra.mxu0 0.0
    %2150 = vmatprep.subr.mxu0 0.0
    %2151 = vmatpush2.msra.mxu0 0.0
    %2152 = vmatprep.subr.mxu0 0.0
    %2153 = vmatpush2.msra.mxu0 0.0
    %2154 = vmatprep.subr.mxu0 0.0
    %2155 = vmatpush2.msra.mxu0 0.0
    %2156 = vmatprep.subr.mxu0 0.0
    %2157 = vmatpush2.msra.mxu0 0.0
    %2158 = vmatprep.subr.mxu0 0.0
    %2159 = vmatpush2.msra.mxu0 0.0
    %2160 = vmatprep.subr.mxu0 0.0
    %2161 = vmatpush2.msra.mxu0 0.0
    %2162 = vmatprep.subr.mxu0 0.0
    %2163 = vmatpush2.msra.mxu0 0.0
    %2164 = vmatprep.subr.mxu0 0.0
    %2165 = vmatpush2.msra.mxu0 0.0
    %2166 = vmatprep.subr.mxu0 0.0
    %2167 = vmatpush2.msra.mxu0 0.0
    %2168 = vmatprep.subr.mxu0 0.0
    %2169 = vmatpush2.msra.mxu0 0.0
    %2170 = vmatprep.subr.mxu0 0.0
    %2171 = vmatpush2.msra.mxu0 0.0
    %2172 = vmatprep.subr.mxu0 0.0
    %2173 = vmatpush2.msra.mxu0 0.0
    %2174 = vmatprep.subr.mxu0 0.0
    %2175 = vmatpush2.msra.mxu0 0.0
    %2176 = vmatprep.subr.mxu0 0.0
    %2177 = vmatpush2.msra.mxu0 0.0
    %2178 = vmatprep.mubr.f32.mxu0 0.0
    %v2179 = vand.u32 %v352, 4294901760
    %v2180 = vsub.f32 %v352, %v2179
    %v2181 = vand.u32 %v2180, 4294901760
    %2182 = vmatmul.mubr.f32.gmra.mxu0 %v2181
    %v2183 = vpop.f32.mrf.mxu0
    %v2184 = vadd.f32 %v2078, %v2183
    %v2185 = vpop.f32.mrf.mxu0
    %v2186 = vadd.f32 %v2080, %v2185
    %2187 = vmatprep.mubr.f32.mxu0 0.0
    %v2188 = vand.u32 %v355, 4294901760
    %v2189 = vsub.f32 %v355, %v2188
    %v2190 = vand.u32 %v2189, 4294901760
    %2191 = vmatmul.mubr.f32.gmra.mxu0 %v2190
    %v2192 = vpop.f32.mrf.mxu0
    %v2193 = vadd.f32 %v2086, %v2192
    %v2194 = vpop.f32.mrf.mxu0
    %v2195 = vadd.f32 %v2088, %v2194
    %2196 = vmatprep.mubr.f32.mxu0 0.0
    %v2197 = vand.u32 %v358, 4294901760
    %v2198 = vsub.f32 %v358, %v2197
    %v2199 = vand.u32 %v2198, 4294901760
    %2200 = vmatmul.mubr.f32.gmra.mxu0 %v2199
    %v2201 = vpop.f32.mrf.mxu0
    %v2202 = vadd.f32 %v2094, %v2201
    %v2203 = vpop.f32.mrf.mxu0
    %v2204 = vadd.f32 %v2096, %v2203
    %2205 = vmatprep.mubr.f32.mxu0 0.0
    %v2206 = vand.u32 %v361, 4294901760
    %v2207 = vsub.f32 %v361, %v2206
    %v2208 = vand.u32 %v2207, 4294901760
    %2209 = vmatmul.mubr.f32.gmra.mxu0 %v2208
    %v2210 = vpop.f32.mrf.mxu0
    %v2211 = vadd.f32 %v2102, %v2210
    %v2212 = vpop.f32.mrf.mxu0
    %v2213 = vadd.f32 %v2104, %v2212
    %2214 = vdwg.mxu0
    %2215 = vmatprep.subr.mxu0 0.0
    %2216 = vmatpush1.msra.mxu0 0.0
    %2217 = vmatprep.subr.mxu0 0.0
    %2218 = vmatpush1.msra.mxu0 0.0
    %2219 = vmatprep.subr.mxu0 0.0
    %2220 = vmatpush1.msra.mxu0 0.0
    %2221 = vmatprep.subr.mxu0 0.0
    %2222 = vmatpush1.msra.mxu0 0.0
    %2223 = vmatprep.subr.mxu0 0.0
    %2224 = vmatpush1.msra.mxu0 0.0
    %2225 = vmatprep.subr.mxu0 0.0
    %2226 = vmatpush1.msra.mxu0 0.0
    %2227 = vmatprep.subr.mxu0 0.0
    %2228 = vmatpush1.msra.mxu0 0.0
    %2229 = vmatprep.subr.mxu0 0.0
    %2230 = vmatpush1.msra.mxu0 0.0
    %2231 = vmatprep.subr.mxu0 0.0
    %2232 = vmatpush1.msra.mxu0 0.0
    %2233 = vmatprep.subr.mxu0 0.0
    %2234 = vmatpush1.msra.mxu0 0.0
    %2235 = vmatprep.subr.mxu0 0.0
    %2236 = vmatpush1.msra.mxu0 0.0
    %2237 = vmatprep.subr.mxu0 0.0
    %2238 = vmatpush1.msra.mxu0 0.0
    %v2239 = vand.u32 %v339, 4294901760
    %v2240 = vsub.f32 %v339, %v2239
    %v2241 = vand.u32 %v2240, 4294901760
    %2242 = vmatprep.subr.mxu0 %v2241
    %v2243 = vand.u32 %v338, 4294901760
    %v2244 = vsub.f32 %v338, %v2243
    %v2245 = vand.u32 %v2244, 4294901760
    %2246 = vmatpush1.msra.mxu0 %v2245
    %v2247 = vand.u32 %v323, 4294901760
    %v2248 = vsub.f32 %v323, %v2247
    %v2249 = vand.u32 %v2248, 4294901760
    %2250 = vmatprep.subr.mxu0 %v2249
    %v2251 = vand.u32 %v322, 4294901760
    %v2252 = vsub.f32 %v322, %v2251
    %v2253 = vand.u32 %v2252, 4294901760
    %2254 = vmatpush1.msra.mxu0 %v2253
    %v2255 = vand.u32 %v307, 4294901760
    %v2256 = vsub.f32 %v307, %v2255
    %v2257 = vand.u32 %v2256, 4294901760
    %2258 = vmatprep.subr.mxu0 %v2257
    %v2259 = vand.u32 %v306, 4294901760
    %v2260 = vsub.f32 %v306, %v2259
    %v2261 = vand.u32 %v2260, 4294901760
    %2262 = vmatpush1.msra.mxu0 %v2261
    %v2263 = vand.u32 %v291, 4294901760
    %v2264 = vsub.f32 %v291, %v2263
    %v2265 = vand.u32 %v2264, 4294901760
    %2266 = vmatprep.subr.mxu0 %v2265
    %v2267 = vand.u32 %v290, 4294901760
    %v2268 = vsub.f32 %v290, %v2267
    %v2269 = vand.u32 %v2268, 4294901760
    %2270 = vmatpush1.msra.mxu0 %v2269
    %2271 = vmatprep.subr.mxu0 0.0
    %2272 = vmatpush2.msra.mxu0 0.0
    %2273 = vmatprep.subr.mxu0 0.0
    %2274 = vmatpush2.msra.mxu0 0.0
    %2275 = vmatprep.subr.mxu0 0.0
    %2276 = vmatpush2.msra.mxu0 0.0
    %2277 = vmatprep.subr.mxu0 0.0
    %2278 = vmatpush2.msra.mxu0 0.0
    %2279 = vmatprep.subr.mxu0 0.0
    %2280 = vmatpush2.msra.mxu0 0.0
    %2281 = vmatprep.subr.mxu0 0.0
    %2282 = vmatpush2.msra.mxu0 0.0
    %2283 = vmatprep.subr.mxu0 0.0
    %2284 = vmatpush2.msra.mxu0 0.0
    %2285 = vmatprep.subr.mxu0 0.0
    %2286 = vmatpush2.msra.mxu0 0.0
    %2287 = vmatprep.subr.mxu0 0.0
    %2288 = vmatpush2.msra.mxu0 0.0
    %2289 = vmatprep.subr.mxu0 0.0
    %2290 = vmatpush2.msra.mxu0 0.0
    %2291 = vmatprep.subr.mxu0 0.0
    %2292 = vmatpush2.msra.mxu0 0.0
    %2293 = vmatprep.subr.mxu0 0.0
    %2294 = vmatpush2.msra.mxu0 0.0
    %2295 = vmatprep.subr.mxu0 0.0
    %2296 = vmatpush2.msra.mxu0 0.0
    %2297 = vmatprep.subr.mxu0 0.0
    %2298 = vmatpush2.msra.mxu0 0.0
    %2299 = vmatprep.subr.mxu0 0.0
    %2300 = vmatpush2.msra.mxu0 0.0
    %2301 = vmatprep.subr.mxu0 0.0
    %2302 = vmatpush2.msra.mxu0 0.0
    %2303 = vmatprep.mubr.f32.mxu0 0.0
    %v2304 = vand.u32 %v352, 4294901760
    %2305 = vmatmul.mubr.f32.gmra.mxu0 %v2304
    %v2306 = vpop.f32.mrf.mxu0
    %v2307 = vadd.f32 %v2184, %v2306
    %v2308 = vpop.f32.mrf.mxu0
    %v2309 = vadd.f32 %v2186, %v2308
    %2310 = vmatprep.mubr.f32.mxu0 0.0
    %v2311 = vand.u32 %v355, 4294901760
    %2312 = vmatmul.mubr.f32.gmra.mxu0 %v2311
    %v2313 = vpop.f32.mrf.mxu0
    %v2314 = vadd.f32 %v2193, %v2313
    %v2315 = vpop.f32.mrf.mxu0
    %v2316 = vadd.f32 %v2195, %v2315
    %2317 = vmatprep.mubr.f32.mxu0 0.0
    %v2318 = vand.u32 %v358, 4294901760
    %2319 = vmatmul.mubr.f32.gmra.mxu0 %v2318
    %v2320 = vpop.f32.mrf.mxu0
    %v2321 = vadd.f32 %v2202, %v2320
    %v2322 = vpop.f32.mrf.mxu0
    %v2323 = vadd.f32 %v2204, %v2322
    %2324 = vmatprep.mubr.f32.mxu0 0.0
    %v2325 = vand.u32 %v361, 4294901760
    %2326 = vmatmul.mubr.f32.gmra.mxu0 %v2325
    %v2327 = vpop.f32.mrf.mxu0
    %v2328 = vadd.f32 %v2211, %v2327
    %v2329 = vpop.f32.mrf.mxu0
    %v2330 = vadd.f32 %v2213, %v2329
    %2331 = vdwg.mxu0
    %2332 = vmatprep.subr.mxu0 0.0
    %2333 = vmatpush1.msra.mxu0 0.0
    %2334 = vmatprep.subr.mxu0 0.0
    %2335 = vmatpush1.msra.mxu0 0.0
    %2336 = vmatprep.subr.mxu0 0.0
    %2337 = vmatpush1.msra.mxu0 0.0
    %2338 = vmatprep.subr.mxu0 0.0
    %2339 = vmatpush1.msra.mxu0 0.0
    %2340 = vmatprep.subr.mxu0 0.0
    %2341 = vmatpush1.msra.mxu0 0.0
    %2342 = vmatprep.subr.mxu0 0.0
    %2343 = vmatpush1.msra.mxu0 0.0
    %2344 = vmatprep.subr.mxu0 0.0
    %2345 = vmatpush1.msra.mxu0 0.0
    %2346 = vmatprep.subr.mxu0 0.0
    %2347 = vmatpush1.msra.mxu0 0.0
    %2348 = vmatprep.subr.mxu0 0.0
    %2349 = vmatpush1.msra.mxu0 0.0
    %2350 = vmatprep.subr.mxu0 0.0
    %2351 = vmatpush1.msra.mxu0 0.0
    %2352 = vmatprep.subr.mxu0 0.0
    %2353 = vmatpush1.msra.mxu0 0.0
    %2354 = vmatprep.subr.mxu0 0.0
    %2355 = vmatpush1.msra.mxu0 0.0
    %v2356 = vand.u32 %v339, 4294901760
    %2357 = vmatprep.subr.mxu0 %v2356
    %v2358 = vand.u32 %v338, 4294901760
    %2359 = vmatpush1.msra.mxu0 %v2358
    %v2360 = vand.u32 %v323, 4294901760
    %2361 = vmatprep.subr.mxu0 %v2360
    %v2362 = vand.u32 %v322, 4294901760
    %2363 = vmatpush1.msra.mxu0 %v2362
    %v2364 = vand.u32 %v307, 4294901760
    %2365 = vmatprep.subr.mxu0 %v2364
    %v2366 = vand.u32 %v306, 4294901760
    %2367 = vmatpush1.msra.mxu0 %v2366
    %v2368 = vand.u32 %v291, 4294901760
    %2369 = vmatprep.subr.mxu0 %v2368
    %v2370 = vand.u32 %v290, 4294901760
    %2371 = vmatpush1.msra.mxu0 %v2370
    %2372 = vmatprep.subr.mxu0 0.0
    %2373 = vmatpush2.msra.mxu0 0.0
    %2374 = vmatprep.subr.mxu0 0.0
    %2375 = vmatpush2.msra.mxu0 0.0
    %2376 = vmatprep.subr.mxu0 0.0
    %2377 = vmatpush2.msra.mxu0 0.0
    %2378 = vmatprep.subr.mxu0 0.0
    %2379 = vmatpush2.msra.mxu0 0.0
    %2380 = vmatprep.subr.mxu0 0.0
    %2381 = vmatpush2.msra.mxu0 0.0
    %2382 = vmatprep.subr.mxu0 0.0
    %2383 = vmatpush2.msra.mxu0 0.0
    %2384 = vmatprep.subr.mxu0 0.0
    %2385 = vmatpush2.msra.mxu0 0.0
    %2386 = vmatprep.subr.mxu0 0.0
    %2387 = vmatpush2.msra.mxu0 0.0
    %2388 = vmatprep.subr.mxu0 0.0
    %2389 = vmatpush2.msra.mxu0 0.0
    %2390 = vmatprep.subr.mxu0 0.0
    %2391 = vmatpush2.msra.mxu0 0.0
    %2392 = vmatprep.subr.mxu0 0.0
    %2393 = vmatpush2.msra.mxu0 0.0
    %2394 = vmatprep.subr.mxu0 0.0
    %2395 = vmatpush2.msra.mxu0 0.0
    %2396 = vmatprep.subr.mxu0 0.0
    %2397 = vmatpush2.msra.mxu0 0.0
    %2398 = vmatprep.subr.mxu0 0.0
    %2399 = vmatpush2.msra.mxu0 0.0
    %2400 = vmatprep.subr.mxu0 0.0
    %2401 = vmatpush2.msra.mxu0 0.0
    %2402 = vmatprep.subr.mxu0 0.0
    %2403 = vmatpush2.msra.mxu0 0.0
    %2404 = vmatprep.mubr.f32.mxu0 0.0
    %v2405 = vand.u32 %v352, 4294901760
    %2406 = vmatmul.mubr.f32.gmra.mxu0 %v2405
    %v2407 = vpop.f32.mrf.mxu0
    %v2408 = vadd.f32 %v2307, %v2407
    %v2409 = vpop.f32.mrf.mxu0
    %v2410 = vadd.f32 %v2309, %v2409
    %2411 = vmatprep.mubr.f32.mxu0 0.0
    %v2412 = vand.u32 %v355, 4294901760
    %2413 = vmatmul.mubr.f32.gmra.mxu0 %v2412
    %v2414 = vpop.f32.mrf.mxu0
    %v2415 = vadd.f32 %v2314, %v2414
    %v2416 = vpop.f32.mrf.mxu0
    %v2417 = vadd.f32 %v2316, %v2416
    %2418 = vmatprep.mubr.f32.mxu0 0.0
    %v2419 = vand.u32 %v358, 4294901760
    %2420 = vmatmul.mubr.f32.gmra.mxu0 %v2419
    %v2421 = vpop.f32.mrf.mxu0
    %v2422 = vadd.f32 %v2321, %v2421
    %v2423 = vpop.f32.mrf.mxu0
    %v2424 = vadd.f32 %v2323, %v2423
    %2425 = vmatprep.mubr.f32.mxu0 0.0
    %v2426 = vand.u32 %v361, 4294901760
    %2427 = vmatmul.mubr.f32.gmra.mxu0 %v2426
    %v2428 = vpop.f32.mrf.mxu0
    %v2429 = vadd.f32 %v2328, %v2428
    %v2430 = vpop.f32.mrf.mxu0
    %v2431 = vadd.f32 %v2330, %v2430
    %2432 = vdwg.mxu0
    %2433 = vmatprep.subr.mxu0 0.0
    %2434 = vmatpush1.msra.mxu0 0.0
    %2435 = vmatprep.subr.mxu0 0.0
    %2436 = vmatpush1.msra.mxu0 0.0
    %2437 = vmatprep.subr.mxu0 0.0
    %2438 = vmatpush1.msra.mxu0 0.0
    %2439 = vmatprep.subr.mxu0 0.0
    %2440 = vmatpush1.msra.mxu0 0.0
    %2441 = vmatprep.subr.mxu0 0.0
    %2442 = vmatpush1.msra.mxu0 0.0
    %2443 = vmatprep.subr.mxu0 0.0
    %2444 = vmatpush1.msra.mxu0 0.0
    %2445 = vmatprep.subr.mxu0 0.0
    %2446 = vmatpush1.msra.mxu0 0.0
    %2447 = vmatprep.subr.mxu0 0.0
    %2448 = vmatpush1.msra.mxu0 0.0
    %2449 = vmatprep.subr.mxu0 0.0
    %2450 = vmatpush1.msra.mxu0 0.0
    %2451 = vmatprep.subr.mxu0 0.0
    %2452 = vmatpush1.msra.mxu0 0.0
    %2453 = vmatprep.subr.mxu0 0.0
    %2454 = vmatpush1.msra.mxu0 0.0
    %2455 = vmatprep.subr.mxu0 0.0
    %2456 = vmatpush1.msra.mxu0 0.0
    %v2457 = vand.u32 %v341, 4294901760
    %2458 = vmatprep.subr.mxu0 %v2457
    %v2459 = vand.u32 %v340, 4294901760
    %2460 = vmatpush1.msra.mxu0 %v2459
    %v2461 = vand.u32 %v325, 4294901760
    %2462 = vmatprep.subr.mxu0 %v2461
    %v2463 = vand.u32 %v324, 4294901760
    %2464 = vmatpush1.msra.mxu0 %v2463
    %v2465 = vand.u32 %v309, 4294901760
    %2466 = vmatprep.subr.mxu0 %v2465
    %v2467 = vand.u32 %v308, 4294901760
    %2468 = vmatpush1.msra.mxu0 %v2467
    %v2469 = vand.u32 %v293, 4294901760
    %2470 = vmatprep.subr.mxu0 %v2469
    %v2471 = vand.u32 %v292, 4294901760
    %2472 = vmatpush1.msra.mxu0 %v2471
    %2473 = vmatprep.subr.mxu0 0.0
    %2474 = vmatpush2.msra.mxu0 0.0
    %2475 = vmatprep.subr.mxu0 0.0
    %2476 = vmatpush2.msra.mxu0 0.0
    %2477 = vmatprep.subr.mxu0 0.0
    %2478 = vmatpush2.msra.mxu0 0.0
    %2479 = vmatprep.subr.mxu0 0.0
    %2480 = vmatpush2.msra.mxu0 0.0
    %2481 = vmatprep.subr.mxu0 0.0
    %2482 = vmatpush2.msra.mxu0 0.0
    %2483 = vmatprep.subr.mxu0 0.0
    %2484 = vmatpush2.msra.mxu0 0.0
    %2485 = vmatprep.subr.mxu0 0.0
    %2486 = vmatpush2.msra.mxu0 0.0
    %2487 = vmatprep.subr.mxu0 0.0
    %2488 = vmatpush2.msra.mxu0 0.0
    %2489 = vmatprep.subr.mxu0 0.0
    %2490 = vmatpush2.msra.mxu0 0.0
    %2491 = vmatprep.subr.mxu0 0.0
    %2492 = vmatpush2.msra.mxu0 0.0
    %2493 = vmatprep.subr.mxu0 0.0
    %2494 = vmatpush2.msra.mxu0 0.0
    %2495 = vmatprep.subr.mxu0 0.0
    %2496 = vmatpush2.msra.mxu0 0.0
    %2497 = vmatprep.subr.mxu0 0.0
    %2498 = vmatpush2.msra.mxu0 0.0
    %2499 = vmatprep.subr.mxu0 0.0
    %2500 = vmatpush2.msra.mxu0 0.0
    %2501 = vmatprep.subr.mxu0 0.0
    %2502 = vmatpush2.msra.mxu0 0.0
    %2503 = vmatprep.subr.mxu0 0.0
    %2504 = vmatpush2.msra.mxu0 0.0
    %2505 = vmatprep.mubr.f32.mxu0 0.0
    %v2506 = vand.u32 %v352, 4294901760
    %v2507 = vsub.f32 %v352, %v2506
    %v2508 = vand.u32 %v2507, 4294901760
    %v2509 = vsub.f32 %v2507, %v2508
    %v2510 = vand.u32 %v2509, 4294901760
    %2511 = vmatmul.mubr.f32.gmra.mxu0 %v2510
    %v2512 = vpop.f32.mrf.mxu0
    %v2513 = vadd.f32 0.0, %v2512
    %v2514 = vpop.f32.mrf.mxu0
    %v2515 = vadd.f32 0.0, %v2514
    %2516 = vmatprep.mubr.f32.mxu0 0.0
    %v2517 = vand.u32 %v355, 4294901760
    %v2518 = vsub.f32 %v355, %v2517
    %v2519 = vand.u32 %v2518, 4294901760
    %v2520 = vsub.f32 %v2518, %v2519
    %v2521 = vand.u32 %v2520, 4294901760
    %2522 = vmatmul.mubr.f32.gmra.mxu0 %v2521
    %v2523 = vpop.f32.mrf.mxu0
    %v2524 = vadd.f32 0.0, %v2523
    %v2525 = vpop.f32.mrf.mxu0
    %v2526 = vadd.f32 0.0, %v2525
    %2527 = vmatprep.mubr.f32.mxu0 0.0
    %v2528 = vand.u32 %v358, 4294901760
    %v2529 = vsub.f32 %v358, %v2528
    %v2530 = vand.u32 %v2529, 4294901760
    %v2531 = vsub.f32 %v2529, %v2530
    %v2532 = vand.u32 %v2531, 4294901760
    %2533 = vmatmul.mubr.f32.gmra.mxu0 %v2532
    %v2534 = vpop.f32.mrf.mxu0
    %v2535 = vadd.f32 0.0, %v2534
    %v2536 = vpop.f32.mrf.mxu0
    %v2537 = vadd.f32 0.0, %v2536
    %2538 = vmatprep.mubr.f32.mxu0 0.0
    %v2539 = vand.u32 %v361, 4294901760
    %v2540 = vsub.f32 %v361, %v2539
    %v2541 = vand.u32 %v2540, 4294901760
    %v2542 = vsub.f32 %v2540, %v2541
    %v2543 = vand.u32 %v2542, 4294901760
    %2544 = vmatmul.mubr.f32.gmra.mxu0 %v2543
    %v2545 = vpop.f32.mrf.mxu0
    %v2546 = vadd.f32 0.0, %v2545
    %v2547 = vpop.f32.mrf.mxu0
    %v2548 = vadd.f32 0.0, %v2547
    %2549 = vdwg.mxu0
    %2550 = vmatprep.subr.mxu0 0.0
    %2551 = vmatpush1.msra.mxu0 0.0
    %2552 = vmatprep.subr.mxu0 0.0
    %2553 = vmatpush1.msra.mxu0 0.0
    %2554 = vmatprep.subr.mxu0 0.0
    %2555 = vmatpush1.msra.mxu0 0.0
    %2556 = vmatprep.subr.mxu0 0.0
    %2557 = vmatpush1.msra.mxu0 0.0
    %2558 = vmatprep.subr.mxu0 0.0
    %2559 = vmatpush1.msra.mxu0 0.0
    %2560 = vmatprep.subr.mxu0 0.0
    %2561 = vmatpush1.msra.mxu0 0.0
    %2562 = vmatprep.subr.mxu0 0.0
    %2563 = vmatpush1.msra.mxu0 0.0
    %2564 = vmatprep.subr.mxu0 0.0
    %2565 = vmatpush1.msra.mxu0 0.0
    %2566 = vmatprep.subr.mxu0 0.0
    %2567 = vmatpush1.msra.mxu0 0.0
    %2568 = vmatprep.subr.mxu0 0.0
    %2569 = vmatpush1.msra.mxu0 0.0
    %2570 = vmatprep.subr.mxu0 0.0
    %2571 = vmatpush1.msra.mxu0 0.0
    %2572 = vmatprep.subr.mxu0 0.0
    %2573 = vmatpush1.msra.mxu0 0.0
    %v2574 = vand.u32 %v341, 4294901760
    %v2575 = vsub.f32 %v341, %v2574
    %v2576 = vand.u32 %v2575, 4294901760
    %v2577 = vsub.f32 %v2575, %v2576
    %v2578 = vand.u32 %v2577, 4294901760
    %2579 = vmatprep.subr.mxu0 %v2578
    %v2580 = vand.u32 %v340, 4294901760
    %v2581 = vsub.f32 %v340, %v2580
    %v2582 = vand.u32 %v2581, 4294901760
    %v2583 = vsub.f32 %v2581, %v2582
    %v2584 = vand.u32 %v2583, 4294901760
    %2585 = vmatpush1.msra.mxu0 %v2584
    %v2586 = vand.u32 %v325, 4294901760
    %v2587 = vsub.f32 %v325, %v2586
    %v2588 = vand.u32 %v2587, 4294901760
    %v2589 = vsub.f32 %v2587, %v2588
    %v2590 = vand.u32 %v2589, 4294901760
    %2591 = vmatprep.subr.mxu0 %v2590
    %v2592 = vand.u32 %v324, 4294901760
    %v2593 = vsub.f32 %v324, %v2592
    %v2594 = vand.u32 %v2593, 4294901760
    %v2595 = vsub.f32 %v2593, %v2594
    %v2596 = vand.u32 %v2595, 4294901760
    %2597 = vmatpush1.msra.mxu0 %v2596
    %v2598 = vand.u32 %v309, 4294901760
    %v2599 = vsub.f32 %v309, %v2598
    %v2600 = vand.u32 %v2599, 4294901760
    %v2601 = vsub.f32 %v2599, %v2600
    %v2602 = vand.u32 %v2601, 4294901760
    %2603 = vmatprep.subr.mxu0 %v2602
    %v2604 = vand.u32 %v308, 4294901760
    %v2605 = vsub.f32 %v308, %v2604
    %v2606 = vand.u32 %v2605, 4294901760
    %v2607 = vsub.f32 %v2605, %v2606
    %v2608 = vand.u32 %v2607, 4294901760
    %2609 = vmatpush1.msra.mxu0 %v2608
    %v2610 = vand.u32 %v293, 4294901760
    %v2611 = vsub.f32 %v293, %v2610
    %v2612 = vand.u32 %v2611, 4294901760
    %v2613 = vsub.f32 %v2611, %v2612
    %v2614 = vand.u32 %v2613, 4294901760
    %2615 = vmatprep.subr.mxu0 %v2614
    %v2616 = vand.u32 %v292, 4294901760
    %v2617 = vsub.f32 %v292, %v2616
    %v2618 = vand.u32 %v2617, 4294901760
    %v2619 = vsub.f32 %v2617, %v2618
    %v2620 = vand.u32 %v2619, 4294901760
    %2621 = vmatpush1.msra.mxu0 %v2620
    %2622 = vmatprep.subr.mxu0 0.0
    %2623 = vmatpush2.msra.mxu0 0.0
    %2624 = vmatprep.subr.mxu0 0.0
    %2625 = vmatpush2.msra.mxu0 0.0
    %2626 = vmatprep.subr.mxu0 0.0
    %2627 = vmatpush2.msra.mxu0 0.0
    %2628 = vmatprep.subr.mxu0 0.0
    %2629 = vmatpush2.msra.mxu0 0.0
    %2630 = vmatprep.subr.mxu0 0.0
    %2631 = vmatpush2.msra.mxu0 0.0
    %2632 = vmatprep.subr.mxu0 0.0
    %2633 = vmatpush2.msra.mxu0 0.0
    %2634 = vmatprep.subr.mxu0 0.0
    %2635 = vmatpush2.msra.mxu0 0.0
    %2636 = vmatprep.subr.mxu0 0.0
    %2637 = vmatpush2.msra.mxu0 0.0
    %2638 = vmatprep.subr.mxu0 0.0
    %2639 = vmatpush2.msra.mxu0 0.0
    %2640 = vmatprep.subr.mxu0 0.0
    %2641 = vmatpush2.msra.mxu0 0.0
    %2642 = vmatprep.subr.mxu0 0.0
    %2643 = vmatpush2.msra.mxu0 0.0
    %2644 = vmatprep.subr.mxu0 0.0
    %2645 = vmatpush2.msra.mxu0 0.0
    %2646 = vmatprep.subr.mxu0 0.0
    %2647 = vmatpush2.msra.mxu0 0.0
    %2648 = vmatprep.subr.mxu0 0.0
    %2649 = vmatpush2.msra.mxu0 0.0
    %2650 = vmatprep.subr.mxu0 0.0
    %2651 = vmatpush2.msra.mxu0 0.0
    %2652 = vmatprep.subr.mxu0 0.0
    %2653 = vmatpush2.msra.mxu0 0.0
    %2654 = vmatprep.mubr.f32.mxu0 0.0
    %v2655 = vand.u32 %v352, 4294901760
    %2656 = vmatmul.mubr.f32.gmra.mxu0 %v2655
    %v2657 = vpop.f32.mrf.mxu0
    %v2658 = vadd.f32 %v2513, %v2657
    %v2659 = vpop.f32.mrf.mxu0
    %v2660 = vadd.f32 %v2515, %v2659
    %2661 = vmatprep.mubr.f32.mxu0 0.0
    %v2662 = vand.u32 %v355, 4294901760
    %2663 = vmatmul.mubr.f32.gmra.mxu0 %v2662
    %v2664 = vpop.f32.mrf.mxu0
    %v2665 = vadd.f32 %v2524, %v2664
    %v2666 = vpop.f32.mrf.mxu0
    %v2667 = vadd.f32 %v2526, %v2666
    %2668 = vmatprep.mubr.f32.mxu0 0.0
    %v2669 = vand.u32 %v358, 4294901760
    %2670 = vmatmul.mubr.f32.gmra.mxu0 %v2669
    %v2671 = vpop.f32.mrf.mxu0
    %v2672 = vadd.f32 %v2535, %v2671
    %v2673 = vpop.f32.mrf.mxu0
    %v2674 = vadd.f32 %v2537, %v2673
    %2675 = vmatprep.mubr.f32.mxu0 0.0
    %v2676 = vand.u32 %v361, 4294901760
    %2677 = vmatmul.mubr.f32.gmra.mxu0 %v2676
    %v2678 = vpop.f32.mrf.mxu0
    %v2679 = vadd.f32 %v2546, %v2678
    %v2680 = vpop.f32.mrf.mxu0
    %v2681 = vadd.f32 %v2548, %v2680
    %2682 = vdwg.mxu0
    %2683 = vmatprep.subr.mxu0 0.0
    %2684 = vmatpush1.msra.mxu0 0.0
    %2685 = vmatprep.subr.mxu0 0.0
    %2686 = vmatpush1.msra.mxu0 0.0
    %2687 = vmatprep.subr.mxu0 0.0
    %2688 = vmatpush1.msra.mxu0 0.0
    %2689 = vmatprep.subr.mxu0 0.0
    %2690 = vmatpush1.msra.mxu0 0.0
    %2691 = vmatprep.subr.mxu0 0.0
    %2692 = vmatpush1.msra.mxu0 0.0
    %2693 = vmatprep.subr.mxu0 0.0
    %2694 = vmatpush1.msra.mxu0 0.0
    %2695 = vmatprep.subr.mxu0 0.0
    %2696 = vmatpush1.msra.mxu0 0.0
    %2697 = vmatprep.subr.mxu0 0.0
    %2698 = vmatpush1.msra.mxu0 0.0
    %2699 = vmatprep.subr.mxu0 0.0
    %2700 = vmatpush1.msra.mxu0 0.0
    %2701 = vmatprep.subr.mxu0 0.0
    %2702 = vmatpush1.msra.mxu0 0.0
    %2703 = vmatprep.subr.mxu0 0.0
    %2704 = vmatpush1.msra.mxu0 0.0
    %2705 = vmatprep.subr.mxu0 0.0
    %2706 = vmatpush1.msra.mxu0 0.0
    %v2707 = vand.u32 %v341, 4294901760
    %v2708 = vsub.f32 %v341, %v2707
    %2709 = vmatprep.subr.mxu0 %v2708
    %v2710 = vand.u32 %v340, 4294901760
    %v2711 = vsub.f32 %v340, %v2710
    %2712 = vmatpush1.msra.mxu0 %v2711
    %v2713 = vand.u32 %v325, 4294901760
    %v2714 = vsub.f32 %v325, %v2713
    %2715 = vmatprep.subr.mxu0 %v2714
    %v2716 = vand.u32 %v324, 4294901760
    %v2717 = vsub.f32 %v324, %v2716
    %2718 = vmatpush1.msra.mxu0 %v2717
    %v2719 = vand.u32 %v309, 4294901760
    %v2720 = vsub.f32 %v309, %v2719
    %2721 = vmatprep.subr.mxu0 %v2720
    %v2722 = vand.u32 %v308, 4294901760
    %v2723 = vsub.f32 %v308, %v2722
    %2724 = vmatpush1.msra.mxu0 %v2723
    %v2725 = vand.u32 %v293, 4294901760
    %v2726 = vsub.f32 %v293, %v2725
    %2727 = vmatprep.subr.mxu0 %v2726
    %v2728 = vand.u32 %v292, 4294901760
    %v2729 = vsub.f32 %v292, %v2728
    %2730 = vmatpush1.msra.mxu0 %v2729
    %2731 = vmatprep.subr.mxu0 0.0
    %2732 = vmatpush2.msra.mxu0 0.0
    %2733 = vmatprep.subr.mxu0 0.0
    %2734 = vmatpush2.msra.mxu0 0.0
    %2735 = vmatprep.subr.mxu0 0.0
    %2736 = vmatpush2.msra.mxu0 0.0
    %2737 = vmatprep.subr.mxu0 0.0
    %2738 = vmatpush2.msra.mxu0 0.0
    %2739 = vmatprep.subr.mxu0 0.0
    %2740 = vmatpush2.msra.mxu0 0.0
    %2741 = vmatprep.subr.mxu0 0.0
    %2742 = vmatpush2.msra.mxu0 0.0
    %2743 = vmatprep.subr.mxu0 0.0
    %2744 = vmatpush2.msra.mxu0 0.0
    %2745 = vmatprep.subr.mxu0 0.0
    %2746 = vmatpush2.msra.mxu0 0.0
    %2747 = vmatprep.subr.mxu0 0.0
    %2748 = vmatpush2.msra.mxu0 0.0
    %2749 = vmatprep.subr.mxu0 0.0
    %2750 = vmatpush2.msra.mxu0 0.0
    %2751 = vmatprep.subr.mxu0 0.0
    %2752 = vmatpush2.msra.mxu0 0.0
    %2753 = vmatprep.subr.mxu0 0.0
    %2754 = vmatpush2.msra.mxu0 0.0
    %2755 = vmatprep.subr.mxu0 0.0
    %2756 = vmatpush2.msra.mxu0 0.0
    %2757 = vmatprep.subr.mxu0 0.0
    %2758 = vmatpush2.msra.mxu0 0.0
    %2759 = vmatprep.subr.mxu0 0.0
    %2760 = vmatpush2.msra.mxu0 0.0
    %2761 = vmatprep.subr.mxu0 0.0
    %2762 = vmatpush2.msra.mxu0 0.0
    %2763 = vmatprep.mubr.f32.mxu0 0.0
    %v2764 = vand.u32 %v352, 4294901760
    %v2765 = vsub.f32 %v352, %v2764
    %2766 = vmatmul.mubr.f32.gmra.mxu0 %v2765
    %v2767 = vpop.f32.mrf.mxu0
    %v2768 = vadd.f32 %v2658, %v2767
    %v2769 = vpop.f32.mrf.mxu0
    %v2770 = vadd.f32 %v2660, %v2769
    %2771 = vmatprep.mubr.f32.mxu0 0.0
    %v2772 = vand.u32 %v355, 4294901760
    %v2773 = vsub.f32 %v355, %v2772
    %2774 = vmatmul.mubr.f32.gmra.mxu0 %v2773
    %v2775 = vpop.f32.mrf.mxu0
    %v2776 = vadd.f32 %v2665, %v2775
    %v2777 = vpop.f32.mrf.mxu0
    %v2778 = vadd.f32 %v2667, %v2777
    %2779 = vmatprep.mubr.f32.mxu0 0.0
    %v2780 = vand.u32 %v358, 4294901760
    %v2781 = vsub.f32 %v358, %v2780
    %2782 = vmatmul.mubr.f32.gmra.mxu0 %v2781
    %v2783 = vpop.f32.mrf.mxu0
    %v2784 = vadd.f32 %v2672, %v2783
    %v2785 = vpop.f32.mrf.mxu0
    %v2786 = vadd.f32 %v2674, %v2785
    %2787 = vmatprep.mubr.f32.mxu0 0.0
    %v2788 = vand.u32 %v361, 4294901760
    %v2789 = vsub.f32 %v361, %v2788
    %2790 = vmatmul.mubr.f32.gmra.mxu0 %v2789
    %v2791 = vpop.f32.mrf.mxu0
    %v2792 = vadd.f32 %v2679, %v2791
    %v2793 = vpop.f32.mrf.mxu0
    %v2794 = vadd.f32 %v2681, %v2793
    %2795 = vdwg.mxu0
    %2796 = vmatprep.subr.mxu0 0.0
    %2797 = vmatpush1.msra.mxu0 0.0
    %2798 = vmatprep.subr.mxu0 0.0
    %2799 = vmatpush1.msra.mxu0 0.0
    %2800 = vmatprep.subr.mxu0 0.0
    %2801 = vmatpush1.msra.mxu0 0.0
    %2802 = vmatprep.subr.mxu0 0.0
    %2803 = vmatpush1.msra.mxu0 0.0
    %2804 = vmatprep.subr.mxu0 0.0
    %2805 = vmatpush1.msra.mxu0 0.0
    %2806 = vmatprep.subr.mxu0 0.0
    %2807 = vmatpush1.msra.mxu0 0.0
    %2808 = vmatprep.subr.mxu0 0.0
    %2809 = vmatpush1.msra.mxu0 0.0
    %2810 = vmatprep.subr.mxu0 0.0
    %2811 = vmatpush1.msra.mxu0 0.0
    %2812 = vmatprep.subr.mxu0 0.0
    %2813 = vmatpush1.msra.mxu0 0.0
    %2814 = vmatprep.subr.mxu0 0.0
    %2815 = vmatpush1.msra.mxu0 0.0
    %2816 = vmatprep.subr.mxu0 0.0
    %2817 = vmatpush1.msra.mxu0 0.0
    %2818 = vmatprep.subr.mxu0 0.0
    %2819 = vmatpush1.msra.mxu0 0.0
    %v2820 = vand.u32 %v341, 4294901760
    %2821 = vmatprep.subr.mxu0 %v2820
    %v2822 = vand.u32 %v340, 4294901760
    %2823 = vmatpush1.msra.mxu0 %v2822
    %v2824 = vand.u32 %v325, 4294901760
    %2825 = vmatprep.subr.mxu0 %v2824
    %v2826 = vand.u32 %v324, 4294901760
    %2827 = vmatpush1.msra.mxu0 %v2826
    %v2828 = vand.u32 %v309, 4294901760
    %2829 = vmatprep.subr.mxu0 %v2828
    %v2830 = vand.u32 %v308, 4294901760
    %2831 = vmatpush1.msra.mxu0 %v2830
    %v2832 = vand.u32 %v293, 4294901760
    %2833 = vmatprep.subr.mxu0 %v2832
    %v2834 = vand.u32 %v292, 4294901760
    %2835 = vmatpush1.msra.mxu0 %v2834
    %2836 = vmatprep.subr.mxu0 0.0
    %2837 = vmatpush2.msra.mxu0 0.0
    %2838 = vmatprep.subr.mxu0 0.0
    %2839 = vmatpush2.msra.mxu0 0.0
    %2840 = vmatprep.subr.mxu0 0.0
    %2841 = vmatpush2.msra.mxu0 0.0
    %2842 = vmatprep.subr.mxu0 0.0
    %2843 = vmatpush2.msra.mxu0 0.0
    %2844 = vmatprep.subr.mxu0 0.0
    %2845 = vmatpush2.msra.mxu0 0.0
    %2846 = vmatprep.subr.mxu0 0.0
    %2847 = vmatpush2.msra.mxu0 0.0
    %2848 = vmatprep.subr.mxu0 0.0
    %2849 = vmatpush2.msra.mxu0 0.0
    %2850 = vmatprep.subr.mxu0 0.0
    %2851 = vmatpush2.msra.mxu0 0.0
    %2852 = vmatprep.subr.mxu0 0.0
    %2853 = vmatpush2.msra.mxu0 0.0
    %2854 = vmatprep.subr.mxu0 0.0
    %2855 = vmatpush2.msra.mxu0 0.0
    %2856 = vmatprep.subr.mxu0 0.0
    %2857 = vmatpush2.msra.mxu0 0.0
    %2858 = vmatprep.subr.mxu0 0.0
    %2859 = vmatpush2.msra.mxu0 0.0
    %2860 = vmatprep.subr.mxu0 0.0
    %2861 = vmatpush2.msra.mxu0 0.0
    %2862 = vmatprep.subr.mxu0 0.0
    %2863 = vmatpush2.msra.mxu0 0.0
    %2864 = vmatprep.subr.mxu0 0.0
    %2865 = vmatpush2.msra.mxu0 0.0
    %2866 = vmatprep.subr.mxu0 0.0
    %2867 = vmatpush2.msra.mxu0 0.0
    %2868 = vmatprep.mubr.f32.mxu0 0.0
    %v2869 = vand.u32 %v352, 4294901760
    %v2870 = vsub.f32 %v352, %v2869
    %v2871 = vand.u32 %v2870, 4294901760
    %2872 = vmatmul.mubr.f32.gmra.mxu0 %v2871
    %v2873 = vpop.f32.mrf.mxu0
    %v2874 = vadd.f32 %v2768, %v2873
    %v2875 = vpop.f32.mrf.mxu0
    %v2876 = vadd.f32 %v2770, %v2875
    %2877 = vmatprep.mubr.f32.mxu0 0.0
    %v2878 = vand.u32 %v355, 4294901760
    %v2879 = vsub.f32 %v355, %v2878
    %v2880 = vand.u32 %v2879, 4294901760
    %2881 = vmatmul.mubr.f32.gmra.mxu0 %v2880
    %v2882 = vpop.f32.mrf.mxu0
    %v2883 = vadd.f32 %v2776, %v2882
    %v2884 = vpop.f32.mrf.mxu0
    %v2885 = vadd.f32 %v2778, %v2884
    %2886 = vmatprep.mubr.f32.mxu0 0.0
    %v2887 = vand.u32 %v358, 4294901760
    %v2888 = vsub.f32 %v358, %v2887
    %v2889 = vand.u32 %v2888, 4294901760
    %2890 = vmatmul.mubr.f32.gmra.mxu0 %v2889
    %v2891 = vpop.f32.mrf.mxu0
    %v2892 = vadd.f32 %v2784, %v2891
    %v2893 = vpop.f32.mrf.mxu0
    %v2894 = vadd.f32 %v2786, %v2893
    %2895 = vmatprep.mubr.f32.mxu0 0.0
    %v2896 = vand.u32 %v361, 4294901760
    %v2897 = vsub.f32 %v361, %v2896
    %v2898 = vand.u32 %v2897, 4294901760
    %2899 = vmatmul.mubr.f32.gmra.mxu0 %v2898
    %v2900 = vpop.f32.mrf.mxu0
    %v2901 = vadd.f32 %v2792, %v2900
    %v2902 = vpop.f32.mrf.mxu0
    %v2903 = vadd.f32 %v2794, %v2902
    %2904 = vdwg.mxu0
    %2905 = vmatprep.subr.mxu0 0.0
    %2906 = vmatpush1.msra.mxu0 0.0
    %2907 = vmatprep.subr.mxu0 0.0
    %2908 = vmatpush1.msra.mxu0 0.0
    %2909 = vmatprep.subr.mxu0 0.0
    %2910 = vmatpush1.msra.mxu0 0.0
    %2911 = vmatprep.subr.mxu0 0.0
    %2912 = vmatpush1.msra.mxu0 0.0
    %2913 = vmatprep.subr.mxu0 0.0
    %2914 = vmatpush1.msra.mxu0 0.0
    %2915 = vmatprep.subr.mxu0 0.0
    %2916 = vmatpush1.msra.mxu0 0.0
    %2917 = vmatprep.subr.mxu0 0.0
    %2918 = vmatpush1.msra.mxu0 0.0
    %2919 = vmatprep.subr.mxu0 0.0
    %2920 = vmatpush1.msra.mxu0 0.0
    %2921 = vmatprep.subr.mxu0 0.0
    %2922 = vmatpush1.msra.mxu0 0.0
    %2923 = vmatprep.subr.mxu0 0.0
    %2924 = vmatpush1.msra.mxu0 0.0
    %2925 = vmatprep.subr.mxu0 0.0
    %2926 = vmatpush1.msra.mxu0 0.0
    %2927 = vmatprep.subr.mxu0 0.0
    %2928 = vmatpush1.msra.mxu0 0.0
    %v2929 = vand.u32 %v341, 4294901760
    %v2930 = vsub.f32 %v341, %v2929
    %v2931 = vand.u32 %v2930, 4294901760
    %2932 = vmatprep.subr.mxu0 %v2931
    %v2933 = vand.u32 %v340, 4294901760
    %v2934 = vsub.f32 %v340, %v2933
    %v2935 = vand.u32 %v2934, 4294901760
    %2936 = vmatpush1.msra.mxu0 %v2935
    %v2937 = vand.u32 %v325, 4294901760
    %v2938 = vsub.f32 %v325, %v2937
    %v2939 = vand.u32 %v2938, 4294901760
    %2940 = vmatprep.subr.mxu0 %v2939
    %v2941 = vand.u32 %v324, 4294901760
    %v2942 = vsub.f32 %v324, %v2941
    %v2943 = vand.u32 %v2942, 4294901760
    %2944 = vmatpush1.msra.mxu0 %v2943
    %v2945 = vand.u32 %v309, 4294901760
    %v2946 = vsub.f32 %v309, %v2945
    %v2947 = vand.u32 %v2946, 4294901760
    %2948 = vmatprep.subr.mxu0 %v2947
    %v2949 = vand.u32 %v308, 4294901760
    %v2950 = vsub.f32 %v308, %v2949
    %v2951 = vand.u32 %v2950, 4294901760
    %2952 = vmatpush1.msra.mxu0 %v2951
    %v2953 = vand.u32 %v293, 4294901760
    %v2954 = vsub.f32 %v293, %v2953
    %v2955 = vand.u32 %v2954, 4294901760
    %2956 = vmatprep.subr.mxu0 %v2955
    %v2957 = vand.u32 %v292, 4294901760
    %v2958 = vsub.f32 %v292, %v2957
    %v2959 = vand.u32 %v2958, 4294901760
    %2960 = vmatpush1.msra.mxu0 %v2959
    %2961 = vmatprep.subr.mxu0 0.0
    %2962 = vmatpush2.msra.mxu0 0.0
    %2963 = vmatprep.subr.mxu0 0.0
    %2964 = vmatpush2.msra.mxu0 0.0
    %2965 = vmatprep.subr.mxu0 0.0
    %2966 = vmatpush2.msra.mxu0 0.0
    %2967 = vmatprep.subr.mxu0 0.0
    %2968 = vmatpush2.msra.mxu0 0.0
    %2969 = vmatprep.subr.mxu0 0.0
    %2970 = vmatpush2.msra.mxu0 0.0
    %2971 = vmatprep.subr.mxu0 0.0
    %2972 = vmatpush2.msra.mxu0 0.0
    %2973 = vmatprep.subr.mxu0 0.0
    %2974 = vmatpush2.msra.mxu0 0.0
    %2975 = vmatprep.subr.mxu0 0.0
    %2976 = vmatpush2.msra.mxu0 0.0
    %2977 = vmatprep.subr.mxu0 0.0
    %2978 = vmatpush2.msra.mxu0 0.0
    %2979 = vmatprep.subr.mxu0 0.0
    %2980 = vmatpush2.msra.mxu0 0.0
    %2981 = vmatprep.subr.mxu0 0.0
    %2982 = vmatpush2.msra.mxu0 0.0
    %2983 = vmatprep.subr.mxu0 0.0
    %2984 = vmatpush2.msra.mxu0 0.0
    %2985 = vmatprep.subr.mxu0 0.0
    %2986 = vmatpush2.msra.mxu0 0.0
    %2987 = vmatprep.subr.mxu0 0.0
    %2988 = vmatpush2.msra.mxu0 0.0
    %2989 = vmatprep.subr.mxu0 0.0
    %2990 = vmatpush2.msra.mxu0 0.0
    %2991 = vmatprep.subr.mxu0 0.0
    %2992 = vmatpush2.msra.mxu0 0.0
    %2993 = vmatprep.mubr.f32.mxu0 0.0
    %v2994 = vand.u32 %v352, 4294901760
    %2995 = vmatmul.mubr.f32.gmra.mxu0 %v2994
    %v2996 = vpop.f32.mrf.mxu0
    %v2997 = vadd.f32 %v2874, %v2996
    %v2998 = vpop.f32.mrf.mxu0
    %v2999 = vadd.f32 %v2876, %v2998
    %3000 = vmatprep.mubr.f32.mxu0 0.0
    %v3001 = vand.u32 %v355, 4294901760
    %3002 = vmatmul.mubr.f32.gmra.mxu0 %v3001
    %v3003 = vpop.f32.mrf.mxu0
    %v3004 = vadd.f32 %v2883, %v3003
    %v3005 = vpop.f32.mrf.mxu0
    %v3006 = vadd.f32 %v2885, %v3005
    %3007 = vmatprep.mubr.f32.mxu0 0.0
    %v3008 = vand.u32 %v358, 4294901760
    %3009 = vmatmul.mubr.f32.gmra.mxu0 %v3008
    %v3010 = vpop.f32.mrf.mxu0
    %v3011 = vadd.f32 %v2892, %v3010
    %v3012 = vpop.f32.mrf.mxu0
    %v3013 = vadd.f32 %v2894, %v3012
    %3014 = vmatprep.mubr.f32.mxu0 0.0
    %v3015 = vand.u32 %v361, 4294901760
    %3016 = vmatmul.mubr.f32.gmra.mxu0 %v3015
    %v3017 = vpop.f32.mrf.mxu0
    %v3018 = vadd.f32 %v2901, %v3017
    %v3019 = vpop.f32.mrf.mxu0
    %v3020 = vadd.f32 %v2903, %v3019
    %3021 = vdwg.mxu0
    %3022 = vmatprep.subr.mxu0 0.0
    %3023 = vmatpush1.msra.mxu0 0.0
    %3024 = vmatprep.subr.mxu0 0.0
    %3025 = vmatpush1.msra.mxu0 0.0
    %3026 = vmatprep.subr.mxu0 0.0
    %3027 = vmatpush1.msra.mxu0 0.0
    %3028 = vmatprep.subr.mxu0 0.0
    %3029 = vmatpush1.msra.mxu0 0.0
    %3030 = vmatprep.subr.mxu0 0.0
    %3031 = vmatpush1.msra.mxu0 0.0
    %3032 = vmatprep.subr.mxu0 0.0
    %3033 = vmatpush1.msra.mxu0 0.0
    %3034 = vmatprep.subr.mxu0 0.0
    %3035 = vmatpush1.msra.mxu0 0.0
    %3036 = vmatprep.subr.mxu0 0.0
    %3037 = vmatpush1.msra.mxu0 0.0
    %3038 = vmatprep.subr.mxu0 0.0
    %3039 = vmatpush1.msra.mxu0 0.0
    %3040 = vmatprep.subr.mxu0 0.0
    %3041 = vmatpush1.msra.mxu0 0.0
    %3042 = vmatprep.subr.mxu0 0.0
    %3043 = vmatpush1.msra.mxu0 0.0
    %3044 = vmatprep.subr.mxu0 0.0
    %3045 = vmatpush1.msra.mxu0 0.0
    %v3046 = vand.u32 %v341, 4294901760
    %3047 = vmatprep.subr.mxu0 %v3046
    %v3048 = vand.u32 %v340, 4294901760
    %3049 = vmatpush1.msra.mxu0 %v3048
    %v3050 = vand.u32 %v325, 4294901760
    %3051 = vmatprep.subr.mxu0 %v3050
    %v3052 = vand.u32 %v324, 4294901760
    %3053 = vmatpush1.msra.mxu0 %v3052
    %v3054 = vand.u32 %v309, 4294901760
    %3055 = vmatprep.subr.mxu0 %v3054
    %v3056 = vand.u32 %v308, 4294901760
    %3057 = vmatpush1.msra.mxu0 %v3056
    %v3058 = vand.u32 %v293, 4294901760
    %3059 = vmatprep.subr.mxu0 %v3058
    %v3060 = vand.u32 %v292, 4294901760
    %3061 = vmatpush1.msra.mxu0 %v3060
    %3062 = vmatprep.subr.mxu0 0.0
    %3063 = vmatpush2.msra.mxu0 0.0
    %3064 = vmatprep.subr.mxu0 0.0
    %3065 = vmatpush2.msra.mxu0 0.0
    %3066 = vmatprep.subr.mxu0 0.0
    %3067 = vmatpush2.msra.mxu0 0.0
    %3068 = vmatprep.subr.mxu0 0.0
    %3069 = vmatpush2.msra.mxu0 0.0
    %3070 = vmatprep.subr.mxu0 0.0
    %3071 = vmatpush2.msra.mxu0 0.0
    %3072 = vmatprep.subr.mxu0 0.0
    %3073 = vmatpush2.msra.mxu0 0.0
    %3074 = vmatprep.subr.mxu0 0.0
    %3075 = vmatpush2.msra.mxu0 0.0
    %3076 = vmatprep.subr.mxu0 0.0
    %3077 = vmatpush2.msra.mxu0 0.0
    %3078 = vmatprep.subr.mxu0 0.0
    %3079 = vmatpush2.msra.mxu0 0.0
    %3080 = vmatprep.subr.mxu0 0.0
    %3081 = vmatpush2.msra.mxu0 0.0
    %3082 = vmatprep.subr.mxu0 0.0
    %3083 = vmatpush2.msra.mxu0 0.0
    %3084 = vmatprep.subr.mxu0 0.0
    %3085 = vmatpush2.msra.mxu0 0.0
    %3086 = vmatprep.subr.mxu0 0.0
    %3087 = vmatpush2.msra.mxu0 0.0
    %3088 = vmatprep.subr.mxu0 0.0
    %3089 = vmatpush2.msra.mxu0 0.0
    %3090 = vmatprep.subr.mxu0 0.0
    %3091 = vmatpush2.msra.mxu0 0.0
    %3092 = vmatprep.subr.mxu0 0.0
    %3093 = vmatpush2.msra.mxu0 0.0
    %3094 = vmatprep.mubr.f32.mxu0 0.0
    %v3095 = vand.u32 %v352, 4294901760
    %3096 = vmatmul.mubr.f32.gmra.mxu0 %v3095
    %v3097 = vpop.f32.mrf.mxu0
    %v3098 = vadd.f32 %v2997, %v3097
    %v3099 = vpop.f32.mrf.mxu0
    %v3100 = vadd.f32 %v2999, %v3099
    %3101 = vmatprep.mubr.f32.mxu0 0.0
    %v3102 = vand.u32 %v355, 4294901760
    %3103 = vmatmul.mubr.f32.gmra.mxu0 %v3102
    %v3104 = vpop.f32.mrf.mxu0
    %v3105 = vadd.f32 %v3004, %v3104
    %v3106 = vpop.f32.mrf.mxu0
    %v3107 = vadd.f32 %v3006, %v3106
    %3108 = vmatprep.mubr.f32.mxu0 0.0
    %v3109 = vand.u32 %v358, 4294901760
    %3110 = vmatmul.mubr.f32.gmra.mxu0 %v3109
    %v3111 = vpop.f32.mrf.mxu0
    %v3112 = vadd.f32 %v3011, %v3111
    %v3113 = vpop.f32.mrf.mxu0
    %v3114 = vadd.f32 %v3013, %v3113
    %3115 = vmatprep.mubr.f32.mxu0 0.0
    %v3116 = vand.u32 %v361, 4294901760
    %3117 = vmatmul.mubr.f32.gmra.mxu0 %v3116
    %v3118 = vpop.f32.mrf.mxu0
    %v3119 = vadd.f32 %v3018, %v3118
    %v3120 = vpop.f32.mrf.mxu0
    %v3121 = vadd.f32 %v3020, %v3120
    %3122 = vdwg.mxu0
    %3123 = vmatprep.subr.mxu0 0.0
    %3124 = vmatpush1.msra.mxu0 0.0
    %3125 = vmatprep.subr.mxu0 0.0
    %3126 = vmatpush1.msra.mxu0 0.0
    %3127 = vmatprep.subr.mxu0 0.0
    %3128 = vmatpush1.msra.mxu0 0.0
    %3129 = vmatprep.subr.mxu0 0.0
    %3130 = vmatpush1.msra.mxu0 0.0
    %3131 = vmatprep.subr.mxu0 0.0
    %3132 = vmatpush1.msra.mxu0 0.0
    %3133 = vmatprep.subr.mxu0 0.0
    %3134 = vmatpush1.msra.mxu0 0.0
    %3135 = vmatprep.subr.mxu0 0.0
    %3136 = vmatpush1.msra.mxu0 0.0
    %3137 = vmatprep.subr.mxu0 0.0
    %3138 = vmatpush1.msra.mxu0 0.0
    %3139 = vmatprep.subr.mxu0 0.0
    %3140 = vmatpush1.msra.mxu0 0.0
    %3141 = vmatprep.subr.mxu0 0.0
    %3142 = vmatpush1.msra.mxu0 0.0
    %3143 = vmatprep.subr.mxu0 0.0
    %3144 = vmatpush1.msra.mxu0 0.0
    %3145 = vmatprep.subr.mxu0 0.0
    %3146 = vmatpush1.msra.mxu0 0.0
    %v3147 = vand.u32 %v343, 4294901760
    %3148 = vmatprep.subr.mxu0 %v3147
    %v3149 = vand.u32 %v342, 4294901760
    %3150 = vmatpush1.msra.mxu0 %v3149
    %v3151 = vand.u32 %v327, 4294901760
    %3152 = vmatprep.subr.mxu0 %v3151
    %v3153 = vand.u32 %v326, 4294901760
    %3154 = vmatpush1.msra.mxu0 %v3153
    %v3155 = vand.u32 %v311, 4294901760
    %3156 = vmatprep.subr.mxu0 %v3155
    %v3157 = vand.u32 %v310, 4294901760
    %3158 = vmatpush1.msra.mxu0 %v3157
    %v3159 = vand.u32 %v295, 4294901760
    %3160 = vmatprep.subr.mxu0 %v3159
    %v3161 = vand.u32 %v294, 4294901760
    %3162 = vmatpush1.msra.mxu0 %v3161
    %3163 = vmatprep.subr.mxu0 0.0
    %3164 = vmatpush2.msra.mxu0 0.0
    %3165 = vmatprep.subr.mxu0 0.0
    %3166 = vmatpush2.msra.mxu0 0.0
    %3167 = vmatprep.subr.mxu0 0.0
    %3168 = vmatpush2.msra.mxu0 0.0
    %3169 = vmatprep.subr.mxu0 0.0
    %3170 = vmatpush2.msra.mxu0 0.0
    %3171 = vmatprep.subr.mxu0 0.0
    %3172 = vmatpush2.msra.mxu0 0.0
    %3173 = vmatprep.subr.mxu0 0.0
    %3174 = vmatpush2.msra.mxu0 0.0
    %3175 = vmatprep.subr.mxu0 0.0
    %3176 = vmatpush2.msra.mxu0 0.0
    %3177 = vmatprep.subr.mxu0 0.0
    %3178 = vmatpush2.msra.mxu0 0.0
    %3179 = vmatprep.subr.mxu0 0.0
    %3180 = vmatpush2.msra.mxu0 0.0
    %3181 = vmatprep.subr.mxu0 0.0
    %3182 = vmatpush2.msra.mxu0 0.0
    %3183 = vmatprep.subr.mxu0 0.0
    %3184 = vmatpush2.msra.mxu0 0.0
    %3185 = vmatprep.subr.mxu0 0.0
    %3186 = vmatpush2.msra.mxu0 0.0
    %3187 = vmatprep.subr.mxu0 0.0
    %3188 = vmatpush2.msra.mxu0 0.0
    %3189 = vmatprep.subr.mxu0 0.0
    %3190 = vmatpush2.msra.mxu0 0.0
    %3191 = vmatprep.subr.mxu0 0.0
    %3192 = vmatpush2.msra.mxu0 0.0
    %3193 = vmatprep.subr.mxu0 0.0
    %3194 = vmatpush2.msra.mxu0 0.0
    %3195 = vmatprep.mubr.f32.mxu0 0.0
    %v3196 = vand.u32 %v352, 4294901760
    %v3197 = vsub.f32 %v352, %v3196
    %v3198 = vand.u32 %v3197, 4294901760
    %v3199 = vsub.f32 %v3197, %v3198
    %v3200 = vand.u32 %v3199, 4294901760
    %3201 = vmatmul.mubr.f32.gmra.mxu0 %v3200
    %v3202 = vpop.f32.mrf.mxu0
    %v3203 = vadd.f32 0.0, %v3202
    %v3204 = vpop.f32.mrf.mxu0
    %v3205 = vadd.f32 0.0, %v3204
    %3206 = vmatprep.mubr.f32.mxu0 0.0
    %v3207 = vand.u32 %v355, 4294901760
    %v3208 = vsub.f32 %v355, %v3207
    %v3209 = vand.u32 %v3208, 4294901760
    %v3210 = vsub.f32 %v3208, %v3209
    %v3211 = vand.u32 %v3210, 4294901760
    %3212 = vmatmul.mubr.f32.gmra.mxu0 %v3211
    %v3213 = vpop.f32.mrf.mxu0
    %v3214 = vadd.f32 0.0, %v3213
    %v3215 = vpop.f32.mrf.mxu0
    %v3216 = vadd.f32 0.0, %v3215
    %3217 = vmatprep.mubr.f32.mxu0 0.0
    %v3218 = vand.u32 %v358, 4294901760
    %v3219 = vsub.f32 %v358, %v3218
    %v3220 = vand.u32 %v3219, 4294901760
    %v3221 = vsub.f32 %v3219, %v3220
    %v3222 = vand.u32 %v3221, 4294901760
    %3223 = vmatmul.mubr.f32.gmra.mxu0 %v3222
    %v3224 = vpop.f32.mrf.mxu0
    %v3225 = vadd.f32 0.0, %v3224
    %v3226 = vpop.f32.mrf.mxu0
    %v3227 = vadd.f32 0.0, %v3226
    %3228 = vmatprep.mubr.f32.mxu0 0.0
    %v3229 = vand.u32 %v361, 4294901760
    %v3230 = vsub.f32 %v361, %v3229
    %v3231 = vand.u32 %v3230, 4294901760
    %v3232 = vsub.f32 %v3230, %v3231
    %v3233 = vand.u32 %v3232, 4294901760
    %3234 = vmatmul.mubr.f32.gmra.mxu0 %v3233
    %v3235 = vpop.f32.mrf.mxu0
    %v3236 = vadd.f32 0.0, %v3235
    %v3237 = vpop.f32.mrf.mxu0
    %v3238 = vadd.f32 0.0, %v3237
    %3239 = vdwg.mxu0
    %3240 = vmatprep.subr.mxu0 0.0
    %3241 = vmatpush1.msra.mxu0 0.0
    %3242 = vmatprep.subr.mxu0 0.0
    %3243 = vmatpush1.msra.mxu0 0.0
    %3244 = vmatprep.subr.mxu0 0.0
    %3245 = vmatpush1.msra.mxu0 0.0
    %3246 = vmatprep.subr.mxu0 0.0
    %3247 = vmatpush1.msra.mxu0 0.0
    %3248 = vmatprep.subr.mxu0 0.0
    %3249 = vmatpush1.msra.mxu0 0.0
    %3250 = vmatprep.subr.mxu0 0.0
    %3251 = vmatpush1.msra.mxu0 0.0
    %3252 = vmatprep.subr.mxu0 0.0
    %3253 = vmatpush1.msra.mxu0 0.0
    %3254 = vmatprep.subr.mxu0 0.0
    %3255 = vmatpush1.msra.mxu0 0.0
    %3256 = vmatprep.subr.mxu0 0.0
    %3257 = vmatpush1.msra.mxu0 0.0
    %3258 = vmatprep.subr.mxu0 0.0
    %3259 = vmatpush1.msra.mxu0 0.0
    %3260 = vmatprep.subr.mxu0 0.0
    %3261 = vmatpush1.msra.mxu0 0.0
    %3262 = vmatprep.subr.mxu0 0.0
    %3263 = vmatpush1.msra.mxu0 0.0
    %v3264 = vand.u32 %v343, 4294901760
    %v3265 = vsub.f32 %v343, %v3264
    %v3266 = vand.u32 %v3265, 4294901760
    %v3267 = vsub.f32 %v3265, %v3266
    %v3268 = vand.u32 %v3267, 4294901760
    %3269 = vmatprep.subr.mxu0 %v3268
    %v3270 = vand.u32 %v342, 4294901760
    %v3271 = vsub.f32 %v342, %v3270
    %v3272 = vand.u32 %v3271, 4294901760
    %v3273 = vsub.f32 %v3271, %v3272
    %v3274 = vand.u32 %v3273, 4294901760
    %3275 = vmatpush1.msra.mxu0 %v3274
    %v3276 = vand.u32 %v327, 4294901760
    %v3277 = vsub.f32 %v327, %v3276
    %v3278 = vand.u32 %v3277, 4294901760
    %v3279 = vsub.f32 %v3277, %v3278
    %v3280 = vand.u32 %v3279, 4294901760
    %3281 = vmatprep.subr.mxu0 %v3280
    %v3282 = vand.u32 %v326, 4294901760
    %v3283 = vsub.f32 %v326, %v3282
    %v3284 = vand.u32 %v3283, 4294901760
    %v3285 = vsub.f32 %v3283, %v3284
    %v3286 = vand.u32 %v3285, 4294901760
    %3287 = vmatpush1.msra.mxu0 %v3286
    %v3288 = vand.u32 %v311, 4294901760
    %v3289 = vsub.f32 %v311, %v3288
    %v3290 = vand.u32 %v3289, 4294901760
    %v3291 = vsub.f32 %v3289, %v3290
    %v3292 = vand.u32 %v3291, 4294901760
    %3293 = vmatprep.subr.mxu0 %v3292
    %v3294 = vand.u32 %v310, 4294901760
    %v3295 = vsub.f32 %v310, %v3294
    %v3296 = vand.u32 %v3295, 4294901760
    %v3297 = vsub.f32 %v3295, %v3296
    %v3298 = vand.u32 %v3297, 4294901760
    %3299 = vmatpush1.msra.mxu0 %v3298
    %v3300 = vand.u32 %v295, 4294901760
    %v3301 = vsub.f32 %v295, %v3300
    %v3302 = vand.u32 %v3301, 4294901760
    %v3303 = vsub.f32 %v3301, %v3302
    %v3304 = vand.u32 %v3303, 4294901760
    %3305 = vmatprep.subr.mxu0 %v3304
    %v3306 = vand.u32 %v294, 4294901760
    %v3307 = vsub.f32 %v294, %v3306
    %v3308 = vand.u32 %v3307, 4294901760
    %v3309 = vsub.f32 %v3307, %v3308
    %v3310 = vand.u32 %v3309, 4294901760
    %3311 = vmatpush1.msra.mxu0 %v3310
    %3312 = vmatprep.subr.mxu0 0.0
    %3313 = vmatpush2.msra.mxu0 0.0
    %3314 = vmatprep.subr.mxu0 0.0
    %3315 = vmatpush2.msra.mxu0 0.0
    %3316 = vmatprep.subr.mxu0 0.0
    %3317 = vmatpush2.msra.mxu0 0.0
    %3318 = vmatprep.subr.mxu0 0.0
    %3319 = vmatpush2.msra.mxu0 0.0
    %3320 = vmatprep.subr.mxu0 0.0
    %3321 = vmatpush2.msra.mxu0 0.0
    %3322 = vmatprep.subr.mxu0 0.0
    %3323 = vmatpush2.msra.mxu0 0.0
    %3324 = vmatprep.subr.mxu0 0.0
    %3325 = vmatpush2.msra.mxu0 0.0
    %3326 = vmatprep.subr.mxu0 0.0
    %3327 = vmatpush2.msra.mxu0 0.0
    %3328 = vmatprep.subr.mxu0 0.0
    %3329 = vmatpush2.msra.mxu0 0.0
    %3330 = vmatprep.subr.mxu0 0.0
    %3331 = vmatpush2.msra.mxu0 0.0
    %3332 = vmatprep.subr.mxu0 0.0
    %3333 = vmatpush2.msra.mxu0 0.0
    %3334 = vmatprep.subr.mxu0 0.0
    %3335 = vmatpush2.msra.mxu0 0.0
    %3336 = vmatprep.subr.mxu0 0.0
    %3337 = vmatpush2.msra.mxu0 0.0
    %3338 = vmatprep.subr.mxu0 0.0
    %3339 = vmatpush2.msra.mxu0 0.0
    %3340 = vmatprep.subr.mxu0 0.0
    %3341 = vmatpush2.msra.mxu0 0.0
    %3342 = vmatprep.subr.mxu0 0.0
    %3343 = vmatpush2.msra.mxu0 0.0
    %3344 = vmatprep.mubr.f32.mxu0 0.0
    %v3345 = vand.u32 %v352, 4294901760
    %3346 = vmatmul.mubr.f32.gmra.mxu0 %v3345
    %v3347 = vpop.f32.mrf.mxu0
    %v3348 = vadd.f32 %v3203, %v3347
    %v3349 = vpop.f32.mrf.mxu0
    %v3350 = vadd.f32 %v3205, %v3349
    %3351 = vmatprep.mubr.f32.mxu0 0.0
    %v3352 = vand.u32 %v355, 4294901760
    %3353 = vmatmul.mubr.f32.gmra.mxu0 %v3352
    %v3354 = vpop.f32.mrf.mxu0
    %v3355 = vadd.f32 %v3214, %v3354
    %v3356 = vpop.f32.mrf.mxu0
    %v3357 = vadd.f32 %v3216, %v3356
    %3358 = vmatprep.mubr.f32.mxu0 0.0
    %v3359 = vand.u32 %v358, 4294901760
    %3360 = vmatmul.mubr.f32.gmra.mxu0 %v3359
    %v3361 = vpop.f32.mrf.mxu0
    %v3362 = vadd.f32 %v3225, %v3361
    %v3363 = vpop.f32.mrf.mxu0
    %v3364 = vadd.f32 %v3227, %v3363
    %3365 = vmatprep.mubr.f32.mxu0 0.0
    %v3366 = vand.u32 %v361, 4294901760
    %3367 = vmatmul.mubr.f32.gmra.mxu0 %v3366
    %v3368 = vpop.f32.mrf.mxu0
    %v3369 = vadd.f32 %v3236, %v3368
    %v3370 = vpop.f32.mrf.mxu0
    %v3371 = vadd.f32 %v3238, %v3370
    %3372 = vdwg.mxu0
    %3373 = vmatprep.subr.mxu0 0.0
    %3374 = vmatpush1.msra.mxu0 0.0
    %3375 = vmatprep.subr.mxu0 0.0
    %3376 = vmatpush1.msra.mxu0 0.0
    %3377 = vmatprep.subr.mxu0 0.0
    %3378 = vmatpush1.msra.mxu0 0.0
    %3379 = vmatprep.subr.mxu0 0.0
    %3380 = vmatpush1.msra.mxu0 0.0
    %3381 = vmatprep.subr.mxu0 0.0
    %3382 = vmatpush1.msra.mxu0 0.0
    %3383 = vmatprep.subr.mxu0 0.0
    %3384 = vmatpush1.msra.mxu0 0.0
    %3385 = vmatprep.subr.mxu0 0.0
    %3386 = vmatpush1.msra.mxu0 0.0
    %3387 = vmatprep.subr.mxu0 0.0
    %3388 = vmatpush1.msra.mxu0 0.0
    %3389 = vmatprep.subr.mxu0 0.0
    %3390 = vmatpush1.msra.mxu0 0.0
    %3391 = vmatprep.subr.mxu0 0.0
    %3392 = vmatpush1.msra.mxu0 0.0
    %3393 = vmatprep.subr.mxu0 0.0
    %3394 = vmatpush1.msra.mxu0 0.0
    %3395 = vmatprep.subr.mxu0 0.0
    %3396 = vmatpush1.msra.mxu0 0.0
    %v3397 = vand.u32 %v343, 4294901760
    %v3398 = vsub.f32 %v343, %v3397
    %3399 = vmatprep.subr.mxu0 %v3398
    %v3400 = vand.u32 %v342, 4294901760
    %v3401 = vsub.f32 %v342, %v3400
    %3402 = vmatpush1.msra.mxu0 %v3401
    %v3403 = vand.u32 %v327, 4294901760
    %v3404 = vsub.f32 %v327, %v3403
    %3405 = vmatprep.subr.mxu0 %v3404
    %v3406 = vand.u32 %v326, 4294901760
    %v3407 = vsub.f32 %v326, %v3406
    %3408 = vmatpush1.msra.mxu0 %v3407
    %v3409 = vand.u32 %v311, 4294901760
    %v3410 = vsub.f32 %v311, %v3409
    %3411 = vmatprep.subr.mxu0 %v3410
    %v3412 = vand.u32 %v310, 4294901760
    %v3413 = vsub.f32 %v310, %v3412
    %3414 = vmatpush1.msra.mxu0 %v3413
    %v3415 = vand.u32 %v295, 4294901760
    %v3416 = vsub.f32 %v295, %v3415
    %3417 = vmatprep.subr.mxu0 %v3416
    %v3418 = vand.u32 %v294, 4294901760
    %v3419 = vsub.f32 %v294, %v3418
    %3420 = vmatpush1.msra.mxu0 %v3419
    %3421 = vmatprep.subr.mxu0 0.0
    %3422 = vmatpush2.msra.mxu0 0.0
    %3423 = vmatprep.subr.mxu0 0.0
    %3424 = vmatpush2.msra.mxu0 0.0
    %3425 = vmatprep.subr.mxu0 0.0
    %3426 = vmatpush2.msra.mxu0 0.0
    %3427 = vmatprep.subr.mxu0 0.0
    %3428 = vmatpush2.msra.mxu0 0.0
    %3429 = vmatprep.subr.mxu0 0.0
    %3430 = vmatpush2.msra.mxu0 0.0
    %3431 = vmatprep.subr.mxu0 0.0
    %3432 = vmatpush2.msra.mxu0 0.0
    %3433 = vmatprep.subr.mxu0 0.0
    %3434 = vmatpush2.msra.mxu0 0.0
    %3435 = vmatprep.subr.mxu0 0.0
    %3436 = vmatpush2.msra.mxu0 0.0
    %3437 = vmatprep.subr.mxu0 0.0
    %3438 = vmatpush2.msra.mxu0 0.0
    %3439 = vmatprep.subr.mxu0 0.0
    %3440 = vmatpush2.msra.mxu0 0.0
    %3441 = vmatprep.subr.mxu0 0.0
    %3442 = vmatpush2.msra.mxu0 0.0
    %3443 = vmatprep.subr.mxu0 0.0
    %3444 = vmatpush2.msra.mxu0 0.0
    %3445 = vmatprep.subr.mxu0 0.0
    %3446 = vmatpush2.msra.mxu0 0.0
    %3447 = vmatprep.subr.mxu0 0.0
    %3448 = vmatpush2.msra.mxu0 0.0
    %3449 = vmatprep.subr.mxu0 0.0
    %3450 = vmatpush2.msra.mxu0 0.0
    %3451 = vmatprep.subr.mxu0 0.0
    %3452 = vmatpush2.msra.mxu0 0.0
    %3453 = vmatprep.mubr.f32.mxu0 0.0
    %v3454 = vand.u32 %v352, 4294901760
    %v3455 = vsub.f32 %v352, %v3454
    %3456 = vmatmul.mubr.f32.gmra.mxu0 %v3455
    %v3457 = vpop.f32.mrf.mxu0
    %v3458 = vadd.f32 %v3348, %v3457
    %v3459 = vpop.f32.mrf.mxu0
    %v3460 = vadd.f32 %v3350, %v3459
    %3461 = vmatprep.mubr.f32.mxu0 0.0
    %v3462 = vand.u32 %v355, 4294901760
    %v3463 = vsub.f32 %v355, %v3462
    %3464 = vmatmul.mubr.f32.gmra.mxu0 %v3463
    %v3465 = vpop.f32.mrf.mxu0
    %v3466 = vadd.f32 %v3355, %v3465
    %v3467 = vpop.f32.mrf.mxu0
    %v3468 = vadd.f32 %v3357, %v3467
    %3469 = vmatprep.mubr.f32.mxu0 0.0
    %v3470 = vand.u32 %v358, 4294901760
    %v3471 = vsub.f32 %v358, %v3470
    %3472 = vmatmul.mubr.f32.gmra.mxu0 %v3471
    %v3473 = vpop.f32.mrf.mxu0
    %v3474 = vadd.f32 %v3362, %v3473
    %v3475 = vpop.f32.mrf.mxu0
    %v3476 = vadd.f32 %v3364, %v3475
    %3477 = vmatprep.mubr.f32.mxu0 0.0
    %v3478 = vand.u32 %v361, 4294901760
    %v3479 = vsub.f32 %v361, %v3478
    %3480 = vmatmul.mubr.f32.gmra.mxu0 %v3479
    %v3481 = vpop.f32.mrf.mxu0
    %v3482 = vadd.f32 %v3369, %v3481
    %v3483 = vpop.f32.mrf.mxu0
    %v3484 = vadd.f32 %v3371, %v3483
    %3485 = vdwg.mxu0
    %3486 = vmatprep.subr.mxu0 0.0
    %3487 = vmatpush1.msra.mxu0 0.0
    %3488 = vmatprep.subr.mxu0 0.0
    %3489 = vmatpush1.msra.mxu0 0.0
    %3490 = vmatprep.subr.mxu0 0.0
    %3491 = vmatpush1.msra.mxu0 0.0
    %3492 = vmatprep.subr.mxu0 0.0
    %3493 = vmatpush1.msra.mxu0 0.0
    %3494 = vmatprep.subr.mxu0 0.0
    %3495 = vmatpush1.msra.mxu0 0.0
    %3496 = vmatprep.subr.mxu0 0.0
    %3497 = vmatpush1.msra.mxu0 0.0
    %3498 = vmatprep.subr.mxu0 0.0
    %3499 = vmatpush1.msra.mxu0 0.0
    %3500 = vmatprep.subr.mxu0 0.0
    %3501 = vmatpush1.msra.mxu0 0.0
    %3502 = vmatprep.subr.mxu0 0.0
    %3503 = vmatpush1.msra.mxu0 0.0
    %3504 = vmatprep.subr.mxu0 0.0
    %3505 = vmatpush1.msra.mxu0 0.0
    %3506 = vmatprep.subr.mxu0 0.0
    %3507 = vmatpush1.msra.mxu0 0.0
    %3508 = vmatprep.subr.mxu0 0.0
    %3509 = vmatpush1.msra.mxu0 0.0
    %v3510 = vand.u32 %v343, 4294901760
    %3511 = vmatprep.subr.mxu0 %v3510
    %v3512 = vand.u32 %v342, 4294901760
    %3513 = vmatpush1.msra.mxu0 %v3512
    %v3514 = vand.u32 %v327, 4294901760
    %3515 = vmatprep.subr.mxu0 %v3514
    %v3516 = vand.u32 %v326, 4294901760
    %3517 = vmatpush1.msra.mxu0 %v3516
    %v3518 = vand.u32 %v311, 4294901760
    %3519 = vmatprep.subr.mxu0 %v3518
    %v3520 = vand.u32 %v310, 4294901760
    %3521 = vmatpush1.msra.mxu0 %v3520
    %v3522 = vand.u32 %v295, 4294901760
    %3523 = vmatprep.subr.mxu0 %v3522
    %v3524 = vand.u32 %v294, 4294901760
    %3525 = vmatpush1.msra.mxu0 %v3524
    %3526 = vmatprep.subr.mxu0 0.0
    %3527 = vmatpush2.msra.mxu0 0.0
    %3528 = vmatprep.subr.mxu0 0.0
    %3529 = vmatpush2.msra.mxu0 0.0
    %3530 = vmatprep.subr.mxu0 0.0
    %3531 = vmatpush2.msra.mxu0 0.0
    %3532 = vmatprep.subr.mxu0 0.0
    %3533 = vmatpush2.msra.mxu0 0.0
    %3534 = vmatprep.subr.mxu0 0.0
    %3535 = vmatpush2.msra.mxu0 0.0
    %3536 = vmatprep.subr.mxu0 0.0
    %3537 = vmatpush2.msra.mxu0 0.0
    %3538 = vmatprep.subr.mxu0 0.0
    %3539 = vmatpush2.msra.mxu0 0.0
    %3540 = vmatprep.subr.mxu0 0.0
    %3541 = vmatpush2.msra.mxu0 0.0
    %3542 = vmatprep.subr.mxu0 0.0
    %3543 = vmatpush2.msra.mxu0 0.0
    %3544 = vmatprep.subr.mxu0 0.0
    %3545 = vmatpush2.msra.mxu0 0.0
    %3546 = vmatprep.subr.mxu0 0.0
    %3547 = vmatpush2.msra.mxu0 0.0
    %3548 = vmatprep.subr.mxu0 0.0
    %3549 = vmatpush2.msra.mxu0 0.0
    %3550 = vmatprep.subr.mxu0 0.0
    %3551 = vmatpush2.msra.mxu0 0.0
    %3552 = vmatprep.subr.mxu0 0.0
    %3553 = vmatpush2.msra.mxu0 0.0
    %3554 = vmatprep.subr.mxu0 0.0
    %3555 = vmatpush2.msra.mxu0 0.0
    %3556 = vmatprep.subr.mxu0 0.0
    %3557 = vmatpush2.msra.mxu0 0.0
    %3558 = vmatprep.mubr.f32.mxu0 0.0
    %v3559 = vand.u32 %v352, 4294901760
    %v3560 = vsub.f32 %v352, %v3559
    %v3561 = vand.u32 %v3560, 4294901760
    %3562 = vmatmul.mubr.f32.gmra.mxu0 %v3561
    %v3563 = vpop.f32.mrf.mxu0
    %v3564 = vadd.f32 %v3458, %v3563
    %v3565 = vpop.f32.mrf.mxu0
    %v3566 = vadd.f32 %v3460, %v3565
    %3567 = vmatprep.mubr.f32.mxu0 0.0
    %v3568 = vand.u32 %v355, 4294901760
    %v3569 = vsub.f32 %v355, %v3568
    %v3570 = vand.u32 %v3569, 4294901760
    %3571 = vmatmul.mubr.f32.gmra.mxu0 %v3570
    %v3572 = vpop.f32.mrf.mxu0
    %v3573 = vadd.f32 %v3466, %v3572
    %v3574 = vpop.f32.mrf.mxu0
    %v3575 = vadd.f32 %v3468, %v3574
    %3576 = vmatprep.mubr.f32.mxu0 0.0
    %v3577 = vand.u32 %v358, 4294901760
    %v3578 = vsub.f32 %v358, %v3577
    %v3579 = vand.u32 %v3578, 4294901760
    %3580 = vmatmul.mubr.f32.gmra.mxu0 %v3579
    %v3581 = vpop.f32.mrf.mxu0
    %v3582 = vadd.f32 %v3474, %v3581
    %v3583 = vpop.f32.mrf.mxu0
    %v3584 = vadd.f32 %v3476, %v3583
    %3585 = vmatprep.mubr.f32.mxu0 0.0
    %v3586 = vand.u32 %v361, 4294901760
    %v3587 = vsub.f32 %v361, %v3586
    %v3588 = vand.u32 %v3587, 4294901760
    %3589 = vmatmul.mubr.f32.gmra.mxu0 %v3588
    %v3590 = vpop.f32.mrf.mxu0
    %v3591 = vadd.f32 %v3482, %v3590
    %v3592 = vpop.f32.mrf.mxu0
    %v3593 = vadd.f32 %v3484, %v3592
    %3594 = vdwg.mxu0
    %3595 = vmatprep.subr.mxu0 0.0
    %3596 = vmatpush1.msra.mxu0 0.0
    %3597 = vmatprep.subr.mxu0 0.0
    %3598 = vmatpush1.msra.mxu0 0.0
    %3599 = vmatprep.subr.mxu0 0.0
    %3600 = vmatpush1.msra.mxu0 0.0
    %3601 = vmatprep.subr.mxu0 0.0
    %3602 = vmatpush1.msra.mxu0 0.0
    %3603 = vmatprep.subr.mxu0 0.0
    %3604 = vmatpush1.msra.mxu0 0.0
    %3605 = vmatprep.subr.mxu0 0.0
    %3606 = vmatpush1.msra.mxu0 0.0
    %3607 = vmatprep.subr.mxu0 0.0
    %3608 = vmatpush1.msra.mxu0 0.0
    %3609 = vmatprep.subr.mxu0 0.0
    %3610 = vmatpush1.msra.mxu0 0.0
    %3611 = vmatprep.subr.mxu0 0.0
    %3612 = vmatpush1.msra.mxu0 0.0
    %3613 = vmatprep.subr.mxu0 0.0
    %3614 = vmatpush1.msra.mxu0 0.0
    %3615 = vmatprep.subr.mxu0 0.0
    %3616 = vmatpush1.msra.mxu0 0.0
    %3617 = vmatprep.subr.mxu0 0.0
    %3618 = vmatpush1.msra.mxu0 0.0
    %v3619 = vand.u32 %v343, 4294901760
    %v3620 = vsub.f32 %v343, %v3619
    %v3621 = vand.u32 %v3620, 4294901760
    %3622 = vmatprep.subr.mxu0 %v3621
    %v3623 = vand.u32 %v342, 4294901760
    %v3624 = vsub.f32 %v342, %v3623
    %v3625 = vand.u32 %v3624, 4294901760
    %3626 = vmatpush1.msra.mxu0 %v3625
    %v3627 = vand.u32 %v327, 4294901760
    %v3628 = vsub.f32 %v327, %v3627
    %v3629 = vand.u32 %v3628, 4294901760
    %3630 = vmatprep.subr.mxu0 %v3629
    %v3631 = vand.u32 %v326, 4294901760
    %v3632 = vsub.f32 %v326, %v3631
    %v3633 = vand.u32 %v3632, 4294901760
    %3634 = vmatpush1.msra.mxu0 %v3633
    %v3635 = vand.u32 %v311, 4294901760
    %v3636 = vsub.f32 %v311, %v3635
    %v3637 = vand.u32 %v3636, 4294901760
    %3638 = vmatprep.subr.mxu0 %v3637
    %v3639 = vand.u32 %v310, 4294901760
    %v3640 = vsub.f32 %v310, %v3639
    %v3641 = vand.u32 %v3640, 4294901760
    %3642 = vmatpush1.msra.mxu0 %v3641
    %v3643 = vand.u32 %v295, 4294901760
    %v3644 = vsub.f32 %v295, %v3643
    %v3645 = vand.u32 %v3644, 4294901760
    %3646 = vmatprep.subr.mxu0 %v3645
    %v3647 = vand.u32 %v294, 4294901760
    %v3648 = vsub.f32 %v294, %v3647
    %v3649 = vand.u32 %v3648, 4294901760
    %3650 = vmatpush1.msra.mxu0 %v3649
    %3651 = vmatprep.subr.mxu0 0.0
    %3652 = vmatpush2.msra.mxu0 0.0
    %3653 = vmatprep.subr.mxu0 0.0
    %3654 = vmatpush2.msra.mxu0 0.0
    %3655 = vmatprep.subr.mxu0 0.0
    %3656 = vmatpush2.msra.mxu0 0.0
    %3657 = vmatprep.subr.mxu0 0.0
    %3658 = vmatpush2.msra.mxu0 0.0
    %3659 = vmatprep.subr.mxu0 0.0
    %3660 = vmatpush2.msra.mxu0 0.0
    %3661 = vmatprep.subr.mxu0 0.0
    %3662 = vmatpush2.msra.mxu0 0.0
    %3663 = vmatprep.subr.mxu0 0.0
    %3664 = vmatpush2.msra.mxu0 0.0
    %3665 = vmatprep.subr.mxu0 0.0
    %3666 = vmatpush2.msra.mxu0 0.0
    %3667 = vmatprep.subr.mxu0 0.0
    %3668 = vmatpush2.msra.mxu0 0.0
    %3669 = vmatprep.subr.mxu0 0.0
    %3670 = vmatpush2.msra.mxu0 0.0
    %3671 = vmatprep.subr.mxu0 0.0
    %3672 = vmatpush2.msra.mxu0 0.0
    %3673 = vmatprep.subr.mxu0 0.0
    %3674 = vmatpush2.msra.mxu0 0.0
    %3675 = vmatprep.subr.mxu0 0.0
    %3676 = vmatpush2.msra.mxu0 0.0
    %3677 = vmatprep.subr.mxu0 0.0
    %3678 = vmatpush2.msra.mxu0 0.0
    %3679 = vmatprep.subr.mxu0 0.0
    %3680 = vmatpush2.msra.mxu0 0.0
    %3681 = vmatprep.subr.mxu0 0.0
    %3682 = vmatpush2.msra.mxu0 0.0
    %3683 = vmatprep.mubr.f32.mxu0 0.0
    %v3684 = vand.u32 %v352, 4294901760
    %3685 = vmatmul.mubr.f32.gmra.mxu0 %v3684
    %v3686 = vpop.f32.mrf.mxu0
    %v3687 = vadd.f32 %v3564, %v3686
    %v3688 = vpop.f32.mrf.mxu0
    %v3689 = vadd.f32 %v3566, %v3688
    %3690 = vmatprep.mubr.f32.mxu0 0.0
    %v3691 = vand.u32 %v355, 4294901760
    %3692 = vmatmul.mubr.f32.gmra.mxu0 %v3691
    %v3693 = vpop.f32.mrf.mxu0
    %v3694 = vadd.f32 %v3573, %v3693
    %v3695 = vpop.f32.mrf.mxu0
    %v3696 = vadd.f32 %v3575, %v3695
    %3697 = vmatprep.mubr.f32.mxu0 0.0
    %v3698 = vand.u32 %v358, 4294901760
    %3699 = vmatmul.mubr.f32.gmra.mxu0 %v3698
    %v3700 = vpop.f32.mrf.mxu0
    %v3701 = vadd.f32 %v3582, %v3700
    %v3702 = vpop.f32.mrf.mxu0
    %v3703 = vadd.f32 %v3584, %v3702
    %3704 = vmatprep.mubr.f32.mxu0 0.0
    %v3705 = vand.u32 %v361, 4294901760
    %3706 = vmatmul.mubr.f32.gmra.mxu0 %v3705
    %v3707 = vpop.f32.mrf.mxu0
    %v3708 = vadd.f32 %v3591, %v3707
    %v3709 = vpop.f32.mrf.mxu0
    %v3710 = vadd.f32 %v3593, %v3709
    %3711 = vdwg.mxu0
    %3712 = vmatprep.subr.mxu0 0.0
    %3713 = vmatpush1.msra.mxu0 0.0
    %3714 = vmatprep.subr.mxu0 0.0
    %3715 = vmatpush1.msra.mxu0 0.0
    %3716 = vmatprep.subr.mxu0 0.0
    %3717 = vmatpush1.msra.mxu0 0.0
    %3718 = vmatprep.subr.mxu0 0.0
    %3719 = vmatpush1.msra.mxu0 0.0
    %3720 = vmatprep.subr.mxu0 0.0
    %3721 = vmatpush1.msra.mxu0 0.0
    %3722 = vmatprep.subr.mxu0 0.0
    %3723 = vmatpush1.msra.mxu0 0.0
    %3724 = vmatprep.subr.mxu0 0.0
    %3725 = vmatpush1.msra.mxu0 0.0
    %3726 = vmatprep.subr.mxu0 0.0
    %3727 = vmatpush1.msra.mxu0 0.0
    %3728 = vmatprep.subr.mxu0 0.0
    %3729 = vmatpush1.msra.mxu0 0.0
    %3730 = vmatprep.subr.mxu0 0.0
    %3731 = vmatpush1.msra.mxu0 0.0
    %3732 = vmatprep.subr.mxu0 0.0
    %3733 = vmatpush1.msra.mxu0 0.0
    %3734 = vmatprep.subr.mxu0 0.0
    %3735 = vmatpush1.msra.mxu0 0.0
    %v3736 = vand.u32 %v343, 4294901760
    %3737 = vmatprep.subr.mxu0 %v3736
    %v3738 = vand.u32 %v342, 4294901760
    %3739 = vmatpush1.msra.mxu0 %v3738
    %v3740 = vand.u32 %v327, 4294901760
    %3741 = vmatprep.subr.mxu0 %v3740
    %v3742 = vand.u32 %v326, 4294901760
    %3743 = vmatpush1.msra.mxu0 %v3742
    %v3744 = vand.u32 %v311, 4294901760
    %3745 = vmatprep.subr.mxu0 %v3744
    %v3746 = vand.u32 %v310, 4294901760
    %3747 = vmatpush1.msra.mxu0 %v3746
    %v3748 = vand.u32 %v295, 4294901760
    %3749 = vmatprep.subr.mxu0 %v3748
    %v3750 = vand.u32 %v294, 4294901760
    %3751 = vmatpush1.msra.mxu0 %v3750
    %3752 = vmatprep.subr.mxu0 0.0
    %3753 = vmatpush2.msra.mxu0 0.0
    %3754 = vmatprep.subr.mxu0 0.0
    %3755 = vmatpush2.msra.mxu0 0.0
    %3756 = vmatprep.subr.mxu0 0.0
    %3757 = vmatpush2.msra.mxu0 0.0
    %3758 = vmatprep.subr.mxu0 0.0
    %3759 = vmatpush2.msra.mxu0 0.0
    %3760 = vmatprep.subr.mxu0 0.0
    %3761 = vmatpush2.msra.mxu0 0.0
    %3762 = vmatprep.subr.mxu0 0.0
    %3763 = vmatpush2.msra.mxu0 0.0
    %3764 = vmatprep.subr.mxu0 0.0
    %3765 = vmatpush2.msra.mxu0 0.0
    %3766 = vmatprep.subr.mxu0 0.0
    %3767 = vmatpush2.msra.mxu0 0.0
    %3768 = vmatprep.subr.mxu0 0.0
    %3769 = vmatpush2.msra.mxu0 0.0
    %3770 = vmatprep.subr.mxu0 0.0
    %3771 = vmatpush2.msra.mxu0 0.0
    %3772 = vmatprep.subr.mxu0 0.0
    %3773 = vmatpush2.msra.mxu0 0.0
    %3774 = vmatprep.subr.mxu0 0.0
    %3775 = vmatpush2.msra.mxu0 0.0
    %3776 = vmatprep.subr.mxu0 0.0
    %3777 = vmatpush2.msra.mxu0 0.0
    %3778 = vmatprep.subr.mxu0 0.0
    %3779 = vmatpush2.msra.mxu0 0.0
    %3780 = vmatprep.subr.mxu0 0.0
    %3781 = vmatpush2.msra.mxu0 0.0
    %3782 = vmatprep.subr.mxu0 0.0
    %3783 = vmatpush2.msra.mxu0 0.0
    %3784 = vmatprep.mubr.f32.mxu0 0.0
    %v3785 = vand.u32 %v352, 4294901760
    %3786 = vmatmul.mubr.f32.gmra.mxu0 %v3785
    %v3787 = vpop.f32.mrf.mxu0
    %v3788 = vadd.f32 %v3687, %v3787
    %v3789 = vpop.f32.mrf.mxu0
    %v3790 = vadd.f32 %v3689, %v3789
    %3791 = vmatprep.mubr.f32.mxu0 0.0
    %v3792 = vand.u32 %v355, 4294901760
    %3793 = vmatmul.mubr.f32.gmra.mxu0 %v3792
    %v3794 = vpop.f32.mrf.mxu0
    %v3795 = vadd.f32 %v3694, %v3794
    %v3796 = vpop.f32.mrf.mxu0
    %v3797 = vadd.f32 %v3696, %v3796
    %3798 = vmatprep.mubr.f32.mxu0 0.0
    %v3799 = vand.u32 %v358, 4294901760
    %3800 = vmatmul.mubr.f32.gmra.mxu0 %v3799
    %v3801 = vpop.f32.mrf.mxu0
    %v3802 = vadd.f32 %v3701, %v3801
    %v3803 = vpop.f32.mrf.mxu0
    %v3804 = vadd.f32 %v3703, %v3803
    %3805 = vmatprep.mubr.f32.mxu0 0.0
    %v3806 = vand.u32 %v361, 4294901760
    %3807 = vmatmul.mubr.f32.gmra.mxu0 %v3806
    %v3808 = vpop.f32.mrf.mxu0
    %v3809 = vadd.f32 %v3708, %v3808
    %v3810 = vpop.f32.mrf.mxu0
    %v3811 = vadd.f32 %v3710, %v3810
    %3812 = vdwg.mxu0
    %3813 = vmatprep.subr.mxu0 0.0
    %3814 = vmatpush1.msra.mxu0 0.0
    %3815 = vmatprep.subr.mxu0 0.0
    %3816 = vmatpush1.msra.mxu0 0.0
    %3817 = vmatprep.subr.mxu0 0.0
    %3818 = vmatpush1.msra.mxu0 0.0
    %3819 = vmatprep.subr.mxu0 0.0
    %3820 = vmatpush1.msra.mxu0 0.0
    %3821 = vmatprep.subr.mxu0 0.0
    %3822 = vmatpush1.msra.mxu0 0.0
    %3823 = vmatprep.subr.mxu0 0.0
    %3824 = vmatpush1.msra.mxu0 0.0
    %3825 = vmatprep.subr.mxu0 0.0
    %3826 = vmatpush1.msra.mxu0 0.0
    %3827 = vmatprep.subr.mxu0 0.0
    %3828 = vmatpush1.msra.mxu0 0.0
    %3829 = vmatprep.subr.mxu0 0.0
    %3830 = vmatpush1.msra.mxu0 0.0
    %3831 = vmatprep.subr.mxu0 0.0
    %3832 = vmatpush1.msra.mxu0 0.0
    %3833 = vmatprep.subr.mxu0 0.0
    %3834 = vmatpush1.msra.mxu0 0.0
    %3835 = vmatprep.subr.mxu0 0.0
    %3836 = vmatpush1.msra.mxu0 0.0
    %v3837 = vand.u32 %v345, 4294901760
    %3838 = vmatprep.subr.mxu0 %v3837
    %v3839 = vand.u32 %v344, 4294901760
    %3840 = vmatpush1.msra.mxu0 %v3839
    %v3841 = vand.u32 %v329, 4294901760
    %3842 = vmatprep.subr.mxu0 %v3841
    %v3843 = vand.u32 %v328, 4294901760
    %3844 = vmatpush1.msra.mxu0 %v3843
    %v3845 = vand.u32 %v313, 4294901760
    %3846 = vmatprep.subr.mxu0 %v3845
    %v3847 = vand.u32 %v312, 4294901760
    %3848 = vmatpush1.msra.mxu0 %v3847
    %v3849 = vand.u32 %v297, 4294901760
    %3850 = vmatprep.subr.mxu0 %v3849
    %v3851 = vand.u32 %v296, 4294901760
    %3852 = vmatpush1.msra.mxu0 %v3851
    %3853 = vmatprep.subr.mxu0 0.0
    %3854 = vmatpush2.msra.mxu0 0.0
    %3855 = vmatprep.subr.mxu0 0.0
    %3856 = vmatpush2.msra.mxu0 0.0
    %3857 = vmatprep.subr.mxu0 0.0
    %3858 = vmatpush2.msra.mxu0 0.0
    %3859 = vmatprep.subr.mxu0 0.0
    %3860 = vmatpush2.msra.mxu0 0.0
    %3861 = vmatprep.subr.mxu0 0.0
    %3862 = vmatpush2.msra.mxu0 0.0
    %3863 = vmatprep.subr.mxu0 0.0
    %3864 = vmatpush2.msra.mxu0 0.0
    %3865 = vmatprep.subr.mxu0 0.0
    %3866 = vmatpush2.msra.mxu0 0.0
    %3867 = vmatprep.subr.mxu0 0.0
    %3868 = vmatpush2.msra.mxu0 0.0
    %3869 = vmatprep.subr.mxu0 0.0
    %3870 = vmatpush2.msra.mxu0 0.0
    %3871 = vmatprep.subr.mxu0 0.0
    %3872 = vmatpush2.msra.mxu0 0.0
    %3873 = vmatprep.subr.mxu0 0.0
    %3874 = vmatpush2.msra.mxu0 0.0
    %3875 = vmatprep.subr.mxu0 0.0
    %3876 = vmatpush2.msra.mxu0 0.0
    %3877 = vmatprep.subr.mxu0 0.0
    %3878 = vmatpush2.msra.mxu0 0.0
    %3879 = vmatprep.subr.mxu0 0.0
    %3880 = vmatpush2.msra.mxu0 0.0
    %3881 = vmatprep.subr.mxu0 0.0
    %3882 = vmatpush2.msra.mxu0 0.0
    %3883 = vmatprep.subr.mxu0 0.0
    %3884 = vmatpush2.msra.mxu0 0.0
    %3885 = vmatprep.mubr.f32.mxu0 0.0
    %v3886 = vand.u32 %v352, 4294901760
    %v3887 = vsub.f32 %v352, %v3886
    %v3888 = vand.u32 %v3887, 4294901760
    %v3889 = vsub.f32 %v3887, %v3888
    %v3890 = vand.u32 %v3889, 4294901760
    %3891 = vmatmul.mubr.f32.gmra.mxu0 %v3890
    %v3892 = vpop.f32.mrf.mxu0
    %v3893 = vadd.f32 0.0, %v3892
    %v3894 = vpop.f32.mrf.mxu0
    %v3895 = vadd.f32 0.0, %v3894
    %3896 = vmatprep.mubr.f32.mxu0 0.0
    %v3897 = vand.u32 %v355, 4294901760
    %v3898 = vsub.f32 %v355, %v3897
    %v3899 = vand.u32 %v3898, 4294901760
    %v3900 = vsub.f32 %v3898, %v3899
    %v3901 = vand.u32 %v3900, 4294901760
    %3902 = vmatmul.mubr.f32.gmra.mxu0 %v3901
    %v3903 = vpop.f32.mrf.mxu0
    %v3904 = vadd.f32 0.0, %v3903
    %v3905 = vpop.f32.mrf.mxu0
    %v3906 = vadd.f32 0.0, %v3905
    %3907 = vmatprep.mubr.f32.mxu0 0.0
    %v3908 = vand.u32 %v358, 4294901760
    %v3909 = vsub.f32 %v358, %v3908
    %v3910 = vand.u32 %v3909, 4294901760
    %v3911 = vsub.f32 %v3909, %v3910
    %v3912 = vand.u32 %v3911, 4294901760
    %3913 = vmatmul.mubr.f32.gmra.mxu0 %v3912
    %v3914 = vpop.f32.mrf.mxu0
    %v3915 = vadd.f32 0.0, %v3914
    %v3916 = vpop.f32.mrf.mxu0
    %v3917 = vadd.f32 0.0, %v3916
    %3918 = vmatprep.mubr.f32.mxu0 0.0
    %v3919 = vand.u32 %v361, 4294901760
    %v3920 = vsub.f32 %v361, %v3919
    %v3921 = vand.u32 %v3920, 4294901760
    %v3922 = vsub.f32 %v3920, %v3921
    %v3923 = vand.u32 %v3922, 4294901760
    %3924 = vmatmul.mubr.f32.gmra.mxu0 %v3923
    %v3925 = vpop.f32.mrf.mxu0
    %v3926 = vadd.f32 0.0, %v3925
    %v3927 = vpop.f32.mrf.mxu0
    %v3928 = vadd.f32 0.0, %v3927
    %3929 = vdwg.mxu0
    %3930 = vmatprep.subr.mxu0 0.0
    %3931 = vmatpush1.msra.mxu0 0.0
    %3932 = vmatprep.subr.mxu0 0.0
    %3933 = vmatpush1.msra.mxu0 0.0
    %3934 = vmatprep.subr.mxu0 0.0
    %3935 = vmatpush1.msra.mxu0 0.0
    %3936 = vmatprep.subr.mxu0 0.0
    %3937 = vmatpush1.msra.mxu0 0.0
    %3938 = vmatprep.subr.mxu0 0.0
    %3939 = vmatpush1.msra.mxu0 0.0
    %3940 = vmatprep.subr.mxu0 0.0
    %3941 = vmatpush1.msra.mxu0 0.0
    %3942 = vmatprep.subr.mxu0 0.0
    %3943 = vmatpush1.msra.mxu0 0.0
    %3944 = vmatprep.subr.mxu0 0.0
    %3945 = vmatpush1.msra.mxu0 0.0
    %3946 = vmatprep.subr.mxu0 0.0
    %3947 = vmatpush1.msra.mxu0 0.0
    %3948 = vmatprep.subr.mxu0 0.0
    %3949 = vmatpush1.msra.mxu0 0.0
    %3950 = vmatprep.subr.mxu0 0.0
    %3951 = vmatpush1.msra.mxu0 0.0
    %3952 = vmatprep.subr.mxu0 0.0
    %3953 = vmatpush1.msra.mxu0 0.0
    %v3954 = vand.u32 %v345, 4294901760
    %v3955 = vsub.f32 %v345, %v3954
    %v3956 = vand.u32 %v3955, 4294901760
    %v3957 = vsub.f32 %v3955, %v3956
    %v3958 = vand.u32 %v3957, 4294901760
    %3959 = vmatprep.subr.mxu0 %v3958
    %v3960 = vand.u32 %v344, 4294901760
    %v3961 = vsub.f32 %v344, %v3960
    %v3962 = vand.u32 %v3961, 4294901760
    %v3963 = vsub.f32 %v3961, %v3962
    %v3964 = vand.u32 %v3963, 4294901760
    %3965 = vmatpush1.msra.mxu0 %v3964
    %v3966 = vand.u32 %v329, 4294901760
    %v3967 = vsub.f32 %v329, %v3966
    %v3968 = vand.u32 %v3967, 4294901760
    %v3969 = vsub.f32 %v3967, %v3968
    %v3970 = vand.u32 %v3969, 4294901760
    %3971 = vmatprep.subr.mxu0 %v3970
    %v3972 = vand.u32 %v328, 4294901760
    %v3973 = vsub.f32 %v328, %v3972
    %v3974 = vand.u32 %v3973, 4294901760
    %v3975 = vsub.f32 %v3973, %v3974
    %v3976 = vand.u32 %v3975, 4294901760
    %3977 = vmatpush1.msra.mxu0 %v3976
    %v3978 = vand.u32 %v313, 4294901760
    %v3979 = vsub.f32 %v313, %v3978
    %v3980 = vand.u32 %v3979, 4294901760
    %v3981 = vsub.f32 %v3979, %v3980
    %v3982 = vand.u32 %v3981, 4294901760
    %3983 = vmatprep.subr.mxu0 %v3982
    %v3984 = vand.u32 %v312, 4294901760
    %v3985 = vsub.f32 %v312, %v3984
    %v3986 = vand.u32 %v3985, 4294901760
    %v3987 = vsub.f32 %v3985, %v3986
    %v3988 = vand.u32 %v3987, 4294901760
    %3989 = vmatpush1.msra.mxu0 %v3988
    %v3990 = vand.u32 %v297, 4294901760
    %v3991 = vsub.f32 %v297, %v3990
    %v3992 = vand.u32 %v3991, 4294901760
    %v3993 = vsub.f32 %v3991, %v3992
    %v3994 = vand.u32 %v3993, 4294901760
    %3995 = vmatprep.subr.mxu0 %v3994
    %v3996 = vand.u32 %v296, 4294901760
    %v3997 = vsub.f32 %v296, %v3996
    %v3998 = vand.u32 %v3997, 4294901760
    %v3999 = vsub.f32 %v3997, %v3998
    %v4000 = vand.u32 %v3999, 4294901760
    %4001 = vmatpush1.msra.mxu0 %v4000
    %4002 = vmatprep.subr.mxu0 0.0
    %4003 = vmatpush2.msra.mxu0 0.0
    %4004 = vmatprep.subr.mxu0 0.0
    %4005 = vmatpush2.msra.mxu0 0.0
    %4006 = vmatprep.subr.mxu0 0.0
    %4007 = vmatpush2.msra.mxu0 0.0
    %4008 = vmatprep.subr.mxu0 0.0
    %4009 = vmatpush2.msra.mxu0 0.0
    %4010 = vmatprep.subr.mxu0 0.0
    %4011 = vmatpush2.msra.mxu0 0.0
    %4012 = vmatprep.subr.mxu0 0.0
    %4013 = vmatpush2.msra.mxu0 0.0
    %4014 = vmatprep.subr.mxu0 0.0
    %4015 = vmatpush2.msra.mxu0 0.0
    %4016 = vmatprep.subr.mxu0 0.0
    %4017 = vmatpush2.msra.mxu0 0.0
    %4018 = vmatprep.subr.mxu0 0.0
    %4019 = vmatpush2.msra.mxu0 0.0
    %4020 = vmatprep.subr.mxu0 0.0
    %4021 = vmatpush2.msra.mxu0 0.0
    %4022 = vmatprep.subr.mxu0 0.0
    %4023 = vmatpush2.msra.mxu0 0.0
    %4024 = vmatprep.subr.mxu0 0.0
    %4025 = vmatpush2.msra.mxu0 0.0
    %4026 = vmatprep.subr.mxu0 0.0
    %4027 = vmatpush2.msra.mxu0 0.0
    %4028 = vmatprep.subr.mxu0 0.0
    %4029 = vmatpush2.msra.mxu0 0.0
    %4030 = vmatprep.subr.mxu0 0.0
    %4031 = vmatpush2.msra.mxu0 0.0
    %4032 = vmatprep.subr.mxu0 0.0
    %4033 = vmatpush2.msra.mxu0 0.0
    %4034 = vmatprep.mubr.f32.mxu0 0.0
    %v4035 = vand.u32 %v352, 4294901760
    %4036 = vmatmul.mubr.f32.gmra.mxu0 %v4035
    %v4037 = vpop.f32.mrf.mxu0
    %v4038 = vadd.f32 %v3893, %v4037
    %v4039 = vpop.f32.mrf.mxu0
    %v4040 = vadd.f32 %v3895, %v4039
    %4041 = vmatprep.mubr.f32.mxu0 0.0
    %v4042 = vand.u32 %v355, 4294901760
    %4043 = vmatmul.mubr.f32.gmra.mxu0 %v4042
    %v4044 = vpop.f32.mrf.mxu0
    %v4045 = vadd.f32 %v3904, %v4044
    %v4046 = vpop.f32.mrf.mxu0
    %v4047 = vadd.f32 %v3906, %v4046
    %4048 = vmatprep.mubr.f32.mxu0 0.0
    %v4049 = vand.u32 %v358, 4294901760
    %4050 = vmatmul.mubr.f32.gmra.mxu0 %v4049
    %v4051 = vpop.f32.mrf.mxu0
    %v4052 = vadd.f32 %v3915, %v4051
    %v4053 = vpop.f32.mrf.mxu0
    %v4054 = vadd.f32 %v3917, %v4053
    %4055 = vmatprep.mubr.f32.mxu0 0.0
    %v4056 = vand.u32 %v361, 4294901760
    %4057 = vmatmul.mubr.f32.gmra.mxu0 %v4056
    %v4058 = vpop.f32.mrf.mxu0
    %v4059 = vadd.f32 %v3926, %v4058
    %v4060 = vpop.f32.mrf.mxu0
    %v4061 = vadd.f32 %v3928, %v4060
    %4062 = vdwg.mxu0
    %4063 = vmatprep.subr.mxu0 0.0
    %4064 = vmatpush1.msra.mxu0 0.0
    %4065 = vmatprep.subr.mxu0 0.0
    %4066 = vmatpush1.msra.mxu0 0.0
    %4067 = vmatprep.subr.mxu0 0.0
    %4068 = vmatpush1.msra.mxu0 0.0
    %4069 = vmatprep.subr.mxu0 0.0
    %4070 = vmatpush1.msra.mxu0 0.0
    %4071 = vmatprep.subr.mxu0 0.0
    %4072 = vmatpush1.msra.mxu0 0.0
    %4073 = vmatprep.subr.mxu0 0.0
    %4074 = vmatpush1.msra.mxu0 0.0
    %4075 = vmatprep.subr.mxu0 0.0
    %4076 = vmatpush1.msra.mxu0 0.0
    %4077 = vmatprep.subr.mxu0 0.0
    %4078 = vmatpush1.msra.mxu0 0.0
    %4079 = vmatprep.subr.mxu0 0.0
    %4080 = vmatpush1.msra.mxu0 0.0
    %4081 = vmatprep.subr.mxu0 0.0
    %4082 = vmatpush1.msra.mxu0 0.0
    %4083 = vmatprep.subr.mxu0 0.0
    %4084 = vmatpush1.msra.mxu0 0.0
    %4085 = vmatprep.subr.mxu0 0.0
    %4086 = vmatpush1.msra.mxu0 0.0
    %v4087 = vand.u32 %v345, 4294901760
    %v4088 = vsub.f32 %v345, %v4087
    %4089 = vmatprep.subr.mxu0 %v4088
    %v4090 = vand.u32 %v344, 4294901760
    %v4091 = vsub.f32 %v344, %v4090
    %4092 = vmatpush1.msra.mxu0 %v4091
    %v4093 = vand.u32 %v329, 4294901760
    %v4094 = vsub.f32 %v329, %v4093
    %4095 = vmatprep.subr.mxu0 %v4094
    %v4096 = vand.u32 %v328, 4294901760
    %v4097 = vsub.f32 %v328, %v4096
    %4098 = vmatpush1.msra.mxu0 %v4097
    %v4099 = vand.u32 %v313, 4294901760
    %v4100 = vsub.f32 %v313, %v4099
    %4101 = vmatprep.subr.mxu0 %v4100
    %v4102 = vand.u32 %v312, 4294901760
    %v4103 = vsub.f32 %v312, %v4102
    %4104 = vmatpush1.msra.mxu0 %v4103
    %v4105 = vand.u32 %v297, 4294901760
    %v4106 = vsub.f32 %v297, %v4105
    %4107 = vmatprep.subr.mxu0 %v4106
    %v4108 = vand.u32 %v296, 4294901760
    %v4109 = vsub.f32 %v296, %v4108
    %4110 = vmatpush1.msra.mxu0 %v4109
    %4111 = vmatprep.subr.mxu0 0.0
    %4112 = vmatpush2.msra.mxu0 0.0
    %4113 = vmatprep.subr.mxu0 0.0
    %4114 = vmatpush2.msra.mxu0 0.0
    %4115 = vmatprep.subr.mxu0 0.0
    %4116 = vmatpush2.msra.mxu0 0.0
    %4117 = vmatprep.subr.mxu0 0.0
    %4118 = vmatpush2.msra.mxu0 0.0
    %4119 = vmatprep.subr.mxu0 0.0
    %4120 = vmatpush2.msra.mxu0 0.0
    %4121 = vmatprep.subr.mxu0 0.0
    %4122 = vmatpush2.msra.mxu0 0.0
    %4123 = vmatprep.subr.mxu0 0.0
    %4124 = vmatpush2.msra.mxu0 0.0
    %4125 = vmatprep.subr.mxu0 0.0
    %4126 = vmatpush2.msra.mxu0 0.0
    %4127 = vmatprep.subr.mxu0 0.0
    %4128 = vmatpush2.msra.mxu0 0.0
    %4129 = vmatprep.subr.mxu0 0.0
    %4130 = vmatpush2.msra.mxu0 0.0
    %4131 = vmatprep.subr.mxu0 0.0
    %4132 = vmatpush2.msra.mxu0 0.0
    %4133 = vmatprep.subr.mxu0 0.0
    %4134 = vmatpush2.msra.mxu0 0.0
    %4135 = vmatprep.subr.mxu0 0.0
    %4136 = vmatpush2.msra.mxu0 0.0
    %4137 = vmatprep.subr.mxu0 0.0
    %4138 = vmatpush2.msra.mxu0 0.0
    %4139 = vmatprep.subr.mxu0 0.0
    %4140 = vmatpush2.msra.mxu0 0.0
    %4141 = vmatprep.subr.mxu0 0.0
    %4142 = vmatpush2.msra.mxu0 0.0
    %4143 = vmatprep.mubr.f32.mxu0 0.0
    %v4144 = vand.u32 %v352, 4294901760
    %v4145 = vsub.f32 %v352, %v4144
    %4146 = vmatmul.mubr.f32.gmra.mxu0 %v4145
    %v4147 = vpop.f32.mrf.mxu0
    %v4148 = vadd.f32 %v4038, %v4147
    %v4149 = vpop.f32.mrf.mxu0
    %v4150 = vadd.f32 %v4040, %v4149
    %4151 = vmatprep.mubr.f32.mxu0 0.0
    %v4152 = vand.u32 %v355, 4294901760
    %v4153 = vsub.f32 %v355, %v4152
    %4154 = vmatmul.mubr.f32.gmra.mxu0 %v4153
    %v4155 = vpop.f32.mrf.mxu0
    %v4156 = vadd.f32 %v4045, %v4155
    %v4157 = vpop.f32.mrf.mxu0
    %v4158 = vadd.f32 %v4047, %v4157
    %4159 = vmatprep.mubr.f32.mxu0 0.0
    %v4160 = vand.u32 %v358, 4294901760
    %v4161 = vsub.f32 %v358, %v4160
    %4162 = vmatmul.mubr.f32.gmra.mxu0 %v4161
    %v4163 = vpop.f32.mrf.mxu0
    %v4164 = vadd.f32 %v4052, %v4163
    %v4165 = vpop.f32.mrf.mxu0
    %v4166 = vadd.f32 %v4054, %v4165
    %4167 = vmatprep.mubr.f32.mxu0 0.0
    %v4168 = vand.u32 %v361, 4294901760
    %v4169 = vsub.f32 %v361, %v4168
    %4170 = vmatmul.mubr.f32.gmra.mxu0 %v4169
    %v4171 = vpop.f32.mrf.mxu0
    %v4172 = vadd.f32 %v4059, %v4171
    %v4173 = vpop.f32.mrf.mxu0
    %v4174 = vadd.f32 %v4061, %v4173
    %4175 = vdwg.mxu0
    %4176 = vmatprep.subr.mxu0 0.0
    %4177 = vmatpush1.msra.mxu0 0.0
    %4178 = vmatprep.subr.mxu0 0.0
    %4179 = vmatpush1.msra.mxu0 0.0
    %4180 = vmatprep.subr.mxu0 0.0
    %4181 = vmatpush1.msra.mxu0 0.0
    %4182 = vmatprep.subr.mxu0 0.0
    %4183 = vmatpush1.msra.mxu0 0.0
    %4184 = vmatprep.subr.mxu0 0.0
    %4185 = vmatpush1.msra.mxu0 0.0
    %4186 = vmatprep.subr.mxu0 0.0
    %4187 = vmatpush1.msra.mxu0 0.0
    %4188 = vmatprep.subr.mxu0 0.0
    %4189 = vmatpush1.msra.mxu0 0.0
    %4190 = vmatprep.subr.mxu0 0.0
    %4191 = vmatpush1.msra.mxu0 0.0
    %4192 = vmatprep.subr.mxu0 0.0
    %4193 = vmatpush1.msra.mxu0 0.0
    %4194 = vmatprep.subr.mxu0 0.0
    %4195 = vmatpush1.msra.mxu0 0.0
    %4196 = vmatprep.subr.mxu0 0.0
    %4197 = vmatpush1.msra.mxu0 0.0
    %4198 = vmatprep.subr.mxu0 0.0
    %4199 = vmatpush1.msra.mxu0 0.0
    %v4200 = vand.u32 %v345, 4294901760
    %4201 = vmatprep.subr.mxu0 %v4200
    %v4202 = vand.u32 %v344, 4294901760
    %4203 = vmatpush1.msra.mxu0 %v4202
    %v4204 = vand.u32 %v329, 4294901760
    %4205 = vmatprep.subr.mxu0 %v4204
    %v4206 = vand.u32 %v328, 4294901760
    %4207 = vmatpush1.msra.mxu0 %v4206
    %v4208 = vand.u32 %v313, 4294901760
    %4209 = vmatprep.subr.mxu0 %v4208
    %v4210 = vand.u32 %v312, 4294901760
    %4211 = vmatpush1.msra.mxu0 %v4210
    %v4212 = vand.u32 %v297, 4294901760
    %4213 = vmatprep.subr.mxu0 %v4212
    %v4214 = vand.u32 %v296, 4294901760
    %4215 = vmatpush1.msra.mxu0 %v4214
    %4216 = vmatprep.subr.mxu0 0.0
    %4217 = vmatpush2.msra.mxu0 0.0
    %4218 = vmatprep.subr.mxu0 0.0
    %4219 = vmatpush2.msra.mxu0 0.0
    %4220 = vmatprep.subr.mxu0 0.0
    %4221 = vmatpush2.msra.mxu0 0.0
    %4222 = vmatprep.subr.mxu0 0.0
    %4223 = vmatpush2.msra.mxu0 0.0
    %4224 = vmatprep.subr.mxu0 0.0
    %4225 = vmatpush2.msra.mxu0 0.0
    %4226 = vmatprep.subr.mxu0 0.0
    %4227 = vmatpush2.msra.mxu0 0.0
    %4228 = vmatprep.subr.mxu0 0.0
    %4229 = vmatpush2.msra.mxu0 0.0
    %4230 = vmatprep.subr.mxu0 0.0
    %4231 = vmatpush2.msra.mxu0 0.0
    %4232 = vmatprep.subr.mxu0 0.0
    %4233 = vmatpush2.msra.mxu0 0.0
    %4234 = vmatprep.subr.mxu0 0.0
    %4235 = vmatpush2.msra.mxu0 0.0
    %4236 = vmatprep.subr.mxu0 0.0
    %4237 = vmatpush2.msra.mxu0 0.0
    %4238 = vmatprep.subr.mxu0 0.0
    %4239 = vmatpush2.msra.mxu0 0.0
    %4240 = vmatprep.subr.mxu0 0.0
    %4241 = vmatpush2.msra.mxu0 0.0
    %4242 = vmatprep.subr.mxu0 0.0
    %4243 = vmatpush2.msra.mxu0 0.0
    %4244 = vmatprep.subr.mxu0 0.0
    %4245 = vmatpush2.msra.mxu0 0.0
    %4246 = vmatprep.subr.mxu0 0.0
    %4247 = vmatpush2.msra.mxu0 0.0
    %4248 = vmatprep.mubr.f32.mxu0 0.0
    %v4249 = vand.u32 %v352, 4294901760
    %v4250 = vsub.f32 %v352, %v4249
    %v4251 = vand.u32 %v4250, 4294901760
    %4252 = vmatmul.mubr.f32.gmra.mxu0 %v4251
    %v4253 = vpop.f32.mrf.mxu0
    %v4254 = vadd.f32 %v4148, %v4253
    %v4255 = vpop.f32.mrf.mxu0
    %v4256 = vadd.f32 %v4150, %v4255
    %4257 = vmatprep.mubr.f32.mxu0 0.0
    %v4258 = vand.u32 %v355, 4294901760
    %v4259 = vsub.f32 %v355, %v4258
    %v4260 = vand.u32 %v4259, 4294901760
    %4261 = vmatmul.mubr.f32.gmra.mxu0 %v4260
    %v4262 = vpop.f32.mrf.mxu0
    %v4263 = vadd.f32 %v4156, %v4262
    %v4264 = vpop.f32.mrf.mxu0
    %v4265 = vadd.f32 %v4158, %v4264
    %4266 = vmatprep.mubr.f32.mxu0 0.0
    %v4267 = vand.u32 %v358, 4294901760
    %v4268 = vsub.f32 %v358, %v4267
    %v4269 = vand.u32 %v4268, 4294901760
    %4270 = vmatmul.mubr.f32.gmra.mxu0 %v4269
    %v4271 = vpop.f32.mrf.mxu0
    %v4272 = vadd.f32 %v4164, %v4271
    %v4273 = vpop.f32.mrf.mxu0
    %v4274 = vadd.f32 %v4166, %v4273
    %4275 = vmatprep.mubr.f32.mxu0 0.0
    %v4276 = vand.u32 %v361, 4294901760
    %v4277 = vsub.f32 %v361, %v4276
    %v4278 = vand.u32 %v4277, 4294901760
    %4279 = vmatmul.mubr.f32.gmra.mxu0 %v4278
    %v4280 = vpop.f32.mrf.mxu0
    %v4281 = vadd.f32 %v4172, %v4280
    %v4282 = vpop.f32.mrf.mxu0
    %v4283 = vadd.f32 %v4174, %v4282
    %4284 = vdwg.mxu0
    %4285 = vmatprep.subr.mxu0 0.0
    %4286 = vmatpush1.msra.mxu0 0.0
    %4287 = vmatprep.subr.mxu0 0.0
    %4288 = vmatpush1.msra.mxu0 0.0
    %4289 = vmatprep.subr.mxu0 0.0
    %4290 = vmatpush1.msra.mxu0 0.0
    %4291 = vmatprep.subr.mxu0 0.0
    %4292 = vmatpush1.msra.mxu0 0.0
    %4293 = vmatprep.subr.mxu0 0.0
    %4294 = vmatpush1.msra.mxu0 0.0
    %4295 = vmatprep.subr.mxu0 0.0
    %4296 = vmatpush1.msra.mxu0 0.0
    %4297 = vmatprep.subr.mxu0 0.0
    %4298 = vmatpush1.msra.mxu0 0.0
    %4299 = vmatprep.subr.mxu0 0.0
    %4300 = vmatpush1.msra.mxu0 0.0
    %4301 = vmatprep.subr.mxu0 0.0
    %4302 = vmatpush1.msra.mxu0 0.0
    %4303 = vmatprep.subr.mxu0 0.0
    %4304 = vmatpush1.msra.mxu0 0.0
    %4305 = vmatprep.subr.mxu0 0.0
    %4306 = vmatpush1.msra.mxu0 0.0
    %4307 = vmatprep.subr.mxu0 0.0
    %4308 = vmatpush1.msra.mxu0 0.0
    %v4309 = vand.u32 %v345, 4294901760
    %v4310 = vsub.f32 %v345, %v4309
    %v4311 = vand.u32 %v4310, 4294901760
    %4312 = vmatprep.subr.mxu0 %v4311
    %v4313 = vand.u32 %v344, 4294901760
    %v4314 = vsub.f32 %v344, %v4313
    %v4315 = vand.u32 %v4314, 4294901760
    %4316 = vmatpush1.msra.mxu0 %v4315
    %v4317 = vand.u32 %v329, 4294901760
    %v4318 = vsub.f32 %v329, %v4317
    %v4319 = vand.u32 %v4318, 4294901760
    %4320 = vmatprep.subr.mxu0 %v4319
    %v4321 = vand.u32 %v328, 4294901760
    %v4322 = vsub.f32 %v328, %v4321
    %v4323 = vand.u32 %v4322, 4294901760
    %4324 = vmatpush1.msra.mxu0 %v4323
    %v4325 = vand.u32 %v313, 4294901760
    %v4326 = vsub.f32 %v313, %v4325
    %v4327 = vand.u32 %v4326, 4294901760
    %4328 = vmatprep.subr.mxu0 %v4327
    %v4329 = vand.u32 %v312, 4294901760
    %v4330 = vsub.f32 %v312, %v4329
    %v4331 = vand.u32 %v4330, 4294901760
    %4332 = vmatpush1.msra.mxu0 %v4331
    %v4333 = vand.u32 %v297, 4294901760
    %v4334 = vsub.f32 %v297, %v4333
    %v4335 = vand.u32 %v4334, 4294901760
    %4336 = vmatprep.subr.mxu0 %v4335
    %v4337 = vand.u32 %v296, 4294901760
    %v4338 = vsub.f32 %v296, %v4337
    %v4339 = vand.u32 %v4338, 4294901760
    %4340 = vmatpush1.msra.mxu0 %v4339
    %4341 = vmatprep.subr.mxu0 0.0
    %4342 = vmatpush2.msra.mxu0 0.0
    %4343 = vmatprep.subr.mxu0 0.0
    %4344 = vmatpush2.msra.mxu0 0.0
    %4345 = vmatprep.subr.mxu0 0.0
    %4346 = vmatpush2.msra.mxu0 0.0
    %4347 = vmatprep.subr.mxu0 0.0
    %4348 = vmatpush2.msra.mxu0 0.0
    %4349 = vmatprep.subr.mxu0 0.0
    %4350 = vmatpush2.msra.mxu0 0.0
    %4351 = vmatprep.subr.mxu0 0.0
    %4352 = vmatpush2.msra.mxu0 0.0
    %4353 = vmatprep.subr.mxu0 0.0
    %4354 = vmatpush2.msra.mxu0 0.0
    %4355 = vmatprep.subr.mxu0 0.0
    %4356 = vmatpush2.msra.mxu0 0.0
    %4357 = vmatprep.subr.mxu0 0.0
    %4358 = vmatpush2.msra.mxu0 0.0
    %4359 = vmatprep.subr.mxu0 0.0
    %4360 = vmatpush2.msra.mxu0 0.0
    %4361 = vmatprep.subr.mxu0 0.0
    %4362 = vmatpush2.msra.mxu0 0.0
    %4363 = vmatprep.subr.mxu0 0.0
    %4364 = vmatpush2.msra.mxu0 0.0
    %4365 = vmatprep.subr.mxu0 0.0
    %4366 = vmatpush2.msra.mxu0 0.0
    %4367 = vmatprep.subr.mxu0 0.0
    %4368 = vmatpush2.msra.mxu0 0.0
    %4369 = vmatprep.subr.mxu0 0.0
    %4370 = vmatpush2.msra.mxu0 0.0
    %4371 = vmatprep.subr.mxu0 0.0
    %4372 = vmatpush2.msra.mxu0 0.0
    %4373 = vmatprep.mubr.f32.mxu0 0.0
    %v4374 = vand.u32 %v352, 4294901760
    %4375 = vmatmul.mubr.f32.gmra.mxu0 %v4374
    %v4376 = vpop.f32.mrf.mxu0
    %v4377 = vadd.f32 %v4254, %v4376
    %v4378 = vpop.f32.mrf.mxu0
    %v4379 = vadd.f32 %v4256, %v4378
    %4380 = vmatprep.mubr.f32.mxu0 0.0
    %v4381 = vand.u32 %v355, 4294901760
    %4382 = vmatmul.mubr.f32.gmra.mxu0 %v4381
    %v4383 = vpop.f32.mrf.mxu0
    %v4384 = vadd.f32 %v4263, %v4383
    %v4385 = vpop.f32.mrf.mxu0
    %v4386 = vadd.f32 %v4265, %v4385
    %4387 = vmatprep.mubr.f32.mxu0 0.0
    %v4388 = vand.u32 %v358, 4294901760
    %4389 = vmatmul.mubr.f32.gmra.mxu0 %v4388
    %v4390 = vpop.f32.mrf.mxu0
    %v4391 = vadd.f32 %v4272, %v4390
    %v4392 = vpop.f32.mrf.mxu0
    %v4393 = vadd.f32 %v4274, %v4392
    %4394 = vmatprep.mubr.f32.mxu0 0.0
    %v4395 = vand.u32 %v361, 4294901760
    %4396 = vmatmul.mubr.f32.gmra.mxu0 %v4395
    %v4397 = vpop.f32.mrf.mxu0
    %v4398 = vadd.f32 %v4281, %v4397
    %v4399 = vpop.f32.mrf.mxu0
    %v4400 = vadd.f32 %v4283, %v4399
    %4401 = vdwg.mxu0
    %4402 = vmatprep.subr.mxu0 0.0
    %4403 = vmatpush1.msra.mxu0 0.0
    %4404 = vmatprep.subr.mxu0 0.0
    %4405 = vmatpush1.msra.mxu0 0.0
    %4406 = vmatprep.subr.mxu0 0.0
    %4407 = vmatpush1.msra.mxu0 0.0
    %4408 = vmatprep.subr.mxu0 0.0
    %4409 = vmatpush1.msra.mxu0 0.0
    %4410 = vmatprep.subr.mxu0 0.0
    %4411 = vmatpush1.msra.mxu0 0.0
    %4412 = vmatprep.subr.mxu0 0.0
    %4413 = vmatpush1.msra.mxu0 0.0
    %4414 = vmatprep.subr.mxu0 0.0
    %4415 = vmatpush1.msra.mxu0 0.0
    %4416 = vmatprep.subr.mxu0 0.0
    %4417 = vmatpush1.msra.mxu0 0.0
    %4418 = vmatprep.subr.mxu0 0.0
    %4419 = vmatpush1.msra.mxu0 0.0
    %4420 = vmatprep.subr.mxu0 0.0
    %4421 = vmatpush1.msra.mxu0 0.0
    %4422 = vmatprep.subr.mxu0 0.0
    %4423 = vmatpush1.msra.mxu0 0.0
    %4424 = vmatprep.subr.mxu0 0.0
    %4425 = vmatpush1.msra.mxu0 0.0
    %v4426 = vand.u32 %v345, 4294901760
    %4427 = vmatprep.subr.mxu0 %v4426
    %v4428 = vand.u32 %v344, 4294901760
    %4429 = vmatpush1.msra.mxu0 %v4428
    %v4430 = vand.u32 %v329, 4294901760
    %4431 = vmatprep.subr.mxu0 %v4430
    %v4432 = vand.u32 %v328, 4294901760
    %4433 = vmatpush1.msra.mxu0 %v4432
    %v4434 = vand.u32 %v313, 4294901760
    %4435 = vmatprep.subr.mxu0 %v4434
    %v4436 = vand.u32 %v312, 4294901760
    %4437 = vmatpush1.msra.mxu0 %v4436
    %v4438 = vand.u32 %v297, 4294901760
    %4439 = vmatprep.subr.mxu0 %v4438
    %v4440 = vand.u32 %v296, 4294901760
    %4441 = vmatpush1.msra.mxu0 %v4440
    %4442 = vmatprep.subr.mxu0 0.0
    %4443 = vmatpush2.msra.mxu0 0.0
    %4444 = vmatprep.subr.mxu0 0.0
    %4445 = vmatpush2.msra.mxu0 0.0
    %4446 = vmatprep.subr.mxu0 0.0
    %4447 = vmatpush2.msra.mxu0 0.0
    %4448 = vmatprep.subr.mxu0 0.0
    %4449 = vmatpush2.msra.mxu0 0.0
    %4450 = vmatprep.subr.mxu0 0.0
    %4451 = vmatpush2.msra.mxu0 0.0
    %4452 = vmatprep.subr.mxu0 0.0
    %4453 = vmatpush2.msra.mxu0 0.0
    %4454 = vmatprep.subr.mxu0 0.0
    %4455 = vmatpush2.msra.mxu0 0.0
    %4456 = vmatprep.subr.mxu0 0.0
    %4457 = vmatpush2.msra.mxu0 0.0
    %4458 = vmatprep.subr.mxu0 0.0
    %4459 = vmatpush2.msra.mxu0 0.0
    %4460 = vmatprep.subr.mxu0 0.0
    %4461 = vmatpush2.msra.mxu0 0.0
    %4462 = vmatprep.subr.mxu0 0.0
    %4463 = vmatpush2.msra.mxu0 0.0
    %4464 = vmatprep.subr.mxu0 0.0
    %4465 = vmatpush2.msra.mxu0 0.0
    %4466 = vmatprep.subr.mxu0 0.0
    %4467 = vmatpush2.msra.mxu0 0.0
    %4468 = vmatprep.subr.mxu0 0.0
    %4469 = vmatpush2.msra.mxu0 0.0
    %4470 = vmatprep.subr.mxu0 0.0
    %4471 = vmatpush2.msra.mxu0 0.0
    %4472 = vmatprep.subr.mxu0 0.0
    %4473 = vmatpush2.msra.mxu0 0.0
    %4474 = vmatprep.mubr.f32.mxu0 0.0
    %v4475 = vand.u32 %v352, 4294901760
    %4476 = vmatmul.mubr.f32.gmra.mxu0 %v4475
    %v4477 = vpop.f32.mrf.mxu0
    %v4478 = vadd.f32 %v4377, %v4477
    %v4479 = vpop.f32.mrf.mxu0
    %v4480 = vadd.f32 %v4379, %v4479
    %4481 = vmatprep.mubr.f32.mxu0 0.0
    %v4482 = vand.u32 %v355, 4294901760
    %4483 = vmatmul.mubr.f32.gmra.mxu0 %v4482
    %v4484 = vpop.f32.mrf.mxu0
    %v4485 = vadd.f32 %v4384, %v4484
    %v4486 = vpop.f32.mrf.mxu0
    %v4487 = vadd.f32 %v4386, %v4486
    %4488 = vmatprep.mubr.f32.mxu0 0.0
    %v4489 = vand.u32 %v358, 4294901760
    %4490 = vmatmul.mubr.f32.gmra.mxu0 %v4489
    %v4491 = vpop.f32.mrf.mxu0
    %v4492 = vadd.f32 %v4391, %v4491
    %v4493 = vpop.f32.mrf.mxu0
    %v4494 = vadd.f32 %v4393, %v4493
    %4495 = vmatprep.mubr.f32.mxu0 0.0
    %v4496 = vand.u32 %v361, 4294901760
    %4497 = vmatmul.mubr.f32.gmra.mxu0 %v4496
    %v4498 = vpop.f32.mrf.mxu0
    %v4499 = vadd.f32 %v4398, %v4498
    %v4500 = vpop.f32.mrf.mxu0
    %v4501 = vadd.f32 %v4400, %v4500
    %4502 = vdwg.mxu0
    %4503 = vmatprep.subr.mxu0 0.0
    %4504 = vmatpush1.msra.mxu0 0.0
    %4505 = vmatprep.subr.mxu0 0.0
    %4506 = vmatpush1.msra.mxu0 0.0
    %4507 = vmatprep.subr.mxu0 0.0
    %4508 = vmatpush1.msra.mxu0 0.0
    %4509 = vmatprep.subr.mxu0 0.0
    %4510 = vmatpush1.msra.mxu0 0.0
    %4511 = vmatprep.subr.mxu0 0.0
    %4512 = vmatpush1.msra.mxu0 0.0
    %4513 = vmatprep.subr.mxu0 0.0
    %4514 = vmatpush1.msra.mxu0 0.0
    %4515 = vmatprep.subr.mxu0 0.0
    %4516 = vmatpush1.msra.mxu0 0.0
    %4517 = vmatprep.subr.mxu0 0.0
    %4518 = vmatpush1.msra.mxu0 0.0
    %4519 = vmatprep.subr.mxu0 0.0
    %4520 = vmatpush1.msra.mxu0 0.0
    %4521 = vmatprep.subr.mxu0 0.0
    %4522 = vmatpush1.msra.mxu0 0.0
    %4523 = vmatprep.subr.mxu0 0.0
    %4524 = vmatpush1.msra.mxu0 0.0
    %4525 = vmatprep.subr.mxu0 0.0
    %4526 = vmatpush1.msra.mxu0 0.0
    %v4527 = vand.u32 %v347, 4294901760
    %4528 = vmatprep.subr.mxu0 %v4527
    %v4529 = vand.u32 %v346, 4294901760
    %4530 = vmatpush1.msra.mxu0 %v4529
    %v4531 = vand.u32 %v331, 4294901760
    %4532 = vmatprep.subr.mxu0 %v4531
    %v4533 = vand.u32 %v330, 4294901760
    %4534 = vmatpush1.msra.mxu0 %v4533
    %v4535 = vand.u32 %v315, 4294901760
    %4536 = vmatprep.subr.mxu0 %v4535
    %v4537 = vand.u32 %v314, 4294901760
    %4538 = vmatpush1.msra.mxu0 %v4537
    %v4539 = vand.u32 %v299, 4294901760
    %4540 = vmatprep.subr.mxu0 %v4539
    %v4541 = vand.u32 %v298, 4294901760
    %4542 = vmatpush1.msra.mxu0 %v4541
    %4543 = vmatprep.subr.mxu0 0.0
    %4544 = vmatpush2.msra.mxu0 0.0
    %4545 = vmatprep.subr.mxu0 0.0
    %4546 = vmatpush2.msra.mxu0 0.0
    %4547 = vmatprep.subr.mxu0 0.0
    %4548 = vmatpush2.msra.mxu0 0.0
    %4549 = vmatprep.subr.mxu0 0.0
    %4550 = vmatpush2.msra.mxu0 0.0
    %4551 = vmatprep.subr.mxu0 0.0
    %4552 = vmatpush2.msra.mxu0 0.0
    %4553 = vmatprep.subr.mxu0 0.0
    %4554 = vmatpush2.msra.mxu0 0.0
    %4555 = vmatprep.subr.mxu0 0.0
    %4556 = vmatpush2.msra.mxu0 0.0
    %4557 = vmatprep.subr.mxu0 0.0
    %4558 = vmatpush2.msra.mxu0 0.0
    %4559 = vmatprep.subr.mxu0 0.0
    %4560 = vmatpush2.msra.mxu0 0.0
    %4561 = vmatprep.subr.mxu0 0.0
    %4562 = vmatpush2.msra.mxu0 0.0
    %4563 = vmatprep.subr.mxu0 0.0
    %4564 = vmatpush2.msra.mxu0 0.0
    %4565 = vmatprep.subr.mxu0 0.0
    %4566 = vmatpush2.msra.mxu0 0.0
    %4567 = vmatprep.subr.mxu0 0.0
    %4568 = vmatpush2.msra.mxu0 0.0
    %4569 = vmatprep.subr.mxu0 0.0
    %4570 = vmatpush2.msra.mxu0 0.0
    %4571 = vmatprep.subr.mxu0 0.0
    %4572 = vmatpush2.msra.mxu0 0.0
    %4573 = vmatprep.subr.mxu0 0.0
    %4574 = vmatpush2.msra.mxu0 0.0
    %4575 = vmatprep.mubr.f32.mxu0 0.0
    %v4576 = vand.u32 %v352, 4294901760
    %v4577 = vsub.f32 %v352, %v4576
    %v4578 = vand.u32 %v4577, 4294901760
    %v4579 = vsub.f32 %v4577, %v4578
    %v4580 = vand.u32 %v4579, 4294901760
    %4581 = vmatmul.mubr.f32.gmra.mxu0 %v4580
    %v4582 = vpop.f32.mrf.mxu0
    %v4583 = vadd.f32 0.0, %v4582
    %v4584 = vpop.f32.mrf.mxu0
    %v4585 = vadd.f32 0.0, %v4584
    %4586 = vmatprep.mubr.f32.mxu0 0.0
    %v4587 = vand.u32 %v355, 4294901760
    %v4588 = vsub.f32 %v355, %v4587
    %v4589 = vand.u32 %v4588, 4294901760
    %v4590 = vsub.f32 %v4588, %v4589
    %v4591 = vand.u32 %v4590, 4294901760
    %4592 = vmatmul.mubr.f32.gmra.mxu0 %v4591
    %v4593 = vpop.f32.mrf.mxu0
    %v4594 = vadd.f32 0.0, %v4593
    %v4595 = vpop.f32.mrf.mxu0
    %v4596 = vadd.f32 0.0, %v4595
    %4597 = vmatprep.mubr.f32.mxu0 0.0
    %v4598 = vand.u32 %v358, 4294901760
    %v4599 = vsub.f32 %v358, %v4598
    %v4600 = vand.u32 %v4599, 4294901760
    %v4601 = vsub.f32 %v4599, %v4600
    %v4602 = vand.u32 %v4601, 4294901760
    %4603 = vmatmul.mubr.f32.gmra.mxu0 %v4602
    %v4604 = vpop.f32.mrf.mxu0
    %v4605 = vadd.f32 0.0, %v4604
    %v4606 = vpop.f32.mrf.mxu0
    %v4607 = vadd.f32 0.0, %v4606
    %4608 = vmatprep.mubr.f32.mxu0 0.0
    %v4609 = vand.u32 %v361, 4294901760
    %v4610 = vsub.f32 %v361, %v4609
    %v4611 = vand.u32 %v4610, 4294901760
    %v4612 = vsub.f32 %v4610, %v4611
    %v4613 = vand.u32 %v4612, 4294901760
    %4614 = vmatmul.mubr.f32.gmra.mxu0 %v4613
    %v4615 = vpop.f32.mrf.mxu0
    %v4616 = vadd.f32 0.0, %v4615
    %v4617 = vpop.f32.mrf.mxu0
    %v4618 = vadd.f32 0.0, %v4617
    %4619 = vdwg.mxu0
    %4620 = vmatprep.subr.mxu0 0.0
    %4621 = vmatpush1.msra.mxu0 0.0
    %4622 = vmatprep.subr.mxu0 0.0
    %4623 = vmatpush1.msra.mxu0 0.0
    %4624 = vmatprep.subr.mxu0 0.0
    %4625 = vmatpush1.msra.mxu0 0.0
    %4626 = vmatprep.subr.mxu0 0.0
    %4627 = vmatpush1.msra.mxu0 0.0
    %4628 = vmatprep.subr.mxu0 0.0
    %4629 = vmatpush1.msra.mxu0 0.0
    %4630 = vmatprep.subr.mxu0 0.0
    %4631 = vmatpush1.msra.mxu0 0.0
    %4632 = vmatprep.subr.mxu0 0.0
    %4633 = vmatpush1.msra.mxu0 0.0
    %4634 = vmatprep.subr.mxu0 0.0
    %4635 = vmatpush1.msra.mxu0 0.0
    %4636 = vmatprep.subr.mxu0 0.0
    %4637 = vmatpush1.msra.mxu0 0.0
    %4638 = vmatprep.subr.mxu0 0.0
    %4639 = vmatpush1.msra.mxu0 0.0
    %4640 = vmatprep.subr.mxu0 0.0
    %4641 = vmatpush1.msra.mxu0 0.0
    %4642 = vmatprep.subr.mxu0 0.0
    %4643 = vmatpush1.msra.mxu0 0.0
    %v4644 = vand.u32 %v347, 4294901760
    %v4645 = vsub.f32 %v347, %v4644
    %v4646 = vand.u32 %v4645, 4294901760
    %v4647 = vsub.f32 %v4645, %v4646
    %v4648 = vand.u32 %v4647, 4294901760
    %4649 = vmatprep.subr.mxu0 %v4648
    %v4650 = vand.u32 %v346, 4294901760
    %v4651 = vsub.f32 %v346, %v4650
    %v4652 = vand.u32 %v4651, 4294901760
    %v4653 = vsub.f32 %v4651, %v4652
    %v4654 = vand.u32 %v4653, 4294901760
    %4655 = vmatpush1.msra.mxu0 %v4654
    %v4656 = vand.u32 %v331, 4294901760
    %v4657 = vsub.f32 %v331, %v4656
    %v4658 = vand.u32 %v4657, 4294901760
    %v4659 = vsub.f32 %v4657, %v4658
    %v4660 = vand.u32 %v4659, 4294901760
    %4661 = vmatprep.subr.mxu0 %v4660
    %v4662 = vand.u32 %v330, 4294901760
    %v4663 = vsub.f32 %v330, %v4662
    %v4664 = vand.u32 %v4663, 4294901760
    %v4665 = vsub.f32 %v4663, %v4664
    %v4666 = vand.u32 %v4665, 4294901760
    %4667 = vmatpush1.msra.mxu0 %v4666
    %v4668 = vand.u32 %v315, 4294901760
    %v4669 = vsub.f32 %v315, %v4668
    %v4670 = vand.u32 %v4669, 4294901760
    %v4671 = vsub.f32 %v4669, %v4670
    %v4672 = vand.u32 %v4671, 4294901760
    %4673 = vmatprep.subr.mxu0 %v4672
    %v4674 = vand.u32 %v314, 4294901760
    %v4675 = vsub.f32 %v314, %v4674
    %v4676 = vand.u32 %v4675, 4294901760
    %v4677 = vsub.f32 %v4675, %v4676
    %v4678 = vand.u32 %v4677, 4294901760
    %4679 = vmatpush1.msra.mxu0 %v4678
    %v4680 = vand.u32 %v299, 4294901760
    %v4681 = vsub.f32 %v299, %v4680
    %v4682 = vand.u32 %v4681, 4294901760
    %v4683 = vsub.f32 %v4681, %v4682
    %v4684 = vand.u32 %v4683, 4294901760
    %4685 = vmatprep.subr.mxu0 %v4684
    %v4686 = vand.u32 %v298, 4294901760
    %v4687 = vsub.f32 %v298, %v4686
    %v4688 = vand.u32 %v4687, 4294901760
    %v4689 = vsub.f32 %v4687, %v4688
    %v4690 = vand.u32 %v4689, 4294901760
    %4691 = vmatpush1.msra.mxu0 %v4690
    %4692 = vmatprep.subr.mxu0 0.0
    %4693 = vmatpush2.msra.mxu0 0.0
    %4694 = vmatprep.subr.mxu0 0.0
    %4695 = vmatpush2.msra.mxu0 0.0
    %4696 = vmatprep.subr.mxu0 0.0
    %4697 = vmatpush2.msra.mxu0 0.0
    %4698 = vmatprep.subr.mxu0 0.0
    %4699 = vmatpush2.msra.mxu0 0.0
    %4700 = vmatprep.subr.mxu0 0.0
    %4701 = vmatpush2.msra.mxu0 0.0
    %4702 = vmatprep.subr.mxu0 0.0
    %4703 = vmatpush2.msra.mxu0 0.0
    %4704 = vmatprep.subr.mxu0 0.0
    %4705 = vmatpush2.msra.mxu0 0.0
    %4706 = vmatprep.subr.mxu0 0.0
    %4707 = vmatpush2.msra.mxu0 0.0
    %4708 = vmatprep.subr.mxu0 0.0
    %4709 = vmatpush2.msra.mxu0 0.0
    %4710 = vmatprep.subr.mxu0 0.0
    %4711 = vmatpush2.msra.mxu0 0.0
    %4712 = vmatprep.subr.mxu0 0.0
    %4713 = vmatpush2.msra.mxu0 0.0
    %4714 = vmatprep.subr.mxu0 0.0
    %4715 = vmatpush2.msra.mxu0 0.0
    %4716 = vmatprep.subr.mxu0 0.0
    %4717 = vmatpush2.msra.mxu0 0.0
    %4718 = vmatprep.subr.mxu0 0.0
    %4719 = vmatpush2.msra.mxu0 0.0
    %4720 = vmatprep.subr.mxu0 0.0
    %4721 = vmatpush2.msra.mxu0 0.0
    %4722 = vmatprep.subr.mxu0 0.0
    %4723 = vmatpush2.msra.mxu0 0.0
    %4724 = vmatprep.mubr.f32.mxu0 0.0
    %v4725 = vand.u32 %v352, 4294901760
    %4726 = vmatmul.mubr.f32.gmra.mxu0 %v4725
    %v4727 = vpop.f32.mrf.mxu0
    %v4728 = vadd.f32 %v4583, %v4727
    %v4729 = vpop.f32.mrf.mxu0
    %v4730 = vadd.f32 %v4585, %v4729
    %4731 = vmatprep.mubr.f32.mxu0 0.0
    %v4732 = vand.u32 %v355, 4294901760
    %4733 = vmatmul.mubr.f32.gmra.mxu0 %v4732
    %v4734 = vpop.f32.mrf.mxu0
    %v4735 = vadd.f32 %v4594, %v4734
    %v4736 = vpop.f32.mrf.mxu0
    %v4737 = vadd.f32 %v4596, %v4736
    %4738 = vmatprep.mubr.f32.mxu0 0.0
    %v4739 = vand.u32 %v358, 4294901760
    %4740 = vmatmul.mubr.f32.gmra.mxu0 %v4739
    %v4741 = vpop.f32.mrf.mxu0
    %v4742 = vadd.f32 %v4605, %v4741
    %v4743 = vpop.f32.mrf.mxu0
    %v4744 = vadd.f32 %v4607, %v4743
    %4745 = vmatprep.mubr.f32.mxu0 0.0
    %v4746 = vand.u32 %v361, 4294901760
    %4747 = vmatmul.mubr.f32.gmra.mxu0 %v4746
    %v4748 = vpop.f32.mrf.mxu0
    %v4749 = vadd.f32 %v4616, %v4748
    %v4750 = vpop.f32.mrf.mxu0
    %v4751 = vadd.f32 %v4618, %v4750
    %4752 = vdwg.mxu0
    %4753 = vmatprep.subr.mxu0 0.0
    %4754 = vmatpush1.msra.mxu0 0.0
    %4755 = vmatprep.subr.mxu0 0.0
    %4756 = vmatpush1.msra.mxu0 0.0
    %4757 = vmatprep.subr.mxu0 0.0
    %4758 = vmatpush1.msra.mxu0 0.0
    %4759 = vmatprep.subr.mxu0 0.0
    %4760 = vmatpush1.msra.mxu0 0.0
    %4761 = vmatprep.subr.mxu0 0.0
    %4762 = vmatpush1.msra.mxu0 0.0
    %4763 = vmatprep.subr.mxu0 0.0
    %4764 = vmatpush1.msra.mxu0 0.0
    %4765 = vmatprep.subr.mxu0 0.0
    %4766 = vmatpush1.msra.mxu0 0.0
    %4767 = vmatprep.subr.mxu0 0.0
    %4768 = vmatpush1.msra.mxu0 0.0
    %4769 = vmatprep.subr.mxu0 0.0
    %4770 = vmatpush1.msra.mxu0 0.0
    %4771 = vmatprep.subr.mxu0 0.0
    %4772 = vmatpush1.msra.mxu0 0.0
    %4773 = vmatprep.subr.mxu0 0.0
    %4774 = vmatpush1.msra.mxu0 0.0
    %4775 = vmatprep.subr.mxu0 0.0
    %4776 = vmatpush1.msra.mxu0 0.0
    %v4777 = vand.u32 %v347, 4294901760
    %v4778 = vsub.f32 %v347, %v4777
    %4779 = vmatprep.subr.mxu0 %v4778
    %v4780 = vand.u32 %v346, 4294901760
    %v4781 = vsub.f32 %v346, %v4780
    %4782 = vmatpush1.msra.mxu0 %v4781
    %v4783 = vand.u32 %v331, 4294901760
    %v4784 = vsub.f32 %v331, %v4783
    %4785 = vmatprep.subr.mxu0 %v4784
    %v4786 = vand.u32 %v330, 4294901760
    %v4787 = vsub.f32 %v330, %v4786
    %4788 = vmatpush1.msra.mxu0 %v4787
    %v4789 = vand.u32 %v315, 4294901760
    %v4790 = vsub.f32 %v315, %v4789
    %4791 = vmatprep.subr.mxu0 %v4790
    %v4792 = vand.u32 %v314, 4294901760
    %v4793 = vsub.f32 %v314, %v4792
    %4794 = vmatpush1.msra.mxu0 %v4793
    %v4795 = vand.u32 %v299, 4294901760
    %v4796 = vsub.f32 %v299, %v4795
    %4797 = vmatprep.subr.mxu0 %v4796
    %v4798 = vand.u32 %v298, 4294901760
    %v4799 = vsub.f32 %v298, %v4798
    %4800 = vmatpush1.msra.mxu0 %v4799
    %4801 = vmatprep.subr.mxu0 0.0
    %4802 = vmatpush2.msra.mxu0 0.0
    %4803 = vmatprep.subr.mxu0 0.0
    %4804 = vmatpush2.msra.mxu0 0.0
    %4805 = vmatprep.subr.mxu0 0.0
    %4806 = vmatpush2.msra.mxu0 0.0
    %4807 = vmatprep.subr.mxu0 0.0
    %4808 = vmatpush2.msra.mxu0 0.0
    %4809 = vmatprep.subr.mxu0 0.0
    %4810 = vmatpush2.msra.mxu0 0.0
    %4811 = vmatprep.subr.mxu0 0.0
    %4812 = vmatpush2.msra.mxu0 0.0
    %4813 = vmatprep.subr.mxu0 0.0
    %4814 = vmatpush2.msra.mxu0 0.0
    %4815 = vmatprep.subr.mxu0 0.0
    %4816 = vmatpush2.msra.mxu0 0.0
    %4817 = vmatprep.subr.mxu0 0.0
    %4818 = vmatpush2.msra.mxu0 0.0
    %4819 = vmatprep.subr.mxu0 0.0
    %4820 = vmatpush2.msra.mxu0 0.0
    %4821 = vmatprep.subr.mxu0 0.0
    %4822 = vmatpush2.msra.mxu0 0.0
    %4823 = vmatprep.subr.mxu0 0.0
    %4824 = vmatpush2.msra.mxu0 0.0
    %4825 = vmatprep.subr.mxu0 0.0
    %4826 = vmatpush2.msra.mxu0 0.0
    %4827 = vmatprep.subr.mxu0 0.0
    %4828 = vmatpush2.msra.mxu0 0.0
    %4829 = vmatprep.subr.mxu0 0.0
    %4830 = vmatpush2.msra.mxu0 0.0
    %4831 = vmatprep.subr.mxu0 0.0
    %4832 = vmatpush2.msra.mxu0 0.0
    %4833 = vmatprep.mubr.f32.mxu0 0.0
    %v4834 = vand.u32 %v352, 4294901760
    %v4835 = vsub.f32 %v352, %v4834
    %4836 = vmatmul.mubr.f32.gmra.mxu0 %v4835
    %v4837 = vpop.f32.mrf.mxu0
    %v4838 = vadd.f32 %v4728, %v4837
    %v4839 = vpop.f32.mrf.mxu0
    %v4840 = vadd.f32 %v4730, %v4839
    %4841 = vmatprep.mubr.f32.mxu0 0.0
    %v4842 = vand.u32 %v355, 4294901760
    %v4843 = vsub.f32 %v355, %v4842
    %4844 = vmatmul.mubr.f32.gmra.mxu0 %v4843
    %v4845 = vpop.f32.mrf.mxu0
    %v4846 = vadd.f32 %v4735, %v4845
    %v4847 = vpop.f32.mrf.mxu0
    %v4848 = vadd.f32 %v4737, %v4847
    %4849 = vmatprep.mubr.f32.mxu0 0.0
    %v4850 = vand.u32 %v358, 4294901760
    %v4851 = vsub.f32 %v358, %v4850
    %4852 = vmatmul.mubr.f32.gmra.mxu0 %v4851
    %v4853 = vpop.f32.mrf.mxu0
    %v4854 = vadd.f32 %v4742, %v4853
    %v4855 = vpop.f32.mrf.mxu0
    %v4856 = vadd.f32 %v4744, %v4855
    %4857 = vmatprep.mubr.f32.mxu0 0.0
    %v4858 = vand.u32 %v361, 4294901760
    %v4859 = vsub.f32 %v361, %v4858
    %4860 = vmatmul.mubr.f32.gmra.mxu0 %v4859
    %v4861 = vpop.f32.mrf.mxu0
    %v4862 = vadd.f32 %v4749, %v4861
    %v4863 = vpop.f32.mrf.mxu0
    %v4864 = vadd.f32 %v4751, %v4863
    %4865 = vdwg.mxu0
    %4866 = vmatprep.subr.mxu0 0.0
    %4867 = vmatpush1.msra.mxu0 0.0
    %4868 = vmatprep.subr.mxu0 0.0
    %4869 = vmatpush1.msra.mxu0 0.0
    %4870 = vmatprep.subr.mxu0 0.0
    %4871 = vmatpush1.msra.mxu0 0.0
    %4872 = vmatprep.subr.mxu0 0.0
    %4873 = vmatpush1.msra.mxu0 0.0
    %4874 = vmatprep.subr.mxu0 0.0
    %4875 = vmatpush1.msra.mxu0 0.0
    %4876 = vmatprep.subr.mxu0 0.0
    %4877 = vmatpush1.msra.mxu0 0.0
    %4878 = vmatprep.subr.mxu0 0.0
    %4879 = vmatpush1.msra.mxu0 0.0
    %4880 = vmatprep.subr.mxu0 0.0
    %4881 = vmatpush1.msra.mxu0 0.0
    %4882 = vmatprep.subr.mxu0 0.0
    %4883 = vmatpush1.msra.mxu0 0.0
    %4884 = vmatprep.subr.mxu0 0.0
    %4885 = vmatpush1.msra.mxu0 0.0
    %4886 = vmatprep.subr.mxu0 0.0
    %4887 = vmatpush1.msra.mxu0 0.0
    %4888 = vmatprep.subr.mxu0 0.0
    %4889 = vmatpush1.msra.mxu0 0.0
    %v4890 = vand.u32 %v347, 4294901760
    %4891 = vmatprep.subr.mxu0 %v4890
    %v4892 = vand.u32 %v346, 4294901760
    %4893 = vmatpush1.msra.mxu0 %v4892
    %v4894 = vand.u32 %v331, 4294901760
    %4895 = vmatprep.subr.mxu0 %v4894
    %v4896 = vand.u32 %v330, 4294901760
    %4897 = vmatpush1.msra.mxu0 %v4896
    %v4898 = vand.u32 %v315, 4294901760
    %4899 = vmatprep.subr.mxu0 %v4898
    %v4900 = vand.u32 %v314, 4294901760
    %4901 = vmatpush1.msra.mxu0 %v4900
    %v4902 = vand.u32 %v299, 4294901760
    %4903 = vmatprep.subr.mxu0 %v4902
    %v4904 = vand.u32 %v298, 4294901760
    %4905 = vmatpush1.msra.mxu0 %v4904
    %4906 = vmatprep.subr.mxu0 0.0
    %4907 = vmatpush2.msra.mxu0 0.0
    %4908 = vmatprep.subr.mxu0 0.0
    %4909 = vmatpush2.msra.mxu0 0.0
    %4910 = vmatprep.subr.mxu0 0.0
    %4911 = vmatpush2.msra.mxu0 0.0
    %4912 = vmatprep.subr.mxu0 0.0
    %4913 = vmatpush2.msra.mxu0 0.0
    %4914 = vmatprep.subr.mxu0 0.0
    %4915 = vmatpush2.msra.mxu0 0.0
    %4916 = vmatprep.subr.mxu0 0.0
    %4917 = vmatpush2.msra.mxu0 0.0
    %4918 = vmatprep.subr.mxu0 0.0
    %4919 = vmatpush2.msra.mxu0 0.0
    %4920 = vmatprep.subr.mxu0 0.0
    %4921 = vmatpush2.msra.mxu0 0.0
    %4922 = vmatprep.subr.mxu0 0.0
    %4923 = vmatpush2.msra.mxu0 0.0
    %4924 = vmatprep.subr.mxu0 0.0
    %4925 = vmatpush2.msra.mxu0 0.0
    %4926 = vmatprep.subr.mxu0 0.0
    %4927 = vmatpush2.msra.mxu0 0.0
    %4928 = vmatprep.subr.mxu0 0.0
    %4929 = vmatpush2.msra.mxu0 0.0
    %4930 = vmatprep.subr.mxu0 0.0
    %4931 = vmatpush2.msra.mxu0 0.0
    %4932 = vmatprep.subr.mxu0 0.0
    %4933 = vmatpush2.msra.mxu0 0.0
    %4934 = vmatprep.subr.mxu0 0.0
    %4935 = vmatpush2.msra.mxu0 0.0
    %4936 = vmatprep.subr.mxu0 0.0
    %4937 = vmatpush2.msra.mxu0 0.0
    %4938 = vmatprep.mubr.f32.mxu0 0.0
    %v4939 = vand.u32 %v352, 4294901760
    %v4940 = vsub.f32 %v352, %v4939
    %v4941 = vand.u32 %v4940, 4294901760
    %4942 = vmatmul.mubr.f32.gmra.mxu0 %v4941
    %v4943 = vpop.f32.mrf.mxu0
    %v4944 = vadd.f32 %v4838, %v4943
    %v4945 = vpop.f32.mrf.mxu0
    %v4946 = vadd.f32 %v4840, %v4945
    %4947 = vmatprep.mubr.f32.mxu0 0.0
    %v4948 = vand.u32 %v355, 4294901760
    %v4949 = vsub.f32 %v355, %v4948
    %v4950 = vand.u32 %v4949, 4294901760
    %4951 = vmatmul.mubr.f32.gmra.mxu0 %v4950
    %v4952 = vpop.f32.mrf.mxu0
    %v4953 = vadd.f32 %v4846, %v4952
    %v4954 = vpop.f32.mrf.mxu0
    %v4955 = vadd.f32 %v4848, %v4954
    %4956 = vmatprep.mubr.f32.mxu0 0.0
    %v4957 = vand.u32 %v358, 4294901760
    %v4958 = vsub.f32 %v358, %v4957
    %v4959 = vand.u32 %v4958, 4294901760
    %4960 = vmatmul.mubr.f32.gmra.mxu0 %v4959
    %v4961 = vpop.f32.mrf.mxu0
    %v4962 = vadd.f32 %v4854, %v4961
    %v4963 = vpop.f32.mrf.mxu0
    %v4964 = vadd.f32 %v4856, %v4963
    %4965 = vmatprep.mubr.f32.mxu0 0.0
    %v4966 = vand.u32 %v361, 4294901760
    %v4967 = vsub.f32 %v361, %v4966
    %v4968 = vand.u32 %v4967, 4294901760
    %4969 = vmatmul.mubr.f32.gmra.mxu0 %v4968
    %v4970 = vpop.f32.mrf.mxu0
    %v4971 = vadd.f32 %v4862, %v4970
    %v4972 = vpop.f32.mrf.mxu0
    %v4973 = vadd.f32 %v4864, %v4972
    %4974 = vdwg.mxu0
    %4975 = vmatprep.subr.mxu0 0.0
    %4976 = vmatpush1.msra.mxu0 0.0
    %4977 = vmatprep.subr.mxu0 0.0
    %4978 = vmatpush1.msra.mxu0 0.0
    %4979 = vmatprep.subr.mxu0 0.0
    %4980 = vmatpush1.msra.mxu0 0.0
    %4981 = vmatprep.subr.mxu0 0.0
    %4982 = vmatpush1.msra.mxu0 0.0
    %4983 = vmatprep.subr.mxu0 0.0
    %4984 = vmatpush1.msra.mxu0 0.0
    %4985 = vmatprep.subr.mxu0 0.0
    %4986 = vmatpush1.msra.mxu0 0.0
    %4987 = vmatprep.subr.mxu0 0.0
    %4988 = vmatpush1.msra.mxu0 0.0
    %4989 = vmatprep.subr.mxu0 0.0
    %4990 = vmatpush1.msra.mxu0 0.0
    %4991 = vmatprep.subr.mxu0 0.0
    %4992 = vmatpush1.msra.mxu0 0.0
    %4993 = vmatprep.subr.mxu0 0.0
    %4994 = vmatpush1.msra.mxu0 0.0
    %4995 = vmatprep.subr.mxu0 0.0
    %4996 = vmatpush1.msra.mxu0 0.0
    %4997 = vmatprep.subr.mxu0 0.0
    %4998 = vmatpush1.msra.mxu0 0.0
    %v4999 = vand.u32 %v347, 4294901760
    %v5000 = vsub.f32 %v347, %v4999
    %v5001 = vand.u32 %v5000, 4294901760
    %5002 = vmatprep.subr.mxu0 %v5001
    %v5003 = vand.u32 %v346, 4294901760
    %v5004 = vsub.f32 %v346, %v5003
    %v5005 = vand.u32 %v5004, 4294901760
    %5006 = vmatpush1.msra.mxu0 %v5005
    %v5007 = vand.u32 %v331, 4294901760
    %v5008 = vsub.f32 %v331, %v5007
    %v5009 = vand.u32 %v5008, 4294901760
    %5010 = vmatprep.subr.mxu0 %v5009
    %v5011 = vand.u32 %v330, 4294901760
    %v5012 = vsub.f32 %v330, %v5011
    %v5013 = vand.u32 %v5012, 4294901760
    %5014 = vmatpush1.msra.mxu0 %v5013
    %v5015 = vand.u32 %v315, 4294901760
    %v5016 = vsub.f32 %v315, %v5015
    %v5017 = vand.u32 %v5016, 4294901760
    %5018 = vmatprep.subr.mxu0 %v5017
    %v5019 = vand.u32 %v314, 4294901760
    %v5020 = vsub.f32 %v314, %v5019
    %v5021 = vand.u32 %v5020, 4294901760
    %5022 = vmatpush1.msra.mxu0 %v5021
    %v5023 = vand.u32 %v299, 4294901760
    %v5024 = vsub.f32 %v299, %v5023
    %v5025 = vand.u32 %v5024, 4294901760
    %5026 = vmatprep.subr.mxu0 %v5025
    %v5027 = vand.u32 %v298, 4294901760
    %v5028 = vsub.f32 %v298, %v5027
    %v5029 = vand.u32 %v5028, 4294901760
    %5030 = vmatpush1.msra.mxu0 %v5029
    %5031 = vmatprep.subr.mxu0 0.0
    %5032 = vmatpush2.msra.mxu0 0.0
    %5033 = vmatprep.subr.mxu0 0.0
    %5034 = vmatpush2.msra.mxu0 0.0
    %5035 = vmatprep.subr.mxu0 0.0
    %5036 = vmatpush2.msra.mxu0 0.0
    %5037 = vmatprep.subr.mxu0 0.0
    %5038 = vmatpush2.msra.mxu0 0.0
    %5039 = vmatprep.subr.mxu0 0.0
    %5040 = vmatpush2.msra.mxu0 0.0
    %5041 = vmatprep.subr.mxu0 0.0
    %5042 = vmatpush2.msra.mxu0 0.0
    %5043 = vmatprep.subr.mxu0 0.0
    %5044 = vmatpush2.msra.mxu0 0.0
    %5045 = vmatprep.subr.mxu0 0.0
    %5046 = vmatpush2.msra.mxu0 0.0
    %5047 = vmatprep.subr.mxu0 0.0
    %5048 = vmatpush2.msra.mxu0 0.0
    %5049 = vmatprep.subr.mxu0 0.0
    %5050 = vmatpush2.msra.mxu0 0.0
    %5051 = vmatprep.subr.mxu0 0.0
    %5052 = vmatpush2.msra.mxu0 0.0
    %5053 = vmatprep.subr.mxu0 0.0
    %5054 = vmatpush2.msra.mxu0 0.0
    %5055 = vmatprep.subr.mxu0 0.0
    %5056 = vmatpush2.msra.mxu0 0.0
    %5057 = vmatprep.subr.mxu0 0.0
    %5058 = vmatpush2.msra.mxu0 0.0
    %5059 = vmatprep.subr.mxu0 0.0
    %5060 = vmatpush2.msra.mxu0 0.0
    %5061 = vmatprep.subr.mxu0 0.0
    %5062 = vmatpush2.msra.mxu0 0.0
    %5063 = vmatprep.mubr.f32.mxu0 0.0
    %v5064 = vand.u32 %v352, 4294901760
    %5065 = vmatmul.mubr.f32.gmra.mxu0 %v5064
    %v5066 = vpop.f32.mrf.mxu0
    %v5067 = vadd.f32 %v4944, %v5066
    %v5068 = vpop.f32.mrf.mxu0
    %v5069 = vadd.f32 %v4946, %v5068
    %5070 = vmatprep.mubr.f32.mxu0 0.0
    %v5071 = vand.u32 %v355, 4294901760
    %5072 = vmatmul.mubr.f32.gmra.mxu0 %v5071
    %v5073 = vpop.f32.mrf.mxu0
    %v5074 = vadd.f32 %v4953, %v5073
    %v5075 = vpop.f32.mrf.mxu0
    %v5076 = vadd.f32 %v4955, %v5075
    %5077 = vmatprep.mubr.f32.mxu0 0.0
    %v5078 = vand.u32 %v358, 4294901760
    %5079 = vmatmul.mubr.f32.gmra.mxu0 %v5078
    %v5080 = vpop.f32.mrf.mxu0
    %v5081 = vadd.f32 %v4962, %v5080
    %v5082 = vpop.f32.mrf.mxu0
    %v5083 = vadd.f32 %v4964, %v5082
    %5084 = vmatprep.mubr.f32.mxu0 0.0
    %v5085 = vand.u32 %v361, 4294901760
    %5086 = vmatmul.mubr.f32.gmra.mxu0 %v5085
    %v5087 = vpop.f32.mrf.mxu0
    %v5088 = vadd.f32 %v4971, %v5087
    %v5089 = vpop.f32.mrf.mxu0
    %v5090 = vadd.f32 %v4973, %v5089
    %5091 = vdwg.mxu0
    %5092 = vmatprep.subr.mxu0 0.0
    %5093 = vmatpush1.msra.mxu0 0.0
    %5094 = vmatprep.subr.mxu0 0.0
    %5095 = vmatpush1.msra.mxu0 0.0
    %5096 = vmatprep.subr.mxu0 0.0
    %5097 = vmatpush1.msra.mxu0 0.0
    %5098 = vmatprep.subr.mxu0 0.0
    %5099 = vmatpush1.msra.mxu0 0.0
    %5100 = vmatprep.subr.mxu0 0.0
    %5101 = vmatpush1.msra.mxu0 0.0
    %5102 = vmatprep.subr.mxu0 0.0
    %5103 = vmatpush1.msra.mxu0 0.0
    %5104 = vmatprep.subr.mxu0 0.0
    %5105 = vmatpush1.msra.mxu0 0.0
    %5106 = vmatprep.subr.mxu0 0.0
    %5107 = vmatpush1.msra.mxu0 0.0
    %5108 = vmatprep.subr.mxu0 0.0
    %5109 = vmatpush1.msra.mxu0 0.0
    %5110 = vmatprep.subr.mxu0 0.0
    %5111 = vmatpush1.msra.mxu0 0.0
    %5112 = vmatprep.subr.mxu0 0.0
    %5113 = vmatpush1.msra.mxu0 0.0
    %5114 = vmatprep.subr.mxu0 0.0
    %5115 = vmatpush1.msra.mxu0 0.0
    %v5116 = vand.u32 %v347, 4294901760
    %5117 = vmatprep.subr.mxu0 %v5116
    %v5118 = vand.u32 %v346, 4294901760
    %5119 = vmatpush1.msra.mxu0 %v5118
    %v5120 = vand.u32 %v331, 4294901760
    %5121 = vmatprep.subr.mxu0 %v5120
    %v5122 = vand.u32 %v330, 4294901760
    %5123 = vmatpush1.msra.mxu0 %v5122
    %v5124 = vand.u32 %v315, 4294901760
    %5125 = vmatprep.subr.mxu0 %v5124
    %v5126 = vand.u32 %v314, 4294901760
    %5127 = vmatpush1.msra.mxu0 %v5126
    %v5128 = vand.u32 %v299, 4294901760
    %5129 = vmatprep.subr.mxu0 %v5128
    %v5130 = vand.u32 %v298, 4294901760
    %5131 = vmatpush1.msra.mxu0 %v5130
    %5132 = vmatprep.subr.mxu0 0.0
    %5133 = vmatpush2.msra.mxu0 0.0
    %5134 = vmatprep.subr.mxu0 0.0
    %5135 = vmatpush2.msra.mxu0 0.0
    %5136 = vmatprep.subr.mxu0 0.0
    %5137 = vmatpush2.msra.mxu0 0.0
    %5138 = vmatprep.subr.mxu0 0.0
    %5139 = vmatpush2.msra.mxu0 0.0
    %5140 = vmatprep.subr.mxu0 0.0
    %5141 = vmatpush2.msra.mxu0 0.0
    %5142 = vmatprep.subr.mxu0 0.0
    %5143 = vmatpush2.msra.mxu0 0.0
    %5144 = vmatprep.subr.mxu0 0.0
    %5145 = vmatpush2.msra.mxu0 0.0
    %5146 = vmatprep.subr.mxu0 0.0
    %5147 = vmatpush2.msra.mxu0 0.0
    %5148 = vmatprep.subr.mxu0 0.0
    %5149 = vmatpush2.msra.mxu0 0.0
    %5150 = vmatprep.subr.mxu0 0.0
    %5151 = vmatpush2.msra.mxu0 0.0
    %5152 = vmatprep.subr.mxu0 0.0
    %5153 = vmatpush2.msra.mxu0 0.0
    %5154 = vmatprep.subr.mxu0 0.0
    %5155 = vmatpush2.msra.mxu0 0.0
    %5156 = vmatprep.subr.mxu0 0.0
    %5157 = vmatpush2.msra.mxu0 0.0
    %5158 = vmatprep.subr.mxu0 0.0
    %5159 = vmatpush2.msra.mxu0 0.0
    %5160 = vmatprep.subr.mxu0 0.0
    %5161 = vmatpush2.msra.mxu0 0.0
    %5162 = vmatprep.subr.mxu0 0.0
    %5163 = vmatpush2.msra.mxu0 0.0
    %5164 = vmatprep.mubr.f32.mxu0 0.0
    %v5165 = vand.u32 %v352, 4294901760
    %5166 = vmatmul.mubr.f32.gmra.mxu0 %v5165
    %v5167 = vpop.f32.mrf.mxu0
    %v5168 = vadd.f32 %v5067, %v5167
    %v5169 = vpop.f32.mrf.mxu0
    %v5170 = vadd.f32 %v5069, %v5169
    %5171 = vmatprep.mubr.f32.mxu0 0.0
    %v5172 = vand.u32 %v355, 4294901760
    %5173 = vmatmul.mubr.f32.gmra.mxu0 %v5172
    %v5174 = vpop.f32.mrf.mxu0
    %v5175 = vadd.f32 %v5074, %v5174
    %v5176 = vpop.f32.mrf.mxu0
    %v5177 = vadd.f32 %v5076, %v5176
    %5178 = vmatprep.mubr.f32.mxu0 0.0
    %v5179 = vand.u32 %v358, 4294901760
    %5180 = vmatmul.mubr.f32.gmra.mxu0 %v5179
    %v5181 = vpop.f32.mrf.mxu0
    %v5182 = vadd.f32 %v5081, %v5181
    %v5183 = vpop.f32.mrf.mxu0
    %v5184 = vadd.f32 %v5083, %v5183
    %5185 = vmatprep.mubr.f32.mxu0 0.0
    %v5186 = vand.u32 %v361, 4294901760
    %5187 = vmatmul.mubr.f32.gmra.mxu0 %v5186
    %v5188 = vpop.f32.mrf.mxu0
    %v5189 = vadd.f32 %v5088, %v5188
    %v5190 = vpop.f32.mrf.mxu0
    %v5191 = vadd.f32 %v5090, %v5190
    %5192 = vdwg.mxu0
    %5193 = vmatprep.subr.mxu0 0.0
    %5194 = vmatpush1.msra.mxu0 0.0
    %5195 = vmatprep.subr.mxu0 0.0
    %5196 = vmatpush1.msra.mxu0 0.0
    %5197 = vmatprep.subr.mxu0 0.0
    %5198 = vmatpush1.msra.mxu0 0.0
    %5199 = vmatprep.subr.mxu0 0.0
    %5200 = vmatpush1.msra.mxu0 0.0
    %5201 = vmatprep.subr.mxu0 0.0
    %5202 = vmatpush1.msra.mxu0 0.0
    %5203 = vmatprep.subr.mxu0 0.0
    %5204 = vmatpush1.msra.mxu0 0.0
    %5205 = vmatprep.subr.mxu0 0.0
    %5206 = vmatpush1.msra.mxu0 0.0
    %5207 = vmatprep.subr.mxu0 0.0
    %5208 = vmatpush1.msra.mxu0 0.0
    %5209 = vmatprep.subr.mxu0 0.0
    %5210 = vmatpush1.msra.mxu0 0.0
    %5211 = vmatprep.subr.mxu0 0.0
    %5212 = vmatpush1.msra.mxu0 0.0
    %5213 = vmatprep.subr.mxu0 0.0
    %5214 = vmatpush1.msra.mxu0 0.0
    %5215 = vmatprep.subr.mxu0 0.0
    %5216 = vmatpush1.msra.mxu0 0.0
    %v5217 = vand.u32 %v349, 4294901760
    %5218 = vmatprep.subr.mxu0 %v5217
    %v5219 = vand.u32 %v348, 4294901760
    %5220 = vmatpush1.msra.mxu0 %v5219
    %v5221 = vand.u32 %v333, 4294901760
    %5222 = vmatprep.subr.mxu0 %v5221
    %v5223 = vand.u32 %v332, 4294901760
    %5224 = vmatpush1.msra.mxu0 %v5223
    %v5225 = vand.u32 %v317, 4294901760
    %5226 = vmatprep.subr.mxu0 %v5225
    %v5227 = vand.u32 %v316, 4294901760
    %5228 = vmatpush1.msra.mxu0 %v5227
    %v5229 = vand.u32 %v301, 4294901760
    %5230 = vmatprep.subr.mxu0 %v5229
    %v5231 = vand.u32 %v300, 4294901760
    %5232 = vmatpush1.msra.mxu0 %v5231
    %5233 = vmatprep.subr.mxu0 0.0
    %5234 = vmatpush2.msra.mxu0 0.0
    %5235 = vmatprep.subr.mxu0 0.0
    %5236 = vmatpush2.msra.mxu0 0.0
    %5237 = vmatprep.subr.mxu0 0.0
    %5238 = vmatpush2.msra.mxu0 0.0
    %5239 = vmatprep.subr.mxu0 0.0
    %5240 = vmatpush2.msra.mxu0 0.0
    %5241 = vmatprep.subr.mxu0 0.0
    %5242 = vmatpush2.msra.mxu0 0.0
    %5243 = vmatprep.subr.mxu0 0.0
    %5244 = vmatpush2.msra.mxu0 0.0
    %5245 = vmatprep.subr.mxu0 0.0
    %5246 = vmatpush2.msra.mxu0 0.0
    %5247 = vmatprep.subr.mxu0 0.0
    %5248 = vmatpush2.msra.mxu0 0.0
    %5249 = vmatprep.subr.mxu0 0.0
    %5250 = vmatpush2.msra.mxu0 0.0
    %5251 = vmatprep.subr.mxu0 0.0
    %5252 = vmatpush2.msra.mxu0 0.0
    %5253 = vmatprep.subr.mxu0 0.0
    %5254 = vmatpush2.msra.mxu0 0.0
    %5255 = vmatprep.subr.mxu0 0.0
    %5256 = vmatpush2.msra.mxu0 0.0
    %5257 = vmatprep.subr.mxu0 0.0
    %5258 = vmatpush2.msra.mxu0 0.0
    %5259 = vmatprep.subr.mxu0 0.0
    %5260 = vmatpush2.msra.mxu0 0.0
    %5261 = vmatprep.subr.mxu0 0.0
    %5262 = vmatpush2.msra.mxu0 0.0
    %5263 = vmatprep.subr.mxu0 0.0
    %5264 = vmatpush2.msra.mxu0 0.0
    %5265 = vmatprep.mubr.f32.mxu0 0.0
    %v5266 = vand.u32 %v352, 4294901760
    %v5267 = vsub.f32 %v352, %v5266
    %v5268 = vand.u32 %v5267, 4294901760
    %v5269 = vsub.f32 %v5267, %v5268
    %v5270 = vand.u32 %v5269, 4294901760
    %5271 = vmatmul.mubr.f32.gmra.mxu0 %v5270
    %v5272 = vpop.f32.mrf.mxu0
    %v5273 = vadd.f32 0.0, %v5272
    %v5274 = vpop.f32.mrf.mxu0
    %v5275 = vadd.f32 0.0, %v5274
    %5276 = vmatprep.mubr.f32.mxu0 0.0
    %v5277 = vand.u32 %v355, 4294901760
    %v5278 = vsub.f32 %v355, %v5277
    %v5279 = vand.u32 %v5278, 4294901760
    %v5280 = vsub.f32 %v5278, %v5279
    %v5281 = vand.u32 %v5280, 4294901760
    %5282 = vmatmul.mubr.f32.gmra.mxu0 %v5281
    %v5283 = vpop.f32.mrf.mxu0
    %v5284 = vadd.f32 0.0, %v5283
    %v5285 = vpop.f32.mrf.mxu0
    %v5286 = vadd.f32 0.0, %v5285
    %5287 = vmatprep.mubr.f32.mxu0 0.0
    %v5288 = vand.u32 %v358, 4294901760
    %v5289 = vsub.f32 %v358, %v5288
    %v5290 = vand.u32 %v5289, 4294901760
    %v5291 = vsub.f32 %v5289, %v5290
    %v5292 = vand.u32 %v5291, 4294901760
    %5293 = vmatmul.mubr.f32.gmra.mxu0 %v5292
    %v5294 = vpop.f32.mrf.mxu0
    %v5295 = vadd.f32 0.0, %v5294
    %v5296 = vpop.f32.mrf.mxu0
    %v5297 = vadd.f32 0.0, %v5296
    %5298 = vmatprep.mubr.f32.mxu0 0.0
    %v5299 = vand.u32 %v361, 4294901760
    %v5300 = vsub.f32 %v361, %v5299
    %v5301 = vand.u32 %v5300, 4294901760
    %v5302 = vsub.f32 %v5300, %v5301
    %v5303 = vand.u32 %v5302, 4294901760
    %5304 = vmatmul.mubr.f32.gmra.mxu0 %v5303
    %v5305 = vpop.f32.mrf.mxu0
    %v5306 = vadd.f32 0.0, %v5305
    %v5307 = vpop.f32.mrf.mxu0
    %v5308 = vadd.f32 0.0, %v5307
    %5309 = vdwg.mxu0
    %5310 = vmatprep.subr.mxu0 0.0
    %5311 = vmatpush1.msra.mxu0 0.0
    %5312 = vmatprep.subr.mxu0 0.0
    %5313 = vmatpush1.msra.mxu0 0.0
    %5314 = vmatprep.subr.mxu0 0.0
    %5315 = vmatpush1.msra.mxu0 0.0
    %5316 = vmatprep.subr.mxu0 0.0
    %5317 = vmatpush1.msra.mxu0 0.0
    %5318 = vmatprep.subr.mxu0 0.0
    %5319 = vmatpush1.msra.mxu0 0.0
    %5320 = vmatprep.subr.mxu0 0.0
    %5321 = vmatpush1.msra.mxu0 0.0
    %5322 = vmatprep.subr.mxu0 0.0
    %5323 = vmatpush1.msra.mxu0 0.0
    %5324 = vmatprep.subr.mxu0 0.0
    %5325 = vmatpush1.msra.mxu0 0.0
    %5326 = vmatprep.subr.mxu0 0.0
    %5327 = vmatpush1.msra.mxu0 0.0
    %5328 = vmatprep.subr.mxu0 0.0
    %5329 = vmatpush1.msra.mxu0 0.0
    %5330 = vmatprep.subr.mxu0 0.0
    %5331 = vmatpush1.msra.mxu0 0.0
    %5332 = vmatprep.subr.mxu0 0.0
    %5333 = vmatpush1.msra.mxu0 0.0
    %v5334 = vand.u32 %v349, 4294901760
    %v5335 = vsub.f32 %v349, %v5334
    %v5336 = vand.u32 %v5335, 4294901760
    %v5337 = vsub.f32 %v5335, %v5336
    %v5338 = vand.u32 %v5337, 4294901760
    %5339 = vmatprep.subr.mxu0 %v5338
    %v5340 = vand.u32 %v348, 4294901760
    %v5341 = vsub.f32 %v348, %v5340
    %v5342 = vand.u32 %v5341, 4294901760
    %v5343 = vsub.f32 %v5341, %v5342
    %v5344 = vand.u32 %v5343, 4294901760
    %5345 = vmatpush1.msra.mxu0 %v5344
    %v5346 = vand.u32 %v333, 4294901760
    %v5347 = vsub.f32 %v333, %v5346
    %v5348 = vand.u32 %v5347, 4294901760
    %v5349 = vsub.f32 %v5347, %v5348
    %v5350 = vand.u32 %v5349, 4294901760
    %5351 = vmatprep.subr.mxu0 %v5350
    %v5352 = vand.u32 %v332, 4294901760
    %v5353 = vsub.f32 %v332, %v5352
    %v5354 = vand.u32 %v5353, 4294901760
    %v5355 = vsub.f32 %v5353, %v5354
    %v5356 = vand.u32 %v5355, 4294901760
    %5357 = vmatpush1.msra.mxu0 %v5356
    %v5358 = vand.u32 %v317, 4294901760
    %v5359 = vsub.f32 %v317, %v5358
    %v5360 = vand.u32 %v5359, 4294901760
    %v5361 = vsub.f32 %v5359, %v5360
    %v5362 = vand.u32 %v5361, 4294901760
    %5363 = vmatprep.subr.mxu0 %v5362
    %v5364 = vand.u32 %v316, 4294901760
    %v5365 = vsub.f32 %v316, %v5364
    %v5366 = vand.u32 %v5365, 4294901760
    %v5367 = vsub.f32 %v5365, %v5366
    %v5368 = vand.u32 %v5367, 4294901760
    %5369 = vmatpush1.msra.mxu0 %v5368
    %v5370 = vand.u32 %v301, 4294901760
    %v5371 = vsub.f32 %v301, %v5370
    %v5372 = vand.u32 %v5371, 4294901760
    %v5373 = vsub.f32 %v5371, %v5372
    %v5374 = vand.u32 %v5373, 4294901760
    %5375 = vmatprep.subr.mxu0 %v5374
    %v5376 = vand.u32 %v300, 4294901760
    %v5377 = vsub.f32 %v300, %v5376
    %v5378 = vand.u32 %v5377, 4294901760
    %v5379 = vsub.f32 %v5377, %v5378
    %v5380 = vand.u32 %v5379, 4294901760
    %5381 = vmatpush1.msra.mxu0 %v5380
    %5382 = vmatprep.subr.mxu0 0.0
    %5383 = vmatpush2.msra.mxu0 0.0
    %5384 = vmatprep.subr.mxu0 0.0
    %5385 = vmatpush2.msra.mxu0 0.0
    %5386 = vmatprep.subr.mxu0 0.0
    %5387 = vmatpush2.msra.mxu0 0.0
    %5388 = vmatprep.subr.mxu0 0.0
    %5389 = vmatpush2.msra.mxu0 0.0
    %5390 = vmatprep.subr.mxu0 0.0
    %5391 = vmatpush2.msra.mxu0 0.0
    %5392 = vmatprep.subr.mxu0 0.0
    %5393 = vmatpush2.msra.mxu0 0.0
    %5394 = vmatprep.subr.mxu0 0.0
    %5395 = vmatpush2.msra.mxu0 0.0
    %5396 = vmatprep.subr.mxu0 0.0
    %5397 = vmatpush2.msra.mxu0 0.0
    %5398 = vmatprep.subr.mxu0 0.0
    %5399 = vmatpush2.msra.mxu0 0.0
    %5400 = vmatprep.subr.mxu0 0.0
    %5401 = vmatpush2.msra.mxu0 0.0
    %5402 = vmatprep.subr.mxu0 0.0
    %5403 = vmatpush2.msra.mxu0 0.0
    %5404 = vmatprep.subr.mxu0 0.0
    %5405 = vmatpush2.msra.mxu0 0.0
    %5406 = vmatprep.subr.mxu0 0.0
    %5407 = vmatpush2.msra.mxu0 0.0
    %5408 = vmatprep.subr.mxu0 0.0
    %5409 = vmatpush2.msra.mxu0 0.0
    %5410 = vmatprep.subr.mxu0 0.0
    %5411 = vmatpush2.msra.mxu0 0.0
    %5412 = vmatprep.subr.mxu0 0.0
    %5413 = vmatpush2.msra.mxu0 0.0
    %5414 = vmatprep.mubr.f32.mxu0 0.0
    %v5415 = vand.u32 %v352, 4294901760
    %5416 = vmatmul.mubr.f32.gmra.mxu0 %v5415
    %v5417 = vpop.f32.mrf.mxu0
    %v5418 = vadd.f32 %v5273, %v5417
    %v5419 = vpop.f32.mrf.mxu0
    %v5420 = vadd.f32 %v5275, %v5419
    %5421 = vmatprep.mubr.f32.mxu0 0.0
    %v5422 = vand.u32 %v355, 4294901760
    %5423 = vmatmul.mubr.f32.gmra.mxu0 %v5422
    %v5424 = vpop.f32.mrf.mxu0
    %v5425 = vadd.f32 %v5284, %v5424
    %v5426 = vpop.f32.mrf.mxu0
    %v5427 = vadd.f32 %v5286, %v5426
    %5428 = vmatprep.mubr.f32.mxu0 0.0
    %v5429 = vand.u32 %v358, 4294901760
    %5430 = vmatmul.mubr.f32.gmra.mxu0 %v5429
    %v5431 = vpop.f32.mrf.mxu0
    %v5432 = vadd.f32 %v5295, %v5431
    %v5433 = vpop.f32.mrf.mxu0
    %v5434 = vadd.f32 %v5297, %v5433
    %5435 = vmatprep.mubr.f32.mxu0 0.0
    %v5436 = vand.u32 %v361, 4294901760
    %5437 = vmatmul.mubr.f32.gmra.mxu0 %v5436
    %v5438 = vpop.f32.mrf.mxu0
    %v5439 = vadd.f32 %v5306, %v5438
    %v5440 = vpop.f32.mrf.mxu0
    %v5441 = vadd.f32 %v5308, %v5440
    %5442 = vdwg.mxu0
    %5443 = vmatprep.subr.mxu0 0.0
    %5444 = vmatpush1.msra.mxu0 0.0
    %5445 = vmatprep.subr.mxu0 0.0
    %5446 = vmatpush1.msra.mxu0 0.0
    %5447 = vmatprep.subr.mxu0 0.0
    %5448 = vmatpush1.msra.mxu0 0.0
    %5449 = vmatprep.subr.mxu0 0.0
    %5450 = vmatpush1.msra.mxu0 0.0
    %5451 = vmatprep.subr.mxu0 0.0
    %5452 = vmatpush1.msra.mxu0 0.0
    %5453 = vmatprep.subr.mxu0 0.0
    %5454 = vmatpush1.msra.mxu0 0.0
    %5455 = vmatprep.subr.mxu0 0.0
    %5456 = vmatpush1.msra.mxu0 0.0
    %5457 = vmatprep.subr.mxu0 0.0
    %5458 = vmatpush1.msra.mxu0 0.0
    %5459 = vmatprep.subr.mxu0 0.0
    %5460 = vmatpush1.msra.mxu0 0.0
    %5461 = vmatprep.subr.mxu0 0.0
    %5462 = vmatpush1.msra.mxu0 0.0
    %5463 = vmatprep.subr.mxu0 0.0
    %5464 = vmatpush1.msra.mxu0 0.0
    %5465 = vmatprep.subr.mxu0 0.0
    %5466 = vmatpush1.msra.mxu0 0.0
    %v5467 = vand.u32 %v349, 4294901760
    %v5468 = vsub.f32 %v349, %v5467
    %5469 = vmatprep.subr.mxu0 %v5468
    %v5470 = vand.u32 %v348, 4294901760
    %v5471 = vsub.f32 %v348, %v5470
    %5472 = vmatpush1.msra.mxu0 %v5471
    %v5473 = vand.u32 %v333, 4294901760
    %v5474 = vsub.f32 %v333, %v5473
    %5475 = vmatprep.subr.mxu0 %v5474
    %v5476 = vand.u32 %v332, 4294901760
    %v5477 = vsub.f32 %v332, %v5476
    %5478 = vmatpush1.msra.mxu0 %v5477
    %v5479 = vand.u32 %v317, 4294901760
    %v5480 = vsub.f32 %v317, %v5479
    %5481 = vmatprep.subr.mxu0 %v5480
    %v5482 = vand.u32 %v316, 4294901760
    %v5483 = vsub.f32 %v316, %v5482
    %5484 = vmatpush1.msra.mxu0 %v5483
    %v5485 = vand.u32 %v301, 4294901760
    %v5486 = vsub.f32 %v301, %v5485
    %5487 = vmatprep.subr.mxu0 %v5486
    %v5488 = vand.u32 %v300, 4294901760
    %v5489 = vsub.f32 %v300, %v5488
    %5490 = vmatpush1.msra.mxu0 %v5489
    %5491 = vmatprep.subr.mxu0 0.0
    %5492 = vmatpush2.msra.mxu0 0.0
    %5493 = vmatprep.subr.mxu0 0.0
    %5494 = vmatpush2.msra.mxu0 0.0
    %5495 = vmatprep.subr.mxu0 0.0
    %5496 = vmatpush2.msra.mxu0 0.0
    %5497 = vmatprep.subr.mxu0 0.0
    %5498 = vmatpush2.msra.mxu0 0.0
    %5499 = vmatprep.subr.mxu0 0.0
    %5500 = vmatpush2.msra.mxu0 0.0
    %5501 = vmatprep.subr.mxu0 0.0
    %5502 = vmatpush2.msra.mxu0 0.0
    %5503 = vmatprep.subr.mxu0 0.0
    %5504 = vmatpush2.msra.mxu0 0.0
    %5505 = vmatprep.subr.mxu0 0.0
    %5506 = vmatpush2.msra.mxu0 0.0
    %5507 = vmatprep.subr.mxu0 0.0
    %5508 = vmatpush2.msra.mxu0 0.0
    %5509 = vmatprep.subr.mxu0 0.0
    %5510 = vmatpush2.msra.mxu0 0.0
    %5511 = vmatprep.subr.mxu0 0.0
    %5512 = vmatpush2.msra.mxu0 0.0
    %5513 = vmatprep.subr.mxu0 0.0
    %5514 = vmatpush2.msra.mxu0 0.0
    %5515 = vmatprep.subr.mxu0 0.0
    %5516 = vmatpush2.msra.mxu0 0.0
    %5517 = vmatprep.subr.mxu0 0.0
    %5518 = vmatpush2.msra.mxu0 0.0
    %5519 = vmatprep.subr.mxu0 0.0
    %5520 = vmatpush2.msra.mxu0 0.0
    %5521 = vmatprep.subr.mxu0 0.0
    %5522 = vmatpush2.msra.mxu0 0.0
    %5523 = vmatprep.mubr.f32.mxu0 0.0
    %v5524 = vand.u32 %v352, 4294901760
    %v5525 = vsub.f32 %v352, %v5524
    %5526 = vmatmul.mubr.f32.gmra.mxu0 %v5525
    %v5527 = vpop.f32.mrf.mxu0
    %v5528 = vadd.f32 %v5418, %v5527
    %v5529 = vpop.f32.mrf.mxu0
    %v5530 = vadd.f32 %v5420, %v5529
    %5531 = vmatprep.mubr.f32.mxu0 0.0
    %v5532 = vand.u32 %v355, 4294901760
    %v5533 = vsub.f32 %v355, %v5532
    %5534 = vmatmul.mubr.f32.gmra.mxu0 %v5533
    %v5535 = vpop.f32.mrf.mxu0
    %v5536 = vadd.f32 %v5425, %v5535
    %v5537 = vpop.f32.mrf.mxu0
    %v5538 = vadd.f32 %v5427, %v5537
    %5539 = vmatprep.mubr.f32.mxu0 0.0
    %v5540 = vand.u32 %v358, 4294901760
    %v5541 = vsub.f32 %v358, %v5540
    %5542 = vmatmul.mubr.f32.gmra.mxu0 %v5541
    %v5543 = vpop.f32.mrf.mxu0
    %v5544 = vadd.f32 %v5432, %v5543
    %v5545 = vpop.f32.mrf.mxu0
    %v5546 = vadd.f32 %v5434, %v5545
    %5547 = vmatprep.mubr.f32.mxu0 0.0
    %v5548 = vand.u32 %v361, 4294901760
    %v5549 = vsub.f32 %v361, %v5548
    %5550 = vmatmul.mubr.f32.gmra.mxu0 %v5549
    %v5551 = vpop.f32.mrf.mxu0
    %v5552 = vadd.f32 %v5439, %v5551
    %v5553 = vpop.f32.mrf.mxu0
    %v5554 = vadd.f32 %v5441, %v5553
    %5555 = vdwg.mxu0
    %5556 = vmatprep.subr.mxu0 0.0
    %5557 = vmatpush1.msra.mxu0 0.0
    %5558 = vmatprep.subr.mxu0 0.0
    %5559 = vmatpush1.msra.mxu0 0.0
    %5560 = vmatprep.subr.mxu0 0.0
    %5561 = vmatpush1.msra.mxu0 0.0
    %5562 = vmatprep.subr.mxu0 0.0
    %5563 = vmatpush1.msra.mxu0 0.0
    %5564 = vmatprep.subr.mxu0 0.0
    %5565 = vmatpush1.msra.mxu0 0.0
    %5566 = vmatprep.subr.mxu0 0.0
    %5567 = vmatpush1.msra.mxu0 0.0
    %5568 = vmatprep.subr.mxu0 0.0
    %5569 = vmatpush1.msra.mxu0 0.0
    %5570 = vmatprep.subr.mxu0 0.0
    %5571 = vmatpush1.msra.mxu0 0.0
    %5572 = vmatprep.subr.mxu0 0.0
    %5573 = vmatpush1.msra.mxu0 0.0
    %5574 = vmatprep.subr.mxu0 0.0
    %5575 = vmatpush1.msra.mxu0 0.0
    %5576 = vmatprep.subr.mxu0 0.0
    %5577 = vmatpush1.msra.mxu0 0.0
    %5578 = vmatprep.subr.mxu0 0.0
    %5579 = vmatpush1.msra.mxu0 0.0
    %v5580 = vand.u32 %v349, 4294901760
    %5581 = vmatprep.subr.mxu0 %v5580
    %v5582 = vand.u32 %v348, 4294901760
    %5583 = vmatpush1.msra.mxu0 %v5582
    %v5584 = vand.u32 %v333, 4294901760
    %5585 = vmatprep.subr.mxu0 %v5584
    %v5586 = vand.u32 %v332, 4294901760
    %5587 = vmatpush1.msra.mxu0 %v5586
    %v5588 = vand.u32 %v317, 4294901760
    %5589 = vmatprep.subr.mxu0 %v5588
    %v5590 = vand.u32 %v316, 4294901760
    %5591 = vmatpush1.msra.mxu0 %v5590
    %v5592 = vand.u32 %v301, 4294901760
    %5593 = vmatprep.subr.mxu0 %v5592
    %v5594 = vand.u32 %v300, 4294901760
    %5595 = vmatpush1.msra.mxu0 %v5594
    %5596 = vmatprep.subr.mxu0 0.0
    %5597 = vmatpush2.msra.mxu0 0.0
    %5598 = vmatprep.subr.mxu0 0.0
    %5599 = vmatpush2.msra.mxu0 0.0
    %5600 = vmatprep.subr.mxu0 0.0
    %5601 = vmatpush2.msra.mxu0 0.0
    %5602 = vmatprep.subr.mxu0 0.0
    %5603 = vmatpush2.msra.mxu0 0.0
    %5604 = vmatprep.subr.mxu0 0.0
    %5605 = vmatpush2.msra.mxu0 0.0
    %5606 = vmatprep.subr.mxu0 0.0
    %5607 = vmatpush2.msra.mxu0 0.0
    %5608 = vmatprep.subr.mxu0 0.0
    %5609 = vmatpush2.msra.mxu0 0.0
    %5610 = vmatprep.subr.mxu0 0.0
    %5611 = vmatpush2.msra.mxu0 0.0
    %5612 = vmatprep.subr.mxu0 0.0
    %5613 = vmatpush2.msra.mxu0 0.0
    %5614 = vmatprep.subr.mxu0 0.0
    %5615 = vmatpush2.msra.mxu0 0.0
    %5616 = vmatprep.subr.mxu0 0.0
    %5617 = vmatpush2.msra.mxu0 0.0
    %5618 = vmatprep.subr.mxu0 0.0
    %5619 = vmatpush2.msra.mxu0 0.0
    %5620 = vmatprep.subr.mxu0 0.0
    %5621 = vmatpush2.msra.mxu0 0.0
    %5622 = vmatprep.subr.mxu0 0.0
    %5623 = vmatpush2.msra.mxu0 0.0
    %5624 = vmatprep.subr.mxu0 0.0
    %5625 = vmatpush2.msra.mxu0 0.0
    %5626 = vmatprep.subr.mxu0 0.0
    %5627 = vmatpush2.msra.mxu0 0.0
    %5628 = vmatprep.mubr.f32.mxu0 0.0
    %v5629 = vand.u32 %v352, 4294901760
    %v5630 = vsub.f32 %v352, %v5629
    %v5631 = vand.u32 %v5630, 4294901760
    %5632 = vmatmul.mubr.f32.gmra.mxu0 %v5631
    %v5633 = vpop.f32.mrf.mxu0
    %v5634 = vadd.f32 %v5528, %v5633
    %v5635 = vpop.f32.mrf.mxu0
    %v5636 = vadd.f32 %v5530, %v5635
    %5637 = vmatprep.mubr.f32.mxu0 0.0
    %v5638 = vand.u32 %v355, 4294901760
    %v5639 = vsub.f32 %v355, %v5638
    %v5640 = vand.u32 %v5639, 4294901760
    %5641 = vmatmul.mubr.f32.gmra.mxu0 %v5640
    %v5642 = vpop.f32.mrf.mxu0
    %v5643 = vadd.f32 %v5536, %v5642
    %v5644 = vpop.f32.mrf.mxu0
    %v5645 = vadd.f32 %v5538, %v5644
    %5646 = vmatprep.mubr.f32.mxu0 0.0
    %v5647 = vand.u32 %v358, 4294901760
    %v5648 = vsub.f32 %v358, %v5647
    %v5649 = vand.u32 %v5648, 4294901760
    %5650 = vmatmul.mubr.f32.gmra.mxu0 %v5649
    %v5651 = vpop.f32.mrf.mxu0
    %v5652 = vadd.f32 %v5544, %v5651
    %v5653 = vpop.f32.mrf.mxu0
    %v5654 = vadd.f32 %v5546, %v5653
    %5655 = vmatprep.mubr.f32.mxu0 0.0
    %v5656 = vand.u32 %v361, 4294901760
    %v5657 = vsub.f32 %v361, %v5656
    %v5658 = vand.u32 %v5657, 4294901760
    %5659 = vmatmul.mubr.f32.gmra.mxu0 %v5658
    %v5660 = vpop.f32.mrf.mxu0
    %v5661 = vadd.f32 %v5552, %v5660
    %v5662 = vpop.f32.mrf.mxu0
    %v5663 = vadd.f32 %v5554, %v5662
    %5664 = vdwg.mxu0
    %5665 = vmatprep.subr.mxu0 0.0
    %5666 = vmatpush1.msra.mxu0 0.0
    %5667 = vmatprep.subr.mxu0 0.0
    %5668 = vmatpush1.msra.mxu0 0.0
    %5669 = vmatprep.subr.mxu0 0.0
    %5670 = vmatpush1.msra.mxu0 0.0
    %5671 = vmatprep.subr.mxu0 0.0
    %5672 = vmatpush1.msra.mxu0 0.0
    %5673 = vmatprep.subr.mxu0 0.0
    %5674 = vmatpush1.msra.mxu0 0.0
    %5675 = vmatprep.subr.mxu0 0.0
    %5676 = vmatpush1.msra.mxu0 0.0
    %5677 = vmatprep.subr.mxu0 0.0
    %5678 = vmatpush1.msra.mxu0 0.0
    %5679 = vmatprep.subr.mxu0 0.0
    %5680 = vmatpush1.msra.mxu0 0.0
    %5681 = vmatprep.subr.mxu0 0.0
    %5682 = vmatpush1.msra.mxu0 0.0
    %5683 = vmatprep.subr.mxu0 0.0
    %5684 = vmatpush1.msra.mxu0 0.0
    %5685 = vmatprep.subr.mxu0 0.0
    %5686 = vmatpush1.msra.mxu0 0.0
    %5687 = vmatprep.subr.mxu0 0.0
    %5688 = vmatpush1.msra.mxu0 0.0
    %v5689 = vand.u32 %v349, 4294901760
    %v5690 = vsub.f32 %v349, %v5689
    %v5691 = vand.u32 %v5690, 4294901760
    %5692 = vmatprep.subr.mxu0 %v5691
    %v5693 = vand.u32 %v348, 4294901760
    %v5694 = vsub.f32 %v348, %v5693
    %v5695 = vand.u32 %v5694, 4294901760
    %5696 = vmatpush1.msra.mxu0 %v5695
    %v5697 = vand.u32 %v333, 4294901760
    %v5698 = vsub.f32 %v333, %v5697
    %v5699 = vand.u32 %v5698, 4294901760
    %5700 = vmatprep.subr.mxu0 %v5699
    %v5701 = vand.u32 %v332, 4294901760
    %v5702 = vsub.f32 %v332, %v5701
    %v5703 = vand.u32 %v5702, 4294901760
    %5704 = vmatpush1.msra.mxu0 %v5703
    %v5705 = vand.u32 %v317, 4294901760
    %v5706 = vsub.f32 %v317, %v5705
    %v5707 = vand.u32 %v5706, 4294901760
    %5708 = vmatprep.subr.mxu0 %v5707
    %v5709 = vand.u32 %v316, 4294901760
    %v5710 = vsub.f32 %v316, %v5709
    %v5711 = vand.u32 %v5710, 4294901760
    %5712 = vmatpush1.msra.mxu0 %v5711
    %v5713 = vand.u32 %v301, 4294901760
    %v5714 = vsub.f32 %v301, %v5713
    %v5715 = vand.u32 %v5714, 4294901760
    %5716 = vmatprep.subr.mxu0 %v5715
    %v5717 = vand.u32 %v300, 4294901760
    %v5718 = vsub.f32 %v300, %v5717
    %v5719 = vand.u32 %v5718, 4294901760
    %5720 = vmatpush1.msra.mxu0 %v5719
    %5721 = vmatprep.subr.mxu0 0.0
    %5722 = vmatpush2.msra.mxu0 0.0
    %5723 = vmatprep.subr.mxu0 0.0
    %5724 = vmatpush2.msra.mxu0 0.0
    %5725 = vmatprep.subr.mxu0 0.0
    %5726 = vmatpush2.msra.mxu0 0.0
    %5727 = vmatprep.subr.mxu0 0.0
    %5728 = vmatpush2.msra.mxu0 0.0
    %5729 = vmatprep.subr.mxu0 0.0
    %5730 = vmatpush2.msra.mxu0 0.0
    %5731 = vmatprep.subr.mxu0 0.0
    %5732 = vmatpush2.msra.mxu0 0.0
    %5733 = vmatprep.subr.mxu0 0.0
    %5734 = vmatpush2.msra.mxu0 0.0
    %5735 = vmatprep.subr.mxu0 0.0
    %5736 = vmatpush2.msra.mxu0 0.0
    %5737 = vmatprep.subr.mxu0 0.0
    %5738 = vmatpush2.msra.mxu0 0.0
    %5739 = vmatprep.subr.mxu0 0.0
    %5740 = vmatpush2.msra.mxu0 0.0
    %5741 = vmatprep.subr.mxu0 0.0
    %5742 = vmatpush2.msra.mxu0 0.0
    %5743 = vmatprep.subr.mxu0 0.0
    %5744 = vmatpush2.msra.mxu0 0.0
    %5745 = vmatprep.subr.mxu0 0.0
    %5746 = vmatpush2.msra.mxu0 0.0
    %5747 = vmatprep.subr.mxu0 0.0
    %5748 = vmatpush2.msra.mxu0 0.0
    %5749 = vmatprep.subr.mxu0 0.0
    %5750 = vmatpush2.msra.mxu0 0.0
    %5751 = vmatprep.subr.mxu0 0.0
    %5752 = vmatpush2.msra.mxu0 0.0
    %5753 = vmatprep.mubr.f32.mxu0 0.0
    %v5754 = vand.u32 %v352, 4294901760
    %5755 = vmatmul.mubr.f32.gmra.mxu0 %v5754
    %v5756 = vpop.f32.mrf.mxu0
    %v5757 = vadd.f32 %v5634, %v5756
    %v5758 = vpop.f32.mrf.mxu0
    %v5759 = vadd.f32 %v5636, %v5758
    %5760 = vmatprep.mubr.f32.mxu0 0.0
    %v5761 = vand.u32 %v355, 4294901760
    %5762 = vmatmul.mubr.f32.gmra.mxu0 %v5761
    %v5763 = vpop.f32.mrf.mxu0
    %v5764 = vadd.f32 %v5643, %v5763
    %v5765 = vpop.f32.mrf.mxu0
    %v5766 = vadd.f32 %v5645, %v5765
    %5767 = vmatprep.mubr.f32.mxu0 0.0
    %v5768 = vand.u32 %v358, 4294901760
    %5769 = vmatmul.mubr.f32.gmra.mxu0 %v5768
    %v5770 = vpop.f32.mrf.mxu0
    %v5771 = vadd.f32 %v5652, %v5770
    %v5772 = vpop.f32.mrf.mxu0
    %v5773 = vadd.f32 %v5654, %v5772
    %5774 = vmatprep.mubr.f32.mxu0 0.0
    %v5775 = vand.u32 %v361, 4294901760
    %5776 = vmatmul.mubr.f32.gmra.mxu0 %v5775
    %v5777 = vpop.f32.mrf.mxu0
    %v5778 = vadd.f32 %v5661, %v5777
    %v5779 = vpop.f32.mrf.mxu0
    %v5780 = vadd.f32 %v5663, %v5779
    %5781 = vdwg.mxu0
    %5782 = vmatprep.subr.mxu0 0.0
    %5783 = vmatpush1.msra.mxu0 0.0
    %5784 = vmatprep.subr.mxu0 0.0
    %5785 = vmatpush1.msra.mxu0 0.0
    %5786 = vmatprep.subr.mxu0 0.0
    %5787 = vmatpush1.msra.mxu0 0.0
    %5788 = vmatprep.subr.mxu0 0.0
    %5789 = vmatpush1.msra.mxu0 0.0
    %5790 = vmatprep.subr.mxu0 0.0
    %5791 = vmatpush1.msra.mxu0 0.0
    %5792 = vmatprep.subr.mxu0 0.0
    %5793 = vmatpush1.msra.mxu0 0.0
    %5794 = vmatprep.subr.mxu0 0.0
    %5795 = vmatpush1.msra.mxu0 0.0
    %5796 = vmatprep.subr.mxu0 0.0
    %5797 = vmatpush1.msra.mxu0 0.0
    %5798 = vmatprep.subr.mxu0 0.0
    %5799 = vmatpush1.msra.mxu0 0.0
    %5800 = vmatprep.subr.mxu0 0.0
    %5801 = vmatpush1.msra.mxu0 0.0
    %5802 = vmatprep.subr.mxu0 0.0
    %5803 = vmatpush1.msra.mxu0 0.0
    %5804 = vmatprep.subr.mxu0 0.0
    %5805 = vmatpush1.msra.mxu0 0.0
    %v5806 = vand.u32 %v349, 4294901760
    %5807 = vmatprep.subr.mxu0 %v5806
    %v5808 = vand.u32 %v348, 4294901760
    %5809 = vmatpush1.msra.mxu0 %v5808
    %v5810 = vand.u32 %v333, 4294901760
    %5811 = vmatprep.subr.mxu0 %v5810
    %v5812 = vand.u32 %v332, 4294901760
    %5813 = vmatpush1.msra.mxu0 %v5812
    %v5814 = vand.u32 %v317, 4294901760
    %5815 = vmatprep.subr.mxu0 %v5814
    %v5816 = vand.u32 %v316, 4294901760
    %5817 = vmatpush1.msra.mxu0 %v5816
    %v5818 = vand.u32 %v301, 4294901760
    %5819 = vmatprep.subr.mxu0 %v5818
    %v5820 = vand.u32 %v300, 4294901760
    %5821 = vmatpush1.msra.mxu0 %v5820
    %5822 = vmatprep.subr.mxu0 0.0
    %5823 = vmatpush2.msra.mxu0 0.0
    %5824 = vmatprep.subr.mxu0 0.0
    %5825 = vmatpush2.msra.mxu0 0.0
    %5826 = vmatprep.subr.mxu0 0.0
    %5827 = vmatpush2.msra.mxu0 0.0
    %5828 = vmatprep.subr.mxu0 0.0
    %5829 = vmatpush2.msra.mxu0 0.0
    %5830 = vmatprep.subr.mxu0 0.0
    %5831 = vmatpush2.msra.mxu0 0.0
    %5832 = vmatprep.subr.mxu0 0.0
    %5833 = vmatpush2.msra.mxu0 0.0
    %5834 = vmatprep.subr.mxu0 0.0
    %5835 = vmatpush2.msra.mxu0 0.0
    %5836 = vmatprep.subr.mxu0 0.0
    %5837 = vmatpush2.msra.mxu0 0.0
    %5838 = vmatprep.subr.mxu0 0.0
    %5839 = vmatpush2.msra.mxu0 0.0
    %5840 = vmatprep.subr.mxu0 0.0
    %5841 = vmatpush2.msra.mxu0 0.0
    %5842 = vmatprep.subr.mxu0 0.0
    %5843 = vmatpush2.msra.mxu0 0.0
    %5844 = vmatprep.subr.mxu0 0.0
    %5845 = vmatpush2.msra.mxu0 0.0
    %5846 = vmatprep.subr.mxu0 0.0
    %5847 = vmatpush2.msra.mxu0 0.0
    %5848 = vmatprep.subr.mxu0 0.0
    %5849 = vmatpush2.msra.mxu0 0.0
    %5850 = vmatprep.subr.mxu0 0.0
    %5851 = vmatpush2.msra.mxu0 0.0
    %5852 = vmatprep.subr.mxu0 0.0
    %5853 = vmatpush2.msra.mxu0 0.0
    %5854 = vmatprep.mubr.f32.mxu0 0.0
    %v5855 = vand.u32 %v352, 4294901760
    %5856 = vmatmul.mubr.f32.gmra.mxu0 %v5855
    %v5857 = vpop.f32.mrf.mxu0
    %v5858 = vadd.f32 %v5757, %v5857
    %v5859 = vpop.f32.mrf.mxu0
    %v5860 = vadd.f32 %v5759, %v5859
    %5861 = vmatprep.mubr.f32.mxu0 0.0
    %v5862 = vand.u32 %v355, 4294901760
    %5863 = vmatmul.mubr.f32.gmra.mxu0 %v5862
    %v5864 = vpop.f32.mrf.mxu0
    %v5865 = vadd.f32 %v5764, %v5864
    %v5866 = vpop.f32.mrf.mxu0
    %v5867 = vadd.f32 %v5766, %v5866
    %5868 = vmatprep.mubr.f32.mxu0 0.0
    %v5869 = vand.u32 %v358, 4294901760
    %5870 = vmatmul.mubr.f32.gmra.mxu0 %v5869
    %v5871 = vpop.f32.mrf.mxu0
    %v5872 = vadd.f32 %v5771, %v5871
    %v5873 = vpop.f32.mrf.mxu0
    %v5874 = vadd.f32 %v5773, %v5873
    %5875 = vmatprep.mubr.f32.mxu0 0.0
    %v5876 = vand.u32 %v361, 4294901760
    %5877 = vmatmul.mubr.f32.gmra.mxu0 %v5876
    %v5878 = vpop.f32.mrf.mxu0
    %v5879 = vadd.f32 %v5778, %v5878
    %v5880 = vpop.f32.mrf.mxu0
    %v5881 = vadd.f32 %v5780, %v5880
    %5882 = vdwg.mxu0
    %v5883 = vmax.f32 %v1028, 0.0
    %v5884 = vmax.f32 %v1030, 0.0
    %v5885 = vmax.f32 %v1718, 0.0
    %v5886 = vmax.f32 %v1720, 0.0
    %v5887 = vmax.f32 %v2408, 0.0
    %v5888 = vmax.f32 %v2410, 0.0
    %v5889 = vmax.f32 %v3098, 0.0
    %v5890 = vmax.f32 %v3100, 0.0
    %v5891 = vmax.f32 %v3788, 0.0
    %v5892 = vmax.f32 %v3790, 0.0
    %v5893 = vmax.f32 %v4478, 0.0
    %v5894 = vmax.f32 %v4480, 0.0
    %v5895 = vmax.f32 %v5168, 0.0
    %v5896 = vmax.f32 %v5170, 0.0
    %v5897 = vmax.f32 %v5858, 0.0
    %v5898 = vmax.f32 %v5860, 0.0
    %v5899 = vmax.f32 %v1035, 0.0
    %v5900 = vmax.f32 %v1037, 0.0
    %v5901 = vmax.f32 %v1725, 0.0
    %v5902 = vmax.f32 %v1727, 0.0
    %v5903 = vmax.f32 %v2415, 0.0
    %v5904 = vmax.f32 %v2417, 0.0
    %v5905 = vmax.f32 %v3105, 0.0
    %v5906 = vmax.f32 %v3107, 0.0
    %v5907 = vmax.f32 %v3795, 0.0
    %v5908 = vmax.f32 %v3797, 0.0
    %v5909 = vmax.f32 %v4485, 0.0
    %v5910 = vmax.f32 %v4487, 0.0
    %v5911 = vmax.f32 %v5175, 0.0
    %v5912 = vmax.f32 %v5177, 0.0
    %v5913 = vmax.f32 %v5865, 0.0
    %v5914 = vmax.f32 %v5867, 0.0
    %v5915 = vmax.f32 %v1042, 0.0
    %v5916 = vmax.f32 %v1044, 0.0
    %v5917 = vmax.f32 %v1732, 0.0
    %v5918 = vmax.f32 %v1734, 0.0
    %v5919 = vmax.f32 %v2422, 0.0
    %v5920 = vmax.f32 %v2424, 0.0
    %v5921 = vmax.f32 %v3112, 0.0
    %v5922 = vmax.f32 %v3114, 0.0
    %v5923 = vmax.f32 %v3802, 0.0
    %v5924 = vmax.f32 %v3804, 0.0
    %v5925 = vmax.f32 %v4492, 0.0
    %v5926 = vmax.f32 %v4494, 0.0
    %v5927 = vmax.f32 %v5182, 0.0
    %v5928 = vmax.f32 %v5184, 0.0
    %v5929 = vmax.f32 %v5872, 0.0
    %v5930 = vmax.f32 %v5874, 0.0
    %v5931 = vmax.f32 %v1049, 0.0
    %v5932 = vmax.f32 %v1051, 0.0
    %v5933 = vmax.f32 %v1739, 0.0
    %v5934 = vmax.f32 %v1741, 0.0
    %v5935 = vmax.f32 %v2429, 0.0
    %v5936 = vmax.f32 %v2431, 0.0
    %v5937 = vmax.f32 %v3119, 0.0
    %v5938 = vmax.f32 %v3121, 0.0
    %v5939 = vmax.f32 %v3809, 0.0
    %v5940 = vmax.f32 %v3811, 0.0
    %v5941 = vmax.f32 %v4499, 0.0
    %v5942 = vmax.f32 %v4501, 0.0
    %v5943 = vmax.f32 %v5189, 0.0
    %v5944 = vmax.f32 %v5191, 0.0
    %v5945 = vmax.f32 %v5879, 0.0
    %v5946 = vmax.f32 %v5881, 0.0
    %v5948 = vsel %vm350, %v73, 0
    %5950 = vmatprep.subr.mxu0 0.0
    %5951 = vmatpush1.msra.mxu0 0.0
    %5952 = vmatprep.subr.mxu0 0.0
    %5953 = vmatpush1.msra.mxu0 0.0
    %5954 = vmatprep.subr.mxu0 0.0
    %5955 = vmatpush1.msra.mxu0 0.0
    %5956 = vmatprep.subr.mxu0 0.0
    %5957 = vmatpush1.msra.mxu0 0.0
    %5958 = vmatprep.subr.mxu0 0.0
    %5959 = vmatpush1.msra.mxu0 0.0
    %5960 = vmatprep.subr.mxu0 0.0
    %5961 = vmatpush1.msra.mxu0 0.0
    %5962 = vmatprep.subr.mxu0 0.0
    %5963 = vmatpush1.msra.mxu0 0.0
    %5964 = vmatprep.subr.mxu0 0.0
    %5965 = vmatpush1.msra.mxu0 0.0
    %5966 = vmatprep.subr.mxu0 0.0
    %5967 = vmatpush1.msra.mxu0 0.0
    %5968 = vmatprep.subr.mxu0 0.0
    %5969 = vmatpush1.msra.mxu0 0.0
    %5970 = vmatprep.subr.mxu0 0.0
    %5971 = vmatpush1.msra.mxu0 0.0
    %5972 = vmatprep.subr.mxu0 0.0
    %5973 = vmatpush1.msra.mxu0 0.0
    %v5974 = vand.u32 %v5932, 4294901760
    %5975 = vmatprep.subr.mxu0 %v5974
    %v5976 = vand.u32 %v5931, 4294901760
    %5977 = vmatpush1.msra.mxu0 %v5976
    %v5978 = vand.u32 %v5916, 4294901760
    %5979 = vmatprep.subr.mxu0 %v5978
    %v5980 = vand.u32 %v5915, 4294901760
    %5981 = vmatpush1.msra.mxu0 %v5980
    %v5982 = vand.u32 %v5900, 4294901760
    %5983 = vmatprep.subr.mxu0 %v5982
    %v5984 = vand.u32 %v5899, 4294901760
    %5985 = vmatpush1.msra.mxu0 %v5984
    %v5986 = vand.u32 %v5884, 4294901760
    %5987 = vmatprep.subr.mxu0 %v5986
    %v5988 = vand.u32 %v5883, 4294901760
    %5989 = vmatpush1.msra.mxu0 %v5988
    %5990 = vmatprep.subr.mxu0 0.0
    %5991 = vmatpush2.msra.mxu0 0.0
    %5992 = vmatprep.subr.mxu0 0.0
    %5993 = vmatpush2.msra.mxu0 0.0
    %5994 = vmatprep.subr.mxu0 0.0
    %5995 = vmatpush2.msra.mxu0 0.0
    %5996 = vmatprep.subr.mxu0 0.0
    %5997 = vmatpush2.msra.mxu0 0.0
    %5998 = vmatprep.subr.mxu0 0.0
    %5999 = vmatpush2.msra.mxu0 0.0
    %6000 = vmatprep.subr.mxu0 0.0
    %6001 = vmatpush2.msra.mxu0 0.0
    %6002 = vmatprep.subr.mxu0 0.0
    %6003 = vmatpush2.msra.mxu0 0.0
    %6004 = vmatprep.subr.mxu0 0.0
    %6005 = vmatpush2.msra.mxu0 0.0
    %6006 = vmatprep.subr.mxu0 0.0
    %6007 = vmatpush2.msra.mxu0 0.0
    %6008 = vmatprep.subr.mxu0 0.0
    %6009 = vmatpush2.msra.mxu0 0.0
    %6010 = vmatprep.subr.mxu0 0.0
    %6011 = vmatpush2.msra.mxu0 0.0
    %6012 = vmatprep.subr.mxu0 0.0
    %6013 = vmatpush2.msra.mxu0 0.0
    %6014 = vmatprep.subr.mxu0 0.0
    %6015 = vmatpush2.msra.mxu0 0.0
    %6016 = vmatprep.subr.mxu0 0.0
    %6017 = vmatpush2.msra.mxu0 0.0
    %6018 = vmatprep.subr.mxu0 0.0
    %6019 = vmatpush2.msra.mxu0 0.0
    %6020 = vmatprep.subr.mxu0 0.0
    %6021 = vmatpush2.msra.mxu0 0.0
    %6022 = vmatprep.mubr.f32.mxu0 0.0
    %v6023 = vand.u32 %v5948, 4294901760
    %v6024 = vsub.f32 %v5948, %v6023
    %v6025 = vand.u32 %v6024, 4294901760
    %v6026 = vsub.f32 %v6024, %v6025
    %v6027 = vand.u32 %v6026, 4294901760
    %6028 = vmatmul.mubr.f32.gmra.mxu0 %v6027
    %v6029 = vpop.f32.mrf.mxu0
    %v6030 = vadd.f32 0.0, %v6029
    %v6031 = vpop.f32.mrf.mxu0
    %v6032 = vadd.f32 0.0, %v6031
    %6033 = vdwg.mxu0
    %6034 = vmatprep.subr.mxu0 0.0
    %6035 = vmatpush1.msra.mxu0 0.0
    %6036 = vmatprep.subr.mxu0 0.0
    %6037 = vmatpush1.msra.mxu0 0.0
    %6038 = vmatprep.subr.mxu0 0.0
    %6039 = vmatpush1.msra.mxu0 0.0
    %6040 = vmatprep.subr.mxu0 0.0
    %6041 = vmatpush1.msra.mxu0 0.0
    %6042 = vmatprep.subr.mxu0 0.0
    %6043 = vmatpush1.msra.mxu0 0.0
    %6044 = vmatprep.subr.mxu0 0.0
    %6045 = vmatpush1.msra.mxu0 0.0
    %6046 = vmatprep.subr.mxu0 0.0
    %6047 = vmatpush1.msra.mxu0 0.0
    %6048 = vmatprep.subr.mxu0 0.0
    %6049 = vmatpush1.msra.mxu0 0.0
    %6050 = vmatprep.subr.mxu0 0.0
    %6051 = vmatpush1.msra.mxu0 0.0
    %6052 = vmatprep.subr.mxu0 0.0
    %6053 = vmatpush1.msra.mxu0 0.0
    %6054 = vmatprep.subr.mxu0 0.0
    %6055 = vmatpush1.msra.mxu0 0.0
    %6056 = vmatprep.subr.mxu0 0.0
    %6057 = vmatpush1.msra.mxu0 0.0
    %v6058 = vand.u32 %v5932, 4294901760
    %v6059 = vsub.f32 %v5932, %v6058
    %v6060 = vand.u32 %v6059, 4294901760
    %v6061 = vsub.f32 %v6059, %v6060
    %v6062 = vand.u32 %v6061, 4294901760
    %6063 = vmatprep.subr.mxu0 %v6062
    %v6064 = vand.u32 %v5931, 4294901760
    %v6065 = vsub.f32 %v5931, %v6064
    %v6066 = vand.u32 %v6065, 4294901760
    %v6067 = vsub.f32 %v6065, %v6066
    %v6068 = vand.u32 %v6067, 4294901760
    %6069 = vmatpush1.msra.mxu0 %v6068
    %v6070 = vand.u32 %v5916, 4294901760
    %v6071 = vsub.f32 %v5916, %v6070
    %v6072 = vand.u32 %v6071, 4294901760
    %v6073 = vsub.f32 %v6071, %v6072
    %v6074 = vand.u32 %v6073, 4294901760
    %6075 = vmatprep.subr.mxu0 %v6074
    %v6076 = vand.u32 %v5915, 4294901760
    %v6077 = vsub.f32 %v5915, %v6076
    %v6078 = vand.u32 %v6077, 4294901760
    %v6079 = vsub.f32 %v6077, %v6078
    %v6080 = vand.u32 %v6079, 4294901760
    %6081 = vmatpush1.msra.mxu0 %v6080
    %v6082 = vand.u32 %v5900, 4294901760
    %v6083 = vsub.f32 %v5900, %v6082
    %v6084 = vand.u32 %v6083, 4294901760
    %v6085 = vsub.f32 %v6083, %v6084
    %v6086 = vand.u32 %v6085, 4294901760
    %6087 = vmatprep.subr.mxu0 %v6086
    %v6088 = vand.u32 %v5899, 4294901760
    %v6089 = vsub.f32 %v5899, %v6088
    %v6090 = vand.u32 %v6089, 4294901760
    %v6091 = vsub.f32 %v6089, %v6090
    %v6092 = vand.u32 %v6091, 4294901760
    %6093 = vmatpush1.msra.mxu0 %v6092
    %v6094 = vand.u32 %v5884, 4294901760
    %v6095 = vsub.f32 %v5884, %v6094
    %v6096 = vand.u32 %v6095, 4294901760
    %v6097 = vsub.f32 %v6095, %v6096
    %v6098 = vand.u32 %v6097, 4294901760
    %6099 = vmatprep.subr.mxu0 %v6098
    %v6100 = vand.u32 %v5883, 4294901760
    %v6101 = vsub.f32 %v5883, %v6100
    %v6102 = vand.u32 %v6101, 4294901760
    %v6103 = vsub.f32 %v6101, %v6102
    %v6104 = vand.u32 %v6103, 4294901760
    %6105 = vmatpush1.msra.mxu0 %v6104
    %6106 = vmatprep.subr.mxu0 0.0
    %6107 = vmatpush2.msra.mxu0 0.0
    %6108 = vmatprep.subr.mxu0 0.0
    %6109 = vmatpush2.msra.mxu0 0.0
    %6110 = vmatprep.subr.mxu0 0.0
    %6111 = vmatpush2.msra.mxu0 0.0
    %6112 = vmatprep.subr.mxu0 0.0
    %6113 = vmatpush2.msra.mxu0 0.0
    %6114 = vmatprep.subr.mxu0 0.0
    %6115 = vmatpush2.msra.mxu0 0.0
    %6116 = vmatprep.subr.mxu0 0.0
    %6117 = vmatpush2.msra.mxu0 0.0
    %6118 = vmatprep.subr.mxu0 0.0
    %6119 = vmatpush2.msra.mxu0 0.0
    %6120 = vmatprep.subr.mxu0 0.0
    %6121 = vmatpush2.msra.mxu0 0.0
    %6122 = vmatprep.subr.mxu0 0.0
    %6123 = vmatpush2.msra.mxu0 0.0
    %6124 = vmatprep.subr.mxu0 0.0
    %6125 = vmatpush2.msra.mxu0 0.0
    %6126 = vmatprep.subr.mxu0 0.0
    %6127 = vmatpush2.msra.mxu0 0.0
    %6128 = vmatprep.subr.mxu0 0.0
    %6129 = vmatpush2.msra.mxu0 0.0
    %6130 = vmatprep.subr.mxu0 0.0
    %6131 = vmatpush2.msra.mxu0 0.0
    %6132 = vmatprep.subr.mxu0 0.0
    %6133 = vmatpush2.msra.mxu0 0.0
    %6134 = vmatprep.subr.mxu0 0.0
    %6135 = vmatpush2.msra.mxu0 0.0
    %6136 = vmatprep.subr.mxu0 0.0
    %6137 = vmatpush2.msra.mxu0 0.0
    %6138 = vmatprep.mubr.f32.mxu0 0.0
    %v6139 = vand.u32 %v5948, 4294901760
    %6140 = vmatmul.mubr.f32.gmra.mxu0 %v6139
    %v6141 = vpop.f32.mrf.mxu0
    %v6142 = vadd.f32 %v6030, %v6141
    %v6143 = vpop.f32.mrf.mxu0
    %v6144 = vadd.f32 %v6032, %v6143
    %6145 = vdwg.mxu0
    %6146 = vmatprep.subr.mxu0 0.0
    %6147 = vmatpush1.msra.mxu0 0.0
    %6148 = vmatprep.subr.mxu0 0.0
    %6149 = vmatpush1.msra.mxu0 0.0
    %6150 = vmatprep.subr.mxu0 0.0
    %6151 = vmatpush1.msra.mxu0 0.0
    %6152 = vmatprep.subr.mxu0 0.0
    %6153 = vmatpush1.msra.mxu0 0.0
    %6154 = vmatprep.subr.mxu0 0.0
    %6155 = vmatpush1.msra.mxu0 0.0
    %6156 = vmatprep.subr.mxu0 0.0
    %6157 = vmatpush1.msra.mxu0 0.0
    %6158 = vmatprep.subr.mxu0 0.0
    %6159 = vmatpush1.msra.mxu0 0.0
    %6160 = vmatprep.subr.mxu0 0.0
    %6161 = vmatpush1.msra.mxu0 0.0
    %6162 = vmatprep.subr.mxu0 0.0
    %6163 = vmatpush1.msra.mxu0 0.0
    %6164 = vmatprep.subr.mxu0 0.0
    %6165 = vmatpush1.msra.mxu0 0.0
    %6166 = vmatprep.subr.mxu0 0.0
    %6167 = vmatpush1.msra.mxu0 0.0
    %6168 = vmatprep.subr.mxu0 0.0
    %6169 = vmatpush1.msra.mxu0 0.0
    %v6170 = vand.u32 %v5932, 4294901760
    %v6171 = vsub.f32 %v5932, %v6170
    %6172 = vmatprep.subr.mxu0 %v6171
    %v6173 = vand.u32 %v5931, 4294901760
    %v6174 = vsub.f32 %v5931, %v6173
    %6175 = vmatpush1.msra.mxu0 %v6174
    %v6176 = vand.u32 %v5916, 4294901760
    %v6177 = vsub.f32 %v5916, %v6176
    %6178 = vmatprep.subr.mxu0 %v6177
    %v6179 = vand.u32 %v5915, 4294901760
    %v6180 = vsub.f32 %v5915, %v6179
    %6181 = vmatpush1.msra.mxu0 %v6180
    %v6182 = vand.u32 %v5900, 4294901760
    %v6183 = vsub.f32 %v5900, %v6182
    %6184 = vmatprep.subr.mxu0 %v6183
    %v6185 = vand.u32 %v5899, 4294901760
    %v6186 = vsub.f32 %v5899, %v6185
    %6187 = vmatpush1.msra.mxu0 %v6186
    %v6188 = vand.u32 %v5884, 4294901760
    %v6189 = vsub.f32 %v5884, %v6188
    %6190 = vmatprep.subr.mxu0 %v6189
    %v6191 = vand.u32 %v5883, 4294901760
    %v6192 = vsub.f32 %v5883, %v6191
    %6193 = vmatpush1.msra.mxu0 %v6192
    %6194 = vmatprep.subr.mxu0 0.0
    %6195 = vmatpush2.msra.mxu0 0.0
    %6196 = vmatprep.subr.mxu0 0.0
    %6197 = vmatpush2.msra.mxu0 0.0
    %6198 = vmatprep.subr.mxu0 0.0
    %6199 = vmatpush2.msra.mxu0 0.0
    %6200 = vmatprep.subr.mxu0 0.0
    %6201 = vmatpush2.msra.mxu0 0.0
    %6202 = vmatprep.subr.mxu0 0.0
    %6203 = vmatpush2.msra.mxu0 0.0
    %6204 = vmatprep.subr.mxu0 0.0
    %6205 = vmatpush2.msra.mxu0 0.0
    %6206 = vmatprep.subr.mxu0 0.0
    %6207 = vmatpush2.msra.mxu0 0.0
    %6208 = vmatprep.subr.mxu0 0.0
    %6209 = vmatpush2.msra.mxu0 0.0
    %6210 = vmatprep.subr.mxu0 0.0
    %6211 = vmatpush2.msra.mxu0 0.0
    %6212 = vmatprep.subr.mxu0 0.0
    %6213 = vmatpush2.msra.mxu0 0.0
    %6214 = vmatprep.subr.mxu0 0.0
    %6215 = vmatpush2.msra.mxu0 0.0
    %6216 = vmatprep.subr.mxu0 0.0
    %6217 = vmatpush2.msra.mxu0 0.0
    %6218 = vmatprep.subr.mxu0 0.0
    %6219 = vmatpush2.msra.mxu0 0.0
    %6220 = vmatprep.subr.mxu0 0.0
    %6221 = vmatpush2.msra.mxu0 0.0
    %6222 = vmatprep.subr.mxu0 0.0
    %6223 = vmatpush2.msra.mxu0 0.0
    %6224 = vmatprep.subr.mxu0 0.0
    %6225 = vmatpush2.msra.mxu0 0.0
    %6226 = vmatprep.mubr.f32.mxu0 0.0
    %v6227 = vand.u32 %v5948, 4294901760
    %v6228 = vsub.f32 %v5948, %v6227
    %6229 = vmatmul.mubr.f32.gmra.mxu0 %v6228
    %v6230 = vpop.f32.mrf.mxu0
    %v6231 = vadd.f32 %v6142, %v6230
    %v6232 = vpop.f32.mrf.mxu0
    %v6233 = vadd.f32 %v6144, %v6232
    %6234 = vdwg.mxu0
    %6235 = vmatprep.subr.mxu0 0.0
    %6236 = vmatpush1.msra.mxu0 0.0
    %6237 = vmatprep.subr.mxu0 0.0
    %6238 = vmatpush1.msra.mxu0 0.0
    %6239 = vmatprep.subr.mxu0 0.0
    %6240 = vmatpush1.msra.mxu0 0.0
    %6241 = vmatprep.subr.mxu0 0.0
    %6242 = vmatpush1.msra.mxu0 0.0
    %6243 = vmatprep.subr.mxu0 0.0
    %6244 = vmatpush1.msra.mxu0 0.0
    %6245 = vmatprep.subr.mxu0 0.0
    %6246 = vmatpush1.msra.mxu0 0.0
    %6247 = vmatprep.subr.mxu0 0.0
    %6248 = vmatpush1.msra.mxu0 0.0
    %6249 = vmatprep.subr.mxu0 0.0
    %6250 = vmatpush1.msra.mxu0 0.0
    %6251 = vmatprep.subr.mxu0 0.0
    %6252 = vmatpush1.msra.mxu0 0.0
    %6253 = vmatprep.subr.mxu0 0.0
    %6254 = vmatpush1.msra.mxu0 0.0
    %6255 = vmatprep.subr.mxu0 0.0
    %6256 = vmatpush1.msra.mxu0 0.0
    %6257 = vmatprep.subr.mxu0 0.0
    %6258 = vmatpush1.msra.mxu0 0.0
    %v6259 = vand.u32 %v5932, 4294901760
    %6260 = vmatprep.subr.mxu0 %v6259
    %v6261 = vand.u32 %v5931, 4294901760
    %6262 = vmatpush1.msra.mxu0 %v6261
    %v6263 = vand.u32 %v5916, 4294901760
    %6264 = vmatprep.subr.mxu0 %v6263
    %v6265 = vand.u32 %v5915, 4294901760
    %6266 = vmatpush1.msra.mxu0 %v6265
    %v6267 = vand.u32 %v5900, 4294901760
    %6268 = vmatprep.subr.mxu0 %v6267
    %v6269 = vand.u32 %v5899, 4294901760
    %6270 = vmatpush1.msra.mxu0 %v6269
    %v6271 = vand.u32 %v5884, 4294901760
    %6272 = vmatprep.subr.mxu0 %v6271
    %v6273 = vand.u32 %v5883, 4294901760
    %6274 = vmatpush1.msra.mxu0 %v6273
    %6275 = vmatprep.subr.mxu0 0.0
    %6276 = vmatpush2.msra.mxu0 0.0
    %6277 = vmatprep.subr.mxu0 0.0
    %6278 = vmatpush2.msra.mxu0 0.0
    %6279 = vmatprep.subr.mxu0 0.0
    %6280 = vmatpush2.msra.mxu0 0.0
    %6281 = vmatprep.subr.mxu0 0.0
    %6282 = vmatpush2.msra.mxu0 0.0
    %6283 = vmatprep.subr.mxu0 0.0
    %6284 = vmatpush2.msra.mxu0 0.0
    %6285 = vmatprep.subr.mxu0 0.0
    %6286 = vmatpush2.msra.mxu0 0.0
    %6287 = vmatprep.subr.mxu0 0.0
    %6288 = vmatpush2.msra.mxu0 0.0
    %6289 = vmatprep.subr.mxu0 0.0
    %6290 = vmatpush2.msra.mxu0 0.0
    %6291 = vmatprep.subr.mxu0 0.0
    %6292 = vmatpush2.msra.mxu0 0.0
    %6293 = vmatprep.subr.mxu0 0.0
    %6294 = vmatpush2.msra.mxu0 0.0
    %6295 = vmatprep.subr.mxu0 0.0
    %6296 = vmatpush2.msra.mxu0 0.0
    %6297 = vmatprep.subr.mxu0 0.0
    %6298 = vmatpush2.msra.mxu0 0.0
    %6299 = vmatprep.subr.mxu0 0.0
    %6300 = vmatpush2.msra.mxu0 0.0
    %6301 = vmatprep.subr.mxu0 0.0
    %6302 = vmatpush2.msra.mxu0 0.0
    %6303 = vmatprep.subr.mxu0 0.0
    %6304 = vmatpush2.msra.mxu0 0.0
    %6305 = vmatprep.subr.mxu0 0.0
    %6306 = vmatpush2.msra.mxu0 0.0
    %6307 = vmatprep.mubr.f32.mxu0 0.0
    %v6308 = vand.u32 %v5948, 4294901760
    %v6309 = vsub.f32 %v5948, %v6308
    %v6310 = vand.u32 %v6309, 4294901760
    %6311 = vmatmul.mubr.f32.gmra.mxu0 %v6310
    %v6312 = vpop.f32.mrf.mxu0
    %v6313 = vadd.f32 %v6231, %v6312
    %v6314 = vpop.f32.mrf.mxu0
    %v6315 = vadd.f32 %v6233, %v6314
    %6316 = vdwg.mxu0
    %6317 = vmatprep.subr.mxu0 0.0
    %6318 = vmatpush1.msra.mxu0 0.0
    %6319 = vmatprep.subr.mxu0 0.0
    %6320 = vmatpush1.msra.mxu0 0.0
    %6321 = vmatprep.subr.mxu0 0.0
    %6322 = vmatpush1.msra.mxu0 0.0
    %6323 = vmatprep.subr.mxu0 0.0
    %6324 = vmatpush1.msra.mxu0 0.0
    %6325 = vmatprep.subr.mxu0 0.0
    %6326 = vmatpush1.msra.mxu0 0.0
    %6327 = vmatprep.subr.mxu0 0.0
    %6328 = vmatpush1.msra.mxu0 0.0
    %6329 = vmatprep.subr.mxu0 0.0
    %6330 = vmatpush1.msra.mxu0 0.0
    %6331 = vmatprep.subr.mxu0 0.0
    %6332 = vmatpush1.msra.mxu0 0.0
    %6333 = vmatprep.subr.mxu0 0.0
    %6334 = vmatpush1.msra.mxu0 0.0
    %6335 = vmatprep.subr.mxu0 0.0
    %6336 = vmatpush1.msra.mxu0 0.0
    %6337 = vmatprep.subr.mxu0 0.0
    %6338 = vmatpush1.msra.mxu0 0.0
    %6339 = vmatprep.subr.mxu0 0.0
    %6340 = vmatpush1.msra.mxu0 0.0
    %v6341 = vand.u32 %v5932, 4294901760
    %v6342 = vsub.f32 %v5932, %v6341
    %v6343 = vand.u32 %v6342, 4294901760
    %6344 = vmatprep.subr.mxu0 %v6343
    %v6345 = vand.u32 %v5931, 4294901760
    %v6346 = vsub.f32 %v5931, %v6345
    %v6347 = vand.u32 %v6346, 4294901760
    %6348 = vmatpush1.msra.mxu0 %v6347
    %v6349 = vand.u32 %v5916, 4294901760
    %v6350 = vsub.f32 %v5916, %v6349
    %v6351 = vand.u32 %v6350, 4294901760
    %6352 = vmatprep.subr.mxu0 %v6351
    %v6353 = vand.u32 %v5915, 4294901760
    %v6354 = vsub.f32 %v5915, %v6353
    %v6355 = vand.u32 %v6354, 4294901760
    %6356 = vmatpush1.msra.mxu0 %v6355
    %v6357 = vand.u32 %v5900, 4294901760
    %v6358 = vsub.f32 %v5900, %v6357
    %v6359 = vand.u32 %v6358, 4294901760
    %6360 = vmatprep.subr.mxu0 %v6359
    %v6361 = vand.u32 %v5899, 4294901760
    %v6362 = vsub.f32 %v5899, %v6361
    %v6363 = vand.u32 %v6362, 4294901760
    %6364 = vmatpush1.msra.mxu0 %v6363
    %v6365 = vand.u32 %v5884, 4294901760
    %v6366 = vsub.f32 %v5884, %v6365
    %v6367 = vand.u32 %v6366, 4294901760
    %6368 = vmatprep.subr.mxu0 %v6367
    %v6369 = vand.u32 %v5883, 4294901760
    %v6370 = vsub.f32 %v5883, %v6369
    %v6371 = vand.u32 %v6370, 4294901760
    %6372 = vmatpush1.msra.mxu0 %v6371
    %6373 = vmatprep.subr.mxu0 0.0
    %6374 = vmatpush2.msra.mxu0 0.0
    %6375 = vmatprep.subr.mxu0 0.0
    %6376 = vmatpush2.msra.mxu0 0.0
    %6377 = vmatprep.subr.mxu0 0.0
    %6378 = vmatpush2.msra.mxu0 0.0
    %6379 = vmatprep.subr.mxu0 0.0
    %6380 = vmatpush2.msra.mxu0 0.0
    %6381 = vmatprep.subr.mxu0 0.0
    %6382 = vmatpush2.msra.mxu0 0.0
    %6383 = vmatprep.subr.mxu0 0.0
    %6384 = vmatpush2.msra.mxu0 0.0
    %6385 = vmatprep.subr.mxu0 0.0
    %6386 = vmatpush2.msra.mxu0 0.0
    %6387 = vmatprep.subr.mxu0 0.0
    %6388 = vmatpush2.msra.mxu0 0.0
    %6389 = vmatprep.subr.mxu0 0.0
    %6390 = vmatpush2.msra.mxu0 0.0
    %6391 = vmatprep.subr.mxu0 0.0
    %6392 = vmatpush2.msra.mxu0 0.0
    %6393 = vmatprep.subr.mxu0 0.0
    %6394 = vmatpush2.msra.mxu0 0.0
    %6395 = vmatprep.subr.mxu0 0.0
    %6396 = vmatpush2.msra.mxu0 0.0
    %6397 = vmatprep.subr.mxu0 0.0
    %6398 = vmatpush2.msra.mxu0 0.0
    %6399 = vmatprep.subr.mxu0 0.0
    %6400 = vmatpush2.msra.mxu0 0.0
    %6401 = vmatprep.subr.mxu0 0.0
    %6402 = vmatpush2.msra.mxu0 0.0
    %6403 = vmatprep.subr.mxu0 0.0
    %6404 = vmatpush2.msra.mxu0 0.0
    %6405 = vmatprep.mubr.f32.mxu0 0.0
    %v6406 = vand.u32 %v5948, 4294901760
    %6407 = vmatmul.mubr.f32.gmra.mxu0 %v6406
    %v6408 = vpop.f32.mrf.mxu0
    %v6409 = vadd.f32 %v6313, %v6408
    %v6410 = vpop.f32.mrf.mxu0
    %v6411 = vadd.f32 %v6315, %v6410
    %6412 = vdwg.mxu0
    %6413 = vmatprep.subr.mxu0 0.0
    %6414 = vmatpush1.msra.mxu0 0.0
    %6415 = vmatprep.subr.mxu0 0.0
    %6416 = vmatpush1.msra.mxu0 0.0
    %6417 = vmatprep.subr.mxu0 0.0
    %6418 = vmatpush1.msra.mxu0 0.0
    %6419 = vmatprep.subr.mxu0 0.0
    %6420 = vmatpush1.msra.mxu0 0.0
    %6421 = vmatprep.subr.mxu0 0.0
    %6422 = vmatpush1.msra.mxu0 0.0
    %6423 = vmatprep.subr.mxu0 0.0
    %6424 = vmatpush1.msra.mxu0 0.0
    %6425 = vmatprep.subr.mxu0 0.0
    %6426 = vmatpush1.msra.mxu0 0.0
    %6427 = vmatprep.subr.mxu0 0.0
    %6428 = vmatpush1.msra.mxu0 0.0
    %6429 = vmatprep.subr.mxu0 0.0
    %6430 = vmatpush1.msra.mxu0 0.0
    %6431 = vmatprep.subr.mxu0 0.0
    %6432 = vmatpush1.msra.mxu0 0.0
    %6433 = vmatprep.subr.mxu0 0.0
    %6434 = vmatpush1.msra.mxu0 0.0
    %6435 = vmatprep.subr.mxu0 0.0
    %6436 = vmatpush1.msra.mxu0 0.0
    %v6437 = vand.u32 %v5932, 4294901760
    %6438 = vmatprep.subr.mxu0 %v6437
    %v6439 = vand.u32 %v5931, 4294901760
    %6440 = vmatpush1.msra.mxu0 %v6439
    %v6441 = vand.u32 %v5916, 4294901760
    %6442 = vmatprep.subr.mxu0 %v6441
    %v6443 = vand.u32 %v5915, 4294901760
    %6444 = vmatpush1.msra.mxu0 %v6443
    %v6445 = vand.u32 %v5900, 4294901760
    %6446 = vmatprep.subr.mxu0 %v6445
    %v6447 = vand.u32 %v5899, 4294901760
    %6448 = vmatpush1.msra.mxu0 %v6447
    %v6449 = vand.u32 %v5884, 4294901760
    %6450 = vmatprep.subr.mxu0 %v6449
    %v6451 = vand.u32 %v5883, 4294901760
    %6452 = vmatpush1.msra.mxu0 %v6451
    %6453 = vmatprep.subr.mxu0 0.0
    %6454 = vmatpush2.msra.mxu0 0.0
    %6455 = vmatprep.subr.mxu0 0.0
    %6456 = vmatpush2.msra.mxu0 0.0
    %6457 = vmatprep.subr.mxu0 0.0
    %6458 = vmatpush2.msra.mxu0 0.0
    %6459 = vmatprep.subr.mxu0 0.0
    %6460 = vmatpush2.msra.mxu0 0.0
    %6461 = vmatprep.subr.mxu0 0.0
    %6462 = vmatpush2.msra.mxu0 0.0
    %6463 = vmatprep.subr.mxu0 0.0
    %6464 = vmatpush2.msra.mxu0 0.0
    %6465 = vmatprep.subr.mxu0 0.0
    %6466 = vmatpush2.msra.mxu0 0.0
    %6467 = vmatprep.subr.mxu0 0.0
    %6468 = vmatpush2.msra.mxu0 0.0
    %6469 = vmatprep.subr.mxu0 0.0
    %6470 = vmatpush2.msra.mxu0 0.0
    %6471 = vmatprep.subr.mxu0 0.0
    %6472 = vmatpush2.msra.mxu0 0.0
    %6473 = vmatprep.subr.mxu0 0.0
    %6474 = vmatpush2.msra.mxu0 0.0
    %6475 = vmatprep.subr.mxu0 0.0
    %6476 = vmatpush2.msra.mxu0 0.0
    %6477 = vmatprep.subr.mxu0 0.0
    %6478 = vmatpush2.msra.mxu0 0.0
    %6479 = vmatprep.subr.mxu0 0.0
    %6480 = vmatpush2.msra.mxu0 0.0
    %6481 = vmatprep.subr.mxu0 0.0
    %6482 = vmatpush2.msra.mxu0 0.0
    %6483 = vmatprep.subr.mxu0 0.0
    %6484 = vmatpush2.msra.mxu0 0.0
    %6485 = vmatprep.mubr.f32.mxu0 0.0
    %v6486 = vand.u32 %v5948, 4294901760
    %6487 = vmatmul.mubr.f32.gmra.mxu0 %v6486
    %v6488 = vpop.f32.mrf.mxu0
    %v6489 = vadd.f32 %v6409, %v6488
    %v6490 = vpop.f32.mrf.mxu0
    %v6491 = vadd.f32 %v6411, %v6490
    %6492 = vdwg.mxu0
    %6493 = vmatprep.subr.mxu0 0.0
    %6494 = vmatpush1.msra.mxu0 0.0
    %6495 = vmatprep.subr.mxu0 0.0
    %6496 = vmatpush1.msra.mxu0 0.0
    %6497 = vmatprep.subr.mxu0 0.0
    %6498 = vmatpush1.msra.mxu0 0.0
    %6499 = vmatprep.subr.mxu0 0.0
    %6500 = vmatpush1.msra.mxu0 0.0
    %6501 = vmatprep.subr.mxu0 0.0
    %6502 = vmatpush1.msra.mxu0 0.0
    %6503 = vmatprep.subr.mxu0 0.0
    %6504 = vmatpush1.msra.mxu0 0.0
    %6505 = vmatprep.subr.mxu0 0.0
    %6506 = vmatpush1.msra.mxu0 0.0
    %6507 = vmatprep.subr.mxu0 0.0
    %6508 = vmatpush1.msra.mxu0 0.0
    %6509 = vmatprep.subr.mxu0 0.0
    %6510 = vmatpush1.msra.mxu0 0.0
    %6511 = vmatprep.subr.mxu0 0.0
    %6512 = vmatpush1.msra.mxu0 0.0
    %6513 = vmatprep.subr.mxu0 0.0
    %6514 = vmatpush1.msra.mxu0 0.0
    %6515 = vmatprep.subr.mxu0 0.0
    %6516 = vmatpush1.msra.mxu0 0.0
    %v6517 = vand.u32 %v5934, 4294901760
    %6518 = vmatprep.subr.mxu0 %v6517
    %v6519 = vand.u32 %v5933, 4294901760
    %6520 = vmatpush1.msra.mxu0 %v6519
    %v6521 = vand.u32 %v5918, 4294901760
    %6522 = vmatprep.subr.mxu0 %v6521
    %v6523 = vand.u32 %v5917, 4294901760
    %6524 = vmatpush1.msra.mxu0 %v6523
    %v6525 = vand.u32 %v5902, 4294901760
    %6526 = vmatprep.subr.mxu0 %v6525
    %v6527 = vand.u32 %v5901, 4294901760
    %6528 = vmatpush1.msra.mxu0 %v6527
    %v6529 = vand.u32 %v5886, 4294901760
    %6530 = vmatprep.subr.mxu0 %v6529
    %v6531 = vand.u32 %v5885, 4294901760
    %6532 = vmatpush1.msra.mxu0 %v6531
    %6533 = vmatprep.subr.mxu0 0.0
    %6534 = vmatpush2.msra.mxu0 0.0
    %6535 = vmatprep.subr.mxu0 0.0
    %6536 = vmatpush2.msra.mxu0 0.0
    %6537 = vmatprep.subr.mxu0 0.0
    %6538 = vmatpush2.msra.mxu0 0.0
    %6539 = vmatprep.subr.mxu0 0.0
    %6540 = vmatpush2.msra.mxu0 0.0
    %6541 = vmatprep.subr.mxu0 0.0
    %6542 = vmatpush2.msra.mxu0 0.0
    %6543 = vmatprep.subr.mxu0 0.0
    %6544 = vmatpush2.msra.mxu0 0.0
    %6545 = vmatprep.subr.mxu0 0.0
    %6546 = vmatpush2.msra.mxu0 0.0
    %6547 = vmatprep.subr.mxu0 0.0
    %6548 = vmatpush2.msra.mxu0 0.0
    %6549 = vmatprep.subr.mxu0 0.0
    %6550 = vmatpush2.msra.mxu0 0.0
    %6551 = vmatprep.subr.mxu0 0.0
    %6552 = vmatpush2.msra.mxu0 0.0
    %6553 = vmatprep.subr.mxu0 0.0
    %6554 = vmatpush2.msra.mxu0 0.0
    %6555 = vmatprep.subr.mxu0 0.0
    %6556 = vmatpush2.msra.mxu0 0.0
    %6557 = vmatprep.subr.mxu0 0.0
    %6558 = vmatpush2.msra.mxu0 0.0
    %6559 = vmatprep.subr.mxu0 0.0
    %6560 = vmatpush2.msra.mxu0 0.0
    %6561 = vmatprep.subr.mxu0 0.0
    %6562 = vmatpush2.msra.mxu0 0.0
    %6563 = vmatprep.subr.mxu0 0.0
    %6564 = vmatpush2.msra.mxu0 0.0
    %6565 = vmatprep.mubr.f32.mxu0 0.0
    %v6566 = vand.u32 %v5948, 4294901760
    %v6567 = vsub.f32 %v5948, %v6566
    %v6568 = vand.u32 %v6567, 4294901760
    %v6569 = vsub.f32 %v6567, %v6568
    %v6570 = vand.u32 %v6569, 4294901760
    %6571 = vmatmul.mubr.f32.gmra.mxu0 %v6570
    %v6572 = vpop.f32.mrf.mxu0
    %v6573 = vadd.f32 0.0, %v6572
    %v6574 = vpop.f32.mrf.mxu0
    %v6575 = vadd.f32 0.0, %v6574
    %6576 = vdwg.mxu0
    %6577 = vmatprep.subr.mxu0 0.0
    %6578 = vmatpush1.msra.mxu0 0.0
    %6579 = vmatprep.subr.mxu0 0.0
    %6580 = vmatpush1.msra.mxu0 0.0
    %6581 = vmatprep.subr.mxu0 0.0
    %6582 = vmatpush1.msra.mxu0 0.0
    %6583 = vmatprep.subr.mxu0 0.0
    %6584 = vmatpush1.msra.mxu0 0.0
    %6585 = vmatprep.subr.mxu0 0.0
    %6586 = vmatpush1.msra.mxu0 0.0
    %6587 = vmatprep.subr.mxu0 0.0
    %6588 = vmatpush1.msra.mxu0 0.0
    %6589 = vmatprep.subr.mxu0 0.0
    %6590 = vmatpush1.msra.mxu0 0.0
    %6591 = vmatprep.subr.mxu0 0.0
    %6592 = vmatpush1.msra.mxu0 0.0
    %6593 = vmatprep.subr.mxu0 0.0
    %6594 = vmatpush1.msra.mxu0 0.0
    %6595 = vmatprep.subr.mxu0 0.0
    %6596 = vmatpush1.msra.mxu0 0.0
    %6597 = vmatprep.subr.mxu0 0.0
    %6598 = vmatpush1.msra.mxu0 0.0
    %6599 = vmatprep.subr.mxu0 0.0
    %6600 = vmatpush1.msra.mxu0 0.0
    %v6601 = vand.u32 %v5934, 4294901760
    %v6602 = vsub.f32 %v5934, %v6601
    %v6603 = vand.u32 %v6602, 4294901760
    %v6604 = vsub.f32 %v6602, %v6603
    %v6605 = vand.u32 %v6604, 4294901760
    %6606 = vmatprep.subr.mxu0 %v6605
    %v6607 = vand.u32 %v5933, 4294901760
    %v6608 = vsub.f32 %v5933, %v6607
    %v6609 = vand.u32 %v6608, 4294901760
    %v6610 = vsub.f32 %v6608, %v6609
    %v6611 = vand.u32 %v6610, 4294901760
    %6612 = vmatpush1.msra.mxu0 %v6611
    %v6613 = vand.u32 %v5918, 4294901760
    %v6614 = vsub.f32 %v5918, %v6613
    %v6615 = vand.u32 %v6614, 4294901760
    %v6616 = vsub.f32 %v6614, %v6615
    %v6617 = vand.u32 %v6616, 4294901760
    %6618 = vmatprep.subr.mxu0 %v6617
    %v6619 = vand.u32 %v5917, 4294901760
    %v6620 = vsub.f32 %v5917, %v6619
    %v6621 = vand.u32 %v6620, 4294901760
    %v6622 = vsub.f32 %v6620, %v6621
    %v6623 = vand.u32 %v6622, 4294901760
    %6624 = vmatpush1.msra.mxu0 %v6623
    %v6625 = vand.u32 %v5902, 4294901760
    %v6626 = vsub.f32 %v5902, %v6625
    %v6627 = vand.u32 %v6626, 4294901760
    %v6628 = vsub.f32 %v6626, %v6627
    %v6629 = vand.u32 %v6628, 4294901760
    %6630 = vmatprep.subr.mxu0 %v6629
    %v6631 = vand.u32 %v5901, 4294901760
    %v6632 = vsub.f32 %v5901, %v6631
    %v6633 = vand.u32 %v6632, 4294901760
    %v6634 = vsub.f32 %v6632, %v6633
    %v6635 = vand.u32 %v6634, 4294901760
    %6636 = vmatpush1.msra.mxu0 %v6635
    %v6637 = vand.u32 %v5886, 4294901760
    %v6638 = vsub.f32 %v5886, %v6637
    %v6639 = vand.u32 %v6638, 4294901760
    %v6640 = vsub.f32 %v6638, %v6639
    %v6641 = vand.u32 %v6640, 4294901760
    %6642 = vmatprep.subr.mxu0 %v6641
    %v6643 = vand.u32 %v5885, 4294901760
    %v6644 = vsub.f32 %v5885, %v6643
    %v6645 = vand.u32 %v6644, 4294901760
    %v6646 = vsub.f32 %v6644, %v6645
    %v6647 = vand.u32 %v6646, 4294901760
    %6648 = vmatpush1.msra.mxu0 %v6647
    %6649 = vmatprep.subr.mxu0 0.0
    %6650 = vmatpush2.msra.mxu0 0.0
    %6651 = vmatprep.subr.mxu0 0.0
    %6652 = vmatpush2.msra.mxu0 0.0
    %6653 = vmatprep.subr.mxu0 0.0
    %6654 = vmatpush2.msra.mxu0 0.0
    %6655 = vmatprep.subr.mxu0 0.0
    %6656 = vmatpush2.msra.mxu0 0.0
    %6657 = vmatprep.subr.mxu0 0.0
    %6658 = vmatpush2.msra.mxu0 0.0
    %6659 = vmatprep.subr.mxu0 0.0
    %6660 = vmatpush2.msra.mxu0 0.0
    %6661 = vmatprep.subr.mxu0 0.0
    %6662 = vmatpush2.msra.mxu0 0.0
    %6663 = vmatprep.subr.mxu0 0.0
    %6664 = vmatpush2.msra.mxu0 0.0
    %6665 = vmatprep.subr.mxu0 0.0
    %6666 = vmatpush2.msra.mxu0 0.0
    %6667 = vmatprep.subr.mxu0 0.0
    %6668 = vmatpush2.msra.mxu0 0.0
    %6669 = vmatprep.subr.mxu0 0.0
    %6670 = vmatpush2.msra.mxu0 0.0
    %6671 = vmatprep.subr.mxu0 0.0
    %6672 = vmatpush2.msra.mxu0 0.0
    %6673 = vmatprep.subr.mxu0 0.0
    %6674 = vmatpush2.msra.mxu0 0.0
    %6675 = vmatprep.subr.mxu0 0.0
    %6676 = vmatpush2.msra.mxu0 0.0
    %6677 = vmatprep.subr.mxu0 0.0
    %6678 = vmatpush2.msra.mxu0 0.0
    %6679 = vmatprep.subr.mxu0 0.0
    %6680 = vmatpush2.msra.mxu0 0.0
    %6681 = vmatprep.mubr.f32.mxu0 0.0
    %v6682 = vand.u32 %v5948, 4294901760
    %6683 = vmatmul.mubr.f32.gmra.mxu0 %v6682
    %v6684 = vpop.f32.mrf.mxu0
    %v6685 = vadd.f32 %v6573, %v6684
    %v6686 = vpop.f32.mrf.mxu0
    %v6687 = vadd.f32 %v6575, %v6686
    %6688 = vdwg.mxu0
    %6689 = vmatprep.subr.mxu0 0.0
    %6690 = vmatpush1.msra.mxu0 0.0
    %6691 = vmatprep.subr.mxu0 0.0
    %6692 = vmatpush1.msra.mxu0 0.0
    %6693 = vmatprep.subr.mxu0 0.0
    %6694 = vmatpush1.msra.mxu0 0.0
    %6695 = vmatprep.subr.mxu0 0.0
    %6696 = vmatpush1.msra.mxu0 0.0
    %6697 = vmatprep.subr.mxu0 0.0
    %6698 = vmatpush1.msra.mxu0 0.0
    %6699 = vmatprep.subr.mxu0 0.0
    %6700 = vmatpush1.msra.mxu0 0.0
    %6701 = vmatprep.subr.mxu0 0.0
    %6702 = vmatpush1.msra.mxu0 0.0
    %6703 = vmatprep.subr.mxu0 0.0
    %6704 = vmatpush1.msra.mxu0 0.0
    %6705 = vmatprep.subr.mxu0 0.0
    %6706 = vmatpush1.msra.mxu0 0.0
    %6707 = vmatprep.subr.mxu0 0.0
    %6708 = vmatpush1.msra.mxu0 0.0
    %6709 = vmatprep.subr.mxu0 0.0
    %6710 = vmatpush1.msra.mxu0 0.0
    %6711 = vmatprep.subr.mxu0 0.0
    %6712 = vmatpush1.msra.mxu0 0.0
    %v6713 = vand.u32 %v5934, 4294901760
    %v6714 = vsub.f32 %v5934, %v6713
    %6715 = vmatprep.subr.mxu0 %v6714
    %v6716 = vand.u32 %v5933, 4294901760
    %v6717 = vsub.f32 %v5933, %v6716
    %6718 = vmatpush1.msra.mxu0 %v6717
    %v6719 = vand.u32 %v5918, 4294901760
    %v6720 = vsub.f32 %v5918, %v6719
    %6721 = vmatprep.subr.mxu0 %v6720
    %v6722 = vand.u32 %v5917, 4294901760
    %v6723 = vsub.f32 %v5917, %v6722
    %6724 = vmatpush1.msra.mxu0 %v6723
    %v6725 = vand.u32 %v5902, 4294901760
    %v6726 = vsub.f32 %v5902, %v6725
    %6727 = vmatprep.subr.mxu0 %v6726
    %v6728 = vand.u32 %v5901, 4294901760
    %v6729 = vsub.f32 %v5901, %v6728
    %6730 = vmatpush1.msra.mxu0 %v6729
    %v6731 = vand.u32 %v5886, 4294901760
    %v6732 = vsub.f32 %v5886, %v6731
    %6733 = vmatprep.subr.mxu0 %v6732
    %v6734 = vand.u32 %v5885, 4294901760
    %v6735 = vsub.f32 %v5885, %v6734
    %6736 = vmatpush1.msra.mxu0 %v6735
    %6737 = vmatprep.subr.mxu0 0.0
    %6738 = vmatpush2.msra.mxu0 0.0
    %6739 = vmatprep.subr.mxu0 0.0
    %6740 = vmatpush2.msra.mxu0 0.0
    %6741 = vmatprep.subr.mxu0 0.0
    %6742 = vmatpush2.msra.mxu0 0.0
    %6743 = vmatprep.subr.mxu0 0.0
    %6744 = vmatpush2.msra.mxu0 0.0
    %6745 = vmatprep.subr.mxu0 0.0
    %6746 = vmatpush2.msra.mxu0 0.0
    %6747 = vmatprep.subr.mxu0 0.0
    %6748 = vmatpush2.msra.mxu0 0.0
    %6749 = vmatprep.subr.mxu0 0.0
    %6750 = vmatpush2.msra.mxu0 0.0
    %6751 = vmatprep.subr.mxu0 0.0
    %6752 = vmatpush2.msra.mxu0 0.0
    %6753 = vmatprep.subr.mxu0 0.0
    %6754 = vmatpush2.msra.mxu0 0.0
    %6755 = vmatprep.subr.mxu0 0.0
    %6756 = vmatpush2.msra.mxu0 0.0
    %6757 = vmatprep.subr.mxu0 0.0
    %6758 = vmatpush2.msra.mxu0 0.0
    %6759 = vmatprep.subr.mxu0 0.0
    %6760 = vmatpush2.msra.mxu0 0.0
    %6761 = vmatprep.subr.mxu0 0.0
    %6762 = vmatpush2.msra.mxu0 0.0
    %6763 = vmatprep.subr.mxu0 0.0
    %6764 = vmatpush2.msra.mxu0 0.0
    %6765 = vmatprep.subr.mxu0 0.0
    %6766 = vmatpush2.msra.mxu0 0.0
    %6767 = vmatprep.subr.mxu0 0.0
    %6768 = vmatpush2.msra.mxu0 0.0
    %6769 = vmatprep.mubr.f32.mxu0 0.0
    %v6770 = vand.u32 %v5948, 4294901760
    %v6771 = vsub.f32 %v5948, %v6770
    %6772 = vmatmul.mubr.f32.gmra.mxu0 %v6771
    %v6773 = vpop.f32.mrf.mxu0
    %v6774 = vadd.f32 %v6685, %v6773
    %v6775 = vpop.f32.mrf.mxu0
    %v6776 = vadd.f32 %v6687, %v6775
    %6777 = vdwg.mxu0
    %6778 = vmatprep.subr.mxu0 0.0
    %6779 = vmatpush1.msra.mxu0 0.0
    %6780 = vmatprep.subr.mxu0 0.0
    %6781 = vmatpush1.msra.mxu0 0.0
    %6782 = vmatprep.subr.mxu0 0.0
    %6783 = vmatpush1.msra.mxu0 0.0
    %6784 = vmatprep.subr.mxu0 0.0
    %6785 = vmatpush1.msra.mxu0 0.0
    %6786 = vmatprep.subr.mxu0 0.0
    %6787 = vmatpush1.msra.mxu0 0.0
    %6788 = vmatprep.subr.mxu0 0.0
    %6789 = vmatpush1.msra.mxu0 0.0
    %6790 = vmatprep.subr.mxu0 0.0
    %6791 = vmatpush1.msra.mxu0 0.0
    %6792 = vmatprep.subr.mxu0 0.0
    %6793 = vmatpush1.msra.mxu0 0.0
    %6794 = vmatprep.subr.mxu0 0.0
    %6795 = vmatpush1.msra.mxu0 0.0
    %6796 = vmatprep.subr.mxu0 0.0
    %6797 = vmatpush1.msra.mxu0 0.0
    %6798 = vmatprep.subr.mxu0 0.0
    %6799 = vmatpush1.msra.mxu0 0.0
    %6800 = vmatprep.subr.mxu0 0.0
    %6801 = vmatpush1.msra.mxu0 0.0
    %v6802 = vand.u32 %v5934, 4294901760
    %6803 = vmatprep.subr.mxu0 %v6802
    %v6804 = vand.u32 %v5933, 4294901760
    %6805 = vmatpush1.msra.mxu0 %v6804
    %v6806 = vand.u32 %v5918, 4294901760
    %6807 = vmatprep.subr.mxu0 %v6806
    %v6808 = vand.u32 %v5917, 4294901760
    %6809 = vmatpush1.msra.mxu0 %v6808
    %v6810 = vand.u32 %v5902, 4294901760
    %6811 = vmatprep.subr.mxu0 %v6810
    %v6812 = vand.u32 %v5901, 4294901760
    %6813 = vmatpush1.msra.mxu0 %v6812
    %v6814 = vand.u32 %v5886, 4294901760
    %6815 = vmatprep.subr.mxu0 %v6814
    %v6816 = vand.u32 %v5885, 4294901760
    %6817 = vmatpush1.msra.mxu0 %v6816
    %6818 = vmatprep.subr.mxu0 0.0
    %6819 = vmatpush2.msra.mxu0 0.0
    %6820 = vmatprep.subr.mxu0 0.0
    %6821 = vmatpush2.msra.mxu0 0.0
    %6822 = vmatprep.subr.mxu0 0.0
    %6823 = vmatpush2.msra.mxu0 0.0
    %6824 = vmatprep.subr.mxu0 0.0
    %6825 = vmatpush2.msra.mxu0 0.0
    %6826 = vmatprep.subr.mxu0 0.0
    %6827 = vmatpush2.msra.mxu0 0.0
    %6828 = vmatprep.subr.mxu0 0.0
    %6829 = vmatpush2.msra.mxu0 0.0
    %6830 = vmatprep.subr.mxu0 0.0
    %6831 = vmatpush2.msra.mxu0 0.0
    %6832 = vmatprep.subr.mxu0 0.0
    %6833 = vmatpush2.msra.mxu0 0.0
    %6834 = vmatprep.subr.mxu0 0.0
    %6835 = vmatpush2.msra.mxu0 0.0
    %6836 = vmatprep.subr.mxu0 0.0
    %6837 = vmatpush2.msra.mxu0 0.0
    %6838 = vmatprep.subr.mxu0 0.0
    %6839 = vmatpush2.msra.mxu0 0.0
    %6840 = vmatprep.subr.mxu0 0.0
    %6841 = vmatpush2.msra.mxu0 0.0
    %6842 = vmatprep.subr.mxu0 0.0
    %6843 = vmatpush2.msra.mxu0 0.0
    %6844 = vmatprep.subr.mxu0 0.0
    %6845 = vmatpush2.msra.mxu0 0.0
    %6846 = vmatprep.subr.mxu0 0.0
    %6847 = vmatpush2.msra.mxu0 0.0
    %6848 = vmatprep.subr.mxu0 0.0
    %6849 = vmatpush2.msra.mxu0 0.0
    %6850 = vmatprep.mubr.f32.mxu0 0.0
    %v6851 = vand.u32 %v5948, 4294901760
    %v6852 = vsub.f32 %v5948, %v6851
    %v6853 = vand.u32 %v6852, 4294901760
    %6854 = vmatmul.mubr.f32.gmra.mxu0 %v6853
    %v6855 = vpop.f32.mrf.mxu0
    %v6856 = vadd.f32 %v6774, %v6855
    %v6857 = vpop.f32.mrf.mxu0
    %v6858 = vadd.f32 %v6776, %v6857
    %6859 = vdwg.mxu0
    %6860 = vmatprep.subr.mxu0 0.0
    %6861 = vmatpush1.msra.mxu0 0.0
    %6862 = vmatprep.subr.mxu0 0.0
    %6863 = vmatpush1.msra.mxu0 0.0
    %6864 = vmatprep.subr.mxu0 0.0
    %6865 = vmatpush1.msra.mxu0 0.0
    %6866 = vmatprep.subr.mxu0 0.0
    %6867 = vmatpush1.msra.mxu0 0.0
    %6868 = vmatprep.subr.mxu0 0.0
    %6869 = vmatpush1.msra.mxu0 0.0
    %6870 = vmatprep.subr.mxu0 0.0
    %6871 = vmatpush1.msra.mxu0 0.0
    %6872 = vmatprep.subr.mxu0 0.0
    %6873 = vmatpush1.msra.mxu0 0.0
    %6874 = vmatprep.subr.mxu0 0.0
    %6875 = vmatpush1.msra.mxu0 0.0
    %6876 = vmatprep.subr.mxu0 0.0
    %6877 = vmatpush1.msra.mxu0 0.0
    %6878 = vmatprep.subr.mxu0 0.0
    %6879 = vmatpush1.msra.mxu0 0.0
    %6880 = vmatprep.subr.mxu0 0.0
    %6881 = vmatpush1.msra.mxu0 0.0
    %6882 = vmatprep.subr.mxu0 0.0
    %6883 = vmatpush1.msra.mxu0 0.0
    %v6884 = vand.u32 %v5934, 4294901760
    %v6885 = vsub.f32 %v5934, %v6884
    %v6886 = vand.u32 %v6885, 4294901760
    %6887 = vmatprep.subr.mxu0 %v6886
    %v6888 = vand.u32 %v5933, 4294901760
    %v6889 = vsub.f32 %v5933, %v6888
    %v6890 = vand.u32 %v6889, 4294901760
    %6891 = vmatpush1.msra.mxu0 %v6890
    %v6892 = vand.u32 %v5918, 4294901760
    %v6893 = vsub.f32 %v5918, %v6892
    %v6894 = vand.u32 %v6893, 4294901760
    %6895 = vmatprep.subr.mxu0 %v6894
    %v6896 = vand.u32 %v5917, 4294901760
    %v6897 = vsub.f32 %v5917, %v6896
    %v6898 = vand.u32 %v6897, 4294901760
    %6899 = vmatpush1.msra.mxu0 %v6898
    %v6900 = vand.u32 %v5902, 4294901760
    %v6901 = vsub.f32 %v5902, %v6900
    %v6902 = vand.u32 %v6901, 4294901760
    %6903 = vmatprep.subr.mxu0 %v6902
    %v6904 = vand.u32 %v5901, 4294901760
    %v6905 = vsub.f32 %v5901, %v6904
    %v6906 = vand.u32 %v6905, 4294901760
    %6907 = vmatpush1.msra.mxu0 %v6906
    %v6908 = vand.u32 %v5886, 4294901760
    %v6909 = vsub.f32 %v5886, %v6908
    %v6910 = vand.u32 %v6909, 4294901760
    %6911 = vmatprep.subr.mxu0 %v6910
    %v6912 = vand.u32 %v5885, 4294901760
    %v6913 = vsub.f32 %v5885, %v6912
    %v6914 = vand.u32 %v6913, 4294901760
    %6915 = vmatpush1.msra.mxu0 %v6914
    %6916 = vmatprep.subr.mxu0 0.0
    %6917 = vmatpush2.msra.mxu0 0.0
    %6918 = vmatprep.subr.mxu0 0.0
    %6919 = vmatpush2.msra.mxu0 0.0
    %6920 = vmatprep.subr.mxu0 0.0
    %6921 = vmatpush2.msra.mxu0 0.0
    %6922 = vmatprep.subr.mxu0 0.0
    %6923 = vmatpush2.msra.mxu0 0.0
    %6924 = vmatprep.subr.mxu0 0.0
    %6925 = vmatpush2.msra.mxu0 0.0
    %6926 = vmatprep.subr.mxu0 0.0
    %6927 = vmatpush2.msra.mxu0 0.0
    %6928 = vmatprep.subr.mxu0 0.0
    %6929 = vmatpush2.msra.mxu0 0.0
    %6930 = vmatprep.subr.mxu0 0.0
    %6931 = vmatpush2.msra.mxu0 0.0
    %6932 = vmatprep.subr.mxu0 0.0
    %6933 = vmatpush2.msra.mxu0 0.0
    %6934 = vmatprep.subr.mxu0 0.0
    %6935 = vmatpush2.msra.mxu0 0.0
    %6936 = vmatprep.subr.mxu0 0.0
    %6937 = vmatpush2.msra.mxu0 0.0
    %6938 = vmatprep.subr.mxu0 0.0
    %6939 = vmatpush2.msra.mxu0 0.0
    %6940 = vmatprep.subr.mxu0 0.0
    %6941 = vmatpush2.msra.mxu0 0.0
    %6942 = vmatprep.subr.mxu0 0.0
    %6943 = vmatpush2.msra.mxu0 0.0
    %6944 = vmatprep.subr.mxu0 0.0
    %6945 = vmatpush2.msra.mxu0 0.0
    %6946 = vmatprep.subr.mxu0 0.0
    %6947 = vmatpush2.msra.mxu0 0.0
    %6948 = vmatprep.mubr.f32.mxu0 0.0
    %v6949 = vand.u32 %v5948, 4294901760
    %6950 = vmatmul.mubr.f32.gmra.mxu0 %v6949
    %v6951 = vpop.f32.mrf.mxu0
    %v6952 = vadd.f32 %v6856, %v6951
    %v6953 = vpop.f32.mrf.mxu0
    %v6954 = vadd.f32 %v6858, %v6953
    %6955 = vdwg.mxu0
    %6956 = vmatprep.subr.mxu0 0.0
    %6957 = vmatpush1.msra.mxu0 0.0
    %6958 = vmatprep.subr.mxu0 0.0
    %6959 = vmatpush1.msra.mxu0 0.0
    %6960 = vmatprep.subr.mxu0 0.0
    %6961 = vmatpush1.msra.mxu0 0.0
    %6962 = vmatprep.subr.mxu0 0.0
    %6963 = vmatpush1.msra.mxu0 0.0
    %6964 = vmatprep.subr.mxu0 0.0
    %6965 = vmatpush1.msra.mxu0 0.0
    %6966 = vmatprep.subr.mxu0 0.0
    %6967 = vmatpush1.msra.mxu0 0.0
    %6968 = vmatprep.subr.mxu0 0.0
    %6969 = vmatpush1.msra.mxu0 0.0
    %6970 = vmatprep.subr.mxu0 0.0
    %6971 = vmatpush1.msra.mxu0 0.0
    %6972 = vmatprep.subr.mxu0 0.0
    %6973 = vmatpush1.msra.mxu0 0.0
    %6974 = vmatprep.subr.mxu0 0.0
    %6975 = vmatpush1.msra.mxu0 0.0
    %6976 = vmatprep.subr.mxu0 0.0
    %6977 = vmatpush1.msra.mxu0 0.0
    %6978 = vmatprep.subr.mxu0 0.0
    %6979 = vmatpush1.msra.mxu0 0.0
    %v6980 = vand.u32 %v5934, 4294901760
    %6981 = vmatprep.subr.mxu0 %v6980
    %v6982 = vand.u32 %v5933, 4294901760
    %6983 = vmatpush1.msra.mxu0 %v6982
    %v6984 = vand.u32 %v5918, 4294901760
    %6985 = vmatprep.subr.mxu0 %v6984
    %v6986 = vand.u32 %v5917, 4294901760
    %6987 = vmatpush1.msra.mxu0 %v6986
    %v6988 = vand.u32 %v5902, 4294901760
    %6989 = vmatprep.subr.mxu0 %v6988
    %v6990 = vand.u32 %v5901, 4294901760
    %6991 = vmatpush1.msra.mxu0 %v6990
    %v6992 = vand.u32 %v5886, 4294901760
    %6993 = vmatprep.subr.mxu0 %v6992
    %v6994 = vand.u32 %v5885, 4294901760
    %6995 = vmatpush1.msra.mxu0 %v6994
    %6996 = vmatprep.subr.mxu0 0.0
    %6997 = vmatpush2.msra.mxu0 0.0
    %6998 = vmatprep.subr.mxu0 0.0
    %6999 = vmatpush2.msra.mxu0 0.0
    %7000 = vmatprep.subr.mxu0 0.0
    %7001 = vmatpush2.msra.mxu0 0.0
    %7002 = vmatprep.subr.mxu0 0.0
    %7003 = vmatpush2.msra.mxu0 0.0
    %7004 = vmatprep.subr.mxu0 0.0
    %7005 = vmatpush2.msra.mxu0 0.0
    %7006 = vmatprep.subr.mxu0 0.0
    %7007 = vmatpush2.msra.mxu0 0.0
    %7008 = vmatprep.subr.mxu0 0.0
    %7009 = vmatpush2.msra.mxu0 0.0
    %7010 = vmatprep.subr.mxu0 0.0
    %7011 = vmatpush2.msra.mxu0 0.0
    %7012 = vmatprep.subr.mxu0 0.0
    %7013 = vmatpush2.msra.mxu0 0.0
    %7014 = vmatprep.subr.mxu0 0.0
    %7015 = vmatpush2.msra.mxu0 0.0
    %7016 = vmatprep.subr.mxu0 0.0
    %7017 = vmatpush2.msra.mxu0 0.0
    %7018 = vmatprep.subr.mxu0 0.0
    %7019 = vmatpush2.msra.mxu0 0.0
    %7020 = vmatprep.subr.mxu0 0.0
    %7021 = vmatpush2.msra.mxu0 0.0
    %7022 = vmatprep.subr.mxu0 0.0
    %7023 = vmatpush2.msra.mxu0 0.0
    %7024 = vmatprep.subr.mxu0 0.0
    %7025 = vmatpush2.msra.mxu0 0.0
    %7026 = vmatprep.subr.mxu0 0.0
    %7027 = vmatpush2.msra.mxu0 0.0
    %7028 = vmatprep.mubr.f32.mxu0 0.0
    %v7029 = vand.u32 %v5948, 4294901760
    %7030 = vmatmul.mubr.f32.gmra.mxu0 %v7029
    %v7031 = vpop.f32.mrf.mxu0
    %v7032 = vadd.f32 %v6952, %v7031
    %v7033 = vpop.f32.mrf.mxu0
    %v7034 = vadd.f32 %v6954, %v7033
    %7035 = vdwg.mxu0
    %7036 = vmatprep.subr.mxu0 0.0
    %7037 = vmatpush1.msra.mxu0 0.0
    %7038 = vmatprep.subr.mxu0 0.0
    %7039 = vmatpush1.msra.mxu0 0.0
    %7040 = vmatprep.subr.mxu0 0.0
    %7041 = vmatpush1.msra.mxu0 0.0
    %7042 = vmatprep.subr.mxu0 0.0
    %7043 = vmatpush1.msra.mxu0 0.0
    %7044 = vmatprep.subr.mxu0 0.0
    %7045 = vmatpush1.msra.mxu0 0.0
    %7046 = vmatprep.subr.mxu0 0.0
    %7047 = vmatpush1.msra.mxu0 0.0
    %7048 = vmatprep.subr.mxu0 0.0
    %7049 = vmatpush1.msra.mxu0 0.0
    %7050 = vmatprep.subr.mxu0 0.0
    %7051 = vmatpush1.msra.mxu0 0.0
    %7052 = vmatprep.subr.mxu0 0.0
    %7053 = vmatpush1.msra.mxu0 0.0
    %7054 = vmatprep.subr.mxu0 0.0
    %7055 = vmatpush1.msra.mxu0 0.0
    %7056 = vmatprep.subr.mxu0 0.0
    %7057 = vmatpush1.msra.mxu0 0.0
    %7058 = vmatprep.subr.mxu0 0.0
    %7059 = vmatpush1.msra.mxu0 0.0
    %v7060 = vand.u32 %v5936, 4294901760
    %7061 = vmatprep.subr.mxu0 %v7060
    %v7062 = vand.u32 %v5935, 4294901760
    %7063 = vmatpush1.msra.mxu0 %v7062
    %v7064 = vand.u32 %v5920, 4294901760
    %7065 = vmatprep.subr.mxu0 %v7064
    %v7066 = vand.u32 %v5919, 4294901760
    %7067 = vmatpush1.msra.mxu0 %v7066
    %v7068 = vand.u32 %v5904, 4294901760
    %7069 = vmatprep.subr.mxu0 %v7068
    %v7070 = vand.u32 %v5903, 4294901760
    %7071 = vmatpush1.msra.mxu0 %v7070
    %v7072 = vand.u32 %v5888, 4294901760
    %7073 = vmatprep.subr.mxu0 %v7072
    %v7074 = vand.u32 %v5887, 4294901760
    %7075 = vmatpush1.msra.mxu0 %v7074
    %7076 = vmatprep.subr.mxu0 0.0
    %7077 = vmatpush2.msra.mxu0 0.0
    %7078 = vmatprep.subr.mxu0 0.0
    %7079 = vmatpush2.msra.mxu0 0.0
    %7080 = vmatprep.subr.mxu0 0.0
    %7081 = vmatpush2.msra.mxu0 0.0
    %7082 = vmatprep.subr.mxu0 0.0
    %7083 = vmatpush2.msra.mxu0 0.0
    %7084 = vmatprep.subr.mxu0 0.0
    %7085 = vmatpush2.msra.mxu0 0.0
    %7086 = vmatprep.subr.mxu0 0.0
    %7087 = vmatpush2.msra.mxu0 0.0
    %7088 = vmatprep.subr.mxu0 0.0
    %7089 = vmatpush2.msra.mxu0 0.0
    %7090 = vmatprep.subr.mxu0 0.0
    %7091 = vmatpush2.msra.mxu0 0.0
    %7092 = vmatprep.subr.mxu0 0.0
    %7093 = vmatpush2.msra.mxu0 0.0
    %7094 = vmatprep.subr.mxu0 0.0
    %7095 = vmatpush2.msra.mxu0 0.0
    %7096 = vmatprep.subr.mxu0 0.0
    %7097 = vmatpush2.msra.mxu0 0.0
    %7098 = vmatprep.subr.mxu0 0.0
    %7099 = vmatpush2.msra.mxu0 0.0
    %7100 = vmatprep.subr.mxu0 0.0
    %7101 = vmatpush2.msra.mxu0 0.0
    %7102 = vmatprep.subr.mxu0 0.0
    %7103 = vmatpush2.msra.mxu0 0.0
    %7104 = vmatprep.subr.mxu0 0.0
    %7105 = vmatpush2.msra.mxu0 0.0
    %7106 = vmatprep.subr.mxu0 0.0
    %7107 = vmatpush2.msra.mxu0 0.0
    %7108 = vmatprep.mubr.f32.mxu0 0.0
    %v7109 = vand.u32 %v5948, 4294901760
    %v7110 = vsub.f32 %v5948, %v7109
    %v7111 = vand.u32 %v7110, 4294901760
    %v7112 = vsub.f32 %v7110, %v7111
    %v7113 = vand.u32 %v7112, 4294901760
    %7114 = vmatmul.mubr.f32.gmra.mxu0 %v7113
    %v7115 = vpop.f32.mrf.mxu0
    %v7116 = vadd.f32 0.0, %v7115
    %v7117 = vpop.f32.mrf.mxu0
    %v7118 = vadd.f32 0.0, %v7117
    %7119 = vdwg.mxu0
    %7120 = vmatprep.subr.mxu0 0.0
    %7121 = vmatpush1.msra.mxu0 0.0
    %7122 = vmatprep.subr.mxu0 0.0
    %7123 = vmatpush1.msra.mxu0 0.0
    %7124 = vmatprep.subr.mxu0 0.0
    %7125 = vmatpush1.msra.mxu0 0.0
    %7126 = vmatprep.subr.mxu0 0.0
    %7127 = vmatpush1.msra.mxu0 0.0
    %7128 = vmatprep.subr.mxu0 0.0
    %7129 = vmatpush1.msra.mxu0 0.0
    %7130 = vmatprep.subr.mxu0 0.0
    %7131 = vmatpush1.msra.mxu0 0.0
    %7132 = vmatprep.subr.mxu0 0.0
    %7133 = vmatpush1.msra.mxu0 0.0
    %7134 = vmatprep.subr.mxu0 0.0
    %7135 = vmatpush1.msra.mxu0 0.0
    %7136 = vmatprep.subr.mxu0 0.0
    %7137 = vmatpush1.msra.mxu0 0.0
    %7138 = vmatprep.subr.mxu0 0.0
    %7139 = vmatpush1.msra.mxu0 0.0
    %7140 = vmatprep.subr.mxu0 0.0
    %7141 = vmatpush1.msra.mxu0 0.0
    %7142 = vmatprep.subr.mxu0 0.0
    %7143 = vmatpush1.msra.mxu0 0.0
    %v7144 = vand.u32 %v5936, 4294901760
    %v7145 = vsub.f32 %v5936, %v7144
    %v7146 = vand.u32 %v7145, 4294901760
    %v7147 = vsub.f32 %v7145, %v7146
    %v7148 = vand.u32 %v7147, 4294901760
    %7149 = vmatprep.subr.mxu0 %v7148
    %v7150 = vand.u32 %v5935, 4294901760
    %v7151 = vsub.f32 %v5935, %v7150
    %v7152 = vand.u32 %v7151, 4294901760
    %v7153 = vsub.f32 %v7151, %v7152
    %v7154 = vand.u32 %v7153, 4294901760
    %7155 = vmatpush1.msra.mxu0 %v7154
    %v7156 = vand.u32 %v5920, 4294901760
    %v7157 = vsub.f32 %v5920, %v7156
    %v7158 = vand.u32 %v7157, 4294901760
    %v7159 = vsub.f32 %v7157, %v7158
    %v7160 = vand.u32 %v7159, 4294901760
    %7161 = vmatprep.subr.mxu0 %v7160
    %v7162 = vand.u32 %v5919, 4294901760
    %v7163 = vsub.f32 %v5919, %v7162
    %v7164 = vand.u32 %v7163, 4294901760
    %v7165 = vsub.f32 %v7163, %v7164
    %v7166 = vand.u32 %v7165, 4294901760
    %7167 = vmatpush1.msra.mxu0 %v7166
    %v7168 = vand.u32 %v5904, 4294901760
    %v7169 = vsub.f32 %v5904, %v7168
    %v7170 = vand.u32 %v7169, 4294901760
    %v7171 = vsub.f32 %v7169, %v7170
    %v7172 = vand.u32 %v7171, 4294901760
    %7173 = vmatprep.subr.mxu0 %v7172
    %v7174 = vand.u32 %v5903, 4294901760
    %v7175 = vsub.f32 %v5903, %v7174
    %v7176 = vand.u32 %v7175, 4294901760
    %v7177 = vsub.f32 %v7175, %v7176
    %v7178 = vand.u32 %v7177, 4294901760
    %7179 = vmatpush1.msra.mxu0 %v7178
    %v7180 = vand.u32 %v5888, 4294901760
    %v7181 = vsub.f32 %v5888, %v7180
    %v7182 = vand.u32 %v7181, 4294901760
    %v7183 = vsub.f32 %v7181, %v7182
    %v7184 = vand.u32 %v7183, 4294901760
    %7185 = vmatprep.subr.mxu0 %v7184
    %v7186 = vand.u32 %v5887, 4294901760
    %v7187 = vsub.f32 %v5887, %v7186
    %v7188 = vand.u32 %v7187, 4294901760
    %v7189 = vsub.f32 %v7187, %v7188
    %v7190 = vand.u32 %v7189, 4294901760
    %7191 = vmatpush1.msra.mxu0 %v7190
    %7192 = vmatprep.subr.mxu0 0.0
    %7193 = vmatpush2.msra.mxu0 0.0
    %7194 = vmatprep.subr.mxu0 0.0
    %7195 = vmatpush2.msra.mxu0 0.0
    %7196 = vmatprep.subr.mxu0 0.0
    %7197 = vmatpush2.msra.mxu0 0.0
    %7198 = vmatprep.subr.mxu0 0.0
    %7199 = vmatpush2.msra.mxu0 0.0
    %7200 = vmatprep.subr.mxu0 0.0
    %7201 = vmatpush2.msra.mxu0 0.0
    %7202 = vmatprep.subr.mxu0 0.0
    %7203 = vmatpush2.msra.mxu0 0.0
    %7204 = vmatprep.subr.mxu0 0.0
    %7205 = vmatpush2.msra.mxu0 0.0
    %7206 = vmatprep.subr.mxu0 0.0
    %7207 = vmatpush2.msra.mxu0 0.0
    %7208 = vmatprep.subr.mxu0 0.0
    %7209 = vmatpush2.msra.mxu0 0.0
    %7210 = vmatprep.subr.mxu0 0.0
    %7211 = vmatpush2.msra.mxu0 0.0
    %7212 = vmatprep.subr.mxu0 0.0
    %7213 = vmatpush2.msra.mxu0 0.0
    %7214 = vmatprep.subr.mxu0 0.0
    %7215 = vmatpush2.msra.mxu0 0.0
    %7216 = vmatprep.subr.mxu0 0.0
    %7217 = vmatpush2.msra.mxu0 0.0
    %7218 = vmatprep.subr.mxu0 0.0
    %7219 = vmatpush2.msra.mxu0 0.0
    %7220 = vmatprep.subr.mxu0 0.0
    %7221 = vmatpush2.msra.mxu0 0.0
    %7222 = vmatprep.subr.mxu0 0.0
    %7223 = vmatpush2.msra.mxu0 0.0
    %7224 = vmatprep.mubr.f32.mxu0 0.0
    %v7225 = vand.u32 %v5948, 4294901760
    %7226 = vmatmul.mubr.f32.gmra.mxu0 %v7225
    %v7227 = vpop.f32.mrf.mxu0
    %v7228 = vadd.f32 %v7116, %v7227
    %v7229 = vpop.f32.mrf.mxu0
    %v7230 = vadd.f32 %v7118, %v7229
    %7231 = vdwg.mxu0
    %7232 = vmatprep.subr.mxu0 0.0
    %7233 = vmatpush1.msra.mxu0 0.0
    %7234 = vmatprep.subr.mxu0 0.0
    %7235 = vmatpush1.msra.mxu0 0.0
    %7236 = vmatprep.subr.mxu0 0.0
    %7237 = vmatpush1.msra.mxu0 0.0
    %7238 = vmatprep.subr.mxu0 0.0
    %7239 = vmatpush1.msra.mxu0 0.0
    %7240 = vmatprep.subr.mxu0 0.0
    %7241 = vmatpush1.msra.mxu0 0.0
    %7242 = vmatprep.subr.mxu0 0.0
    %7243 = vmatpush1.msra.mxu0 0.0
    %7244 = vmatprep.subr.mxu0 0.0
    %7245 = vmatpush1.msra.mxu0 0.0
    %7246 = vmatprep.subr.mxu0 0.0
    %7247 = vmatpush1.msra.mxu0 0.0
    %7248 = vmatprep.subr.mxu0 0.0
    %7249 = vmatpush1.msra.mxu0 0.0
    %7250 = vmatprep.subr.mxu0 0.0
    %7251 = vmatpush1.msra.mxu0 0.0
    %7252 = vmatprep.subr.mxu0 0.0
    %7253 = vmatpush1.msra.mxu0 0.0
    %7254 = vmatprep.subr.mxu0 0.0
    %7255 = vmatpush1.msra.mxu0 0.0
    %v7256 = vand.u32 %v5936, 4294901760
    %v7257 = vsub.f32 %v5936, %v7256
    %7258 = vmatprep.subr.mxu0 %v7257
    %v7259 = vand.u32 %v5935, 4294901760
    %v7260 = vsub.f32 %v5935, %v7259
    %7261 = vmatpush1.msra.mxu0 %v7260
    %v7262 = vand.u32 %v5920, 4294901760
    %v7263 = vsub.f32 %v5920, %v7262
    %7264 = vmatprep.subr.mxu0 %v7263
    %v7265 = vand.u32 %v5919, 4294901760
    %v7266 = vsub.f32 %v5919, %v7265
    %7267 = vmatpush1.msra.mxu0 %v7266
    %v7268 = vand.u32 %v5904, 4294901760
    %v7269 = vsub.f32 %v5904, %v7268
    %7270 = vmatprep.subr.mxu0 %v7269
    %v7271 = vand.u32 %v5903, 4294901760
    %v7272 = vsub.f32 %v5903, %v7271
    %7273 = vmatpush1.msra.mxu0 %v7272
    %v7274 = vand.u32 %v5888, 4294901760
    %v7275 = vsub.f32 %v5888, %v7274
    %7276 = vmatprep.subr.mxu0 %v7275
    %v7277 = vand.u32 %v5887, 4294901760
    %v7278 = vsub.f32 %v5887, %v7277
    %7279 = vmatpush1.msra.mxu0 %v7278
    %7280 = vmatprep.subr.mxu0 0.0
    %7281 = vmatpush2.msra.mxu0 0.0
    %7282 = vmatprep.subr.mxu0 0.0
    %7283 = vmatpush2.msra.mxu0 0.0
    %7284 = vmatprep.subr.mxu0 0.0
    %7285 = vmatpush2.msra.mxu0 0.0
    %7286 = vmatprep.subr.mxu0 0.0
    %7287 = vmatpush2.msra.mxu0 0.0
    %7288 = vmatprep.subr.mxu0 0.0
    %7289 = vmatpush2.msra.mxu0 0.0
    %7290 = vmatprep.subr.mxu0 0.0
    %7291 = vmatpush2.msra.mxu0 0.0
    %7292 = vmatprep.subr.mxu0 0.0
    %7293 = vmatpush2.msra.mxu0 0.0
    %7294 = vmatprep.subr.mxu0 0.0
    %7295 = vmatpush2.msra.mxu0 0.0
    %7296 = vmatprep.subr.mxu0 0.0
    %7297 = vmatpush2.msra.mxu0 0.0
    %7298 = vmatprep.subr.mxu0 0.0
    %7299 = vmatpush2.msra.mxu0 0.0
    %7300 = vmatprep.subr.mxu0 0.0
    %7301 = vmatpush2.msra.mxu0 0.0
    %7302 = vmatprep.subr.mxu0 0.0
    %7303 = vmatpush2.msra.mxu0 0.0
    %7304 = vmatprep.subr.mxu0 0.0
    %7305 = vmatpush2.msra.mxu0 0.0
    %7306 = vmatprep.subr.mxu0 0.0
    %7307 = vmatpush2.msra.mxu0 0.0
    %7308 = vmatprep.subr.mxu0 0.0
    %7309 = vmatpush2.msra.mxu0 0.0
    %7310 = vmatprep.subr.mxu0 0.0
    %7311 = vmatpush2.msra.mxu0 0.0
    %7312 = vmatprep.mubr.f32.mxu0 0.0
    %v7313 = vand.u32 %v5948, 4294901760
    %v7314 = vsub.f32 %v5948, %v7313
    %7315 = vmatmul.mubr.f32.gmra.mxu0 %v7314
    %v7316 = vpop.f32.mrf.mxu0
    %v7317 = vadd.f32 %v7228, %v7316
    %v7318 = vpop.f32.mrf.mxu0
    %v7319 = vadd.f32 %v7230, %v7318
    %7320 = vdwg.mxu0
    %7321 = vmatprep.subr.mxu0 0.0
    %7322 = vmatpush1.msra.mxu0 0.0
    %7323 = vmatprep.subr.mxu0 0.0
    %7324 = vmatpush1.msra.mxu0 0.0
    %7325 = vmatprep.subr.mxu0 0.0
    %7326 = vmatpush1.msra.mxu0 0.0
    %7327 = vmatprep.subr.mxu0 0.0
    %7328 = vmatpush1.msra.mxu0 0.0
    %7329 = vmatprep.subr.mxu0 0.0
    %7330 = vmatpush1.msra.mxu0 0.0
    %7331 = vmatprep.subr.mxu0 0.0
    %7332 = vmatpush1.msra.mxu0 0.0
    %7333 = vmatprep.subr.mxu0 0.0
    %7334 = vmatpush1.msra.mxu0 0.0
    %7335 = vmatprep.subr.mxu0 0.0
    %7336 = vmatpush1.msra.mxu0 0.0
    %7337 = vmatprep.subr.mxu0 0.0
    %7338 = vmatpush1.msra.mxu0 0.0
    %7339 = vmatprep.subr.mxu0 0.0
    %7340 = vmatpush1.msra.mxu0 0.0
    %7341 = vmatprep.subr.mxu0 0.0
    %7342 = vmatpush1.msra.mxu0 0.0
    %7343 = vmatprep.subr.mxu0 0.0
    %7344 = vmatpush1.msra.mxu0 0.0
    %v7345 = vand.u32 %v5936, 4294901760
    %7346 = vmatprep.subr.mxu0 %v7345
    %v7347 = vand.u32 %v5935, 4294901760
    %7348 = vmatpush1.msra.mxu0 %v7347
    %v7349 = vand.u32 %v5920, 4294901760
    %7350 = vmatprep.subr.mxu0 %v7349
    %v7351 = vand.u32 %v5919, 4294901760
    %7352 = vmatpush1.msra.mxu0 %v7351
    %v7353 = vand.u32 %v5904, 4294901760
    %7354 = vmatprep.subr.mxu0 %v7353
    %v7355 = vand.u32 %v5903, 4294901760
    %7356 = vmatpush1.msra.mxu0 %v7355
    %v7357 = vand.u32 %v5888, 4294901760
    %7358 = vmatprep.subr.mxu0 %v7357
    %v7359 = vand.u32 %v5887, 4294901760
    %7360 = vmatpush1.msra.mxu0 %v7359
    %7361 = vmatprep.subr.mxu0 0.0
    %7362 = vmatpush2.msra.mxu0 0.0
    %7363 = vmatprep.subr.mxu0 0.0
    %7364 = vmatpush2.msra.mxu0 0.0
    %7365 = vmatprep.subr.mxu0 0.0
    %7366 = vmatpush2.msra.mxu0 0.0
    %7367 = vmatprep.subr.mxu0 0.0
    %7368 = vmatpush2.msra.mxu0 0.0
    %7369 = vmatprep.subr.mxu0 0.0
    %7370 = vmatpush2.msra.mxu0 0.0
    %7371 = vmatprep.subr.mxu0 0.0
    %7372 = vmatpush2.msra.mxu0 0.0
    %7373 = vmatprep.subr.mxu0 0.0
    %7374 = vmatpush2.msra.mxu0 0.0
    %7375 = vmatprep.subr.mxu0 0.0
    %7376 = vmatpush2.msra.mxu0 0.0
    %7377 = vmatprep.subr.mxu0 0.0
    %7378 = vmatpush2.msra.mxu0 0.0
    %7379 = vmatprep.subr.mxu0 0.0
    %7380 = vmatpush2.msra.mxu0 0.0
    %7381 = vmatprep.subr.mxu0 0.0
    %7382 = vmatpush2.msra.mxu0 0.0
    %7383 = vmatprep.subr.mxu0 0.0
    %7384 = vmatpush2.msra.mxu0 0.0
    %7385 = vmatprep.subr.mxu0 0.0
    %7386 = vmatpush2.msra.mxu0 0.0
    %7387 = vmatprep.subr.mxu0 0.0
    %7388 = vmatpush2.msra.mxu0 0.0
    %7389 = vmatprep.subr.mxu0 0.0
    %7390 = vmatpush2.msra.mxu0 0.0
    %7391 = vmatprep.subr.mxu0 0.0
    %7392 = vmatpush2.msra.mxu0 0.0
    %7393 = vmatprep.mubr.f32.mxu0 0.0
    %v7394 = vand.u32 %v5948, 4294901760
    %v7395 = vsub.f32 %v5948, %v7394
    %v7396 = vand.u32 %v7395, 4294901760
    %7397 = vmatmul.mubr.f32.gmra.mxu0 %v7396
    %v7398 = vpop.f32.mrf.mxu0
    %v7399 = vadd.f32 %v7317, %v7398
    %v7400 = vpop.f32.mrf.mxu0
    %v7401 = vadd.f32 %v7319, %v7400
    %7402 = vdwg.mxu0
    %7403 = vmatprep.subr.mxu0 0.0
    %7404 = vmatpush1.msra.mxu0 0.0
    %7405 = vmatprep.subr.mxu0 0.0
    %7406 = vmatpush1.msra.mxu0 0.0
    %7407 = vmatprep.subr.mxu0 0.0
    %7408 = vmatpush1.msra.mxu0 0.0
    %7409 = vmatprep.subr.mxu0 0.0
    %7410 = vmatpush1.msra.mxu0 0.0
    %7411 = vmatprep.subr.mxu0 0.0
    %7412 = vmatpush1.msra.mxu0 0.0
    %7413 = vmatprep.subr.mxu0 0.0
    %7414 = vmatpush1.msra.mxu0 0.0
    %7415 = vmatprep.subr.mxu0 0.0
    %7416 = vmatpush1.msra.mxu0 0.0
    %7417 = vmatprep.subr.mxu0 0.0
    %7418 = vmatpush1.msra.mxu0 0.0
    %7419 = vmatprep.subr.mxu0 0.0
    %7420 = vmatpush1.msra.mxu0 0.0
    %7421 = vmatprep.subr.mxu0 0.0
    %7422 = vmatpush1.msra.mxu0 0.0
    %7423 = vmatprep.subr.mxu0 0.0
    %7424 = vmatpush1.msra.mxu0 0.0
    %7425 = vmatprep.subr.mxu0 0.0
    %7426 = vmatpush1.msra.mxu0 0.0
    %v7427 = vand.u32 %v5936, 4294901760
    %v7428 = vsub.f32 %v5936, %v7427
    %v7429 = vand.u32 %v7428, 4294901760
    %7430 = vmatprep.subr.mxu0 %v7429
    %v7431 = vand.u32 %v5935, 4294901760
    %v7432 = vsub.f32 %v5935, %v7431
    %v7433 = vand.u32 %v7432, 4294901760
    %7434 = vmatpush1.msra.mxu0 %v7433
    %v7435 = vand.u32 %v5920, 4294901760
    %v7436 = vsub.f32 %v5920, %v7435
    %v7437 = vand.u32 %v7436, 4294901760
    %7438 = vmatprep.subr.mxu0 %v7437
    %v7439 = vand.u32 %v5919, 4294901760
    %v7440 = vsub.f32 %v5919, %v7439
    %v7441 = vand.u32 %v7440, 4294901760
    %7442 = vmatpush1.msra.mxu0 %v7441
    %v7443 = vand.u32 %v5904, 4294901760
    %v7444 = vsub.f32 %v5904, %v7443
    %v7445 = vand.u32 %v7444, 4294901760
    %7446 = vmatprep.subr.mxu0 %v7445
    %v7447 = vand.u32 %v5903, 4294901760
    %v7448 = vsub.f32 %v5903, %v7447
    %v7449 = vand.u32 %v7448, 4294901760
    %7450 = vmatpush1.msra.mxu0 %v7449
    %v7451 = vand.u32 %v5888, 4294901760
    %v7452 = vsub.f32 %v5888, %v7451
    %v7453 = vand.u32 %v7452, 4294901760
    %7454 = vmatprep.subr.mxu0 %v7453
    %v7455 = vand.u32 %v5887, 4294901760
    %v7456 = vsub.f32 %v5887, %v7455
    %v7457 = vand.u32 %v7456, 4294901760
    %7458 = vmatpush1.msra.mxu0 %v7457
    %7459 = vmatprep.subr.mxu0 0.0
    %7460 = vmatpush2.msra.mxu0 0.0
    %7461 = vmatprep.subr.mxu0 0.0
    %7462 = vmatpush2.msra.mxu0 0.0
    %7463 = vmatprep.subr.mxu0 0.0
    %7464 = vmatpush2.msra.mxu0 0.0
    %7465 = vmatprep.subr.mxu0 0.0
    %7466 = vmatpush2.msra.mxu0 0.0
    %7467 = vmatprep.subr.mxu0 0.0
    %7468 = vmatpush2.msra.mxu0 0.0
    %7469 = vmatprep.subr.mxu0 0.0
    %7470 = vmatpush2.msra.mxu0 0.0
    %7471 = vmatprep.subr.mxu0 0.0
    %7472 = vmatpush2.msra.mxu0 0.0
    %7473 = vmatprep.subr.mxu0 0.0
    %7474 = vmatpush2.msra.mxu0 0.0
    %7475 = vmatprep.subr.mxu0 0.0
    %7476 = vmatpush2.msra.mxu0 0.0
    %7477 = vmatprep.subr.mxu0 0.0
    %7478 = vmatpush2.msra.mxu0 0.0
    %7479 = vmatprep.subr.mxu0 0.0
    %7480 = vmatpush2.msra.mxu0 0.0
    %7481 = vmatprep.subr.mxu0 0.0
    %7482 = vmatpush2.msra.mxu0 0.0
    %7483 = vmatprep.subr.mxu0 0.0
    %7484 = vmatpush2.msra.mxu0 0.0
    %7485 = vmatprep.subr.mxu0 0.0
    %7486 = vmatpush2.msra.mxu0 0.0
    %7487 = vmatprep.subr.mxu0 0.0
    %7488 = vmatpush2.msra.mxu0 0.0
    %7489 = vmatprep.subr.mxu0 0.0
    %7490 = vmatpush2.msra.mxu0 0.0
    %7491 = vmatprep.mubr.f32.mxu0 0.0
    %v7492 = vand.u32 %v5948, 4294901760
    %7493 = vmatmul.mubr.f32.gmra.mxu0 %v7492
    %v7494 = vpop.f32.mrf.mxu0
    %v7495 = vadd.f32 %v7399, %v7494
    %v7496 = vpop.f32.mrf.mxu0
    %v7497 = vadd.f32 %v7401, %v7496
    %7498 = vdwg.mxu0
    %7499 = vmatprep.subr.mxu0 0.0
    %7500 = vmatpush1.msra.mxu0 0.0
    %7501 = vmatprep.subr.mxu0 0.0
    %7502 = vmatpush1.msra.mxu0 0.0
    %7503 = vmatprep.subr.mxu0 0.0
    %7504 = vmatpush1.msra.mxu0 0.0
    %7505 = vmatprep.subr.mxu0 0.0
    %7506 = vmatpush1.msra.mxu0 0.0
    %7507 = vmatprep.subr.mxu0 0.0
    %7508 = vmatpush1.msra.mxu0 0.0
    %7509 = vmatprep.subr.mxu0 0.0
    %7510 = vmatpush1.msra.mxu0 0.0
    %7511 = vmatprep.subr.mxu0 0.0
    %7512 = vmatpush1.msra.mxu0 0.0
    %7513 = vmatprep.subr.mxu0 0.0
    %7514 = vmatpush1.msra.mxu0 0.0
    %7515 = vmatprep.subr.mxu0 0.0
    %7516 = vmatpush1.msra.mxu0 0.0
    %7517 = vmatprep.subr.mxu0 0.0
    %7518 = vmatpush1.msra.mxu0 0.0
    %7519 = vmatprep.subr.mxu0 0.0
    %7520 = vmatpush1.msra.mxu0 0.0
    %7521 = vmatprep.subr.mxu0 0.0
    %7522 = vmatpush1.msra.mxu0 0.0
    %v7523 = vand.u32 %v5936, 4294901760
    %7524 = vmatprep.subr.mxu0 %v7523
    %v7525 = vand.u32 %v5935, 4294901760
    %7526 = vmatpush1.msra.mxu0 %v7525
    %v7527 = vand.u32 %v5920, 4294901760
    %7528 = vmatprep.subr.mxu0 %v7527
    %v7529 = vand.u32 %v5919, 4294901760
    %7530 = vmatpush1.msra.mxu0 %v7529
    %v7531 = vand.u32 %v5904, 4294901760
    %7532 = vmatprep.subr.mxu0 %v7531
    %v7533 = vand.u32 %v5903, 4294901760
    %7534 = vmatpush1.msra.mxu0 %v7533
    %v7535 = vand.u32 %v5888, 4294901760
    %7536 = vmatprep.subr.mxu0 %v7535
    %v7537 = vand.u32 %v5887, 4294901760
    %7538 = vmatpush1.msra.mxu0 %v7537
    %7539 = vmatprep.subr.mxu0 0.0
    %7540 = vmatpush2.msra.mxu0 0.0
    %7541 = vmatprep.subr.mxu0 0.0
    %7542 = vmatpush2.msra.mxu0 0.0
    %7543 = vmatprep.subr.mxu0 0.0
    %7544 = vmatpush2.msra.mxu0 0.0
    %7545 = vmatprep.subr.mxu0 0.0
    %7546 = vmatpush2.msra.mxu0 0.0
    %7547 = vmatprep.subr.mxu0 0.0
    %7548 = vmatpush2.msra.mxu0 0.0
    %7549 = vmatprep.subr.mxu0 0.0
    %7550 = vmatpush2.msra.mxu0 0.0
    %7551 = vmatprep.subr.mxu0 0.0
    %7552 = vmatpush2.msra.mxu0 0.0
    %7553 = vmatprep.subr.mxu0 0.0
    %7554 = vmatpush2.msra.mxu0 0.0
    %7555 = vmatprep.subr.mxu0 0.0
    %7556 = vmatpush2.msra.mxu0 0.0
    %7557 = vmatprep.subr.mxu0 0.0
    %7558 = vmatpush2.msra.mxu0 0.0
    %7559 = vmatprep.subr.mxu0 0.0
    %7560 = vmatpush2.msra.mxu0 0.0
    %7561 = vmatprep.subr.mxu0 0.0
    %7562 = vmatpush2.msra.mxu0 0.0
    %7563 = vmatprep.subr.mxu0 0.0
    %7564 = vmatpush2.msra.mxu0 0.0
    %7565 = vmatprep.subr.mxu0 0.0
    %7566 = vmatpush2.msra.mxu0 0.0
    %7567 = vmatprep.subr.mxu0 0.0
    %7568 = vmatpush2.msra.mxu0 0.0
    %7569 = vmatprep.subr.mxu0 0.0
    %7570 = vmatpush2.msra.mxu0 0.0
    %7571 = vmatprep.mubr.f32.mxu0 0.0
    %v7572 = vand.u32 %v5948, 4294901760
    %7573 = vmatmul.mubr.f32.gmra.mxu0 %v7572
    %v7574 = vpop.f32.mrf.mxu0
    %v7575 = vadd.f32 %v7495, %v7574
    %v7576 = vpop.f32.mrf.mxu0
    %v7577 = vadd.f32 %v7497, %v7576
    %7578 = vdwg.mxu0
    %7579 = vmatprep.subr.mxu0 0.0
    %7580 = vmatpush1.msra.mxu0 0.0
    %7581 = vmatprep.subr.mxu0 0.0
    %7582 = vmatpush1.msra.mxu0 0.0
    %7583 = vmatprep.subr.mxu0 0.0
    %7584 = vmatpush1.msra.mxu0 0.0
    %7585 = vmatprep.subr.mxu0 0.0
    %7586 = vmatpush1.msra.mxu0 0.0
    %7587 = vmatprep.subr.mxu0 0.0
    %7588 = vmatpush1.msra.mxu0 0.0
    %7589 = vmatprep.subr.mxu0 0.0
    %7590 = vmatpush1.msra.mxu0 0.0
    %7591 = vmatprep.subr.mxu0 0.0
    %7592 = vmatpush1.msra.mxu0 0.0
    %7593 = vmatprep.subr.mxu0 0.0
    %7594 = vmatpush1.msra.mxu0 0.0
    %7595 = vmatprep.subr.mxu0 0.0
    %7596 = vmatpush1.msra.mxu0 0.0
    %7597 = vmatprep.subr.mxu0 0.0
    %7598 = vmatpush1.msra.mxu0 0.0
    %7599 = vmatprep.subr.mxu0 0.0
    %7600 = vmatpush1.msra.mxu0 0.0
    %7601 = vmatprep.subr.mxu0 0.0
    %7602 = vmatpush1.msra.mxu0 0.0
    %v7603 = vand.u32 %v5938, 4294901760
    %7604 = vmatprep.subr.mxu0 %v7603
    %v7605 = vand.u32 %v5937, 4294901760
    %7606 = vmatpush1.msra.mxu0 %v7605
    %v7607 = vand.u32 %v5922, 4294901760
    %7608 = vmatprep.subr.mxu0 %v7607
    %v7609 = vand.u32 %v5921, 4294901760
    %7610 = vmatpush1.msra.mxu0 %v7609
    %v7611 = vand.u32 %v5906, 4294901760
    %7612 = vmatprep.subr.mxu0 %v7611
    %v7613 = vand.u32 %v5905, 4294901760
    %7614 = vmatpush1.msra.mxu0 %v7613
    %v7615 = vand.u32 %v5890, 4294901760
    %7616 = vmatprep.subr.mxu0 %v7615
    %v7617 = vand.u32 %v5889, 4294901760
    %7618 = vmatpush1.msra.mxu0 %v7617
    %7619 = vmatprep.subr.mxu0 0.0
    %7620 = vmatpush2.msra.mxu0 0.0
    %7621 = vmatprep.subr.mxu0 0.0
    %7622 = vmatpush2.msra.mxu0 0.0
    %7623 = vmatprep.subr.mxu0 0.0
    %7624 = vmatpush2.msra.mxu0 0.0
    %7625 = vmatprep.subr.mxu0 0.0
    %7626 = vmatpush2.msra.mxu0 0.0
    %7627 = vmatprep.subr.mxu0 0.0
    %7628 = vmatpush2.msra.mxu0 0.0
    %7629 = vmatprep.subr.mxu0 0.0
    %7630 = vmatpush2.msra.mxu0 0.0
    %7631 = vmatprep.subr.mxu0 0.0
    %7632 = vmatpush2.msra.mxu0 0.0
    %7633 = vmatprep.subr.mxu0 0.0
    %7634 = vmatpush2.msra.mxu0 0.0
    %7635 = vmatprep.subr.mxu0 0.0
    %7636 = vmatpush2.msra.mxu0 0.0
    %7637 = vmatprep.subr.mxu0 0.0
    %7638 = vmatpush2.msra.mxu0 0.0
    %7639 = vmatprep.subr.mxu0 0.0
    %7640 = vmatpush2.msra.mxu0 0.0
    %7641 = vmatprep.subr.mxu0 0.0
    %7642 = vmatpush2.msra.mxu0 0.0
    %7643 = vmatprep.subr.mxu0 0.0
    %7644 = vmatpush2.msra.mxu0 0.0
    %7645 = vmatprep.subr.mxu0 0.0
    %7646 = vmatpush2.msra.mxu0 0.0
    %7647 = vmatprep.subr.mxu0 0.0
    %7648 = vmatpush2.msra.mxu0 0.0
    %7649 = vmatprep.subr.mxu0 0.0
    %7650 = vmatpush2.msra.mxu0 0.0
    %7651 = vmatprep.mubr.f32.mxu0 0.0
    %v7652 = vand.u32 %v5948, 4294901760
    %v7653 = vsub.f32 %v5948, %v7652
    %v7654 = vand.u32 %v7653, 4294901760
    %v7655 = vsub.f32 %v7653, %v7654
    %v7656 = vand.u32 %v7655, 4294901760
    %7657 = vmatmul.mubr.f32.gmra.mxu0 %v7656
    %v7658 = vpop.f32.mrf.mxu0
    %v7659 = vadd.f32 0.0, %v7658
    %v7660 = vpop.f32.mrf.mxu0
    %v7661 = vadd.f32 0.0, %v7660
    %7662 = vdwg.mxu0
    %7663 = vmatprep.subr.mxu0 0.0
    %7664 = vmatpush1.msra.mxu0 0.0
    %7665 = vmatprep.subr.mxu0 0.0
    %7666 = vmatpush1.msra.mxu0 0.0
    %7667 = vmatprep.subr.mxu0 0.0
    %7668 = vmatpush1.msra.mxu0 0.0
    %7669 = vmatprep.subr.mxu0 0.0
    %7670 = vmatpush1.msra.mxu0 0.0
    %7671 = vmatprep.subr.mxu0 0.0
    %7672 = vmatpush1.msra.mxu0 0.0
    %7673 = vmatprep.subr.mxu0 0.0
    %7674 = vmatpush1.msra.mxu0 0.0
    %7675 = vmatprep.subr.mxu0 0.0
    %7676 = vmatpush1.msra.mxu0 0.0
    %7677 = vmatprep.subr.mxu0 0.0
    %7678 = vmatpush1.msra.mxu0 0.0
    %7679 = vmatprep.subr.mxu0 0.0
    %7680 = vmatpush1.msra.mxu0 0.0
    %7681 = vmatprep.subr.mxu0 0.0
    %7682 = vmatpush1.msra.mxu0 0.0
    %7683 = vmatprep.subr.mxu0 0.0
    %7684 = vmatpush1.msra.mxu0 0.0
    %7685 = vmatprep.subr.mxu0 0.0
    %7686 = vmatpush1.msra.mxu0 0.0
    %v7687 = vand.u32 %v5938, 4294901760
    %v7688 = vsub.f32 %v5938, %v7687
    %v7689 = vand.u32 %v7688, 4294901760
    %v7690 = vsub.f32 %v7688, %v7689
    %v7691 = vand.u32 %v7690, 4294901760
    %7692 = vmatprep.subr.mxu0 %v7691
    %v7693 = vand.u32 %v5937, 4294901760
    %v7694 = vsub.f32 %v5937, %v7693
    %v7695 = vand.u32 %v7694, 4294901760
    %v7696 = vsub.f32 %v7694, %v7695
    %v7697 = vand.u32 %v7696, 4294901760
    %7698 = vmatpush1.msra.mxu0 %v7697
    %v7699 = vand.u32 %v5922, 4294901760
    %v7700 = vsub.f32 %v5922, %v7699
    %v7701 = vand.u32 %v7700, 4294901760
    %v7702 = vsub.f32 %v7700, %v7701
    %v7703 = vand.u32 %v7702, 4294901760
    %7704 = vmatprep.subr.mxu0 %v7703
    %v7705 = vand.u32 %v5921, 4294901760
    %v7706 = vsub.f32 %v5921, %v7705
    %v7707 = vand.u32 %v7706, 4294901760
    %v7708 = vsub.f32 %v7706, %v7707
    %v7709 = vand.u32 %v7708, 4294901760
    %7710 = vmatpush1.msra.mxu0 %v7709
    %v7711 = vand.u32 %v5906, 4294901760
    %v7712 = vsub.f32 %v5906, %v7711
    %v7713 = vand.u32 %v7712, 4294901760
    %v7714 = vsub.f32 %v7712, %v7713
    %v7715 = vand.u32 %v7714, 4294901760
    %7716 = vmatprep.subr.mxu0 %v7715
    %v7717 = vand.u32 %v5905, 4294901760
    %v7718 = vsub.f32 %v5905, %v7717
    %v7719 = vand.u32 %v7718, 4294901760
    %v7720 = vsub.f32 %v7718, %v7719
    %v7721 = vand.u32 %v7720, 4294901760
    %7722 = vmatpush1.msra.mxu0 %v7721
    %v7723 = vand.u32 %v5890, 4294901760
    %v7724 = vsub.f32 %v5890, %v7723
    %v7725 = vand.u32 %v7724, 4294901760
    %v7726 = vsub.f32 %v7724, %v7725
    %v7727 = vand.u32 %v7726, 4294901760
    %7728 = vmatprep.subr.mxu0 %v7727
    %v7729 = vand.u32 %v5889, 4294901760
    %v7730 = vsub.f32 %v5889, %v7729
    %v7731 = vand.u32 %v7730, 4294901760
    %v7732 = vsub.f32 %v7730, %v7731
    %v7733 = vand.u32 %v7732, 4294901760
    %7734 = vmatpush1.msra.mxu0 %v7733
    %7735 = vmatprep.subr.mxu0 0.0
    %7736 = vmatpush2.msra.mxu0 0.0
    %7737 = vmatprep.subr.mxu0 0.0
    %7738 = vmatpush2.msra.mxu0 0.0
    %7739 = vmatprep.subr.mxu0 0.0
    %7740 = vmatpush2.msra.mxu0 0.0
    %7741 = vmatprep.subr.mxu0 0.0
    %7742 = vmatpush2.msra.mxu0 0.0
    %7743 = vmatprep.subr.mxu0 0.0
    %7744 = vmatpush2.msra.mxu0 0.0
    %7745 = vmatprep.subr.mxu0 0.0
    %7746 = vmatpush2.msra.mxu0 0.0
    %7747 = vmatprep.subr.mxu0 0.0
    %7748 = vmatpush2.msra.mxu0 0.0
    %7749 = vmatprep.subr.mxu0 0.0
    %7750 = vmatpush2.msra.mxu0 0.0
    %7751 = vmatprep.subr.mxu0 0.0
    %7752 = vmatpush2.msra.mxu0 0.0
    %7753 = vmatprep.subr.mxu0 0.0
    %7754 = vmatpush2.msra.mxu0 0.0
    %7755 = vmatprep.subr.mxu0 0.0
    %7756 = vmatpush2.msra.mxu0 0.0
    %7757 = vmatprep.subr.mxu0 0.0
    %7758 = vmatpush2.msra.mxu0 0.0
    %7759 = vmatprep.subr.mxu0 0.0
    %7760 = vmatpush2.msra.mxu0 0.0
    %7761 = vmatprep.subr.mxu0 0.0
    %7762 = vmatpush2.msra.mxu0 0.0
    %7763 = vmatprep.subr.mxu0 0.0
    %7764 = vmatpush2.msra.mxu0 0.0
    %7765 = vmatprep.subr.mxu0 0.0
    %7766 = vmatpush2.msra.mxu0 0.0
    %7767 = vmatprep.mubr.f32.mxu0 0.0
    %v7768 = vand.u32 %v5948, 4294901760
    %7769 = vmatmul.mubr.f32.gmra.mxu0 %v7768
    %v7770 = vpop.f32.mrf.mxu0
    %v7771 = vadd.f32 %v7659, %v7770
    %v7772 = vpop.f32.mrf.mxu0
    %v7773 = vadd.f32 %v7661, %v7772
    %7774 = vdwg.mxu0
    %7775 = vmatprep.subr.mxu0 0.0
    %7776 = vmatpush1.msra.mxu0 0.0
    %7777 = vmatprep.subr.mxu0 0.0
    %7778 = vmatpush1.msra.mxu0 0.0
    %7779 = vmatprep.subr.mxu0 0.0
    %7780 = vmatpush1.msra.mxu0 0.0
    %7781 = vmatprep.subr.mxu0 0.0
    %7782 = vmatpush1.msra.mxu0 0.0
    %7783 = vmatprep.subr.mxu0 0.0
    %7784 = vmatpush1.msra.mxu0 0.0
    %7785 = vmatprep.subr.mxu0 0.0
    %7786 = vmatpush1.msra.mxu0 0.0
    %7787 = vmatprep.subr.mxu0 0.0
    %7788 = vmatpush1.msra.mxu0 0.0
    %7789 = vmatprep.subr.mxu0 0.0
    %7790 = vmatpush1.msra.mxu0 0.0
    %7791 = vmatprep.subr.mxu0 0.0
    %7792 = vmatpush1.msra.mxu0 0.0
    %7793 = vmatprep.subr.mxu0 0.0
    %7794 = vmatpush1.msra.mxu0 0.0
    %7795 = vmatprep.subr.mxu0 0.0
    %7796 = vmatpush1.msra.mxu0 0.0
    %7797 = vmatprep.subr.mxu0 0.0
    %7798 = vmatpush1.msra.mxu0 0.0
    %v7799 = vand.u32 %v5938, 4294901760
    %v7800 = vsub.f32 %v5938, %v7799
    %7801 = vmatprep.subr.mxu0 %v7800
    %v7802 = vand.u32 %v5937, 4294901760
    %v7803 = vsub.f32 %v5937, %v7802
    %7804 = vmatpush1.msra.mxu0 %v7803
    %v7805 = vand.u32 %v5922, 4294901760
    %v7806 = vsub.f32 %v5922, %v7805
    %7807 = vmatprep.subr.mxu0 %v7806
    %v7808 = vand.u32 %v5921, 4294901760
    %v7809 = vsub.f32 %v5921, %v7808
    %7810 = vmatpush1.msra.mxu0 %v7809
    %v7811 = vand.u32 %v5906, 4294901760
    %v7812 = vsub.f32 %v5906, %v7811
    %7813 = vmatprep.subr.mxu0 %v7812
    %v7814 = vand.u32 %v5905, 4294901760
    %v7815 = vsub.f32 %v5905, %v7814
    %7816 = vmatpush1.msra.mxu0 %v7815
    %v7817 = vand.u32 %v5890, 4294901760
    %v7818 = vsub.f32 %v5890, %v7817
    %7819 = vmatprep.subr.mxu0 %v7818
    %v7820 = vand.u32 %v5889, 4294901760
    %v7821 = vsub.f32 %v5889, %v7820
    %7822 = vmatpush1.msra.mxu0 %v7821
    %7823 = vmatprep.subr.mxu0 0.0
    %7824 = vmatpush2.msra.mxu0 0.0
    %7825 = vmatprep.subr.mxu0 0.0
    %7826 = vmatpush2.msra.mxu0 0.0
    %7827 = vmatprep.subr.mxu0 0.0
    %7828 = vmatpush2.msra.mxu0 0.0
    %7829 = vmatprep.subr.mxu0 0.0
    %7830 = vmatpush2.msra.mxu0 0.0
    %7831 = vmatprep.subr.mxu0 0.0
    %7832 = vmatpush2.msra.mxu0 0.0
    %7833 = vmatprep.subr.mxu0 0.0
    %7834 = vmatpush2.msra.mxu0 0.0
    %7835 = vmatprep.subr.mxu0 0.0
    %7836 = vmatpush2.msra.mxu0 0.0
    %7837 = vmatprep.subr.mxu0 0.0
    %7838 = vmatpush2.msra.mxu0 0.0
    %7839 = vmatprep.subr.mxu0 0.0
    %7840 = vmatpush2.msra.mxu0 0.0
    %7841 = vmatprep.subr.mxu0 0.0
    %7842 = vmatpush2.msra.mxu0 0.0
    %7843 = vmatprep.subr.mxu0 0.0
    %7844 = vmatpush2.msra.mxu0 0.0
    %7845 = vmatprep.subr.mxu0 0.0
    %7846 = vmatpush2.msra.mxu0 0.0
    %7847 = vmatprep.subr.mxu0 0.0
    %7848 = vmatpush2.msra.mxu0 0.0
    %7849 = vmatprep.subr.mxu0 0.0
    %7850 = vmatpush2.msra.mxu0 0.0
    %7851 = vmatprep.subr.mxu0 0.0
    %7852 = vmatpush2.msra.mxu0 0.0
    %7853 = vmatprep.subr.mxu0 0.0
    %7854 = vmatpush2.msra.mxu0 0.0
    %7855 = vmatprep.mubr.f32.mxu0 0.0
    %v7856 = vand.u32 %v5948, 4294901760
    %v7857 = vsub.f32 %v5948, %v7856
    %7858 = vmatmul.mubr.f32.gmra.mxu0 %v7857
    %v7859 = vpop.f32.mrf.mxu0
    %v7860 = vadd.f32 %v7771, %v7859
    %v7861 = vpop.f32.mrf.mxu0
    %v7862 = vadd.f32 %v7773, %v7861
    %7863 = vdwg.mxu0
    %7864 = vmatprep.subr.mxu0 0.0
    %7865 = vmatpush1.msra.mxu0 0.0
    %7866 = vmatprep.subr.mxu0 0.0
    %7867 = vmatpush1.msra.mxu0 0.0
    %7868 = vmatprep.subr.mxu0 0.0
    %7869 = vmatpush1.msra.mxu0 0.0
    %7870 = vmatprep.subr.mxu0 0.0
    %7871 = vmatpush1.msra.mxu0 0.0
    %7872 = vmatprep.subr.mxu0 0.0
    %7873 = vmatpush1.msra.mxu0 0.0
    %7874 = vmatprep.subr.mxu0 0.0
    %7875 = vmatpush1.msra.mxu0 0.0
    %7876 = vmatprep.subr.mxu0 0.0
    %7877 = vmatpush1.msra.mxu0 0.0
    %7878 = vmatprep.subr.mxu0 0.0
    %7879 = vmatpush1.msra.mxu0 0.0
    %7880 = vmatprep.subr.mxu0 0.0
    %7881 = vmatpush1.msra.mxu0 0.0
    %7882 = vmatprep.subr.mxu0 0.0
    %7883 = vmatpush1.msra.mxu0 0.0
    %7884 = vmatprep.subr.mxu0 0.0
    %7885 = vmatpush1.msra.mxu0 0.0
    %7886 = vmatprep.subr.mxu0 0.0
    %7887 = vmatpush1.msra.mxu0 0.0
    %v7888 = vand.u32 %v5938, 4294901760
    %7889 = vmatprep.subr.mxu0 %v7888
    %v7890 = vand.u32 %v5937, 4294901760
    %7891 = vmatpush1.msra.mxu0 %v7890
    %v7892 = vand.u32 %v5922, 4294901760
    %7893 = vmatprep.subr.mxu0 %v7892
    %v7894 = vand.u32 %v5921, 4294901760
    %7895 = vmatpush1.msra.mxu0 %v7894
    %v7896 = vand.u32 %v5906, 4294901760
    %7897 = vmatprep.subr.mxu0 %v7896
    %v7898 = vand.u32 %v5905, 4294901760
    %7899 = vmatpush1.msra.mxu0 %v7898
    %v7900 = vand.u32 %v5890, 4294901760
    %7901 = vmatprep.subr.mxu0 %v7900
    %v7902 = vand.u32 %v5889, 4294901760
    %7903 = vmatpush1.msra.mxu0 %v7902
    %7904 = vmatprep.subr.mxu0 0.0
    %7905 = vmatpush2.msra.mxu0 0.0
    %7906 = vmatprep.subr.mxu0 0.0
    %7907 = vmatpush2.msra.mxu0 0.0
    %7908 = vmatprep.subr.mxu0 0.0
    %7909 = vmatpush2.msra.mxu0 0.0
    %7910 = vmatprep.subr.mxu0 0.0
    %7911 = vmatpush2.msra.mxu0 0.0
    %7912 = vmatprep.subr.mxu0 0.0
    %7913 = vmatpush2.msra.mxu0 0.0
    %7914 = vmatprep.subr.mxu0 0.0
    %7915 = vmatpush2.msra.mxu0 0.0
    %7916 = vmatprep.subr.mxu0 0.0
    %7917 = vmatpush2.msra.mxu0 0.0
    %7918 = vmatprep.subr.mxu0 0.0
    %7919 = vmatpush2.msra.mxu0 0.0
    %7920 = vmatprep.subr.mxu0 0.0
    %7921 = vmatpush2.msra.mxu0 0.0
    %7922 = vmatprep.subr.mxu0 0.0
    %7923 = vmatpush2.msra.mxu0 0.0
    %7924 = vmatprep.subr.mxu0 0.0
    %7925 = vmatpush2.msra.mxu0 0.0
    %7926 = vmatprep.subr.mxu0 0.0
    %7927 = vmatpush2.msra.mxu0 0.0
    %7928 = vmatprep.subr.mxu0 0.0
    %7929 = vmatpush2.msra.mxu0 0.0
    %7930 = vmatprep.subr.mxu0 0.0
    %7931 = vmatpush2.msra.mxu0 0.0
    %7932 = vmatprep.subr.mxu0 0.0
    %7933 = vmatpush2.msra.mxu0 0.0
    %7934 = vmatprep.subr.mxu0 0.0
    %7935 = vmatpush2.msra.mxu0 0.0
    %7936 = vmatprep.mubr.f32.mxu0 0.0
    %v7937 = vand.u32 %v5948, 4294901760
    %v7938 = vsub.f32 %v5948, %v7937
    %v7939 = vand.u32 %v7938, 4294901760
    %7940 = vmatmul.mubr.f32.gmra.mxu0 %v7939
    %v7941 = vpop.f32.mrf.mxu0
    %v7942 = vadd.f32 %v7860, %v7941
    %v7943 = vpop.f32.mrf.mxu0
    %v7944 = vadd.f32 %v7862, %v7943
    %7945 = vdwg.mxu0
    %7946 = vmatprep.subr.mxu0 0.0
    %7947 = vmatpush1.msra.mxu0 0.0
    %7948 = vmatprep.subr.mxu0 0.0
    %7949 = vmatpush1.msra.mxu0 0.0
    %7950 = vmatprep.subr.mxu0 0.0
    %7951 = vmatpush1.msra.mxu0 0.0
    %7952 = vmatprep.subr.mxu0 0.0
    %7953 = vmatpush1.msra.mxu0 0.0
    %7954 = vmatprep.subr.mxu0 0.0
    %7955 = vmatpush1.msra.mxu0 0.0
    %7956 = vmatprep.subr.mxu0 0.0
    %7957 = vmatpush1.msra.mxu0 0.0
    %7958 = vmatprep.subr.mxu0 0.0
    %7959 = vmatpush1.msra.mxu0 0.0
    %7960 = vmatprep.subr.mxu0 0.0
    %7961 = vmatpush1.msra.mxu0 0.0
    %7962 = vmatprep.subr.mxu0 0.0
    %7963 = vmatpush1.msra.mxu0 0.0
    %7964 = vmatprep.subr.mxu0 0.0
    %7965 = vmatpush1.msra.mxu0 0.0
    %7966 = vmatprep.subr.mxu0 0.0
    %7967 = vmatpush1.msra.mxu0 0.0
    %7968 = vmatprep.subr.mxu0 0.0
    %7969 = vmatpush1.msra.mxu0 0.0
    %v7970 = vand.u32 %v5938, 4294901760
    %v7971 = vsub.f32 %v5938, %v7970
    %v7972 = vand.u32 %v7971, 4294901760
    %7973 = vmatprep.subr.mxu0 %v7972
    %v7974 = vand.u32 %v5937, 4294901760
    %v7975 = vsub.f32 %v5937, %v7974
    %v7976 = vand.u32 %v7975, 4294901760
    %7977 = vmatpush1.msra.mxu0 %v7976
    %v7978 = vand.u32 %v5922, 4294901760
    %v7979 = vsub.f32 %v5922, %v7978
    %v7980 = vand.u32 %v7979, 4294901760
    %7981 = vmatprep.subr.mxu0 %v7980
    %v7982 = vand.u32 %v5921, 4294901760
    %v7983 = vsub.f32 %v5921, %v7982
    %v7984 = vand.u32 %v7983, 4294901760
    %7985 = vmatpush1.msra.mxu0 %v7984
    %v7986 = vand.u32 %v5906, 4294901760
    %v7987 = vsub.f32 %v5906, %v7986
    %v7988 = vand.u32 %v7987, 4294901760
    %7989 = vmatprep.subr.mxu0 %v7988
    %v7990 = vand.u32 %v5905, 4294901760
    %v7991 = vsub.f32 %v5905, %v7990
    %v7992 = vand.u32 %v7991, 4294901760
    %7993 = vmatpush1.msra.mxu0 %v7992
    %v7994 = vand.u32 %v5890, 4294901760
    %v7995 = vsub.f32 %v5890, %v7994
    %v7996 = vand.u32 %v7995, 4294901760
    %7997 = vmatprep.subr.mxu0 %v7996
    %v7998 = vand.u32 %v5889, 4294901760
    %v7999 = vsub.f32 %v5889, %v7998
    %v8000 = vand.u32 %v7999, 4294901760
    %8001 = vmatpush1.msra.mxu0 %v8000
    %8002 = vmatprep.subr.mxu0 0.0
    %8003 = vmatpush2.msra.mxu0 0.0
    %8004 = vmatprep.subr.mxu0 0.0
    %8005 = vmatpush2.msra.mxu0 0.0
    %8006 = vmatprep.subr.mxu0 0.0
    %8007 = vmatpush2.msra.mxu0 0.0
    %8008 = vmatprep.subr.mxu0 0.0
    %8009 = vmatpush2.msra.mxu0 0.0
    %8010 = vmatprep.subr.mxu0 0.0
    %8011 = vmatpush2.msra.mxu0 0.0
    %8012 = vmatprep.subr.mxu0 0.0
    %8013 = vmatpush2.msra.mxu0 0.0
    %8014 = vmatprep.subr.mxu0 0.0
    %8015 = vmatpush2.msra.mxu0 0.0
    %8016 = vmatprep.subr.mxu0 0.0
    %8017 = vmatpush2.msra.mxu0 0.0
    %8018 = vmatprep.subr.mxu0 0.0
    %8019 = vmatpush2.msra.mxu0 0.0
    %8020 = vmatprep.subr.mxu0 0.0
    %8021 = vmatpush2.msra.mxu0 0.0
    %8022 = vmatprep.subr.mxu0 0.0
    %8023 = vmatpush2.msra.mxu0 0.0
    %8024 = vmatprep.subr.mxu0 0.0
    %8025 = vmatpush2.msra.mxu0 0.0
    %8026 = vmatprep.subr.mxu0 0.0
    %8027 = vmatpush2.msra.mxu0 0.0
    %8028 = vmatprep.subr.mxu0 0.0
    %8029 = vmatpush2.msra.mxu0 0.0
    %8030 = vmatprep.subr.mxu0 0.0
    %8031 = vmatpush2.msra.mxu0 0.0
    %8032 = vmatprep.subr.mxu0 0.0
    %8033 = vmatpush2.msra.mxu0 0.0
    %8034 = vmatprep.mubr.f32.mxu0 0.0
    %v8035 = vand.u32 %v5948, 4294901760
    %8036 = vmatmul.mubr.f32.gmra.mxu0 %v8035
    %v8037 = vpop.f32.mrf.mxu0
    %v8038 = vadd.f32 %v7942, %v8037
    %v8039 = vpop.f32.mrf.mxu0
    %v8040 = vadd.f32 %v7944, %v8039
    %8041 = vdwg.mxu0
    %8042 = vmatprep.subr.mxu0 0.0
    %8043 = vmatpush1.msra.mxu0 0.0
    %8044 = vmatprep.subr.mxu0 0.0
    %8045 = vmatpush1.msra.mxu0 0.0
    %8046 = vmatprep.subr.mxu0 0.0
    %8047 = vmatpush1.msra.mxu0 0.0
    %8048 = vmatprep.subr.mxu0 0.0
    %8049 = vmatpush1.msra.mxu0 0.0
    %8050 = vmatprep.subr.mxu0 0.0
    %8051 = vmatpush1.msra.mxu0 0.0
    %8052 = vmatprep.subr.mxu0 0.0
    %8053 = vmatpush1.msra.mxu0 0.0
    %8054 = vmatprep.subr.mxu0 0.0
    %8055 = vmatpush1.msra.mxu0 0.0
    %8056 = vmatprep.subr.mxu0 0.0
    %8057 = vmatpush1.msra.mxu0 0.0
    %8058 = vmatprep.subr.mxu0 0.0
    %8059 = vmatpush1.msra.mxu0 0.0
    %8060 = vmatprep.subr.mxu0 0.0
    %8061 = vmatpush1.msra.mxu0 0.0
    %8062 = vmatprep.subr.mxu0 0.0
    %8063 = vmatpush1.msra.mxu0 0.0
    %8064 = vmatprep.subr.mxu0 0.0
    %8065 = vmatpush1.msra.mxu0 0.0
    %v8066 = vand.u32 %v5938, 4294901760
    %8067 = vmatprep.subr.mxu0 %v8066
    %v8068 = vand.u32 %v5937, 4294901760
    %8069 = vmatpush1.msra.mxu0 %v8068
    %v8070 = vand.u32 %v5922, 4294901760
    %8071 = vmatprep.subr.mxu0 %v8070
    %v8072 = vand.u32 %v5921, 4294901760
    %8073 = vmatpush1.msra.mxu0 %v8072
    %v8074 = vand.u32 %v5906, 4294901760
    %8075 = vmatprep.subr.mxu0 %v8074
    %v8076 = vand.u32 %v5905, 4294901760
    %8077 = vmatpush1.msra.mxu0 %v8076
    %v8078 = vand.u32 %v5890, 4294901760
    %8079 = vmatprep.subr.mxu0 %v8078
    %v8080 = vand.u32 %v5889, 4294901760
    %8081 = vmatpush1.msra.mxu0 %v8080
    %8082 = vmatprep.subr.mxu0 0.0
    %8083 = vmatpush2.msra.mxu0 0.0
    %8084 = vmatprep.subr.mxu0 0.0
    %8085 = vmatpush2.msra.mxu0 0.0
    %8086 = vmatprep.subr.mxu0 0.0
    %8087 = vmatpush2.msra.mxu0 0.0
    %8088 = vmatprep.subr.mxu0 0.0
    %8089 = vmatpush2.msra.mxu0 0.0
    %8090 = vmatprep.subr.mxu0 0.0
    %8091 = vmatpush2.msra.mxu0 0.0
    %8092 = vmatprep.subr.mxu0 0.0
    %8093 = vmatpush2.msra.mxu0 0.0
    %8094 = vmatprep.subr.mxu0 0.0
    %8095 = vmatpush2.msra.mxu0 0.0
    %8096 = vmatprep.subr.mxu0 0.0
    %8097 = vmatpush2.msra.mxu0 0.0
    %8098 = vmatprep.subr.mxu0 0.0
    %8099 = vmatpush2.msra.mxu0 0.0
    %8100 = vmatprep.subr.mxu0 0.0
    %8101 = vmatpush2.msra.mxu0 0.0
    %8102 = vmatprep.subr.mxu0 0.0
    %8103 = vmatpush2.msra.mxu0 0.0
    %8104 = vmatprep.subr.mxu0 0.0
    %8105 = vmatpush2.msra.mxu0 0.0
    %8106 = vmatprep.subr.mxu0 0.0
    %8107 = vmatpush2.msra.mxu0 0.0
    %8108 = vmatprep.subr.mxu0 0.0
    %8109 = vmatpush2.msra.mxu0 0.0
    %8110 = vmatprep.subr.mxu0 0.0
    %8111 = vmatpush2.msra.mxu0 0.0
    %8112 = vmatprep.subr.mxu0 0.0
    %8113 = vmatpush2.msra.mxu0 0.0
    %8114 = vmatprep.mubr.f32.mxu0 0.0
    %v8115 = vand.u32 %v5948, 4294901760
    %8116 = vmatmul.mubr.f32.gmra.mxu0 %v8115
    %v8117 = vpop.f32.mrf.mxu0
    %v8118 = vadd.f32 %v8038, %v8117
    %v8119 = vpop.f32.mrf.mxu0
    %v8120 = vadd.f32 %v8040, %v8119
    %8121 = vdwg.mxu0
    %8122 = vmatprep.subr.mxu0 0.0
    %8123 = vmatpush1.msra.mxu0 0.0
    %8124 = vmatprep.subr.mxu0 0.0
    %8125 = vmatpush1.msra.mxu0 0.0
    %8126 = vmatprep.subr.mxu0 0.0
    %8127 = vmatpush1.msra.mxu0 0.0
    %8128 = vmatprep.subr.mxu0 0.0
    %8129 = vmatpush1.msra.mxu0 0.0
    %8130 = vmatprep.subr.mxu0 0.0
    %8131 = vmatpush1.msra.mxu0 0.0
    %8132 = vmatprep.subr.mxu0 0.0
    %8133 = vmatpush1.msra.mxu0 0.0
    %8134 = vmatprep.subr.mxu0 0.0
    %8135 = vmatpush1.msra.mxu0 0.0
    %8136 = vmatprep.subr.mxu0 0.0
    %8137 = vmatpush1.msra.mxu0 0.0
    %8138 = vmatprep.subr.mxu0 0.0
    %8139 = vmatpush1.msra.mxu0 0.0
    %8140 = vmatprep.subr.mxu0 0.0
    %8141 = vmatpush1.msra.mxu0 0.0
    %8142 = vmatprep.subr.mxu0 0.0
    %8143 = vmatpush1.msra.mxu0 0.0
    %8144 = vmatprep.subr.mxu0 0.0
    %8145 = vmatpush1.msra.mxu0 0.0
    %v8146 = vand.u32 %v5940, 4294901760
    %8147 = vmatprep.subr.mxu0 %v8146
    %v8148 = vand.u32 %v5939, 4294901760
    %8149 = vmatpush1.msra.mxu0 %v8148
    %v8150 = vand.u32 %v5924, 4294901760
    %8151 = vmatprep.subr.mxu0 %v8150
    %v8152 = vand.u32 %v5923, 4294901760
    %8153 = vmatpush1.msra.mxu0 %v8152
    %v8154 = vand.u32 %v5908, 4294901760
    %8155 = vmatprep.subr.mxu0 %v8154
    %v8156 = vand.u32 %v5907, 4294901760
    %8157 = vmatpush1.msra.mxu0 %v8156
    %v8158 = vand.u32 %v5892, 4294901760
    %8159 = vmatprep.subr.mxu0 %v8158
    %v8160 = vand.u32 %v5891, 4294901760
    %8161 = vmatpush1.msra.mxu0 %v8160
    %8162 = vmatprep.subr.mxu0 0.0
    %8163 = vmatpush2.msra.mxu0 0.0
    %8164 = vmatprep.subr.mxu0 0.0
    %8165 = vmatpush2.msra.mxu0 0.0
    %8166 = vmatprep.subr.mxu0 0.0
    %8167 = vmatpush2.msra.mxu0 0.0
    %8168 = vmatprep.subr.mxu0 0.0
    %8169 = vmatpush2.msra.mxu0 0.0
    %8170 = vmatprep.subr.mxu0 0.0
    %8171 = vmatpush2.msra.mxu0 0.0
    %8172 = vmatprep.subr.mxu0 0.0
    %8173 = vmatpush2.msra.mxu0 0.0
    %8174 = vmatprep.subr.mxu0 0.0
    %8175 = vmatpush2.msra.mxu0 0.0
    %8176 = vmatprep.subr.mxu0 0.0
    %8177 = vmatpush2.msra.mxu0 0.0
    %8178 = vmatprep.subr.mxu0 0.0
    %8179 = vmatpush2.msra.mxu0 0.0
    %8180 = vmatprep.subr.mxu0 0.0
    %8181 = vmatpush2.msra.mxu0 0.0
    %8182 = vmatprep.subr.mxu0 0.0
    %8183 = vmatpush2.msra.mxu0 0.0
    %8184 = vmatprep.subr.mxu0 0.0
    %8185 = vmatpush2.msra.mxu0 0.0
    %8186 = vmatprep.subr.mxu0 0.0
    %8187 = vmatpush2.msra.mxu0 0.0
    %8188 = vmatprep.subr.mxu0 0.0
    %8189 = vmatpush2.msra.mxu0 0.0
    %8190 = vmatprep.subr.mxu0 0.0
    %8191 = vmatpush2.msra.mxu0 0.0
    %8192 = vmatprep.subr.mxu0 0.0
    %8193 = vmatpush2.msra.mxu0 0.0
    %8194 = vmatprep.mubr.f32.mxu0 0.0
    %v8195 = vand.u32 %v5948, 4294901760
    %v8196 = vsub.f32 %v5948, %v8195
    %v8197 = vand.u32 %v8196, 4294901760
    %v8198 = vsub.f32 %v8196, %v8197
    %v8199 = vand.u32 %v8198, 4294901760
    %8200 = vmatmul.mubr.f32.gmra.mxu0 %v8199
    %v8201 = vpop.f32.mrf.mxu0
    %v8202 = vadd.f32 0.0, %v8201
    %v8203 = vpop.f32.mrf.mxu0
    %v8204 = vadd.f32 0.0, %v8203
    %8205 = vdwg.mxu0
    %8206 = vmatprep.subr.mxu0 0.0
    %8207 = vmatpush1.msra.mxu0 0.0
    %8208 = vmatprep.subr.mxu0 0.0
    %8209 = vmatpush1.msra.mxu0 0.0
    %8210 = vmatprep.subr.mxu0 0.0
    %8211 = vmatpush1.msra.mxu0 0.0
    %8212 = vmatprep.subr.mxu0 0.0
    %8213 = vmatpush1.msra.mxu0 0.0
    %8214 = vmatprep.subr.mxu0 0.0
    %8215 = vmatpush1.msra.mxu0 0.0
    %8216 = vmatprep.subr.mxu0 0.0
    %8217 = vmatpush1.msra.mxu0 0.0
    %8218 = vmatprep.subr.mxu0 0.0
    %8219 = vmatpush1.msra.mxu0 0.0
    %8220 = vmatprep.subr.mxu0 0.0
    %8221 = vmatpush1.msra.mxu0 0.0
    %8222 = vmatprep.subr.mxu0 0.0
    %8223 = vmatpush1.msra.mxu0 0.0
    %8224 = vmatprep.subr.mxu0 0.0
    %8225 = vmatpush1.msra.mxu0 0.0
    %8226 = vmatprep.subr.mxu0 0.0
    %8227 = vmatpush1.msra.mxu0 0.0
    %8228 = vmatprep.subr.mxu0 0.0
    %8229 = vmatpush1.msra.mxu0 0.0
    %v8230 = vand.u32 %v5940, 4294901760
    %v8231 = vsub.f32 %v5940, %v8230
    %v8232 = vand.u32 %v8231, 4294901760
    %v8233 = vsub.f32 %v8231, %v8232
    %v8234 = vand.u32 %v8233, 4294901760
    %8235 = vmatprep.subr.mxu0 %v8234
    %v8236 = vand.u32 %v5939, 4294901760
    %v8237 = vsub.f32 %v5939, %v8236
    %v8238 = vand.u32 %v8237, 4294901760
    %v8239 = vsub.f32 %v8237, %v8238
    %v8240 = vand.u32 %v8239, 4294901760
    %8241 = vmatpush1.msra.mxu0 %v8240
    %v8242 = vand.u32 %v5924, 4294901760
    %v8243 = vsub.f32 %v5924, %v8242
    %v8244 = vand.u32 %v8243, 4294901760
    %v8245 = vsub.f32 %v8243, %v8244
    %v8246 = vand.u32 %v8245, 4294901760
    %8247 = vmatprep.subr.mxu0 %v8246
    %v8248 = vand.u32 %v5923, 4294901760
    %v8249 = vsub.f32 %v5923, %v8248
    %v8250 = vand.u32 %v8249, 4294901760
    %v8251 = vsub.f32 %v8249, %v8250
    %v8252 = vand.u32 %v8251, 4294901760
    %8253 = vmatpush1.msra.mxu0 %v8252
    %v8254 = vand.u32 %v5908, 4294901760
    %v8255 = vsub.f32 %v5908, %v8254
    %v8256 = vand.u32 %v8255, 4294901760
    %v8257 = vsub.f32 %v8255, %v8256
    %v8258 = vand.u32 %v8257, 4294901760
    %8259 = vmatprep.subr.mxu0 %v8258
    %v8260 = vand.u32 %v5907, 4294901760
    %v8261 = vsub.f32 %v5907, %v8260
    %v8262 = vand.u32 %v8261, 4294901760
    %v8263 = vsub.f32 %v8261, %v8262
    %v8264 = vand.u32 %v8263, 4294901760
    %8265 = vmatpush1.msra.mxu0 %v8264
    %v8266 = vand.u32 %v5892, 4294901760
    %v8267 = vsub.f32 %v5892, %v8266
    %v8268 = vand.u32 %v8267, 4294901760
    %v8269 = vsub.f32 %v8267, %v8268
    %v8270 = vand.u32 %v8269, 4294901760
    %8271 = vmatprep.subr.mxu0 %v8270
    %v8272 = vand.u32 %v5891, 4294901760
    %v8273 = vsub.f32 %v5891, %v8272
    %v8274 = vand.u32 %v8273, 4294901760
    %v8275 = vsub.f32 %v8273, %v8274
    %v8276 = vand.u32 %v8275, 4294901760
    %8277 = vmatpush1.msra.mxu0 %v8276
    %8278 = vmatprep.subr.mxu0 0.0
    %8279 = vmatpush2.msra.mxu0 0.0
    %8280 = vmatprep.subr.mxu0 0.0
    %8281 = vmatpush2.msra.mxu0 0.0
    %8282 = vmatprep.subr.mxu0 0.0
    %8283 = vmatpush2.msra.mxu0 0.0
    %8284 = vmatprep.subr.mxu0 0.0
    %8285 = vmatpush2.msra.mxu0 0.0
    %8286 = vmatprep.subr.mxu0 0.0
    %8287 = vmatpush2.msra.mxu0 0.0
    %8288 = vmatprep.subr.mxu0 0.0
    %8289 = vmatpush2.msra.mxu0 0.0
    %8290 = vmatprep.subr.mxu0 0.0
    %8291 = vmatpush2.msra.mxu0 0.0
    %8292 = vmatprep.subr.mxu0 0.0
    %8293 = vmatpush2.msra.mxu0 0.0
    %8294 = vmatprep.subr.mxu0 0.0
    %8295 = vmatpush2.msra.mxu0 0.0
    %8296 = vmatprep.subr.mxu0 0.0
    %8297 = vmatpush2.msra.mxu0 0.0
    %8298 = vmatprep.subr.mxu0 0.0
    %8299 = vmatpush2.msra.mxu0 0.0
    %8300 = vmatprep.subr.mxu0 0.0
    %8301 = vmatpush2.msra.mxu0 0.0
    %8302 = vmatprep.subr.mxu0 0.0
    %8303 = vmatpush2.msra.mxu0 0.0
    %8304 = vmatprep.subr.mxu0 0.0
    %8305 = vmatpush2.msra.mxu0 0.0
    %8306 = vmatprep.subr.mxu0 0.0
    %8307 = vmatpush2.msra.mxu0 0.0
    %8308 = vmatprep.subr.mxu0 0.0
    %8309 = vmatpush2.msra.mxu0 0.0
    %8310 = vmatprep.mubr.f32.mxu0 0.0
    %v8311 = vand.u32 %v5948, 4294901760
    %8312 = vmatmul.mubr.f32.gmra.mxu0 %v8311
    %v8313 = vpop.f32.mrf.mxu0
    %v8314 = vadd.f32 %v8202, %v8313
    %v8315 = vpop.f32.mrf.mxu0
    %v8316 = vadd.f32 %v8204, %v8315
    %8317 = vdwg.mxu0
    %8318 = vmatprep.subr.mxu0 0.0
    %8319 = vmatpush1.msra.mxu0 0.0
    %8320 = vmatprep.subr.mxu0 0.0
    %8321 = vmatpush1.msra.mxu0 0.0
    %8322 = vmatprep.subr.mxu0 0.0
    %8323 = vmatpush1.msra.mxu0 0.0
    %8324 = vmatprep.subr.mxu0 0.0
    %8325 = vmatpush1.msra.mxu0 0.0
    %8326 = vmatprep.subr.mxu0 0.0
    %8327 = vmatpush1.msra.mxu0 0.0
    %8328 = vmatprep.subr.mxu0 0.0
    %8329 = vmatpush1.msra.mxu0 0.0
    %8330 = vmatprep.subr.mxu0 0.0
    %8331 = vmatpush1.msra.mxu0 0.0
    %8332 = vmatprep.subr.mxu0 0.0
    %8333 = vmatpush1.msra.mxu0 0.0
    %8334 = vmatprep.subr.mxu0 0.0
    %8335 = vmatpush1.msra.mxu0 0.0
    %8336 = vmatprep.subr.mxu0 0.0
    %8337 = vmatpush1.msra.mxu0 0.0
    %8338 = vmatprep.subr.mxu0 0.0
    %8339 = vmatpush1.msra.mxu0 0.0
    %8340 = vmatprep.subr.mxu0 0.0
    %8341 = vmatpush1.msra.mxu0 0.0
    %v8342 = vand.u32 %v5940, 4294901760
    %v8343 = vsub.f32 %v5940, %v8342
    %8344 = vmatprep.subr.mxu0 %v8343
    %v8345 = vand.u32 %v5939, 4294901760
    %v8346 = vsub.f32 %v5939, %v8345
    %8347 = vmatpush1.msra.mxu0 %v8346
    %v8348 = vand.u32 %v5924, 4294901760
    %v8349 = vsub.f32 %v5924, %v8348
    %8350 = vmatprep.subr.mxu0 %v8349
    %v8351 = vand.u32 %v5923, 4294901760
    %v8352 = vsub.f32 %v5923, %v8351
    %8353 = vmatpush1.msra.mxu0 %v8352
    %v8354 = vand.u32 %v5908, 4294901760
    %v8355 = vsub.f32 %v5908, %v8354
    %8356 = vmatprep.subr.mxu0 %v8355
    %v8357 = vand.u32 %v5907, 4294901760
    %v8358 = vsub.f32 %v5907, %v8357
    %8359 = vmatpush1.msra.mxu0 %v8358
    %v8360 = vand.u32 %v5892, 4294901760
    %v8361 = vsub.f32 %v5892, %v8360
    %8362 = vmatprep.subr.mxu0 %v8361
    %v8363 = vand.u32 %v5891, 4294901760
    %v8364 = vsub.f32 %v5891, %v8363
    %8365 = vmatpush1.msra.mxu0 %v8364
    %8366 = vmatprep.subr.mxu0 0.0
    %8367 = vmatpush2.msra.mxu0 0.0
    %8368 = vmatprep.subr.mxu0 0.0
    %8369 = vmatpush2.msra.mxu0 0.0
    %8370 = vmatprep.subr.mxu0 0.0
    %8371 = vmatpush2.msra.mxu0 0.0
    %8372 = vmatprep.subr.mxu0 0.0
    %8373 = vmatpush2.msra.mxu0 0.0
    %8374 = vmatprep.subr.mxu0 0.0
    %8375 = vmatpush2.msra.mxu0 0.0
    %8376 = vmatprep.subr.mxu0 0.0
    %8377 = vmatpush2.msra.mxu0 0.0
    %8378 = vmatprep.subr.mxu0 0.0
    %8379 = vmatpush2.msra.mxu0 0.0
    %8380 = vmatprep.subr.mxu0 0.0
    %8381 = vmatpush2.msra.mxu0 0.0
    %8382 = vmatprep.subr.mxu0 0.0
    %8383 = vmatpush2.msra.mxu0 0.0
    %8384 = vmatprep.subr.mxu0 0.0
    %8385 = vmatpush2.msra.mxu0 0.0
    %8386 = vmatprep.subr.mxu0 0.0
    %8387 = vmatpush2.msra.mxu0 0.0
    %8388 = vmatprep.subr.mxu0 0.0
    %8389 = vmatpush2.msra.mxu0 0.0
    %8390 = vmatprep.subr.mxu0 0.0
    %8391 = vmatpush2.msra.mxu0 0.0
    %8392 = vmatprep.subr.mxu0 0.0
    %8393 = vmatpush2.msra.mxu0 0.0
    %8394 = vmatprep.subr.mxu0 0.0
    %8395 = vmatpush2.msra.mxu0 0.0
    %8396 = vmatprep.subr.mxu0 0.0
    %8397 = vmatpush2.msra.mxu0 0.0
    %8398 = vmatprep.mubr.f32.mxu0 0.0
    %v8399 = vand.u32 %v5948, 4294901760
    %v8400 = vsub.f32 %v5948, %v8399
    %8401 = vmatmul.mubr.f32.gmra.mxu0 %v8400
    %v8402 = vpop.f32.mrf.mxu0
    %v8403 = vadd.f32 %v8314, %v8402
    %v8404 = vpop.f32.mrf.mxu0
    %v8405 = vadd.f32 %v8316, %v8404
    %8406 = vdwg.mxu0
    %8407 = vmatprep.subr.mxu0 0.0
    %8408 = vmatpush1.msra.mxu0 0.0
    %8409 = vmatprep.subr.mxu0 0.0
    %8410 = vmatpush1.msra.mxu0 0.0
    %8411 = vmatprep.subr.mxu0 0.0
    %8412 = vmatpush1.msra.mxu0 0.0
    %8413 = vmatprep.subr.mxu0 0.0
    %8414 = vmatpush1.msra.mxu0 0.0
    %8415 = vmatprep.subr.mxu0 0.0
    %8416 = vmatpush1.msra.mxu0 0.0
    %8417 = vmatprep.subr.mxu0 0.0
    %8418 = vmatpush1.msra.mxu0 0.0
    %8419 = vmatprep.subr.mxu0 0.0
    %8420 = vmatpush1.msra.mxu0 0.0
    %8421 = vmatprep.subr.mxu0 0.0
    %8422 = vmatpush1.msra.mxu0 0.0
    %8423 = vmatprep.subr.mxu0 0.0
    %8424 = vmatpush1.msra.mxu0 0.0
    %8425 = vmatprep.subr.mxu0 0.0
    %8426 = vmatpush1.msra.mxu0 0.0
    %8427 = vmatprep.subr.mxu0 0.0
    %8428 = vmatpush1.msra.mxu0 0.0
    %8429 = vmatprep.subr.mxu0 0.0
    %8430 = vmatpush1.msra.mxu0 0.0
    %v8431 = vand.u32 %v5940, 4294901760
    %8432 = vmatprep.subr.mxu0 %v8431
    %v8433 = vand.u32 %v5939, 4294901760
    %8434 = vmatpush1.msra.mxu0 %v8433
    %v8435 = vand.u32 %v5924, 4294901760
    %8436 = vmatprep.subr.mxu0 %v8435
    %v8437 = vand.u32 %v5923, 4294901760
    %8438 = vmatpush1.msra.mxu0 %v8437
    %v8439 = vand.u32 %v5908, 4294901760
    %8440 = vmatprep.subr.mxu0 %v8439
    %v8441 = vand.u32 %v5907, 4294901760
    %8442 = vmatpush1.msra.mxu0 %v8441
    %v8443 = vand.u32 %v5892, 4294901760
    %8444 = vmatprep.subr.mxu0 %v8443
    %v8445 = vand.u32 %v5891, 4294901760
    %8446 = vmatpush1.msra.mxu0 %v8445
    %8447 = vmatprep.subr.mxu0 0.0
    %8448 = vmatpush2.msra.mxu0 0.0
    %8449 = vmatprep.subr.mxu0 0.0
    %8450 = vmatpush2.msra.mxu0 0.0
    %8451 = vmatprep.subr.mxu0 0.0
    %8452 = vmatpush2.msra.mxu0 0.0
    %8453 = vmatprep.subr.mxu0 0.0
    %8454 = vmatpush2.msra.mxu0 0.0
    %8455 = vmatprep.subr.mxu0 0.0
    %8456 = vmatpush2.msra.mxu0 0.0
    %8457 = vmatprep.subr.mxu0 0.0
    %8458 = vmatpush2.msra.mxu0 0.0
    %8459 = vmatprep.subr.mxu0 0.0
    %8460 = vmatpush2.msra.mxu0 0.0
    %8461 = vmatprep.subr.mxu0 0.0
    %8462 = vmatpush2.msra.mxu0 0.0
    %8463 = vmatprep.subr.mxu0 0.0
    %8464 = vmatpush2.msra.mxu0 0.0
    %8465 = vmatprep.subr.mxu0 0.0
    %8466 = vmatpush2.msra.mxu0 0.0
    %8467 = vmatprep.subr.mxu0 0.0
    %8468 = vmatpush2.msra.mxu0 0.0
    %8469 = vmatprep.subr.mxu0 0.0
    %8470 = vmatpush2.msra.mxu0 0.0
    %8471 = vmatprep.subr.mxu0 0.0
    %8472 = vmatpush2.msra.mxu0 0.0
    %8473 = vmatprep.subr.mxu0 0.0
    %8474 = vmatpush2.msra.mxu0 0.0
    %8475 = vmatprep.subr.mxu0 0.0
    %8476 = vmatpush2.msra.mxu0 0.0
    %8477 = vmatprep.subr.mxu0 0.0
    %8478 = vmatpush2.msra.mxu0 0.0
    %8479 = vmatprep.mubr.f32.mxu0 0.0
    %v8480 = vand.u32 %v5948, 4294901760
    %v8481 = vsub.f32 %v5948, %v8480
    %v8482 = vand.u32 %v8481, 4294901760
    %8483 = vmatmul.mubr.f32.gmra.mxu0 %v8482
    %v8484 = vpop.f32.mrf.mxu0
    %v8485 = vadd.f32 %v8403, %v8484
    %v8486 = vpop.f32.mrf.mxu0
    %v8487 = vadd.f32 %v8405, %v8486
    %8488 = vdwg.mxu0
    %8489 = vmatprep.subr.mxu0 0.0
    %8490 = vmatpush1.msra.mxu0 0.0
    %8491 = vmatprep.subr.mxu0 0.0
    %8492 = vmatpush1.msra.mxu0 0.0
    %8493 = vmatprep.subr.mxu0 0.0
    %8494 = vmatpush1.msra.mxu0 0.0
    %8495 = vmatprep.subr.mxu0 0.0
    %8496 = vmatpush1.msra.mxu0 0.0
    %8497 = vmatprep.subr.mxu0 0.0
    %8498 = vmatpush1.msra.mxu0 0.0
    %8499 = vmatprep.subr.mxu0 0.0
    %8500 = vmatpush1.msra.mxu0 0.0
    %8501 = vmatprep.subr.mxu0 0.0
    %8502 = vmatpush1.msra.mxu0 0.0
    %8503 = vmatprep.subr.mxu0 0.0
    %8504 = vmatpush1.msra.mxu0 0.0
    %8505 = vmatprep.subr.mxu0 0.0
    %8506 = vmatpush1.msra.mxu0 0.0
    %8507 = vmatprep.subr.mxu0 0.0
    %8508 = vmatpush1.msra.mxu0 0.0
    %8509 = vmatprep.subr.mxu0 0.0
    %8510 = vmatpush1.msra.mxu0 0.0
    %8511 = vmatprep.subr.mxu0 0.0
    %8512 = vmatpush1.msra.mxu0 0.0
    %v8513 = vand.u32 %v5940, 4294901760
    %v8514 = vsub.f32 %v5940, %v8513
    %v8515 = vand.u32 %v8514, 4294901760
    %8516 = vmatprep.subr.mxu0 %v8515
    %v8517 = vand.u32 %v5939, 4294901760
    %v8518 = vsub.f32 %v5939, %v8517
    %v8519 = vand.u32 %v8518, 4294901760
    %8520 = vmatpush1.msra.mxu0 %v8519
    %v8521 = vand.u32 %v5924, 4294901760
    %v8522 = vsub.f32 %v5924, %v8521
    %v8523 = vand.u32 %v8522, 4294901760
    %8524 = vmatprep.subr.mxu0 %v8523
    %v8525 = vand.u32 %v5923, 4294901760
    %v8526 = vsub.f32 %v5923, %v8525
    %v8527 = vand.u32 %v8526, 4294901760
    %8528 = vmatpush1.msra.mxu0 %v8527
    %v8529 = vand.u32 %v5908, 4294901760
    %v8530 = vsub.f32 %v5908, %v8529
    %v8531 = vand.u32 %v8530, 4294901760
    %8532 = vmatprep.subr.mxu0 %v8531
    %v8533 = vand.u32 %v5907, 4294901760
    %v8534 = vsub.f32 %v5907, %v8533
    %v8535 = vand.u32 %v8534, 4294901760
    %8536 = vmatpush1.msra.mxu0 %v8535
    %v8537 = vand.u32 %v5892, 4294901760
    %v8538 = vsub.f32 %v5892, %v8537
    %v8539 = vand.u32 %v8538, 4294901760
    %8540 = vmatprep.subr.mxu0 %v8539
    %v8541 = vand.u32 %v5891, 4294901760
    %v8542 = vsub.f32 %v5891, %v8541
    %v8543 = vand.u32 %v8542, 4294901760
    %8544 = vmatpush1.msra.mxu0 %v8543
    %8545 = vmatprep.subr.mxu0 0.0
    %8546 = vmatpush2.msra.mxu0 0.0
    %8547 = vmatprep.subr.mxu0 0.0
    %8548 = vmatpush2.msra.mxu0 0.0
    %8549 = vmatprep.subr.mxu0 0.0
    %8550 = vmatpush2.msra.mxu0 0.0
    %8551 = vmatprep.subr.mxu0 0.0
    %8552 = vmatpush2.msra.mxu0 0.0
    %8553 = vmatprep.subr.mxu0 0.0
    %8554 = vmatpush2.msra.mxu0 0.0
    %8555 = vmatprep.subr.mxu0 0.0
    %8556 = vmatpush2.msra.mxu0 0.0
    %8557 = vmatprep.subr.mxu0 0.0
    %8558 = vmatpush2.msra.mxu0 0.0
    %8559 = vmatprep.subr.mxu0 0.0
    %8560 = vmatpush2.msra.mxu0 0.0
    %8561 = vmatprep.subr.mxu0 0.0
    %8562 = vmatpush2.msra.mxu0 0.0
    %8563 = vmatprep.subr.mxu0 0.0
    %8564 = vmatpush2.msra.mxu0 0.0
    %8565 = vmatprep.subr.mxu0 0.0
    %8566 = vmatpush2.msra.mxu0 0.0
    %8567 = vmatprep.subr.mxu0 0.0
    %8568 = vmatpush2.msra.mxu0 0.0
    %8569 = vmatprep.subr.mxu0 0.0
    %8570 = vmatpush2.msra.mxu0 0.0
    %8571 = vmatprep.subr.mxu0 0.0
    %8572 = vmatpush2.msra.mxu0 0.0
    %8573 = vmatprep.subr.mxu0 0.0
    %8574 = vmatpush2.msra.mxu0 0.0
    %8575 = vmatprep.subr.mxu0 0.0
    %8576 = vmatpush2.msra.mxu0 0.0
    %8577 = vmatprep.mubr.f32.mxu0 0.0
    %v8578 = vand.u32 %v5948, 4294901760
    %8579 = vmatmul.mubr.f32.gmra.mxu0 %v8578
    %v8580 = vpop.f32.mrf.mxu0
    %v8581 = vadd.f32 %v8485, %v8580
    %v8582 = vpop.f32.mrf.mxu0
    %v8583 = vadd.f32 %v8487, %v8582
    %8584 = vdwg.mxu0
    %8585 = vmatprep.subr.mxu0 0.0
    %8586 = vmatpush1.msra.mxu0 0.0
    %8587 = vmatprep.subr.mxu0 0.0
    %8588 = vmatpush1.msra.mxu0 0.0
    %8589 = vmatprep.subr.mxu0 0.0
    %8590 = vmatpush1.msra.mxu0 0.0
    %8591 = vmatprep.subr.mxu0 0.0
    %8592 = vmatpush1.msra.mxu0 0.0
    %8593 = vmatprep.subr.mxu0 0.0
    %8594 = vmatpush1.msra.mxu0 0.0
    %8595 = vmatprep.subr.mxu0 0.0
    %8596 = vmatpush1.msra.mxu0 0.0
    %8597 = vmatprep.subr.mxu0 0.0
    %8598 = vmatpush1.msra.mxu0 0.0
    %8599 = vmatprep.subr.mxu0 0.0
    %8600 = vmatpush1.msra.mxu0 0.0
    %8601 = vmatprep.subr.mxu0 0.0
    %8602 = vmatpush1.msra.mxu0 0.0
    %8603 = vmatprep.subr.mxu0 0.0
    %8604 = vmatpush1.msra.mxu0 0.0
    %8605 = vmatprep.subr.mxu0 0.0
    %8606 = vmatpush1.msra.mxu0 0.0
    %8607 = vmatprep.subr.mxu0 0.0
    %8608 = vmatpush1.msra.mxu0 0.0
    %v8609 = vand.u32 %v5940, 4294901760
    %8610 = vmatprep.subr.mxu0 %v8609
    %v8611 = vand.u32 %v5939, 4294901760
    %8612 = vmatpush1.msra.mxu0 %v8611
    %v8613 = vand.u32 %v5924, 4294901760
    %8614 = vmatprep.subr.mxu0 %v8613
    %v8615 = vand.u32 %v5923, 4294901760
    %8616 = vmatpush1.msra.mxu0 %v8615
    %v8617 = vand.u32 %v5908, 4294901760
    %8618 = vmatprep.subr.mxu0 %v8617
    %v8619 = vand.u32 %v5907, 4294901760
    %8620 = vmatpush1.msra.mxu0 %v8619
    %v8621 = vand.u32 %v5892, 4294901760
    %8622 = vmatprep.subr.mxu0 %v8621
    %v8623 = vand.u32 %v5891, 4294901760
    %8624 = vmatpush1.msra.mxu0 %v8623
    %8625 = vmatprep.subr.mxu0 0.0
    %8626 = vmatpush2.msra.mxu0 0.0
    %8627 = vmatprep.subr.mxu0 0.0
    %8628 = vmatpush2.msra.mxu0 0.0
    %8629 = vmatprep.subr.mxu0 0.0
    %8630 = vmatpush2.msra.mxu0 0.0
    %8631 = vmatprep.subr.mxu0 0.0
    %8632 = vmatpush2.msra.mxu0 0.0
    %8633 = vmatprep.subr.mxu0 0.0
    %8634 = vmatpush2.msra.mxu0 0.0
    %8635 = vmatprep.subr.mxu0 0.0
    %8636 = vmatpush2.msra.mxu0 0.0
    %8637 = vmatprep.subr.mxu0 0.0
    %8638 = vmatpush2.msra.mxu0 0.0
    %8639 = vmatprep.subr.mxu0 0.0
    %8640 = vmatpush2.msra.mxu0 0.0
    %8641 = vmatprep.subr.mxu0 0.0
    %8642 = vmatpush2.msra.mxu0 0.0
    %8643 = vmatprep.subr.mxu0 0.0
    %8644 = vmatpush2.msra.mxu0 0.0
    %8645 = vmatprep.subr.mxu0 0.0
    %8646 = vmatpush2.msra.mxu0 0.0
    %8647 = vmatprep.subr.mxu0 0.0
    %8648 = vmatpush2.msra.mxu0 0.0
    %8649 = vmatprep.subr.mxu0 0.0
    %8650 = vmatpush2.msra.mxu0 0.0
    %8651 = vmatprep.subr.mxu0 0.0
    %8652 = vmatpush2.msra.mxu0 0.0
    %8653 = vmatprep.subr.mxu0 0.0
    %8654 = vmatpush2.msra.mxu0 0.0
    %8655 = vmatprep.subr.mxu0 0.0
    %8656 = vmatpush2.msra.mxu0 0.0
    %8657 = vmatprep.mubr.f32.mxu0 0.0
    %v8658 = vand.u32 %v5948, 4294901760
    %8659 = vmatmul.mubr.f32.gmra.mxu0 %v8658
    %v8660 = vpop.f32.mrf.mxu0
    %v8661 = vadd.f32 %v8581, %v8660
    %v8662 = vpop.f32.mrf.mxu0
    %v8663 = vadd.f32 %v8583, %v8662
    %8664 = vdwg.mxu0
    %8665 = vmatprep.subr.mxu0 0.0
    %8666 = vmatpush1.msra.mxu0 0.0
    %8667 = vmatprep.subr.mxu0 0.0
    %8668 = vmatpush1.msra.mxu0 0.0
    %8669 = vmatprep.subr.mxu0 0.0
    %8670 = vmatpush1.msra.mxu0 0.0
    %8671 = vmatprep.subr.mxu0 0.0
    %8672 = vmatpush1.msra.mxu0 0.0
    %8673 = vmatprep.subr.mxu0 0.0
    %8674 = vmatpush1.msra.mxu0 0.0
    %8675 = vmatprep.subr.mxu0 0.0
    %8676 = vmatpush1.msra.mxu0 0.0
    %8677 = vmatprep.subr.mxu0 0.0
    %8678 = vmatpush1.msra.mxu0 0.0
    %8679 = vmatprep.subr.mxu0 0.0
    %8680 = vmatpush1.msra.mxu0 0.0
    %8681 = vmatprep.subr.mxu0 0.0
    %8682 = vmatpush1.msra.mxu0 0.0
    %8683 = vmatprep.subr.mxu0 0.0
    %8684 = vmatpush1.msra.mxu0 0.0
    %8685 = vmatprep.subr.mxu0 0.0
    %8686 = vmatpush1.msra.mxu0 0.0
    %8687 = vmatprep.subr.mxu0 0.0
    %8688 = vmatpush1.msra.mxu0 0.0
    %v8689 = vand.u32 %v5942, 4294901760
    %8690 = vmatprep.subr.mxu0 %v8689
    %v8691 = vand.u32 %v5941, 4294901760
    %8692 = vmatpush1.msra.mxu0 %v8691
    %v8693 = vand.u32 %v5926, 4294901760
    %8694 = vmatprep.subr.mxu0 %v8693
    %v8695 = vand.u32 %v5925, 4294901760
    %8696 = vmatpush1.msra.mxu0 %v8695
    %v8697 = vand.u32 %v5910, 4294901760
    %8698 = vmatprep.subr.mxu0 %v8697
    %v8699 = vand.u32 %v5909, 4294901760
    %8700 = vmatpush1.msra.mxu0 %v8699
    %v8701 = vand.u32 %v5894, 4294901760
    %8702 = vmatprep.subr.mxu0 %v8701
    %v8703 = vand.u32 %v5893, 4294901760
    %8704 = vmatpush1.msra.mxu0 %v8703
    %8705 = vmatprep.subr.mxu0 0.0
    %8706 = vmatpush2.msra.mxu0 0.0
    %8707 = vmatprep.subr.mxu0 0.0
    %8708 = vmatpush2.msra.mxu0 0.0
    %8709 = vmatprep.subr.mxu0 0.0
    %8710 = vmatpush2.msra.mxu0 0.0
    %8711 = vmatprep.subr.mxu0 0.0
    %8712 = vmatpush2.msra.mxu0 0.0
    %8713 = vmatprep.subr.mxu0 0.0
    %8714 = vmatpush2.msra.mxu0 0.0
    %8715 = vmatprep.subr.mxu0 0.0
    %8716 = vmatpush2.msra.mxu0 0.0
    %8717 = vmatprep.subr.mxu0 0.0
    %8718 = vmatpush2.msra.mxu0 0.0
    %8719 = vmatprep.subr.mxu0 0.0
    %8720 = vmatpush2.msra.mxu0 0.0
    %8721 = vmatprep.subr.mxu0 0.0
    %8722 = vmatpush2.msra.mxu0 0.0
    %8723 = vmatprep.subr.mxu0 0.0
    %8724 = vmatpush2.msra.mxu0 0.0
    %8725 = vmatprep.subr.mxu0 0.0
    %8726 = vmatpush2.msra.mxu0 0.0
    %8727 = vmatprep.subr.mxu0 0.0
    %8728 = vmatpush2.msra.mxu0 0.0
    %8729 = vmatprep.subr.mxu0 0.0
    %8730 = vmatpush2.msra.mxu0 0.0
    %8731 = vmatprep.subr.mxu0 0.0
    %8732 = vmatpush2.msra.mxu0 0.0
    %8733 = vmatprep.subr.mxu0 0.0
    %8734 = vmatpush2.msra.mxu0 0.0
    %8735 = vmatprep.subr.mxu0 0.0
    %8736 = vmatpush2.msra.mxu0 0.0
    %8737 = vmatprep.mubr.f32.mxu0 0.0
    %v8738 = vand.u32 %v5948, 4294901760
    %v8739 = vsub.f32 %v5948, %v8738
    %v8740 = vand.u32 %v8739, 4294901760
    %v8741 = vsub.f32 %v8739, %v8740
    %v8742 = vand.u32 %v8741, 4294901760
    %8743 = vmatmul.mubr.f32.gmra.mxu0 %v8742
    %v8744 = vpop.f32.mrf.mxu0
    %v8745 = vadd.f32 0.0, %v8744
    %v8746 = vpop.f32.mrf.mxu0
    %v8747 = vadd.f32 0.0, %v8746
    %8748 = vdwg.mxu0
    %8749 = vmatprep.subr.mxu0 0.0
    %8750 = vmatpush1.msra.mxu0 0.0
    %8751 = vmatprep.subr.mxu0 0.0
    %8752 = vmatpush1.msra.mxu0 0.0
    %8753 = vmatprep.subr.mxu0 0.0
    %8754 = vmatpush1.msra.mxu0 0.0
    %8755 = vmatprep.subr.mxu0 0.0
    %8756 = vmatpush1.msra.mxu0 0.0
    %8757 = vmatprep.subr.mxu0 0.0
    %8758 = vmatpush1.msra.mxu0 0.0
    %8759 = vmatprep.subr.mxu0 0.0
    %8760 = vmatpush1.msra.mxu0 0.0
    %8761 = vmatprep.subr.mxu0 0.0
    %8762 = vmatpush1.msra.mxu0 0.0
    %8763 = vmatprep.subr.mxu0 0.0
    %8764 = vmatpush1.msra.mxu0 0.0
    %8765 = vmatprep.subr.mxu0 0.0
    %8766 = vmatpush1.msra.mxu0 0.0
    %8767 = vmatprep.subr.mxu0 0.0
    %8768 = vmatpush1.msra.mxu0 0.0
    %8769 = vmatprep.subr.mxu0 0.0
    %8770 = vmatpush1.msra.mxu0 0.0
    %8771 = vmatprep.subr.mxu0 0.0
    %8772 = vmatpush1.msra.mxu0 0.0
    %v8773 = vand.u32 %v5942, 4294901760
    %v8774 = vsub.f32 %v5942, %v8773
    %v8775 = vand.u32 %v8774, 4294901760
    %v8776 = vsub.f32 %v8774, %v8775
    %v8777 = vand.u32 %v8776, 4294901760
    %8778 = vmatprep.subr.mxu0 %v8777
    %v8779 = vand.u32 %v5941, 4294901760
    %v8780 = vsub.f32 %v5941, %v8779
    %v8781 = vand.u32 %v8780, 4294901760
    %v8782 = vsub.f32 %v8780, %v8781
    %v8783 = vand.u32 %v8782, 4294901760
    %8784 = vmatpush1.msra.mxu0 %v8783
    %v8785 = vand.u32 %v5926, 4294901760
    %v8786 = vsub.f32 %v5926, %v8785
    %v8787 = vand.u32 %v8786, 4294901760
    %v8788 = vsub.f32 %v8786, %v8787
    %v8789 = vand.u32 %v8788, 4294901760
    %8790 = vmatprep.subr.mxu0 %v8789
    %v8791 = vand.u32 %v5925, 4294901760
    %v8792 = vsub.f32 %v5925, %v8791
    %v8793 = vand.u32 %v8792, 4294901760
    %v8794 = vsub.f32 %v8792, %v8793
    %v8795 = vand.u32 %v8794, 4294901760
    %8796 = vmatpush1.msra.mxu0 %v8795
    %v8797 = vand.u32 %v5910, 4294901760
    %v8798 = vsub.f32 %v5910, %v8797
    %v8799 = vand.u32 %v8798, 4294901760
    %v8800 = vsub.f32 %v8798, %v8799
    %v8801 = vand.u32 %v8800, 4294901760
    %8802 = vmatprep.subr.mxu0 %v8801
    %v8803 = vand.u32 %v5909, 4294901760
    %v8804 = vsub.f32 %v5909, %v8803
    %v8805 = vand.u32 %v8804, 4294901760
    %v8806 = vsub.f32 %v8804, %v8805
    %v8807 = vand.u32 %v8806, 4294901760
    %8808 = vmatpush1.msra.mxu0 %v8807
    %v8809 = vand.u32 %v5894, 4294901760
    %v8810 = vsub.f32 %v5894, %v8809
    %v8811 = vand.u32 %v8810, 4294901760
    %v8812 = vsub.f32 %v8810, %v8811
    %v8813 = vand.u32 %v8812, 4294901760
    %8814 = vmatprep.subr.mxu0 %v8813
    %v8815 = vand.u32 %v5893, 4294901760
    %v8816 = vsub.f32 %v5893, %v8815
    %v8817 = vand.u32 %v8816, 4294901760
    %v8818 = vsub.f32 %v8816, %v8817
    %v8819 = vand.u32 %v8818, 4294901760
    %8820 = vmatpush1.msra.mxu0 %v8819
    %8821 = vmatprep.subr.mxu0 0.0
    %8822 = vmatpush2.msra.mxu0 0.0
    %8823 = vmatprep.subr.mxu0 0.0
    %8824 = vmatpush2.msra.mxu0 0.0
    %8825 = vmatprep.subr.mxu0 0.0
    %8826 = vmatpush2.msra.mxu0 0.0
    %8827 = vmatprep.subr.mxu0 0.0
    %8828 = vmatpush2.msra.mxu0 0.0
    %8829 = vmatprep.subr.mxu0 0.0
    %8830 = vmatpush2.msra.mxu0 0.0
    %8831 = vmatprep.subr.mxu0 0.0
    %8832 = vmatpush2.msra.mxu0 0.0
    %8833 = vmatprep.subr.mxu0 0.0
    %8834 = vmatpush2.msra.mxu0 0.0
    %8835 = vmatprep.subr.mxu0 0.0
    %8836 = vmatpush2.msra.mxu0 0.0
    %8837 = vmatprep.subr.mxu0 0.0
    %8838 = vmatpush2.msra.mxu0 0.0
    %8839 = vmatprep.subr.mxu0 0.0
    %8840 = vmatpush2.msra.mxu0 0.0
    %8841 = vmatprep.subr.mxu0 0.0
    %8842 = vmatpush2.msra.mxu0 0.0
    %8843 = vmatprep.subr.mxu0 0.0
    %8844 = vmatpush2.msra.mxu0 0.0
    %8845 = vmatprep.subr.mxu0 0.0
    %8846 = vmatpush2.msra.mxu0 0.0
    %8847 = vmatprep.subr.mxu0 0.0
    %8848 = vmatpush2.msra.mxu0 0.0
    %8849 = vmatprep.subr.mxu0 0.0
    %8850 = vmatpush2.msra.mxu0 0.0
    %8851 = vmatprep.subr.mxu0 0.0
    %8852 = vmatpush2.msra.mxu0 0.0
    %8853 = vmatprep.mubr.f32.mxu0 0.0
    %v8854 = vand.u32 %v5948, 4294901760
    %8855 = vmatmul.mubr.f32.gmra.mxu0 %v8854
    %v8856 = vpop.f32.mrf.mxu0
    %v8857 = vadd.f32 %v8745, %v8856
    %v8858 = vpop.f32.mrf.mxu0
    %v8859 = vadd.f32 %v8747, %v8858
    %8860 = vdwg.mxu0
    %8861 = vmatprep.subr.mxu0 0.0
    %8862 = vmatpush1.msra.mxu0 0.0
    %8863 = vmatprep.subr.mxu0 0.0
    %8864 = vmatpush1.msra.mxu0 0.0
    %8865 = vmatprep.subr.mxu0 0.0
    %8866 = vmatpush1.msra.mxu0 0.0
    %8867 = vmatprep.subr.mxu0 0.0
    %8868 = vmatpush1.msra.mxu0 0.0
    %8869 = vmatprep.subr.mxu0 0.0
    %8870 = vmatpush1.msra.mxu0 0.0
    %8871 = vmatprep.subr.mxu0 0.0
    %8872 = vmatpush1.msra.mxu0 0.0
    %8873 = vmatprep.subr.mxu0 0.0
    %8874 = vmatpush1.msra.mxu0 0.0
    %8875 = vmatprep.subr.mxu0 0.0
    %8876 = vmatpush1.msra.mxu0 0.0
    %8877 = vmatprep.subr.mxu0 0.0
    %8878 = vmatpush1.msra.mxu0 0.0
    %8879 = vmatprep.subr.mxu0 0.0
    %8880 = vmatpush1.msra.mxu0 0.0
    %8881 = vmatprep.subr.mxu0 0.0
    %8882 = vmatpush1.msra.mxu0 0.0
    %8883 = vmatprep.subr.mxu0 0.0
    %8884 = vmatpush1.msra.mxu0 0.0
    %v8885 = vand.u32 %v5942, 4294901760
    %v8886 = vsub.f32 %v5942, %v8885
    %8887 = vmatprep.subr.mxu0 %v8886
    %v8888 = vand.u32 %v5941, 4294901760
    %v8889 = vsub.f32 %v5941, %v8888
    %8890 = vmatpush1.msra.mxu0 %v8889
    %v8891 = vand.u32 %v5926, 4294901760
    %v8892 = vsub.f32 %v5926, %v8891
    %8893 = vmatprep.subr.mxu0 %v8892
    %v8894 = vand.u32 %v5925, 4294901760
    %v8895 = vsub.f32 %v5925, %v8894
    %8896 = vmatpush1.msra.mxu0 %v8895
    %v8897 = vand.u32 %v5910, 4294901760
    %v8898 = vsub.f32 %v5910, %v8897
    %8899 = vmatprep.subr.mxu0 %v8898
    %v8900 = vand.u32 %v5909, 4294901760
    %v8901 = vsub.f32 %v5909, %v8900
    %8902 = vmatpush1.msra.mxu0 %v8901
    %v8903 = vand.u32 %v5894, 4294901760
    %v8904 = vsub.f32 %v5894, %v8903
    %8905 = vmatprep.subr.mxu0 %v8904
    %v8906 = vand.u32 %v5893, 4294901760
    %v8907 = vsub.f32 %v5893, %v8906
    %8908 = vmatpush1.msra.mxu0 %v8907
    %8909 = vmatprep.subr.mxu0 0.0
    %8910 = vmatpush2.msra.mxu0 0.0
    %8911 = vmatprep.subr.mxu0 0.0
    %8912 = vmatpush2.msra.mxu0 0.0
    %8913 = vmatprep.subr.mxu0 0.0
    %8914 = vmatpush2.msra.mxu0 0.0
    %8915 = vmatprep.subr.mxu0 0.0
    %8916 = vmatpush2.msra.mxu0 0.0
    %8917 = vmatprep.subr.mxu0 0.0
    %8918 = vmatpush2.msra.mxu0 0.0
    %8919 = vmatprep.subr.mxu0 0.0
    %8920 = vmatpush2.msra.mxu0 0.0
    %8921 = vmatprep.subr.mxu0 0.0
    %8922 = vmatpush2.msra.mxu0 0.0
    %8923 = vmatprep.subr.mxu0 0.0
    %8924 = vmatpush2.msra.mxu0 0.0
    %8925 = vmatprep.subr.mxu0 0.0
    %8926 = vmatpush2.msra.mxu0 0.0
    %8927 = vmatprep.subr.mxu0 0.0
    %8928 = vmatpush2.msra.mxu0 0.0
    %8929 = vmatprep.subr.mxu0 0.0
    %8930 = vmatpush2.msra.mxu0 0.0
    %8931 = vmatprep.subr.mxu0 0.0
    %8932 = vmatpush2.msra.mxu0 0.0
    %8933 = vmatprep.subr.mxu0 0.0
    %8934 = vmatpush2.msra.mxu0 0.0
    %8935 = vmatprep.subr.mxu0 0.0
    %8936 = vmatpush2.msra.mxu0 0.0
    %8937 = vmatprep.subr.mxu0 0.0
    %8938 = vmatpush2.msra.mxu0 0.0
    %8939 = vmatprep.subr.mxu0 0.0
    %8940 = vmatpush2.msra.mxu0 0.0
    %8941 = vmatprep.mubr.f32.mxu0 0.0
    %v8942 = vand.u32 %v5948, 4294901760
    %v8943 = vsub.f32 %v5948, %v8942
    %8944 = vmatmul.mubr.f32.gmra.mxu0 %v8943
    %v8945 = vpop.f32.mrf.mxu0
    %v8946 = vadd.f32 %v8857, %v8945
    %v8947 = vpop.f32.mrf.mxu0
    %v8948 = vadd.f32 %v8859, %v8947
    %8949 = vdwg.mxu0
    %8950 = vmatprep.subr.mxu0 0.0
    %8951 = vmatpush1.msra.mxu0 0.0
    %8952 = vmatprep.subr.mxu0 0.0
    %8953 = vmatpush1.msra.mxu0 0.0
    %8954 = vmatprep.subr.mxu0 0.0
    %8955 = vmatpush1.msra.mxu0 0.0
    %8956 = vmatprep.subr.mxu0 0.0
    %8957 = vmatpush1.msra.mxu0 0.0
    %8958 = vmatprep.subr.mxu0 0.0
    %8959 = vmatpush1.msra.mxu0 0.0
    %8960 = vmatprep.subr.mxu0 0.0
    %8961 = vmatpush1.msra.mxu0 0.0
    %8962 = vmatprep.subr.mxu0 0.0
    %8963 = vmatpush1.msra.mxu0 0.0
    %8964 = vmatprep.subr.mxu0 0.0
    %8965 = vmatpush1.msra.mxu0 0.0
    %8966 = vmatprep.subr.mxu0 0.0
    %8967 = vmatpush1.msra.mxu0 0.0
    %8968 = vmatprep.subr.mxu0 0.0
    %8969 = vmatpush1.msra.mxu0 0.0
    %8970 = vmatprep.subr.mxu0 0.0
    %8971 = vmatpush1.msra.mxu0 0.0
    %8972 = vmatprep.subr.mxu0 0.0
    %8973 = vmatpush1.msra.mxu0 0.0
    %v8974 = vand.u32 %v5942, 4294901760
    %8975 = vmatprep.subr.mxu0 %v8974
    %v8976 = vand.u32 %v5941, 4294901760
    %8977 = vmatpush1.msra.mxu0 %v8976
    %v8978 = vand.u32 %v5926, 4294901760
    %8979 = vmatprep.subr.mxu0 %v8978
    %v8980 = vand.u32 %v5925, 4294901760
    %8981 = vmatpush1.msra.mxu0 %v8980
    %v8982 = vand.u32 %v5910, 4294901760
    %8983 = vmatprep.subr.mxu0 %v8982
    %v8984 = vand.u32 %v5909, 4294901760
    %8985 = vmatpush1.msra.mxu0 %v8984
    %v8986 = vand.u32 %v5894, 4294901760
    %8987 = vmatprep.subr.mxu0 %v8986
    %v8988 = vand.u32 %v5893, 4294901760
    %8989 = vmatpush1.msra.mxu0 %v8988
    %8990 = vmatprep.subr.mxu0 0.0
    %8991 = vmatpush2.msra.mxu0 0.0
    %8992 = vmatprep.subr.mxu0 0.0
    %8993 = vmatpush2.msra.mxu0 0.0
    %8994 = vmatprep.subr.mxu0 0.0
    %8995 = vmatpush2.msra.mxu0 0.0
    %8996 = vmatprep.subr.mxu0 0.0
    %8997 = vmatpush2.msra.mxu0 0.0
    %8998 = vmatprep.subr.mxu0 0.0
    %8999 = vmatpush2.msra.mxu0 0.0
    %9000 = vmatprep.subr.mxu0 0.0
    %9001 = vmatpush2.msra.mxu0 0.0
    %9002 = vmatprep.subr.mxu0 0.0
    %9003 = vmatpush2.msra.mxu0 0.0
    %9004 = vmatprep.subr.mxu0 0.0
    %9005 = vmatpush2.msra.mxu0 0.0
    %9006 = vmatprep.subr.mxu0 0.0
    %9007 = vmatpush2.msra.mxu0 0.0
    %9008 = vmatprep.subr.mxu0 0.0
    %9009 = vmatpush2.msra.mxu0 0.0
    %9010 = vmatprep.subr.mxu0 0.0
    %9011 = vmatpush2.msra.mxu0 0.0
    %9012 = vmatprep.subr.mxu0 0.0
    %9013 = vmatpush2.msra.mxu0 0.0
    %9014 = vmatprep.subr.mxu0 0.0
    %9015 = vmatpush2.msra.mxu0 0.0
    %9016 = vmatprep.subr.mxu0 0.0
    %9017 = vmatpush2.msra.mxu0 0.0
    %9018 = vmatprep.subr.mxu0 0.0
    %9019 = vmatpush2.msra.mxu0 0.0
    %9020 = vmatprep.subr.mxu0 0.0
    %9021 = vmatpush2.msra.mxu0 0.0
    %9022 = vmatprep.mubr.f32.mxu0 0.0
    %v9023 = vand.u32 %v5948, 4294901760
    %v9024 = vsub.f32 %v5948, %v9023
    %v9025 = vand.u32 %v9024, 4294901760
    %9026 = vmatmul.mubr.f32.gmra.mxu0 %v9025
    %v9027 = vpop.f32.mrf.mxu0
    %v9028 = vadd.f32 %v8946, %v9027
    %v9029 = vpop.f32.mrf.mxu0
    %v9030 = vadd.f32 %v8948, %v9029
    %9031 = vdwg.mxu0
    %9032 = vmatprep.subr.mxu0 0.0
    %9033 = vmatpush1.msra.mxu0 0.0
    %9034 = vmatprep.subr.mxu0 0.0
    %9035 = vmatpush1.msra.mxu0 0.0
    %9036 = vmatprep.subr.mxu0 0.0
    %9037 = vmatpush1.msra.mxu0 0.0
    %9038 = vmatprep.subr.mxu0 0.0
    %9039 = vmatpush1.msra.mxu0 0.0
    %9040 = vmatprep.subr.mxu0 0.0
    %9041 = vmatpush1.msra.mxu0 0.0
    %9042 = vmatprep.subr.mxu0 0.0
    %9043 = vmatpush1.msra.mxu0 0.0
    %9044 = vmatprep.subr.mxu0 0.0
    %9045 = vmatpush1.msra.mxu0 0.0
    %9046 = vmatprep.subr.mxu0 0.0
    %9047 = vmatpush1.msra.mxu0 0.0
    %9048 = vmatprep.subr.mxu0 0.0
    %9049 = vmatpush1.msra.mxu0 0.0
    %9050 = vmatprep.subr.mxu0 0.0
    %9051 = vmatpush1.msra.mxu0 0.0
    %9052 = vmatprep.subr.mxu0 0.0
    %9053 = vmatpush1.msra.mxu0 0.0
    %9054 = vmatprep.subr.mxu0 0.0
    %9055 = vmatpush1.msra.mxu0 0.0
    %v9056 = vand.u32 %v5942, 4294901760
    %v9057 = vsub.f32 %v5942, %v9056
    %v9058 = vand.u32 %v9057, 4294901760
    %9059 = vmatprep.subr.mxu0 %v9058
    %v9060 = vand.u32 %v5941, 4294901760
    %v9061 = vsub.f32 %v5941, %v9060
    %v9062 = vand.u32 %v9061, 4294901760
    %9063 = vmatpush1.msra.mxu0 %v9062
    %v9064 = vand.u32 %v5926, 4294901760
    %v9065 = vsub.f32 %v5926, %v9064
    %v9066 = vand.u32 %v9065, 4294901760
    %9067 = vmatprep.subr.mxu0 %v9066
    %v9068 = vand.u32 %v5925, 4294901760
    %v9069 = vsub.f32 %v5925, %v9068
    %v9070 = vand.u32 %v9069, 4294901760
    %9071 = vmatpush1.msra.mxu0 %v9070
    %v9072 = vand.u32 %v5910, 4294901760
    %v9073 = vsub.f32 %v5910, %v9072
    %v9074 = vand.u32 %v9073, 4294901760
    %9075 = vmatprep.subr.mxu0 %v9074
    %v9076 = vand.u32 %v5909, 4294901760
    %v9077 = vsub.f32 %v5909, %v9076
    %v9078 = vand.u32 %v9077, 4294901760
    %9079 = vmatpush1.msra.mxu0 %v9078
    %v9080 = vand.u32 %v5894, 4294901760
    %v9081 = vsub.f32 %v5894, %v9080
    %v9082 = vand.u32 %v9081, 4294901760
    %9083 = vmatprep.subr.mxu0 %v9082
    %v9084 = vand.u32 %v5893, 4294901760
    %v9085 = vsub.f32 %v5893, %v9084
    %v9086 = vand.u32 %v9085, 4294901760
    %9087 = vmatpush1.msra.mxu0 %v9086
    %9088 = vmatprep.subr.mxu0 0.0
    %9089 = vmatpush2.msra.mxu0 0.0
    %9090 = vmatprep.subr.mxu0 0.0
    %9091 = vmatpush2.msra.mxu0 0.0
    %9092 = vmatprep.subr.mxu0 0.0
    %9093 = vmatpush2.msra.mxu0 0.0
    %9094 = vmatprep.subr.mxu0 0.0
    %9095 = vmatpush2.msra.mxu0 0.0
    %9096 = vmatprep.subr.mxu0 0.0
    %9097 = vmatpush2.msra.mxu0 0.0
    %9098 = vmatprep.subr.mxu0 0.0
    %9099 = vmatpush2.msra.mxu0 0.0
    %9100 = vmatprep.subr.mxu0 0.0
    %9101 = vmatpush2.msra.mxu0 0.0
    %9102 = vmatprep.subr.mxu0 0.0
    %9103 = vmatpush2.msra.mxu0 0.0
    %9104 = vmatprep.subr.mxu0 0.0
    %9105 = vmatpush2.msra.mxu0 0.0
    %9106 = vmatprep.subr.mxu0 0.0
    %9107 = vmatpush2.msra.mxu0 0.0
    %9108 = vmatprep.subr.mxu0 0.0
    %9109 = vmatpush2.msra.mxu0 0.0
    %9110 = vmatprep.subr.mxu0 0.0
    %9111 = vmatpush2.msra.mxu0 0.0
    %9112 = vmatprep.subr.mxu0 0.0
    %9113 = vmatpush2.msra.mxu0 0.0
    %9114 = vmatprep.subr.mxu0 0.0
    %9115 = vmatpush2.msra.mxu0 0.0
    %9116 = vmatprep.subr.mxu0 0.0
    %9117 = vmatpush2.msra.mxu0 0.0
    %9118 = vmatprep.subr.mxu0 0.0
    %9119 = vmatpush2.msra.mxu0 0.0
    %9120 = vmatprep.mubr.f32.mxu0 0.0
    %v9121 = vand.u32 %v5948, 4294901760
    %9122 = vmatmul.mubr.f32.gmra.mxu0 %v9121
    %v9123 = vpop.f32.mrf.mxu0
    %v9124 = vadd.f32 %v9028, %v9123
    %v9125 = vpop.f32.mrf.mxu0
    %v9126 = vadd.f32 %v9030, %v9125
    %9127 = vdwg.mxu0
    %9128 = vmatprep.subr.mxu0 0.0
    %9129 = vmatpush1.msra.mxu0 0.0
    %9130 = vmatprep.subr.mxu0 0.0
    %9131 = vmatpush1.msra.mxu0 0.0
    %9132 = vmatprep.subr.mxu0 0.0
    %9133 = vmatpush1.msra.mxu0 0.0
    %9134 = vmatprep.subr.mxu0 0.0
    %9135 = vmatpush1.msra.mxu0 0.0
    %9136 = vmatprep.subr.mxu0 0.0
    %9137 = vmatpush1.msra.mxu0 0.0
    %9138 = vmatprep.subr.mxu0 0.0
    %9139 = vmatpush1.msra.mxu0 0.0
    %9140 = vmatprep.subr.mxu0 0.0
    %9141 = vmatpush1.msra.mxu0 0.0
    %9142 = vmatprep.subr.mxu0 0.0
    %9143 = vmatpush1.msra.mxu0 0.0
    %9144 = vmatprep.subr.mxu0 0.0
    %9145 = vmatpush1.msra.mxu0 0.0
    %9146 = vmatprep.subr.mxu0 0.0
    %9147 = vmatpush1.msra.mxu0 0.0
    %9148 = vmatprep.subr.mxu0 0.0
    %9149 = vmatpush1.msra.mxu0 0.0
    %9150 = vmatprep.subr.mxu0 0.0
    %9151 = vmatpush1.msra.mxu0 0.0
    %v9152 = vand.u32 %v5942, 4294901760
    %9153 = vmatprep.subr.mxu0 %v9152
    %v9154 = vand.u32 %v5941, 4294901760
    %9155 = vmatpush1.msra.mxu0 %v9154
    %v9156 = vand.u32 %v5926, 4294901760
    %9157 = vmatprep.subr.mxu0 %v9156
    %v9158 = vand.u32 %v5925, 4294901760
    %9159 = vmatpush1.msra.mxu0 %v9158
    %v9160 = vand.u32 %v5910, 4294901760
    %9161 = vmatprep.subr.mxu0 %v9160
    %v9162 = vand.u32 %v5909, 4294901760
    %9163 = vmatpush1.msra.mxu0 %v9162
    %v9164 = vand.u32 %v5894, 4294901760
    %9165 = vmatprep.subr.mxu0 %v9164
    %v9166 = vand.u32 %v5893, 4294901760
    %9167 = vmatpush1.msra.mxu0 %v9166
    %9168 = vmatprep.subr.mxu0 0.0
    %9169 = vmatpush2.msra.mxu0 0.0
    %9170 = vmatprep.subr.mxu0 0.0
    %9171 = vmatpush2.msra.mxu0 0.0
    %9172 = vmatprep.subr.mxu0 0.0
    %9173 = vmatpush2.msra.mxu0 0.0
    %9174 = vmatprep.subr.mxu0 0.0
    %9175 = vmatpush2.msra.mxu0 0.0
    %9176 = vmatprep.subr.mxu0 0.0
    %9177 = vmatpush2.msra.mxu0 0.0
    %9178 = vmatprep.subr.mxu0 0.0
    %9179 = vmatpush2.msra.mxu0 0.0
    %9180 = vmatprep.subr.mxu0 0.0
    %9181 = vmatpush2.msra.mxu0 0.0
    %9182 = vmatprep.subr.mxu0 0.0
    %9183 = vmatpush2.msra.mxu0 0.0
    %9184 = vmatprep.subr.mxu0 0.0
    %9185 = vmatpush2.msra.mxu0 0.0
    %9186 = vmatprep.subr.mxu0 0.0
    %9187 = vmatpush2.msra.mxu0 0.0
    %9188 = vmatprep.subr.mxu0 0.0
    %9189 = vmatpush2.msra.mxu0 0.0
    %9190 = vmatprep.subr.mxu0 0.0
    %9191 = vmatpush2.msra.mxu0 0.0
    %9192 = vmatprep.subr.mxu0 0.0
    %9193 = vmatpush2.msra.mxu0 0.0
    %9194 = vmatprep.subr.mxu0 0.0
    %9195 = vmatpush2.msra.mxu0 0.0
    %9196 = vmatprep.subr.mxu0 0.0
    %9197 = vmatpush2.msra.mxu0 0.0
    %9198 = vmatprep.subr.mxu0 0.0
    %9199 = vmatpush2.msra.mxu0 0.0
    %9200 = vmatprep.mubr.f32.mxu0 0.0
    %v9201 = vand.u32 %v5948, 4294901760
    %9202 = vmatmul.mubr.f32.gmra.mxu0 %v9201
    %v9203 = vpop.f32.mrf.mxu0
    %v9204 = vadd.f32 %v9124, %v9203
    %v9205 = vpop.f32.mrf.mxu0
    %v9206 = vadd.f32 %v9126, %v9205
    %9207 = vdwg.mxu0
    %9208 = vmatprep.subr.mxu0 0.0
    %9209 = vmatpush1.msra.mxu0 0.0
    %9210 = vmatprep.subr.mxu0 0.0
    %9211 = vmatpush1.msra.mxu0 0.0
    %9212 = vmatprep.subr.mxu0 0.0
    %9213 = vmatpush1.msra.mxu0 0.0
    %9214 = vmatprep.subr.mxu0 0.0
    %9215 = vmatpush1.msra.mxu0 0.0
    %9216 = vmatprep.subr.mxu0 0.0
    %9217 = vmatpush1.msra.mxu0 0.0
    %9218 = vmatprep.subr.mxu0 0.0
    %9219 = vmatpush1.msra.mxu0 0.0
    %9220 = vmatprep.subr.mxu0 0.0
    %9221 = vmatpush1.msra.mxu0 0.0
    %9222 = vmatprep.subr.mxu0 0.0
    %9223 = vmatpush1.msra.mxu0 0.0
    %9224 = vmatprep.subr.mxu0 0.0
    %9225 = vmatpush1.msra.mxu0 0.0
    %9226 = vmatprep.subr.mxu0 0.0
    %9227 = vmatpush1.msra.mxu0 0.0
    %9228 = vmatprep.subr.mxu0 0.0
    %9229 = vmatpush1.msra.mxu0 0.0
    %9230 = vmatprep.subr.mxu0 0.0
    %9231 = vmatpush1.msra.mxu0 0.0
    %v9232 = vand.u32 %v5944, 4294901760
    %9233 = vmatprep.subr.mxu0 %v9232
    %v9234 = vand.u32 %v5943, 4294901760
    %9235 = vmatpush1.msra.mxu0 %v9234
    %v9236 = vand.u32 %v5928, 4294901760
    %9237 = vmatprep.subr.mxu0 %v9236
    %v9238 = vand.u32 %v5927, 4294901760
    %9239 = vmatpush1.msra.mxu0 %v9238
    %v9240 = vand.u32 %v5912, 4294901760
    %9241 = vmatprep.subr.mxu0 %v9240
    %v9242 = vand.u32 %v5911, 4294901760
    %9243 = vmatpush1.msra.mxu0 %v9242
    %v9244 = vand.u32 %v5896, 4294901760
    %9245 = vmatprep.subr.mxu0 %v9244
    %v9246 = vand.u32 %v5895, 4294901760
    %9247 = vmatpush1.msra.mxu0 %v9246
    %9248 = vmatprep.subr.mxu0 0.0
    %9249 = vmatpush2.msra.mxu0 0.0
    %9250 = vmatprep.subr.mxu0 0.0
    %9251 = vmatpush2.msra.mxu0 0.0
    %9252 = vmatprep.subr.mxu0 0.0
    %9253 = vmatpush2.msra.mxu0 0.0
    %9254 = vmatprep.subr.mxu0 0.0
    %9255 = vmatpush2.msra.mxu0 0.0
    %9256 = vmatprep.subr.mxu0 0.0
    %9257 = vmatpush2.msra.mxu0 0.0
    %9258 = vmatprep.subr.mxu0 0.0
    %9259 = vmatpush2.msra.mxu0 0.0
    %9260 = vmatprep.subr.mxu0 0.0
    %9261 = vmatpush2.msra.mxu0 0.0
    %9262 = vmatprep.subr.mxu0 0.0
    %9263 = vmatpush2.msra.mxu0 0.0
    %9264 = vmatprep.subr.mxu0 0.0
    %9265 = vmatpush2.msra.mxu0 0.0
    %9266 = vmatprep.subr.mxu0 0.0
    %9267 = vmatpush2.msra.mxu0 0.0
    %9268 = vmatprep.subr.mxu0 0.0
    %9269 = vmatpush2.msra.mxu0 0.0
    %9270 = vmatprep.subr.mxu0 0.0
    %9271 = vmatpush2.msra.mxu0 0.0
    %9272 = vmatprep.subr.mxu0 0.0
    %9273 = vmatpush2.msra.mxu0 0.0
    %9274 = vmatprep.subr.mxu0 0.0
    %9275 = vmatpush2.msra.mxu0 0.0
    %9276 = vmatprep.subr.mxu0 0.0
    %9277 = vmatpush2.msra.mxu0 0.0
    %9278 = vmatprep.subr.mxu0 0.0
    %9279 = vmatpush2.msra.mxu0 0.0
    %9280 = vmatprep.mubr.f32.mxu0 0.0
    %v9281 = vand.u32 %v5948, 4294901760
    %v9282 = vsub.f32 %v5948, %v9281
    %v9283 = vand.u32 %v9282, 4294901760
    %v9284 = vsub.f32 %v9282, %v9283
    %v9285 = vand.u32 %v9284, 4294901760
    %9286 = vmatmul.mubr.f32.gmra.mxu0 %v9285
    %v9287 = vpop.f32.mrf.mxu0
    %v9288 = vadd.f32 0.0, %v9287
    %v9289 = vpop.f32.mrf.mxu0
    %v9290 = vadd.f32 0.0, %v9289
    %9291 = vdwg.mxu0
    %9292 = vmatprep.subr.mxu0 0.0
    %9293 = vmatpush1.msra.mxu0 0.0
    %9294 = vmatprep.subr.mxu0 0.0
    %9295 = vmatpush1.msra.mxu0 0.0
    %9296 = vmatprep.subr.mxu0 0.0
    %9297 = vmatpush1.msra.mxu0 0.0
    %9298 = vmatprep.subr.mxu0 0.0
    %9299 = vmatpush1.msra.mxu0 0.0
    %9300 = vmatprep.subr.mxu0 0.0
    %9301 = vmatpush1.msra.mxu0 0.0
    %9302 = vmatprep.subr.mxu0 0.0
    %9303 = vmatpush1.msra.mxu0 0.0
    %9304 = vmatprep.subr.mxu0 0.0
    %9305 = vmatpush1.msra.mxu0 0.0
    %9306 = vmatprep.subr.mxu0 0.0
    %9307 = vmatpush1.msra.mxu0 0.0
    %9308 = vmatprep.subr.mxu0 0.0
    %9309 = vmatpush1.msra.mxu0 0.0
    %9310 = vmatprep.subr.mxu0 0.0
    %9311 = vmatpush1.msra.mxu0 0.0
    %9312 = vmatprep.subr.mxu0 0.0
    %9313 = vmatpush1.msra.mxu0 0.0
    %9314 = vmatprep.subr.mxu0 0.0
    %9315 = vmatpush1.msra.mxu0 0.0
    %v9316 = vand.u32 %v5944, 4294901760
    %v9317 = vsub.f32 %v5944, %v9316
    %v9318 = vand.u32 %v9317, 4294901760
    %v9319 = vsub.f32 %v9317, %v9318
    %v9320 = vand.u32 %v9319, 4294901760
    %9321 = vmatprep.subr.mxu0 %v9320
    %v9322 = vand.u32 %v5943, 4294901760
    %v9323 = vsub.f32 %v5943, %v9322
    %v9324 = vand.u32 %v9323, 4294901760
    %v9325 = vsub.f32 %v9323, %v9324
    %v9326 = vand.u32 %v9325, 4294901760
    %9327 = vmatpush1.msra.mxu0 %v9326
    %v9328 = vand.u32 %v5928, 4294901760
    %v9329 = vsub.f32 %v5928, %v9328
    %v9330 = vand.u32 %v9329, 4294901760
    %v9331 = vsub.f32 %v9329, %v9330
    %v9332 = vand.u32 %v9331, 4294901760
    %9333 = vmatprep.subr.mxu0 %v9332
    %v9334 = vand.u32 %v5927, 4294901760
    %v9335 = vsub.f32 %v5927, %v9334
    %v9336 = vand.u32 %v9335, 4294901760
    %v9337 = vsub.f32 %v9335, %v9336
    %v9338 = vand.u32 %v9337, 4294901760
    %9339 = vmatpush1.msra.mxu0 %v9338
    %v9340 = vand.u32 %v5912, 4294901760
    %v9341 = vsub.f32 %v5912, %v9340
    %v9342 = vand.u32 %v9341, 4294901760
    %v9343 = vsub.f32 %v9341, %v9342
    %v9344 = vand.u32 %v9343, 4294901760
    %9345 = vmatprep.subr.mxu0 %v9344
    %v9346 = vand.u32 %v5911, 4294901760
    %v9347 = vsub.f32 %v5911, %v9346
    %v9348 = vand.u32 %v9347, 4294901760
    %v9349 = vsub.f32 %v9347, %v9348
    %v9350 = vand.u32 %v9349, 4294901760
    %9351 = vmatpush1.msra.mxu0 %v9350
    %v9352 = vand.u32 %v5896, 4294901760
    %v9353 = vsub.f32 %v5896, %v9352
    %v9354 = vand.u32 %v9353, 4294901760
    %v9355 = vsub.f32 %v9353, %v9354
    %v9356 = vand.u32 %v9355, 4294901760
    %9357 = vmatprep.subr.mxu0 %v9356
    %v9358 = vand.u32 %v5895, 4294901760
    %v9359 = vsub.f32 %v5895, %v9358
    %v9360 = vand.u32 %v9359, 4294901760
    %v9361 = vsub.f32 %v9359, %v9360
    %v9362 = vand.u32 %v9361, 4294901760
    %9363 = vmatpush1.msra.mxu0 %v9362
    %9364 = vmatprep.subr.mxu0 0.0
    %9365 = vmatpush2.msra.mxu0 0.0
    %9366 = vmatprep.subr.mxu0 0.0
    %9367 = vmatpush2.msra.mxu0 0.0
    %9368 = vmatprep.subr.mxu0 0.0
    %9369 = vmatpush2.msra.mxu0 0.0
    %9370 = vmatprep.subr.mxu0 0.0
    %9371 = vmatpush2.msra.mxu0 0.0
    %9372 = vmatprep.subr.mxu0 0.0
    %9373 = vmatpush2.msra.mxu0 0.0
    %9374 = vmatprep.subr.mxu0 0.0
    %9375 = vmatpush2.msra.mxu0 0.0
    %9376 = vmatprep.subr.mxu0 0.0
    %9377 = vmatpush2.msra.mxu0 0.0
    %9378 = vmatprep.subr.mxu0 0.0
    %9379 = vmatpush2.msra.mxu0 0.0
    %9380 = vmatprep.subr.mxu0 0.0
    %9381 = vmatpush2.msra.mxu0 0.0
    %9382 = vmatprep.subr.mxu0 0.0
    %9383 = vmatpush2.msra.mxu0 0.0
    %9384 = vmatprep.subr.mxu0 0.0
    %9385 = vmatpush2.msra.mxu0 0.0
    %9386 = vmatprep.subr.mxu0 0.0
    %9387 = vmatpush2.msra.mxu0 0.0
    %9388 = vmatprep.subr.mxu0 0.0
    %9389 = vmatpush2.msra.mxu0 0.0
    %9390 = vmatprep.subr.mxu0 0.0
    %9391 = vmatpush2.msra.mxu0 0.0
    %9392 = vmatprep.subr.mxu0 0.0
    %9393 = vmatpush2.msra.mxu0 0.0
    %9394 = vmatprep.subr.mxu0 0.0
    %9395 = vmatpush2.msra.mxu0 0.0
    %9396 = vmatprep.mubr.f32.mxu0 0.0
    %v9397 = vand.u32 %v5948, 4294901760
    %9398 = vmatmul.mubr.f32.gmra.mxu0 %v9397
    %v9399 = vpop.f32.mrf.mxu0
    %v9400 = vadd.f32 %v9288, %v9399
    %v9401 = vpop.f32.mrf.mxu0
    %v9402 = vadd.f32 %v9290, %v9401
    %9403 = vdwg.mxu0
    %9404 = vmatprep.subr.mxu0 0.0
    %9405 = vmatpush1.msra.mxu0 0.0
    %9406 = vmatprep.subr.mxu0 0.0
    %9407 = vmatpush1.msra.mxu0 0.0
    %9408 = vmatprep.subr.mxu0 0.0
    %9409 = vmatpush1.msra.mxu0 0.0
    %9410 = vmatprep.subr.mxu0 0.0
    %9411 = vmatpush1.msra.mxu0 0.0
    %9412 = vmatprep.subr.mxu0 0.0
    %9413 = vmatpush1.msra.mxu0 0.0
    %9414 = vmatprep.subr.mxu0 0.0
    %9415 = vmatpush1.msra.mxu0 0.0
    %9416 = vmatprep.subr.mxu0 0.0
    %9417 = vmatpush1.msra.mxu0 0.0
    %9418 = vmatprep.subr.mxu0 0.0
    %9419 = vmatpush1.msra.mxu0 0.0
    %9420 = vmatprep.subr.mxu0 0.0
    %9421 = vmatpush1.msra.mxu0 0.0
    %9422 = vmatprep.subr.mxu0 0.0
    %9423 = vmatpush1.msra.mxu0 0.0
    %9424 = vmatprep.subr.mxu0 0.0
    %9425 = vmatpush1.msra.mxu0 0.0
    %9426 = vmatprep.subr.mxu0 0.0
    %9427 = vmatpush1.msra.mxu0 0.0
    %v9428 = vand.u32 %v5944, 4294901760
    %v9429 = vsub.f32 %v5944, %v9428
    %9430 = vmatprep.subr.mxu0 %v9429
    %v9431 = vand.u32 %v5943, 4294901760
    %v9432 = vsub.f32 %v5943, %v9431
    %9433 = vmatpush1.msra.mxu0 %v9432
    %v9434 = vand.u32 %v5928, 4294901760
    %v9435 = vsub.f32 %v5928, %v9434
    %9436 = vmatprep.subr.mxu0 %v9435
    %v9437 = vand.u32 %v5927, 4294901760
    %v9438 = vsub.f32 %v5927, %v9437
    %9439 = vmatpush1.msra.mxu0 %v9438
    %v9440 = vand.u32 %v5912, 4294901760
    %v9441 = vsub.f32 %v5912, %v9440
    %9442 = vmatprep.subr.mxu0 %v9441
    %v9443 = vand.u32 %v5911, 4294901760
    %v9444 = vsub.f32 %v5911, %v9443
    %9445 = vmatpush1.msra.mxu0 %v9444
    %v9446 = vand.u32 %v5896, 4294901760
    %v9447 = vsub.f32 %v5896, %v9446
    %9448 = vmatprep.subr.mxu0 %v9447
    %v9449 = vand.u32 %v5895, 4294901760
    %v9450 = vsub.f32 %v5895, %v9449
    %9451 = vmatpush1.msra.mxu0 %v9450
    %9452 = vmatprep.subr.mxu0 0.0
    %9453 = vmatpush2.msra.mxu0 0.0
    %9454 = vmatprep.subr.mxu0 0.0
    %9455 = vmatpush2.msra.mxu0 0.0
    %9456 = vmatprep.subr.mxu0 0.0
    %9457 = vmatpush2.msra.mxu0 0.0
    %9458 = vmatprep.subr.mxu0 0.0
    %9459 = vmatpush2.msra.mxu0 0.0
    %9460 = vmatprep.subr.mxu0 0.0
    %9461 = vmatpush2.msra.mxu0 0.0
    %9462 = vmatprep.subr.mxu0 0.0
    %9463 = vmatpush2.msra.mxu0 0.0
    %9464 = vmatprep.subr.mxu0 0.0
    %9465 = vmatpush2.msra.mxu0 0.0
    %9466 = vmatprep.subr.mxu0 0.0
    %9467 = vmatpush2.msra.mxu0 0.0
    %9468 = vmatprep.subr.mxu0 0.0
    %9469 = vmatpush2.msra.mxu0 0.0
    %9470 = vmatprep.subr.mxu0 0.0
    %9471 = vmatpush2.msra.mxu0 0.0
    %9472 = vmatprep.subr.mxu0 0.0
    %9473 = vmatpush2.msra.mxu0 0.0
    %9474 = vmatprep.subr.mxu0 0.0
    %9475 = vmatpush2.msra.mxu0 0.0
    %9476 = vmatprep.subr.mxu0 0.0
    %9477 = vmatpush2.msra.mxu0 0.0
    %9478 = vmatprep.subr.mxu0 0.0
    %9479 = vmatpush2.msra.mxu0 0.0
    %9480 = vmatprep.subr.mxu0 0.0
    %9481 = vmatpush2.msra.mxu0 0.0
    %9482 = vmatprep.subr.mxu0 0.0
    %9483 = vmatpush2.msra.mxu0 0.0
    %9484 = vmatprep.mubr.f32.mxu0 0.0
    %v9485 = vand.u32 %v5948, 4294901760
    %v9486 = vsub.f32 %v5948, %v9485
    %9487 = vmatmul.mubr.f32.gmra.mxu0 %v9486
    %v9488 = vpop.f32.mrf.mxu0
    %v9489 = vadd.f32 %v9400, %v9488
    %v9490 = vpop.f32.mrf.mxu0
    %v9491 = vadd.f32 %v9402, %v9490
    %9492 = vdwg.mxu0
    %9493 = vmatprep.subr.mxu0 0.0
    %9494 = vmatpush1.msra.mxu0 0.0
    %9495 = vmatprep.subr.mxu0 0.0
    %9496 = vmatpush1.msra.mxu0 0.0
    %9497 = vmatprep.subr.mxu0 0.0
    %9498 = vmatpush1.msra.mxu0 0.0
    %9499 = vmatprep.subr.mxu0 0.0
    %9500 = vmatpush1.msra.mxu0 0.0
    %9501 = vmatprep.subr.mxu0 0.0
    %9502 = vmatpush1.msra.mxu0 0.0
    %9503 = vmatprep.subr.mxu0 0.0
    %9504 = vmatpush1.msra.mxu0 0.0
    %9505 = vmatprep.subr.mxu0 0.0
    %9506 = vmatpush1.msra.mxu0 0.0
    %9507 = vmatprep.subr.mxu0 0.0
    %9508 = vmatpush1.msra.mxu0 0.0
    %9509 = vmatprep.subr.mxu0 0.0
    %9510 = vmatpush1.msra.mxu0 0.0
    %9511 = vmatprep.subr.mxu0 0.0
    %9512 = vmatpush1.msra.mxu0 0.0
    %9513 = vmatprep.subr.mxu0 0.0
    %9514 = vmatpush1.msra.mxu0 0.0
    %9515 = vmatprep.subr.mxu0 0.0
    %9516 = vmatpush1.msra.mxu0 0.0
    %v9517 = vand.u32 %v5944, 4294901760
    %9518 = vmatprep.subr.mxu0 %v9517
    %v9519 = vand.u32 %v5943, 4294901760
    %9520 = vmatpush1.msra.mxu0 %v9519
    %v9521 = vand.u32 %v5928, 4294901760
    %9522 = vmatprep.subr.mxu0 %v9521
    %v9523 = vand.u32 %v5927, 4294901760
    %9524 = vmatpush1.msra.mxu0 %v9523
    %v9525 = vand.u32 %v5912, 4294901760
    %9526 = vmatprep.subr.mxu0 %v9525
    %v9527 = vand.u32 %v5911, 4294901760
    %9528 = vmatpush1.msra.mxu0 %v9527
    %v9529 = vand.u32 %v5896, 4294901760
    %9530 = vmatprep.subr.mxu0 %v9529
    %v9531 = vand.u32 %v5895, 4294901760
    %9532 = vmatpush1.msra.mxu0 %v9531
    %9533 = vmatprep.subr.mxu0 0.0
    %9534 = vmatpush2.msra.mxu0 0.0
    %9535 = vmatprep.subr.mxu0 0.0
    %9536 = vmatpush2.msra.mxu0 0.0
    %9537 = vmatprep.subr.mxu0 0.0
    %9538 = vmatpush2.msra.mxu0 0.0
    %9539 = vmatprep.subr.mxu0 0.0
    %9540 = vmatpush2.msra.mxu0 0.0
    %9541 = vmatprep.subr.mxu0 0.0
    %9542 = vmatpush2.msra.mxu0 0.0
    %9543 = vmatprep.subr.mxu0 0.0
    %9544 = vmatpush2.msra.mxu0 0.0
    %9545 = vmatprep.subr.mxu0 0.0
    %9546 = vmatpush2.msra.mxu0 0.0
    %9547 = vmatprep.subr.mxu0 0.0
    %9548 = vmatpush2.msra.mxu0 0.0
    %9549 = vmatprep.subr.mxu0 0.0
    %9550 = vmatpush2.msra.mxu0 0.0
    %9551 = vmatprep.subr.mxu0 0.0
    %9552 = vmatpush2.msra.mxu0 0.0
    %9553 = vmatprep.subr.mxu0 0.0
    %9554 = vmatpush2.msra.mxu0 0.0
    %9555 = vmatprep.subr.mxu0 0.0
    %9556 = vmatpush2.msra.mxu0 0.0
    %9557 = vmatprep.subr.mxu0 0.0
    %9558 = vmatpush2.msra.mxu0 0.0
    %9559 = vmatprep.subr.mxu0 0.0
    %9560 = vmatpush2.msra.mxu0 0.0
    %9561 = vmatprep.subr.mxu0 0.0
    %9562 = vmatpush2.msra.mxu0 0.0
    %9563 = vmatprep.subr.mxu0 0.0
    %9564 = vmatpush2.msra.mxu0 0.0
    %9565 = vmatprep.mubr.f32.mxu0 0.0
    %v9566 = vand.u32 %v5948, 4294901760
    %v9567 = vsub.f32 %v5948, %v9566
    %v9568 = vand.u32 %v9567, 4294901760
    %9569 = vmatmul.mubr.f32.gmra.mxu0 %v9568
    %v9570 = vpop.f32.mrf.mxu0
    %v9571 = vadd.f32 %v9489, %v9570
    %v9572 = vpop.f32.mrf.mxu0
    %v9573 = vadd.f32 %v9491, %v9572
    %9574 = vdwg.mxu0
    %9575 = vmatprep.subr.mxu0 0.0
    %9576 = vmatpush1.msra.mxu0 0.0
    %9577 = vmatprep.subr.mxu0 0.0
    %9578 = vmatpush1.msra.mxu0 0.0
    %9579 = vmatprep.subr.mxu0 0.0
    %9580 = vmatpush1.msra.mxu0 0.0
    %9581 = vmatprep.subr.mxu0 0.0
    %9582 = vmatpush1.msra.mxu0 0.0
    %9583 = vmatprep.subr.mxu0 0.0
    %9584 = vmatpush1.msra.mxu0 0.0
    %9585 = vmatprep.subr.mxu0 0.0
    %9586 = vmatpush1.msra.mxu0 0.0
    %9587 = vmatprep.subr.mxu0 0.0
    %9588 = vmatpush1.msra.mxu0 0.0
    %9589 = vmatprep.subr.mxu0 0.0
    %9590 = vmatpush1.msra.mxu0 0.0
    %9591 = vmatprep.subr.mxu0 0.0
    %9592 = vmatpush1.msra.mxu0 0.0
    %9593 = vmatprep.subr.mxu0 0.0
    %9594 = vmatpush1.msra.mxu0 0.0
    %9595 = vmatprep.subr.mxu0 0.0
    %9596 = vmatpush1.msra.mxu0 0.0
    %9597 = vmatprep.subr.mxu0 0.0
    %9598 = vmatpush1.msra.mxu0 0.0
    %v9599 = vand.u32 %v5944, 4294901760
    %v9600 = vsub.f32 %v5944, %v9599
    %v9601 = vand.u32 %v9600, 4294901760
    %9602 = vmatprep.subr.mxu0 %v9601
    %v9603 = vand.u32 %v5943, 4294901760
    %v9604 = vsub.f32 %v5943, %v9603
    %v9605 = vand.u32 %v9604, 4294901760
    %9606 = vmatpush1.msra.mxu0 %v9605
    %v9607 = vand.u32 %v5928, 4294901760
    %v9608 = vsub.f32 %v5928, %v9607
    %v9609 = vand.u32 %v9608, 4294901760
    %9610 = vmatprep.subr.mxu0 %v9609
    %v9611 = vand.u32 %v5927, 4294901760
    %v9612 = vsub.f32 %v5927, %v9611
    %v9613 = vand.u32 %v9612, 4294901760
    %9614 = vmatpush1.msra.mxu0 %v9613
    %v9615 = vand.u32 %v5912, 4294901760
    %v9616 = vsub.f32 %v5912, %v9615
    %v9617 = vand.u32 %v9616, 4294901760
    %9618 = vmatprep.subr.mxu0 %v9617
    %v9619 = vand.u32 %v5911, 4294901760
    %v9620 = vsub.f32 %v5911, %v9619
    %v9621 = vand.u32 %v9620, 4294901760
    %9622 = vmatpush1.msra.mxu0 %v9621
    %v9623 = vand.u32 %v5896, 4294901760
    %v9624 = vsub.f32 %v5896, %v9623
    %v9625 = vand.u32 %v9624, 4294901760
    %9626 = vmatprep.subr.mxu0 %v9625
    %v9627 = vand.u32 %v5895, 4294901760
    %v9628 = vsub.f32 %v5895, %v9627
    %v9629 = vand.u32 %v9628, 4294901760
    %9630 = vmatpush1.msra.mxu0 %v9629
    %9631 = vmatprep.subr.mxu0 0.0
    %9632 = vmatpush2.msra.mxu0 0.0
    %9633 = vmatprep.subr.mxu0 0.0
    %9634 = vmatpush2.msra.mxu0 0.0
    %9635 = vmatprep.subr.mxu0 0.0
    %9636 = vmatpush2.msra.mxu0 0.0
    %9637 = vmatprep.subr.mxu0 0.0
    %9638 = vmatpush2.msra.mxu0 0.0
    %9639 = vmatprep.subr.mxu0 0.0
    %9640 = vmatpush2.msra.mxu0 0.0
    %9641 = vmatprep.subr.mxu0 0.0
    %9642 = vmatpush2.msra.mxu0 0.0
    %9643 = vmatprep.subr.mxu0 0.0
    %9644 = vmatpush2.msra.mxu0 0.0
    %9645 = vmatprep.subr.mxu0 0.0
    %9646 = vmatpush2.msra.mxu0 0.0
    %9647 = vmatprep.subr.mxu0 0.0
    %9648 = vmatpush2.msra.mxu0 0.0
    %9649 = vmatprep.subr.mxu0 0.0
    %9650 = vmatpush2.msra.mxu0 0.0
    %9651 = vmatprep.subr.mxu0 0.0
    %9652 = vmatpush2.msra.mxu0 0.0
    %9653 = vmatprep.subr.mxu0 0.0
    %9654 = vmatpush2.msra.mxu0 0.0
    %9655 = vmatprep.subr.mxu0 0.0
    %9656 = vmatpush2.msra.mxu0 0.0
    %9657 = vmatprep.subr.mxu0 0.0
    %9658 = vmatpush2.msra.mxu0 0.0
    %9659 = vmatprep.subr.mxu0 0.0
    %9660 = vmatpush2.msra.mxu0 0.0
    %9661 = vmatprep.subr.mxu0 0.0
    %9662 = vmatpush2.msra.mxu0 0.0
    %9663 = vmatprep.mubr.f32.mxu0 0.0
    %v9664 = vand.u32 %v5948, 4294901760
    %9665 = vmatmul.mubr.f32.gmra.mxu0 %v9664
    %v9666 = vpop.f32.mrf.mxu0
    %v9667 = vadd.f32 %v9571, %v9666
    %v9668 = vpop.f32.mrf.mxu0
    %v9669 = vadd.f32 %v9573, %v9668
    %9670 = vdwg.mxu0
    %9671 = vmatprep.subr.mxu0 0.0
    %9672 = vmatpush1.msra.mxu0 0.0
    %9673 = vmatprep.subr.mxu0 0.0
    %9674 = vmatpush1.msra.mxu0 0.0
    %9675 = vmatprep.subr.mxu0 0.0
    %9676 = vmatpush1.msra.mxu0 0.0
    %9677 = vmatprep.subr.mxu0 0.0
    %9678 = vmatpush1.msra.mxu0 0.0
    %9679 = vmatprep.subr.mxu0 0.0
    %9680 = vmatpush1.msra.mxu0 0.0
    %9681 = vmatprep.subr.mxu0 0.0
    %9682 = vmatpush1.msra.mxu0 0.0
    %9683 = vmatprep.subr.mxu0 0.0
    %9684 = vmatpush1.msra.mxu0 0.0
    %9685 = vmatprep.subr.mxu0 0.0
    %9686 = vmatpush1.msra.mxu0 0.0
    %9687 = vmatprep.subr.mxu0 0.0
    %9688 = vmatpush1.msra.mxu0 0.0
    %9689 = vmatprep.subr.mxu0 0.0
    %9690 = vmatpush1.msra.mxu0 0.0
    %9691 = vmatprep.subr.mxu0 0.0
    %9692 = vmatpush1.msra.mxu0 0.0
    %9693 = vmatprep.subr.mxu0 0.0
    %9694 = vmatpush1.msra.mxu0 0.0
    %v9695 = vand.u32 %v5944, 4294901760
    %9696 = vmatprep.subr.mxu0 %v9695
    %v9697 = vand.u32 %v5943, 4294901760
    %9698 = vmatpush1.msra.mxu0 %v9697
    %v9699 = vand.u32 %v5928, 4294901760
    %9700 = vmatprep.subr.mxu0 %v9699
    %v9701 = vand.u32 %v5927, 4294901760
    %9702 = vmatpush1.msra.mxu0 %v9701
    %v9703 = vand.u32 %v5912, 4294901760
    %9704 = vmatprep.subr.mxu0 %v9703
    %v9705 = vand.u32 %v5911, 4294901760
    %9706 = vmatpush1.msra.mxu0 %v9705
    %v9707 = vand.u32 %v5896, 4294901760
    %9708 = vmatprep.subr.mxu0 %v9707
    %v9709 = vand.u32 %v5895, 4294901760
    %9710 = vmatpush1.msra.mxu0 %v9709
    %9711 = vmatprep.subr.mxu0 0.0
    %9712 = vmatpush2.msra.mxu0 0.0
    %9713 = vmatprep.subr.mxu0 0.0
    %9714 = vmatpush2.msra.mxu0 0.0
    %9715 = vmatprep.subr.mxu0 0.0
    %9716 = vmatpush2.msra.mxu0 0.0
    %9717 = vmatprep.subr.mxu0 0.0
    %9718 = vmatpush2.msra.mxu0 0.0
    %9719 = vmatprep.subr.mxu0 0.0
    %9720 = vmatpush2.msra.mxu0 0.0
    %9721 = vmatprep.subr.mxu0 0.0
    %9722 = vmatpush2.msra.mxu0 0.0
    %9723 = vmatprep.subr.mxu0 0.0
    %9724 = vmatpush2.msra.mxu0 0.0
    %9725 = vmatprep.subr.mxu0 0.0
    %9726 = vmatpush2.msra.mxu0 0.0
    %9727 = vmatprep.subr.mxu0 0.0
    %9728 = vmatpush2.msra.mxu0 0.0
    %9729 = vmatprep.subr.mxu0 0.0
    %9730 = vmatpush2.msra.mxu0 0.0
    %9731 = vmatprep.subr.mxu0 0.0
    %9732 = vmatpush2.msra.mxu0 0.0
    %9733 = vmatprep.subr.mxu0 0.0
    %9734 = vmatpush2.msra.mxu0 0.0
    %9735 = vmatprep.subr.mxu0 0.0
    %9736 = vmatpush2.msra.mxu0 0.0
    %9737 = vmatprep.subr.mxu0 0.0
    %9738 = vmatpush2.msra.mxu0 0.0
    %9739 = vmatprep.subr.mxu0 0.0
    %9740 = vmatpush2.msra.mxu0 0.0
    %9741 = vmatprep.subr.mxu0 0.0
    %9742 = vmatpush2.msra.mxu0 0.0
    %9743 = vmatprep.mubr.f32.mxu0 0.0
    %v9744 = vand.u32 %v5948, 4294901760
    %9745 = vmatmul.mubr.f32.gmra.mxu0 %v9744
    %v9746 = vpop.f32.mrf.mxu0
    %v9747 = vadd.f32 %v9667, %v9746
    %v9748 = vpop.f32.mrf.mxu0
    %v9749 = vadd.f32 %v9669, %v9748
    %9750 = vdwg.mxu0
    %9751 = vmatprep.subr.mxu0 0.0
    %9752 = vmatpush1.msra.mxu0 0.0
    %9753 = vmatprep.subr.mxu0 0.0
    %9754 = vmatpush1.msra.mxu0 0.0
    %9755 = vmatprep.subr.mxu0 0.0
    %9756 = vmatpush1.msra.mxu0 0.0
    %9757 = vmatprep.subr.mxu0 0.0
    %9758 = vmatpush1.msra.mxu0 0.0
    %9759 = vmatprep.subr.mxu0 0.0
    %9760 = vmatpush1.msra.mxu0 0.0
    %9761 = vmatprep.subr.mxu0 0.0
    %9762 = vmatpush1.msra.mxu0 0.0
    %9763 = vmatprep.subr.mxu0 0.0
    %9764 = vmatpush1.msra.mxu0 0.0
    %9765 = vmatprep.subr.mxu0 0.0
    %9766 = vmatpush1.msra.mxu0 0.0
    %9767 = vmatprep.subr.mxu0 0.0
    %9768 = vmatpush1.msra.mxu0 0.0
    %9769 = vmatprep.subr.mxu0 0.0
    %9770 = vmatpush1.msra.mxu0 0.0
    %9771 = vmatprep.subr.mxu0 0.0
    %9772 = vmatpush1.msra.mxu0 0.0
    %9773 = vmatprep.subr.mxu0 0.0
    %9774 = vmatpush1.msra.mxu0 0.0
    %v9775 = vand.u32 %v5946, 4294901760
    %9776 = vmatprep.subr.mxu0 %v9775
    %v9777 = vand.u32 %v5945, 4294901760
    %9778 = vmatpush1.msra.mxu0 %v9777
    %v9779 = vand.u32 %v5930, 4294901760
    %9780 = vmatprep.subr.mxu0 %v9779
    %v9781 = vand.u32 %v5929, 4294901760
    %9782 = vmatpush1.msra.mxu0 %v9781
    %v9783 = vand.u32 %v5914, 4294901760
    %9784 = vmatprep.subr.mxu0 %v9783
    %v9785 = vand.u32 %v5913, 4294901760
    %9786 = vmatpush1.msra.mxu0 %v9785
    %v9787 = vand.u32 %v5898, 4294901760
    %9788 = vmatprep.subr.mxu0 %v9787
    %v9789 = vand.u32 %v5897, 4294901760
    %9790 = vmatpush1.msra.mxu0 %v9789
    %9791 = vmatprep.subr.mxu0 0.0
    %9792 = vmatpush2.msra.mxu0 0.0
    %9793 = vmatprep.subr.mxu0 0.0
    %9794 = vmatpush2.msra.mxu0 0.0
    %9795 = vmatprep.subr.mxu0 0.0
    %9796 = vmatpush2.msra.mxu0 0.0
    %9797 = vmatprep.subr.mxu0 0.0
    %9798 = vmatpush2.msra.mxu0 0.0
    %9799 = vmatprep.subr.mxu0 0.0
    %9800 = vmatpush2.msra.mxu0 0.0
    %9801 = vmatprep.subr.mxu0 0.0
    %9802 = vmatpush2.msra.mxu0 0.0
    %9803 = vmatprep.subr.mxu0 0.0
    %9804 = vmatpush2.msra.mxu0 0.0
    %9805 = vmatprep.subr.mxu0 0.0
    %9806 = vmatpush2.msra.mxu0 0.0
    %9807 = vmatprep.subr.mxu0 0.0
    %9808 = vmatpush2.msra.mxu0 0.0
    %9809 = vmatprep.subr.mxu0 0.0
    %9810 = vmatpush2.msra.mxu0 0.0
    %9811 = vmatprep.subr.mxu0 0.0
    %9812 = vmatpush2.msra.mxu0 0.0
    %9813 = vmatprep.subr.mxu0 0.0
    %9814 = vmatpush2.msra.mxu0 0.0
    %9815 = vmatprep.subr.mxu0 0.0
    %9816 = vmatpush2.msra.mxu0 0.0
    %9817 = vmatprep.subr.mxu0 0.0
    %9818 = vmatpush2.msra.mxu0 0.0
    %9819 = vmatprep.subr.mxu0 0.0
    %9820 = vmatpush2.msra.mxu0 0.0
    %9821 = vmatprep.subr.mxu0 0.0
    %9822 = vmatpush2.msra.mxu0 0.0
    %9823 = vmatprep.mubr.f32.mxu0 0.0
    %v9824 = vand.u32 %v5948, 4294901760
    %v9825 = vsub.f32 %v5948, %v9824
    %v9826 = vand.u32 %v9825, 4294901760
    %v9827 = vsub.f32 %v9825, %v9826
    %v9828 = vand.u32 %v9827, 4294901760
    %9829 = vmatmul.mubr.f32.gmra.mxu0 %v9828
    %v9830 = vpop.f32.mrf.mxu0
    %v9831 = vadd.f32 0.0, %v9830
    %v9832 = vpop.f32.mrf.mxu0
    %v9833 = vadd.f32 0.0, %v9832
    %9834 = vdwg.mxu0
    %9835 = vmatprep.subr.mxu0 0.0
    %9836 = vmatpush1.msra.mxu0 0.0
    %9837 = vmatprep.subr.mxu0 0.0
    %9838 = vmatpush1.msra.mxu0 0.0
    %9839 = vmatprep.subr.mxu0 0.0
    %9840 = vmatpush1.msra.mxu0 0.0
    %9841 = vmatprep.subr.mxu0 0.0
    %9842 = vmatpush1.msra.mxu0 0.0
    %9843 = vmatprep.subr.mxu0 0.0
    %9844 = vmatpush1.msra.mxu0 0.0
    %9845 = vmatprep.subr.mxu0 0.0
    %9846 = vmatpush1.msra.mxu0 0.0
    %9847 = vmatprep.subr.mxu0 0.0
    %9848 = vmatpush1.msra.mxu0 0.0
    %9849 = vmatprep.subr.mxu0 0.0
    %9850 = vmatpush1.msra.mxu0 0.0
    %9851 = vmatprep.subr.mxu0 0.0
    %9852 = vmatpush1.msra.mxu0 0.0
    %9853 = vmatprep.subr.mxu0 0.0
    %9854 = vmatpush1.msra.mxu0 0.0
    %9855 = vmatprep.subr.mxu0 0.0
    %9856 = vmatpush1.msra.mxu0 0.0
    %9857 = vmatprep.subr.mxu0 0.0
    %9858 = vmatpush1.msra.mxu0 0.0
    %v9859 = vand.u32 %v5946, 4294901760
    %v9860 = vsub.f32 %v5946, %v9859
    %v9861 = vand.u32 %v9860, 4294901760
    %v9862 = vsub.f32 %v9860, %v9861
    %v9863 = vand.u32 %v9862, 4294901760
    %9864 = vmatprep.subr.mxu0 %v9863
    %v9865 = vand.u32 %v5945, 4294901760
    %v9866 = vsub.f32 %v5945, %v9865
    %v9867 = vand.u32 %v9866, 4294901760
    %v9868 = vsub.f32 %v9866, %v9867
    %v9869 = vand.u32 %v9868, 4294901760
    %9870 = vmatpush1.msra.mxu0 %v9869
    %v9871 = vand.u32 %v5930, 4294901760
    %v9872 = vsub.f32 %v5930, %v9871
    %v9873 = vand.u32 %v9872, 4294901760
    %v9874 = vsub.f32 %v9872, %v9873
    %v9875 = vand.u32 %v9874, 4294901760
    %9876 = vmatprep.subr.mxu0 %v9875
    %v9877 = vand.u32 %v5929, 4294901760
    %v9878 = vsub.f32 %v5929, %v9877
    %v9879 = vand.u32 %v9878, 4294901760
    %v9880 = vsub.f32 %v9878, %v9879
    %v9881 = vand.u32 %v9880, 4294901760
    %9882 = vmatpush1.msra.mxu0 %v9881
    %v9883 = vand.u32 %v5914, 4294901760
    %v9884 = vsub.f32 %v5914, %v9883
    %v9885 = vand.u32 %v9884, 4294901760
    %v9886 = vsub.f32 %v9884, %v9885
    %v9887 = vand.u32 %v9886, 4294901760
    %9888 = vmatprep.subr.mxu0 %v9887
    %v9889 = vand.u32 %v5913, 4294901760
    %v9890 = vsub.f32 %v5913, %v9889
    %v9891 = vand.u32 %v9890, 4294901760
    %v9892 = vsub.f32 %v9890, %v9891
    %v9893 = vand.u32 %v9892, 4294901760
    %9894 = vmatpush1.msra.mxu0 %v9893
    %v9895 = vand.u32 %v5898, 4294901760
    %v9896 = vsub.f32 %v5898, %v9895
    %v9897 = vand.u32 %v9896, 4294901760
    %v9898 = vsub.f32 %v9896, %v9897
    %v9899 = vand.u32 %v9898, 4294901760
    %9900 = vmatprep.subr.mxu0 %v9899
    %v9901 = vand.u32 %v5897, 4294901760
    %v9902 = vsub.f32 %v5897, %v9901
    %v9903 = vand.u32 %v9902, 4294901760
    %v9904 = vsub.f32 %v9902, %v9903
    %v9905 = vand.u32 %v9904, 4294901760
    %9906 = vmatpush1.msra.mxu0 %v9905
    %9907 = vmatprep.subr.mxu0 0.0
    %9908 = vmatpush2.msra.mxu0 0.0
    %9909 = vmatprep.subr.mxu0 0.0
    %9910 = vmatpush2.msra.mxu0 0.0
    %9911 = vmatprep.subr.mxu0 0.0
    %9912 = vmatpush2.msra.mxu0 0.0
    %9913 = vmatprep.subr.mxu0 0.0
    %9914 = vmatpush2.msra.mxu0 0.0
    %9915 = vmatprep.subr.mxu0 0.0
    %9916 = vmatpush2.msra.mxu0 0.0
    %9917 = vmatprep.subr.mxu0 0.0
    %9918 = vmatpush2.msra.mxu0 0.0
    %9919 = vmatprep.subr.mxu0 0.0
    %9920 = vmatpush2.msra.mxu0 0.0
    %9921 = vmatprep.subr.mxu0 0.0
    %9922 = vmatpush2.msra.mxu0 0.0
    %9923 = vmatprep.subr.mxu0 0.0
    %9924 = vmatpush2.msra.mxu0 0.0
    %9925 = vmatprep.subr.mxu0 0.0
    %9926 = vmatpush2.msra.mxu0 0.0
    %9927 = vmatprep.subr.mxu0 0.0
    %9928 = vmatpush2.msra.mxu0 0.0
    %9929 = vmatprep.subr.mxu0 0.0
    %9930 = vmatpush2.msra.mxu0 0.0
    %9931 = vmatprep.subr.mxu0 0.0
    %9932 = vmatpush2.msra.mxu0 0.0
    %9933 = vmatprep.subr.mxu0 0.0
    %9934 = vmatpush2.msra.mxu0 0.0
    %9935 = vmatprep.subr.mxu0 0.0
    %9936 = vmatpush2.msra.mxu0 0.0
    %9937 = vmatprep.subr.mxu0 0.0
    %9938 = vmatpush2.msra.mxu0 0.0
    %9939 = vmatprep.mubr.f32.mxu0 0.0
    %v9940 = vand.u32 %v5948, 4294901760
    %9941 = vmatmul.mubr.f32.gmra.mxu0 %v9940
    %v9942 = vpop.f32.mrf.mxu0
    %v9943 = vadd.f32 %v9831, %v9942
    %v9944 = vpop.f32.mrf.mxu0
    %v9945 = vadd.f32 %v9833, %v9944
    %9946 = vdwg.mxu0
    %9947 = vmatprep.subr.mxu0 0.0
    %9948 = vmatpush1.msra.mxu0 0.0
    %9949 = vmatprep.subr.mxu0 0.0
    %9950 = vmatpush1.msra.mxu0 0.0
    %9951 = vmatprep.subr.mxu0 0.0
    %9952 = vmatpush1.msra.mxu0 0.0
    %9953 = vmatprep.subr.mxu0 0.0
    %9954 = vmatpush1.msra.mxu0 0.0
    %9955 = vmatprep.subr.mxu0 0.0
    %9956 = vmatpush1.msra.mxu0 0.0
    %9957 = vmatprep.subr.mxu0 0.0
    %9958 = vmatpush1.msra.mxu0 0.0
    %9959 = vmatprep.subr.mxu0 0.0
    %9960 = vmatpush1.msra.mxu0 0.0
    %9961 = vmatprep.subr.mxu0 0.0
    %9962 = vmatpush1.msra.mxu0 0.0
    %9963 = vmatprep.subr.mxu0 0.0
    %9964 = vmatpush1.msra.mxu0 0.0
    %9965 = vmatprep.subr.mxu0 0.0
    %9966 = vmatpush1.msra.mxu0 0.0
    %9967 = vmatprep.subr.mxu0 0.0
    %9968 = vmatpush1.msra.mxu0 0.0
    %9969 = vmatprep.subr.mxu0 0.0
    %9970 = vmatpush1.msra.mxu0 0.0
    %v9971 = vand.u32 %v5946, 4294901760
    %v9972 = vsub.f32 %v5946, %v9971
    %9973 = vmatprep.subr.mxu0 %v9972
    %v9974 = vand.u32 %v5945, 4294901760
    %v9975 = vsub.f32 %v5945, %v9974
    %9976 = vmatpush1.msra.mxu0 %v9975
    %v9977 = vand.u32 %v5930, 4294901760
    %v9978 = vsub.f32 %v5930, %v9977
    %9979 = vmatprep.subr.mxu0 %v9978
    %v9980 = vand.u32 %v5929, 4294901760
    %v9981 = vsub.f32 %v5929, %v9980
    %9982 = vmatpush1.msra.mxu0 %v9981
    %v9983 = vand.u32 %v5914, 4294901760
    %v9984 = vsub.f32 %v5914, %v9983
    %9985 = vmatprep.subr.mxu0 %v9984
    %v9986 = vand.u32 %v5913, 4294901760
    %v9987 = vsub.f32 %v5913, %v9986
    %9988 = vmatpush1.msra.mxu0 %v9987
    %v9989 = vand.u32 %v5898, 4294901760
    %v9990 = vsub.f32 %v5898, %v9989
    %9991 = vmatprep.subr.mxu0 %v9990
    %v9992 = vand.u32 %v5897, 4294901760
    %v9993 = vsub.f32 %v5897, %v9992
    %9994 = vmatpush1.msra.mxu0 %v9993
    %9995 = vmatprep.subr.mxu0 0.0
    %9996 = vmatpush2.msra.mxu0 0.0
    %9997 = vmatprep.subr.mxu0 0.0
    %9998 = vmatpush2.msra.mxu0 0.0
    %9999 = vmatprep.subr.mxu0 0.0
    %10000 = vmatpush2.msra.mxu0 0.0
    %10001 = vmatprep.subr.mxu0 0.0
    %10002 = vmatpush2.msra.mxu0 0.0
    %10003 = vmatprep.subr.mxu0 0.0
    %10004 = vmatpush2.msra.mxu0 0.0
    %10005 = vmatprep.subr.mxu0 0.0
    %10006 = vmatpush2.msra.mxu0 0.0
    %10007 = vmatprep.subr.mxu0 0.0
    %10008 = vmatpush2.msra.mxu0 0.0
    %10009 = vmatprep.subr.mxu0 0.0
    %10010 = vmatpush2.msra.mxu0 0.0
    %10011 = vmatprep.subr.mxu0 0.0
    %10012 = vmatpush2.msra.mxu0 0.0
    %10013 = vmatprep.subr.mxu0 0.0
    %10014 = vmatpush2.msra.mxu0 0.0
    %10015 = vmatprep.subr.mxu0 0.0
    %10016 = vmatpush2.msra.mxu0 0.0
    %10017 = vmatprep.subr.mxu0 0.0
    %10018 = vmatpush2.msra.mxu0 0.0
    %10019 = vmatprep.subr.mxu0 0.0
    %10020 = vmatpush2.msra.mxu0 0.0
    %10021 = vmatprep.subr.mxu0 0.0
    %10022 = vmatpush2.msra.mxu0 0.0
    %10023 = vmatprep.subr.mxu0 0.0
    %10024 = vmatpush2.msra.mxu0 0.0
    %10025 = vmatprep.subr.mxu0 0.0
    %10026 = vmatpush2.msra.mxu0 0.0
    %10027 = vmatprep.mubr.f32.mxu0 0.0
    %v10028 = vand.u32 %v5948, 4294901760
    %v10029 = vsub.f32 %v5948, %v10028
    %10030 = vmatmul.mubr.f32.gmra.mxu0 %v10029
    %v10031 = vpop.f32.mrf.mxu0
    %v10032 = vadd.f32 %v9943, %v10031
    %v10033 = vpop.f32.mrf.mxu0
    %v10034 = vadd.f32 %v9945, %v10033
    %10035 = vdwg.mxu0
    %10036 = vmatprep.subr.mxu0 0.0
    %10037 = vmatpush1.msra.mxu0 0.0
    %10038 = vmatprep.subr.mxu0 0.0
    %10039 = vmatpush1.msra.mxu0 0.0
    %10040 = vmatprep.subr.mxu0 0.0
    %10041 = vmatpush1.msra.mxu0 0.0
    %10042 = vmatprep.subr.mxu0 0.0
    %10043 = vmatpush1.msra.mxu0 0.0
    %10044 = vmatprep.subr.mxu0 0.0
    %10045 = vmatpush1.msra.mxu0 0.0
    %10046 = vmatprep.subr.mxu0 0.0
    %10047 = vmatpush1.msra.mxu0 0.0
    %10048 = vmatprep.subr.mxu0 0.0
    %10049 = vmatpush1.msra.mxu0 0.0
    %10050 = vmatprep.subr.mxu0 0.0
    %10051 = vmatpush1.msra.mxu0 0.0
    %10052 = vmatprep.subr.mxu0 0.0
    %10053 = vmatpush1.msra.mxu0 0.0
    %10054 = vmatprep.subr.mxu0 0.0
    %10055 = vmatpush1.msra.mxu0 0.0
    %10056 = vmatprep.subr.mxu0 0.0
    %10057 = vmatpush1.msra.mxu0 0.0
    %10058 = vmatprep.subr.mxu0 0.0
    %10059 = vmatpush1.msra.mxu0 0.0
    %v10060 = vand.u32 %v5946, 4294901760
    %10061 = vmatprep.subr.mxu0 %v10060
    %v10062 = vand.u32 %v5945, 4294901760
    %10063 = vmatpush1.msra.mxu0 %v10062
    %v10064 = vand.u32 %v5930, 4294901760
    %10065 = vmatprep.subr.mxu0 %v10064
    %v10066 = vand.u32 %v5929, 4294901760
    %10067 = vmatpush1.msra.mxu0 %v10066
    %v10068 = vand.u32 %v5914, 4294901760
    %10069 = vmatprep.subr.mxu0 %v10068
    %v10070 = vand.u32 %v5913, 4294901760
    %10071 = vmatpush1.msra.mxu0 %v10070
    %v10072 = vand.u32 %v5898, 4294901760
    %10073 = vmatprep.subr.mxu0 %v10072
    %v10074 = vand.u32 %v5897, 4294901760
    %10075 = vmatpush1.msra.mxu0 %v10074
    %10076 = vmatprep.subr.mxu0 0.0
    %10077 = vmatpush2.msra.mxu0 0.0
    %10078 = vmatprep.subr.mxu0 0.0
    %10079 = vmatpush2.msra.mxu0 0.0
    %10080 = vmatprep.subr.mxu0 0.0
    %10081 = vmatpush2.msra.mxu0 0.0
    %10082 = vmatprep.subr.mxu0 0.0
    %10083 = vmatpush2.msra.mxu0 0.0
    %10084 = vmatprep.subr.mxu0 0.0
    %10085 = vmatpush2.msra.mxu0 0.0
    %10086 = vmatprep.subr.mxu0 0.0
    %10087 = vmatpush2.msra.mxu0 0.0
    %10088 = vmatprep.subr.mxu0 0.0
    %10089 = vmatpush2.msra.mxu0 0.0
    %10090 = vmatprep.subr.mxu0 0.0
    %10091 = vmatpush2.msra.mxu0 0.0
    %10092 = vmatprep.subr.mxu0 0.0
    %10093 = vmatpush2.msra.mxu0 0.0
    %10094 = vmatprep.subr.mxu0 0.0
    %10095 = vmatpush2.msra.mxu0 0.0
    %10096 = vmatprep.subr.mxu0 0.0
    %10097 = vmatpush2.msra.mxu0 0.0
    %10098 = vmatprep.subr.mxu0 0.0
    %10099 = vmatpush2.msra.mxu0 0.0
    %10100 = vmatprep.subr.mxu0 0.0
    %10101 = vmatpush2.msra.mxu0 0.0
    %10102 = vmatprep.subr.mxu0 0.0
    %10103 = vmatpush2.msra.mxu0 0.0
    %10104 = vmatprep.subr.mxu0 0.0
    %10105 = vmatpush2.msra.mxu0 0.0
    %10106 = vmatprep.subr.mxu0 0.0
    %10107 = vmatpush2.msra.mxu0 0.0
    %10108 = vmatprep.mubr.f32.mxu0 0.0
    %v10109 = vand.u32 %v5948, 4294901760
    %v10110 = vsub.f32 %v5948, %v10109
    %v10111 = vand.u32 %v10110, 4294901760
    %10112 = vmatmul.mubr.f32.gmra.mxu0 %v10111
    %v10113 = vpop.f32.mrf.mxu0
    %v10114 = vadd.f32 %v10032, %v10113
    %v10115 = vpop.f32.mrf.mxu0
    %v10116 = vadd.f32 %v10034, %v10115
    %10117 = vdwg.mxu0
    %10118 = vmatprep.subr.mxu0 0.0
    %10119 = vmatpush1.msra.mxu0 0.0
    %10120 = vmatprep.subr.mxu0 0.0
    %10121 = vmatpush1.msra.mxu0 0.0
    %10122 = vmatprep.subr.mxu0 0.0
    %10123 = vmatpush1.msra.mxu0 0.0
    %10124 = vmatprep.subr.mxu0 0.0
    %10125 = vmatpush1.msra.mxu0 0.0
    %10126 = vmatprep.subr.mxu0 0.0
    %10127 = vmatpush1.msra.mxu0 0.0
    %10128 = vmatprep.subr.mxu0 0.0
    %10129 = vmatpush1.msra.mxu0 0.0
    %10130 = vmatprep.subr.mxu0 0.0
    %10131 = vmatpush1.msra.mxu0 0.0
    %10132 = vmatprep.subr.mxu0 0.0
    %10133 = vmatpush1.msra.mxu0 0.0
    %10134 = vmatprep.subr.mxu0 0.0
    %10135 = vmatpush1.msra.mxu0 0.0
    %10136 = vmatprep.subr.mxu0 0.0
    %10137 = vmatpush1.msra.mxu0 0.0
    %10138 = vmatprep.subr.mxu0 0.0
    %10139 = vmatpush1.msra.mxu0 0.0
    %10140 = vmatprep.subr.mxu0 0.0
    %10141 = vmatpush1.msra.mxu0 0.0
    %v10142 = vand.u32 %v5946, 4294901760
    %v10143 = vsub.f32 %v5946, %v10142
    %v10144 = vand.u32 %v10143, 4294901760
    %10145 = vmatprep.subr.mxu0 %v10144
    %v10146 = vand.u32 %v5945, 4294901760
    %v10147 = vsub.f32 %v5945, %v10146
    %v10148 = vand.u32 %v10147, 4294901760
    %10149 = vmatpush1.msra.mxu0 %v10148
    %v10150 = vand.u32 %v5930, 4294901760
    %v10151 = vsub.f32 %v5930, %v10150
    %v10152 = vand.u32 %v10151, 4294901760
    %10153 = vmatprep.subr.mxu0 %v10152
    %v10154 = vand.u32 %v5929, 4294901760
    %v10155 = vsub.f32 %v5929, %v10154
    %v10156 = vand.u32 %v10155, 4294901760
    %10157 = vmatpush1.msra.mxu0 %v10156
    %v10158 = vand.u32 %v5914, 4294901760
    %v10159 = vsub.f32 %v5914, %v10158
    %v10160 = vand.u32 %v10159, 4294901760
    %10161 = vmatprep.subr.mxu0 %v10160
    %v10162 = vand.u32 %v5913, 4294901760
    %v10163 = vsub.f32 %v5913, %v10162
    %v10164 = vand.u32 %v10163, 4294901760
    %10165 = vmatpush1.msra.mxu0 %v10164
    %v10166 = vand.u32 %v5898, 4294901760
    %v10167 = vsub.f32 %v5898, %v10166
    %v10168 = vand.u32 %v10167, 4294901760
    %10169 = vmatprep.subr.mxu0 %v10168
    %v10170 = vand.u32 %v5897, 4294901760
    %v10171 = vsub.f32 %v5897, %v10170
    %v10172 = vand.u32 %v10171, 4294901760
    %10173 = vmatpush1.msra.mxu0 %v10172
    %10174 = vmatprep.subr.mxu0 0.0
    %10175 = vmatpush2.msra.mxu0 0.0
    %10176 = vmatprep.subr.mxu0 0.0
    %10177 = vmatpush2.msra.mxu0 0.0
    %10178 = vmatprep.subr.mxu0 0.0
    %10179 = vmatpush2.msra.mxu0 0.0
    %10180 = vmatprep.subr.mxu0 0.0
    %10181 = vmatpush2.msra.mxu0 0.0
    %10182 = vmatprep.subr.mxu0 0.0
    %10183 = vmatpush2.msra.mxu0 0.0
    %10184 = vmatprep.subr.mxu0 0.0
    %10185 = vmatpush2.msra.mxu0 0.0
    %10186 = vmatprep.subr.mxu0 0.0
    %10187 = vmatpush2.msra.mxu0 0.0
    %10188 = vmatprep.subr.mxu0 0.0
    %10189 = vmatpush2.msra.mxu0 0.0
    %10190 = vmatprep.subr.mxu0 0.0
    %10191 = vmatpush2.msra.mxu0 0.0
    %10192 = vmatprep.subr.mxu0 0.0
    %10193 = vmatpush2.msra.mxu0 0.0
    %10194 = vmatprep.subr.mxu0 0.0
    %10195 = vmatpush2.msra.mxu0 0.0
    %10196 = vmatprep.subr.mxu0 0.0
    %10197 = vmatpush2.msra.mxu0 0.0
    %10198 = vmatprep.subr.mxu0 0.0
    %10199 = vmatpush2.msra.mxu0 0.0
    %10200 = vmatprep.subr.mxu0 0.0
    %10201 = vmatpush2.msra.mxu0 0.0
    %10202 = vmatprep.subr.mxu0 0.0
    %10203 = vmatpush2.msra.mxu0 0.0
    %10204 = vmatprep.subr.mxu0 0.0
    %10205 = vmatpush2.msra.mxu0 0.0
    %10206 = vmatprep.mubr.f32.mxu0 0.0
    %v10207 = vand.u32 %v5948, 4294901760
    %10208 = vmatmul.mubr.f32.gmra.mxu0 %v10207
    %v10209 = vpop.f32.mrf.mxu0
    %v10210 = vadd.f32 %v10114, %v10209
    %v10211 = vpop.f32.mrf.mxu0
    %v10212 = vadd.f32 %v10116, %v10211
    %10213 = vdwg.mxu0
    %10214 = vmatprep.subr.mxu0 0.0
    %10215 = vmatpush1.msra.mxu0 0.0
    %10216 = vmatprep.subr.mxu0 0.0
    %10217 = vmatpush1.msra.mxu0 0.0
    %10218 = vmatprep.subr.mxu0 0.0
    %10219 = vmatpush1.msra.mxu0 0.0
    %10220 = vmatprep.subr.mxu0 0.0
    %10221 = vmatpush1.msra.mxu0 0.0
    %10222 = vmatprep.subr.mxu0 0.0
    %10223 = vmatpush1.msra.mxu0 0.0
    %10224 = vmatprep.subr.mxu0 0.0
    %10225 = vmatpush1.msra.mxu0 0.0
    %10226 = vmatprep.subr.mxu0 0.0
    %10227 = vmatpush1.msra.mxu0 0.0
    %10228 = vmatprep.subr.mxu0 0.0
    %10229 = vmatpush1.msra.mxu0 0.0
    %10230 = vmatprep.subr.mxu0 0.0
    %10231 = vmatpush1.msra.mxu0 0.0
    %10232 = vmatprep.subr.mxu0 0.0
    %10233 = vmatpush1.msra.mxu0 0.0
    %10234 = vmatprep.subr.mxu0 0.0
    %10235 = vmatpush1.msra.mxu0 0.0
    %10236 = vmatprep.subr.mxu0 0.0
    %10237 = vmatpush1.msra.mxu0 0.0
    %v10238 = vand.u32 %v5946, 4294901760
    %10239 = vmatprep.subr.mxu0 %v10238
    %v10240 = vand.u32 %v5945, 4294901760
    %10241 = vmatpush1.msra.mxu0 %v10240
    %v10242 = vand.u32 %v5930, 4294901760
    %10243 = vmatprep.subr.mxu0 %v10242
    %v10244 = vand.u32 %v5929, 4294901760
    %10245 = vmatpush1.msra.mxu0 %v10244
    %v10246 = vand.u32 %v5914, 4294901760
    %10247 = vmatprep.subr.mxu0 %v10246
    %v10248 = vand.u32 %v5913, 4294901760
    %10249 = vmatpush1.msra.mxu0 %v10248
    %v10250 = vand.u32 %v5898, 4294901760
    %10251 = vmatprep.subr.mxu0 %v10250
    %v10252 = vand.u32 %v5897, 4294901760
    %10253 = vmatpush1.msra.mxu0 %v10252
    %10254 = vmatprep.subr.mxu0 0.0
    %10255 = vmatpush2.msra.mxu0 0.0
    %10256 = vmatprep.subr.mxu0 0.0
    %10257 = vmatpush2.msra.mxu0 0.0
    %10258 = vmatprep.subr.mxu0 0.0
    %10259 = vmatpush2.msra.mxu0 0.0
    %10260 = vmatprep.subr.mxu0 0.0
    %10261 = vmatpush2.msra.mxu0 0.0
    %10262 = vmatprep.subr.mxu0 0.0
    %10263 = vmatpush2.msra.mxu0 0.0
    %10264 = vmatprep.subr.mxu0 0.0
    %10265 = vmatpush2.msra.mxu0 0.0
    %10266 = vmatprep.subr.mxu0 0.0
    %10267 = vmatpush2.msra.mxu0 0.0
    %10268 = vmatprep.subr.mxu0 0.0
    %10269 = vmatpush2.msra.mxu0 0.0
    %10270 = vmatprep.subr.mxu0 0.0
    %10271 = vmatpush2.msra.mxu0 0.0
    %10272 = vmatprep.subr.mxu0 0.0
    %10273 = vmatpush2.msra.mxu0 0.0
    %10274 = vmatprep.subr.mxu0 0.0
    %10275 = vmatpush2.msra.mxu0 0.0
    %10276 = vmatprep.subr.mxu0 0.0
    %10277 = vmatpush2.msra.mxu0 0.0
    %10278 = vmatprep.subr.mxu0 0.0
    %10279 = vmatpush2.msra.mxu0 0.0
    %10280 = vmatprep.subr.mxu0 0.0
    %10281 = vmatpush2.msra.mxu0 0.0
    %10282 = vmatprep.subr.mxu0 0.0
    %10283 = vmatpush2.msra.mxu0 0.0
    %10284 = vmatprep.subr.mxu0 0.0
    %10285 = vmatpush2.msra.mxu0 0.0
    %10286 = vmatprep.mubr.f32.mxu0 0.0
    %v10287 = vand.u32 %v5948, 4294901760
    %10288 = vmatmul.mubr.f32.gmra.mxu0 %v10287
    %v10289 = vpop.f32.mrf.mxu0
    %v10290 = vadd.f32 %v10210, %v10289
    %v10291 = vpop.f32.mrf.mxu0
    %v10292 = vadd.f32 %v10212, %v10291
    %10293 = vdwg.mxu0
    %v10310 = vcombine.low %v6489, %v6491
    %v10311 = vcombine.low %v7032, %v7034
    %v10312 = vcombine.low %v7575, %v7577
    %v10313 = vcombine.low %v8118, %v8120
    %v10315 = vunpack.c.l.s4 1966171168
    %v10316 = vunpack.c.0.s8 %v10315
    %v10317 = vlaneseq
    %v10318 = vshrl.u32 %v10317, 7
    %v10319 = vsub.s32 %v10316, %v10318
    %v10320 = vrot.slane %v10310, %v10319
    %v10322 = vunpack.c.l.s4 1966171168
    %v10323 = vunpack.c.0.s8 %v10322
    %v10324 = vlaneseq
    %v10325 = vshrl.u32 %v10324, 7
    %v10326 = vsub.s32 %v10323, %v10325
    %v10327 = vrot.slane %v10311, %v10326
    %v10329 = vunpack.c.l.s4 1966171168
    %v10330 = vunpack.c.0.s8 %v10329
    %v10331 = vlaneseq
    %v10332 = vshrl.u32 %v10331, 7
    %v10333 = vsub.s32 %v10330, %v10332
    %v10334 = vrot.slane %v10312, %v10333
    %v10336 = vunpack.c.l.s4 1966171168
    %v10337 = vunpack.c.0.s8 %v10336
    %v10338 = vlaneseq
    %v10339 = vshrl.u32 %v10338, 7
    %v10340 = vsub.s32 %v10337, %v10339
    %v10341 = vrot.slane %v10313, %v10340
    %v10342 = vcombine.low %v10320, %v10327
    %v10343 = vcombine.low %v10334, %v10341
    %v10345 = vunpack.c.l.s4 1966171168
    %v10346 = vunpack.c.0.s8 %v10345
    %v10347 = vlaneseq
    %v10348 = vshrl.u32 %v10347, 7
    %v10349 = vsub.s32 %v10346, %v10348
    %v10350 = vrot.slane %v10342, %v10349
    %v10352 = vunpack.c.l.s4 1966171168
    %v10353 = vunpack.c.0.s8 %v10352
    %v10354 = vlaneseq
    %v10355 = vshrl.u32 %v10354, 7
    %v10356 = vsub.s32 %v10353, %v10355
    %v10357 = vrot.slane %v10343, %v10356
    %v10358 = vcombine.low %v10350, %v10357
    %v10359 = vcombine.low %v8661, %v8663
    %v10360 = vcombine.low %v9204, %v9206
    %v10361 = vcombine.low %v9747, %v9749
    %v10362 = vcombine.low %v10290, %v10292
    %v10364 = vunpack.c.l.s4 1966171168
    %v10365 = vunpack.c.0.s8 %v10364
    %v10366 = vlaneseq
    %v10367 = vshrl.u32 %v10366, 7
    %v10368 = vsub.s32 %v10365, %v10367
    %v10369 = vrot.slane %v10359, %v10368
    %v10371 = vunpack.c.l.s4 1966171168
    %v10372 = vunpack.c.0.s8 %v10371
    %v10373 = vlaneseq
    %v10374 = vshrl.u32 %v10373, 7
    %v10375 = vsub.s32 %v10372, %v10374
    %v10376 = vrot.slane %v10360, %v10375
    %v10378 = vunpack.c.l.s4 1966171168
    %v10379 = vunpack.c.0.s8 %v10378
    %v10380 = vlaneseq
    %v10381 = vshrl.u32 %v10380, 7
    %v10382 = vsub.s32 %v10379, %v10381
    %v10383 = vrot.slane %v10361, %v10382
    %v10385 = vunpack.c.l.s4 1966171168
    %v10386 = vunpack.c.0.s8 %v10385
    %v10387 = vlaneseq
    %v10388 = vshrl.u32 %v10387, 7
    %v10389 = vsub.s32 %v10386, %v10388
    %v10390 = vrot.slane %v10362, %v10389
    %v10391 = vcombine.low %v10369, %v10376
    %v10392 = vcombine.low %v10383, %v10390
    %v10394 = vunpack.c.l.s4 1966171168
    %v10395 = vunpack.c.0.s8 %v10394
    %v10396 = vlaneseq
    %v10397 = vshrl.u32 %v10396, 7
    %v10398 = vsub.s32 %v10395, %v10397
    %v10399 = vrot.slane %v10391, %v10398
    %v10401 = vunpack.c.l.s4 1966171168
    %v10402 = vunpack.c.0.s8 %v10401
    %v10403 = vlaneseq
    %v10404 = vshrl.u32 %v10403, 7
    %v10405 = vsub.s32 %v10402, %v10404
    %v10406 = vrot.slane %v10392, %v10405
    %v10407 = vcombine.low %v10399, %v10406
    %10410 = vst [vmem:[#allocation2] sm:$0xff] %v10358
    %10411 = vst [vmem:[#allocation2 + $0x8] sm:$0xff] %v10407
    // Predicated region
    $region22: #{value_layer_forward.1} parent=1 // pred_check
      _
    $region23: #{value_layer_forward.1} parent=1 // pred_check_branch
      %10413 = sbr.rel (0) target = $region25
    $region24: #{value_layer_forward.1} parent=1 // pred_region
      %s10415 = ssub.s32 256, 256
      %10416 = vsyncadd [#allocation3], %s10415
      %s10418 = sshll.u32 [#allocation2], 4
      %s10419 = int_to_ptr.vmem [resolvable:$true] %s10418
      %10421 = dma.vmem_to_hbm [thread:$0]  %s10419, 256, %s5, [#allocation3]
    $region25: #{value_layer_forward.1} parent=1 // pred_fallthru
      _
    // Predicated region
    $region26: #{value_layer_forward.1} parent=1 // pred_check
      _
    $region27: #{value_layer_forward.1} parent=1 // pred_check_branch
      %10423 = sbr.rel (0) target = $region29
    $region28: #{value_layer_forward.1} parent=1 // pred_region
      %10424 = dma.done [#allocation3], 256
    $region29: #{value_layer_forward.1} parent=1 // pred_fallthru
      _
    %10425 = vsyncpa [#allocation3], 1

</llo_original>
